<compile_context>
chip_gen: v7x
topology: tpu7x:2x2x1
jax: 0.10.0
libtpu: 0.0.40
codegen_flags: <defaults>
</compile_context>

<pallas_src>
import jax
import jax.numpy as jnp
from jax.experimental import pallas as pl
from jax.experimental.pallas import tpu as pltpu


_LANES = 128                    # lane-dense last dim -> full-width vector stores
_MAX_TILE_ROWS = 8192           # 8192 * 128 * 4B = 4 MiB per f32 buffer
_OVERFLOW_T = 20.0              # tanh(softplus(y)) == 1.0 to f32 precision for y > 20
_FAST_PATH_BYTES = 256 * 1024   # below this, fused XLA beats pallas_call overhead


# ---------------------------------------------------------------------------
# Pallas kernel
# ---------------------------------------------------------------------------
def _mish_kernel(x_ref, o_ref):
    y = x_ref[...].astype(jnp.float32)
    # mish(y) = y * tanh(softplus(y)) = y * n / (n + 2),  n = e*(e+2), e = exp(y)
    e = jnp.exp(jnp.minimum(y, _OVERFLOW_T))          # clamp so exp never overflows
    n = e * (e + 2.0)
    m = y * n * pl.reciprocal(n + 2.0, approx=True)   # EUP approximate reciprocal
    # Clamp + where guard are paired: removing either reintroduces inf*0 -> NaN.
    o_ref[...] = jnp.where(y > _OVERFLOW_T, y, m).astype(o_ref.dtype)


# ---------------------------------------------------------------------------
# Wrappers
# ---------------------------------------------------------------------------
def _round_up(v, m):
    return -(-v // m) * m


def _mish_jnp(x):
    """Pure-JAX Mish (fast path for small inputs; also the reference)."""
    xf = x.astype(jnp.float32)
    return (xf * jnp.tanh(jax.nn.softplus(xf))).astype(x.dtype)


def mish(x):
    """Elementwise Mish, any shape/dtype; computed in f32, returned in x.dtype."""
    orig_shape = x.shape
    dtype = x.dtype
    n = x.size
    itemsize = jnp.dtype(dtype).itemsize

    # Tiny tensors: pallas_call launch + plumbing overhead dominates; let XLA fuse.
    if n * itemsize < _FAST_PATH_BYTES:
        return _mish_jnp(x)

    # Lane-dense 2-D view: [rows, 128]. Ragged final grid block is masked by
    # Pallas; padding is only needed when n is not a multiple of 128.
    rows = pl.cdiv(n, _LANES)
    # >= 2 grid steps so both v7x TensorCores get work; multiple of 8 sublanes.
    tile_rows = min(_MAX_TILE_ROWS, _round_up(pl.cdiv(rows, 2), 8))
    grid = (pl.cdiv(rows, tile_rows),)

    padded = rows * _LANES
    flat = x.reshape(-1)
    if padded != n:                      # rare path: extra HBM pass for the pad
        flat = jnp.pad(flat, (0, padded - n))
    x2d = flat.reshape(rows, _LANES)

    cost = pl.CostEstimate(
        flops=10 * n,
        transcendentals=2 * n,
        bytes_accessed=2 * n * itemsize,
    )

    out2d = pl.pallas_call(
        _mish_kernel,
        out_shape=jax.ShapeDtypeStruct((rows, _LANES), dtype),
        grid=grid,
        in_specs=[pl.BlockSpec((tile_rows, _LANES), lambda i: (i, 0))],
        out_specs=pl.BlockSpec((tile_rows, _LANES), lambda i: (i, 0)),
        compiler_params=pltpu.CompilerParams(
            dimension_semantics=("parallel",),   # shards steps across v7x's 2 TCs
            vmem_limit_bytes=32 * 1024 * 1024,   # ~16 MiB footprint; fits v7x 64 MiB
        ),
        cost_estimate=cost,
    )(x2d)

    if padded != n:                      # rare path: extra HBM pass for the slice
        return out2d.reshape(-1)[:n].reshape(orig_shape)
    return out2d.reshape(orig_shape)


# ---------------------------------------------------------------------------
# Pure-JAX reference (matches the PyTorch module: x * tanh(softplus(x)))
# ---------------------------------------------------------------------------
def _mish_ref(x):
    xf = x.astype(jnp.float32)
    return (xf * jnp.tanh(jax.nn.softplus(xf))).astype(x.dtype)


def _assert_close(a, b, tol=2e-2):
    err = jnp.max(jnp.abs(a.astype(jnp.float32) - b.astype(jnp.float32))
                  / (1.0 + jnp.abs(b.astype(jnp.float32))))
    assert bool(err < tol), float(err)


# ---------------------------------------------------------------------------
if __name__ == "__main__":
    key = jax.random.PRNGKey(0)
    k1, k2, k3, k4 = jax.random.split(key, 4)

    # Small NCHW feature map (module's typical input) -> small-size fast path.
    x = jax.random.normal(k1, (2, 4, 16, 16), jnp.float32)
    y = jax.block_until_ready(mish(x))
    assert y.shape == x.shape, y.shape
    assert bool(jnp.all(jnp.isfinite(y)))
    _assert_close(y, _mish_ref(x))

    # Larger input -> Pallas path, zero-copy (n % 128 == 0), multi-step grid.
    x_big = jax.random.normal(k2, (4, 64, 64, 64), jnp.float32)
    y_big = jax.block_until_ready(mish(x_big))
    assert y_big.shape == x_big.shape
    assert bool(jnp.all(jnp.isfinite(y_big)))
    _assert_close(y_big, _mish_ref(x_big))

    # Extreme-magnitude values through the Pallas path (overflow/underflow guard).
    x_ext = jax.random.normal(k3, (256, 1024), jnp.float32) * 30.0
    y_ext = jax.block_until_ready(mish(x_ext))
    assert bool(jnp.all(jnp.isfinite(y_ext)))
    _assert_close(y_ext, _mish_ref(x_ext))

    # Ragged size (n % 128 != 0, grid doesn't divide evenly) -> pad + masked block.
    x_rag = jax.random.normal(k4, (257, 1000), jnp.float32)
    y_rag = jax.block_until_ready(mish(x_rag))
    assert y_rag.shape == x_rag.shape
    assert bool(jnp.all(jnp.isfinite(y_rag)))
    _assert_close(y_rag, _mish_ref(x_rag))

    # Small extreme-value vector via fast path (semantics sanity).
    x_s = jnp.array([-100.0, -20.0, -1.0, 0.0, 1.0, 19.0, 25.0, 100.0], jnp.float32)
    y_s = jax.block_until_ready(mish(x_s))
    assert bool(jnp.all(jnp.isfinite(y_s)))
    _assert_close(y_s, _mish_ref(x_s))

    print("KERNEL_OK")
</pallas_src>

<mosaic_0001>
module attributes {stable_mosaic.version = 11 : i64} {
  func.func @_mish_kernel(%arg0: i32, %arg1: memref<4096x128xf32, #tpu.memory_space<vmem>>, %arg2: memref<4096x128xf32, #tpu.memory_space<vmem>>) attributes {dimension_semantics = [#tpu.dimension_semantics<parallel>], iteration_bounds = array<i64: 2>, scalar_prefetch = 0 : i64, scratch_operands = 0 : i64, tpu.core_type = #tpu.core_type<tc>, window_params = [{transform_indices = @transform_0, window_bounds = array<i64: 4096, 128>}, {transform_indices = @transform_1, window_bounds = array<i64: 4096, 128>}]} {
    %c0 = arith.constant 0 : index
    %c0_0 = arith.constant 0 : index
    %0 = vector.load %arg1[%c0, %c0_0] : memref<4096x128xf32, #tpu.memory_space<vmem>>, vector<4096x128xf32>
    %cst = arith.constant 2.000000e+01 : f32
    %1 = vector.broadcast %cst : f32 to vector<4096x128xf32>
    %2 = arith.minimumf %0, %1 : vector<4096x128xf32>
    %3 = math.exp %2 : vector<4096x128xf32>
    %cst_1 = arith.constant 2.000000e+00 : f32
    %4 = vector.broadcast %cst_1 : f32 to vector<4096x128xf32>
    %5 = arith.addf %3, %4 : vector<4096x128xf32>
    %6 = arith.mulf %3, %5 : vector<4096x128xf32>
    %7 = arith.mulf %0, %6 : vector<4096x128xf32>
    %cst_2 = arith.constant 2.000000e+00 : f32
    %8 = vector.broadcast %cst_2 : f32 to vector<4096x128xf32>
    %9 = arith.addf %6, %8 : vector<4096x128xf32>
    %10 = tpu.reciprocal %9 {approx = true} : vector<4096x128xf32> -> vector<4096x128xf32>
    %11 = arith.mulf %7, %10 : vector<4096x128xf32>
    %cst_3 = arith.constant 2.000000e+01 : f32
    %12 = vector.broadcast %cst_3 : f32 to vector<4096x128xf32>
    %13 = arith.cmpf ogt, %0, %12 : vector<4096x128xf32>
    %14 = arith.select %13, %0, %11 : vector<4096x128xi1>, vector<4096x128xf32>
    %c0_4 = arith.constant 0 : index
    %c0_5 = arith.constant 0 : index
    %15 = vector.load %arg2[%c0_4, %c0_5] : memref<4096x128xf32, #tpu.memory_space<vmem>>, vector<4096x128xf32>
    tpu.vector_store %arg2[%c0_4, %c0_5], %14 {strides = array<i32>} : memref<4096x128xf32, #tpu.memory_space<vmem>>, vector<4096x128xf32>,
    return
  }
  func.func @transform_0(%arg0: i32) -> (i32, i32) {
    %c0_i32 = arith.constant 0 : i32
    %c0_i32_0 = arith.constant 0 : i32
    return %arg0, %c0_i32 : i32, i32
  }
  func.func @transform_1(%arg0: i32) -> (i32, i32) {
    %c0_i32 = arith.constant 0 : i32
    %c0_i32_0 = arith.constant 0 : i32
    return %arg0, %c0_i32 : i32, i32
  }
}

</mosaic_0001>

<llo_original>
// kernel: tpu_custom_call.1
$region0: #{tpu_custom_call.1}
  #allocation0 [shape = 'u32[]', space=smem, size = 0x4, offset = 0x4, fixed_abs, tag = 'smem constant byte address 0x4 - core index']
  #allocation1 [shape = 'u32[144,128]{1,0:T(1,128)}', space=vmem, size = 0x12000, scoped, tag = 'internal scratch']
  %s0 = inlined_call_operand.hbm [shape: f32[8192,128], index: 0, kind: input, shape index: {}]
  %s1 = inlined_call_operand.hbm [shape: f32[8192,128], index: 1, kind: output, shape index: {}]
  %s2 = sld [smem:[#allocation0]]
  $region41: #{tpu_custom_call.1} parent=0
    _
  %s4 = ssub.s32 1, %s2
  %s5 = scalar_select 0, %s4, %s2
  $region1: #{tpu_custom_call.1} parent=0
    #allocation2 [shape = 'u8[4194304]{0}', space=vmem, size = 0x400000, scoped, tag = 'input window, operand 0']
    #allocation3 [shape = 's32[2]{0}', space=sflag, size = 0x8, scoped, tag = 'scoped memory for tpu_custom_call.1']
    #allocation4 [shape = 's32[2]{0}', space=sflag, size = 0x8, scoped, tag = 'scoped memory for tpu_custom_call.1']
    #allocation5 [shape = 'u8[4194304]{0}', space=vmem, size = 0x400000, scoped, tag = 'output window, operand 0']
    %6 = vsyncpa [#allocation3], 0
    %s7 = scalar_lea.sflag [#allocation3], 1
    %8 = vsyncpa %s7, 0
    %9 = vsyncpa [#allocation4], 0
    %s10 = scalar_lea.sflag [#allocation4], 1
    %11 = vsyncpa %s10, 0
    loop: start=0, step=1, limit=4
    $region2: #{tpu_custom_call.1} parent=1 // loop_pre_header
      _
    $region3: #{tpu_custom_call.1} parent=1 // loop_header
      %s13 = sphi 0, %s17
      %p14 = scmp.ge.s32.totalorder %s13, 4
      %s23 = sphi 0, %s25
      %s26 = sphi 0, %s23
      %s27 = sphi 0, %s26
      %s43 = sphi 0, %s27
      %s49 = sphi 0, %s51
      %s52 = sphi 0, %s49
      %s53 = sphi 0, %s52
      %s69 = sphi 0, %s53
    $region4: #{tpu_custom_call.1} parent=1 // loop_header_branch
      %16 = sbr.rel (%p14) target = $region8
    $region5: #{tpu_custom_call.1} parent=1 // loop_body
      %s18 = ssub.s32 %s13, 1
      %s19 = ssub.s32 %s13, 2
      %s20 = sadd.s32 %s13, 1
      %s21 = ssub.s32 %s13, %s20
      %p22 = scmp.eq.s32.totalorder %s21, 0
      %s24 = sadd.s32 %s23, 1
      %s25 = scalar_select %p22, %s23, %s24
      %p28 = pneg %p22
      %p29 = scmp.eq.s32.totalorder %s13, 1
      %p30 = por %p28, %p29
      %p31 = scmp.ne.s32.totalorder %s23, %s26
      %p32 = scmp.eq.s32.totalorder %s13, 0
      %p33 = por %p31, %p32
      %p34 = scmp.ne.s32.totalorder %s23, %s26
      %p35 = scmp.eq.s32.totalorder %s18, 1
      %p36 = por %p34, %p35
      %p37 = scmp.ne.s32.totalorder %s26, %s27
      %p38 = scmp.eq.s32.totalorder %s18, 0
      %p39 = por %p37, %p38
      %p40 = scmp.ne.s32.totalorder %s26, %s27
      %p41 = scmp.eq.s32.totalorder %s19, 1
      %p42 = por %p40, %p41
      %p44 = scmp.ne.s32.totalorder %s27, %s43
      %p45 = scmp.eq.s32.totalorder %s19, 0
      %p46 = por %p44, %p45
      %s47 = ssub.s32 %s13, %s20
      %p48 = scmp.eq.s32.totalorder %s47, 0
      %s50 = sadd.s32 %s49, 1
      %s51 = scalar_select %p48, %s49, %s50
      %p54 = pneg %p48
      %p55 = scmp.eq.s32.totalorder %s13, 1
      %p56 = por %p54, %p55
      %p57 = scmp.ne.s32.totalorder %s49, %s52
      %p58 = scmp.eq.s32.totalorder %s13, 0
      %p59 = por %p57, %p58
      %p60 = scmp.ne.s32.totalorder %s49, %s52
      %p61 = scmp.eq.s32.totalorder %s18, 1
      %p62 = por %p60, %p61
      %p63 = scmp.ne.s32.totalorder %s52, %s53
      %p64 = scmp.eq.s32.totalorder %s18, 0
      %p65 = por %p63, %p64
      %p66 = scmp.ne.s32.totalorder %s52, %s53
      %p67 = scmp.eq.s32.totalorder %s19, 1
      %p68 = por %p66, %p67
      %p70 = scmp.ne.s32.totalorder %s53, %s69
      %p71 = scmp.eq.s32.totalorder %s19, 0
      %p72 = por %p70, %p71
      %p73 = scmp.le.s32.totalorder 1, %s13
      %p74 = scmp.lt.s32.totalorder %s13, 3
      %p75 = pnand %p73, %p74
      %p76 = pneg %p75
      // Predicated region
      $region9: #{tpu_custom_call.1} parent=5 // pred_check
        _
      $region10: #{tpu_custom_call.1} parent=5 // pred_check_branch
        %78 = sbr.rel (%p75) target = $region12
      $region11: #{tpu_custom_call.1} parent=5 // pred_region
        %s79 = ssub.s32 %s13, 1
      $region12: #{tpu_custom_call.1} parent=5 // pred_fallthru
        _
      %p80 = scmp.lt.s32.totalorder %s13, 2
      // Predicated region
      $region13: #{tpu_custom_call.1} parent=5 // pred_check
        %p81 = pneg %p80
      $region14: #{tpu_custom_call.1} parent=5 // pred_check_branch
        %83 = sbr.rel (%p81) target = $region16
      $region15: #{tpu_custom_call.1} parent=5 // pred_region
        // Predicated region
        $region17: #{tpu_custom_call.1} parent=15 // pred_check
          %p84 = pneg %p33
        $region18: #{tpu_custom_call.1} parent=15 // pred_check_branch
          %86 = sbr.rel (%p84) target = $region20
        $region19: #{tpu_custom_call.1} parent=15 // pred_region
          %s87 = sand.u32 %s23, 1
          %s88 = scalar_lea.sflag [#allocation3], %s87
          %s89 = sand.u32 %s23, 1
          %s90 = smul.addr %s89, 4096
          %s91 = scalar_lea.vmem [#allocation2], %s90
          %s92 = smul.u32 512, %s13
          %s94 = ssub.s32 65536, 65536
          %95 = vsyncadd %s88, %s94
          %s96 = smul.addr %s92, 128
          %s97 = scalar_lea.hbm %s0, %s96
          %s98 = sshll.u32 %s91, 4
          %s99 = int_to_ptr.vmem [resolvable:$true] %s98
          %104 = dma.hbm_to_vmem [thread:$0]  %s97, 65536, %s99, %s88, 128, 128, 8
        $region20: #{tpu_custom_call.1} parent=15 // pred_fallthru
          _
      $region16: #{tpu_custom_call.1} parent=5 // pred_fallthru
        _
      %p105 = scmp.le.s32.totalorder 1, %s13
      %p106 = scmp.lt.s32.totalorder %s13, 3
      %p107 = pnand %p105, %p106
      %p108 = pneg %p107
      // Predicated region
      $region21: #{tpu_custom_call.1} parent=5 // pred_check
        _
      $region22: #{tpu_custom_call.1} parent=5 // pred_check_branch
        %110 = sbr.rel (%p107) target = $region24
      $region23: #{tpu_custom_call.1} parent=5 // pred_region
        %s111 = ssub.s32 %s13, 1
        %s112 = sand.u32 %s26, 1
        %s113 = scalar_lea.sflag [#allocation3], %s112
        %s114 = sand.u32 %s26, 1
        %s115 = smul.addr %s114, 4096
        %s116 = scalar_lea.vmem [#allocation2], %s115
        // Predicated region
        $region25: #{tpu_custom_call.1} parent=23 // pred_check
          %p117 = pneg %p39
        $region26: #{tpu_custom_call.1} parent=23 // pred_check_branch
          %119 = sbr.rel (%p117) target = $region28
        $region27: #{tpu_custom_call.1} parent=23 // pred_region
          %120 = dma.done %s113, 65536
        $region28: #{tpu_custom_call.1} parent=23 // pred_fallthru
          _
        %s121 = sand.u32 %s26, 1
        %s122 = scalar_lea.sflag [#allocation3], %s121
        %s123 = sand.u32 %s26, 1
        %s124 = smul.addr %s123, 4096
        %s125 = scalar_lea.vmem [#allocation2], %s124
        %p126 = pneg %p39
        %p127 = pneg %p36
        %p128 = pneg %p65
        %p129 = pneg %p62
        %s130 = sand.u32 %s52, 1
        %s131 = scalar_lea.sflag [#allocation4], %s130
        %s132 = sand.u32 %s52, 1
        %s133 = smul.addr %s132, 4096
        %s134 = scalar_lea.vmem [#allocation5], %s133
        %s135 = smul.u32 512, %s18
        %s136 = smul.u32 512, %s18
        %v137 = vld [vmem:[%s116] sm:$0xff]
        %v138 = vld [vmem:[%s116 + $0x8] sm:$0xff]
        %v139 = vld [vmem:[%s116 + $0x10] sm:$0xff]
        %v140 = vld [vmem:[%s116 + $0x18] sm:$0xff]
        %v141 = vld [vmem:[%s116 + $0x20] sm:$0xff]
        %v142 = vld [vmem:[%s116 + $0x28] sm:$0xff]
        %v143 = vld [vmem:[%s116 + $0x30] sm:$0xff]
        %v144 = vld [vmem:[%s116 + $0x38] sm:$0xff]
        %v145 = vld [vmem:[%s116 + $0x40] sm:$0xff]
        %v146 = vld [vmem:[%s116 + $0x48] sm:$0xff]
        %v147 = vld [vmem:[%s116 + $0x50] sm:$0xff]
        %v148 = vld [vmem:[%s116 + $0x58] sm:$0xff]
        %v149 = vld [vmem:[%s116 + $0x60] sm:$0xff]
        %v150 = vld [vmem:[%s116 + $0x68] sm:$0xff]
        %v151 = vld [vmem:[%s116 + $0x70] sm:$0xff]
        %v152 = vld [vmem:[%s116 + $0x78] sm:$0xff]
        %v153 = vld [vmem:[%s116 + $0x80] sm:$0xff]
        %v154 = vld [vmem:[%s116 + $0x88] sm:$0xff]
        %v155 = vld [vmem:[%s116 + $0x90] sm:$0xff]
        %v156 = vld [vmem:[%s116 + $0x98] sm:$0xff]
        %v157 = vld [vmem:[%s116 + $0xa0] sm:$0xff]
        %v158 = vld [vmem:[%s116 + $0xa8] sm:$0xff]
        %v159 = vld [vmem:[%s116 + $0xb0] sm:$0xff]
        %v160 = vld [vmem:[%s116 + $0xb8] sm:$0xff]
        %v161 = vld [vmem:[%s116 + $0xc0] sm:$0xff]
        %v162 = vld [vmem:[%s116 + $0xc8] sm:$0xff]
        %v163 = vld [vmem:[%s116 + $0xd0] sm:$0xff]
        %v164 = vld [vmem:[%s116 + $0xd8] sm:$0xff]
        %v165 = vld [vmem:[%s116 + $0xe0] sm:$0xff]
        %v166 = vld [vmem:[%s116 + $0xe8] sm:$0xff]
        %v167 = vld [vmem:[%s116 + $0xf0] sm:$0xff]
        %v168 = vld [vmem:[%s116 + $0xf8] sm:$0xff]
        %v169 = vld [vmem:[%s116 + $0x100] sm:$0xff]
        %v170 = vld [vmem:[%s116 + $0x108] sm:$0xff]
        %v171 = vld [vmem:[%s116 + $0x110] sm:$0xff]
        %v172 = vld [vmem:[%s116 + $0x118] sm:$0xff]
        %v173 = vld [vmem:[%s116 + $0x120] sm:$0xff]
        %v174 = vld [vmem:[%s116 + $0x128] sm:$0xff]
        %v175 = vld [vmem:[%s116 + $0x130] sm:$0xff]
        %v176 = vld [vmem:[%s116 + $0x138] sm:$0xff]
        %v177 = vld [vmem:[%s116 + $0x140] sm:$0xff]
        %v178 = vld [vmem:[%s116 + $0x148] sm:$0xff]
        %v179 = vld [vmem:[%s116 + $0x150] sm:$0xff]
        %v180 = vld [vmem:[%s116 + $0x158] sm:$0xff]
        %v181 = vld [vmem:[%s116 + $0x160] sm:$0xff]
        %v182 = vld [vmem:[%s116 + $0x168] sm:$0xff]
        %v183 = vld [vmem:[%s116 + $0x170] sm:$0xff]
        %v184 = vld [vmem:[%s116 + $0x178] sm:$0xff]
        %v185 = vld [vmem:[%s116 + $0x180] sm:$0xff]
        %v186 = vld [vmem:[%s116 + $0x188] sm:$0xff]
        %v187 = vld [vmem:[%s116 + $0x190] sm:$0xff]
        %v188 = vld [vmem:[%s116 + $0x198] sm:$0xff]
        %v189 = vld [vmem:[%s116 + $0x1a0] sm:$0xff]
        %v190 = vld [vmem:[%s116 + $0x1a8] sm:$0xff]
        %v191 = vld [vmem:[%s116 + $0x1b0] sm:$0xff]
        %v192 = vld [vmem:[%s116 + $0x1b8] sm:$0xff]
        %v193 = vld [vmem:[%s116 + $0x1c0] sm:$0xff]
        %v194 = vld [vmem:[%s116 + $0x1c8] sm:$0xff]
        %v195 = vld [vmem:[%s116 + $0x1d0] sm:$0xff]
        %v196 = vld [vmem:[%s116 + $0x1d8] sm:$0xff]
        %v197 = vld [vmem:[%s116 + $0x1e0] sm:$0xff]
        %v198 = vld [vmem:[%s116 + $0x1e8] sm:$0xff]
        %v199 = vld [vmem:[%s116 + $0x1f0] sm:$0xff]
        %v200 = vld [vmem:[%s116 + $0x1f8] sm:$0xff]
        %v201 = vld [vmem:[%s116 + $0x200] sm:$0xff]
        %v202 = vld [vmem:[%s116 + $0x208] sm:$0xff]
        %v203 = vld [vmem:[%s116 + $0x210] sm:$0xff]
        %v204 = vld [vmem:[%s116 + $0x218] sm:$0xff]
        %v205 = vld [vmem:[%s116 + $0x220] sm:$0xff]
        %v206 = vld [vmem:[%s116 + $0x228] sm:$0xff]
        %v207 = vld [vmem:[%s116 + $0x230] sm:$0xff]
        %v208 = vld [vmem:[%s116 + $0x238] sm:$0xff]
        %v209 = vld [vmem:[%s116 + $0x240] sm:$0xff]
        %v210 = vld [vmem:[%s116 + $0x248] sm:$0xff]
        %v211 = vld [vmem:[%s116 + $0x250] sm:$0xff]
        %v212 = vld [vmem:[%s116 + $0x258] sm:$0xff]
        %v213 = vld [vmem:[%s116 + $0x260] sm:$0xff]
        %v214 = vld [vmem:[%s116 + $0x268] sm:$0xff]
        %v215 = vld [vmem:[%s116 + $0x270] sm:$0xff]
        %v216 = vld [vmem:[%s116 + $0x278] sm:$0xff]
        %v217 = vld [vmem:[%s116 + $0x280] sm:$0xff]
        %v218 = vld [vmem:[%s116 + $0x288] sm:$0xff]
        %v219 = vld [vmem:[%s116 + $0x290] sm:$0xff]
        %v220 = vld [vmem:[%s116 + $0x298] sm:$0xff]
        %v221 = vld [vmem:[%s116 + $0x2a0] sm:$0xff]
        %v222 = vld [vmem:[%s116 + $0x2a8] sm:$0xff]
        %v223 = vld [vmem:[%s116 + $0x2b0] sm:$0xff]
        %v224 = vld [vmem:[%s116 + $0x2b8] sm:$0xff]
        %v225 = vld [vmem:[%s116 + $0x2c0] sm:$0xff]
        %v226 = vld [vmem:[%s116 + $0x2c8] sm:$0xff]
        %v227 = vld [vmem:[%s116 + $0x2d0] sm:$0xff]
        %v228 = vld [vmem:[%s116 + $0x2d8] sm:$0xff]
        %v229 = vld [vmem:[%s116 + $0x2e0] sm:$0xff]
        %v230 = vld [vmem:[%s116 + $0x2e8] sm:$0xff]
        %v231 = vld [vmem:[%s116 + $0x2f0] sm:$0xff]
        %v232 = vld [vmem:[%s116 + $0x2f8] sm:$0xff]
        %v233 = vld [vmem:[%s116 + $0x300] sm:$0xff]
        %v234 = vld [vmem:[%s116 + $0x308] sm:$0xff]
        %v235 = vld [vmem:[%s116 + $0x310] sm:$0xff]
        %v236 = vld [vmem:[%s116 + $0x318] sm:$0xff]
        %v237 = vld [vmem:[%s116 + $0x320] sm:$0xff]
        %v238 = vld [vmem:[%s116 + $0x328] sm:$0xff]
        %v239 = vld [vmem:[%s116 + $0x330] sm:$0xff]
        %v240 = vld [vmem:[%s116 + $0x338] sm:$0xff]
        %v241 = vld [vmem:[%s116 + $0x340] sm:$0xff]
        %v242 = vld [vmem:[%s116 + $0x348] sm:$0xff]
        %v243 = vld [vmem:[%s116 + $0x350] sm:$0xff]
        %v244 = vld [vmem:[%s116 + $0x358] sm:$0xff]
        %v245 = vld [vmem:[%s116 + $0x360] sm:$0xff]
        %v246 = vld [vmem:[%s116 + $0x368] sm:$0xff]
        %v247 = vld [vmem:[%s116 + $0x370] sm:$0xff]
        %v248 = vld [vmem:[%s116 + $0x378] sm:$0xff]
        %v249 = vld [vmem:[%s116 + $0x380] sm:$0xff]
        %v250 = vld [vmem:[%s116 + $0x388] sm:$0xff]
        %v251 = vld [vmem:[%s116 + $0x390] sm:$0xff]
        %v252 = vld [vmem:[%s116 + $0x398] sm:$0xff]
        %v253 = vld [vmem:[%s116 + $0x3a0] sm:$0xff]
        %v254 = vld [vmem:[%s116 + $0x3a8] sm:$0xff]
        %v255 = vld [vmem:[%s116 + $0x3b0] sm:$0xff]
        %v256 = vld [vmem:[%s116 + $0x3b8] sm:$0xff]
        %v257 = vld [vmem:[%s116 + $0x3c0] sm:$0xff]
        %v258 = vld [vmem:[%s116 + $0x3c8] sm:$0xff]
        %v259 = vld [vmem:[%s116 + $0x3d0] sm:$0xff]
        %v260 = vld [vmem:[%s116 + $0x3d8] sm:$0xff]
        %v261 = vld [vmem:[%s116 + $0x3e0] sm:$0xff]
        %v262 = vld [vmem:[%s116 + $0x3e8] sm:$0xff]
        %v263 = vld [vmem:[%s116 + $0x3f0] sm:$0xff]
        %v264 = vld [vmem:[%s116 + $0x3f8] sm:$0xff]
        %v265 = vld [vmem:[%s116 + $0x400] sm:$0xff]
        %v266 = vld [vmem:[%s116 + $0x408] sm:$0xff]
        %v267 = vld [vmem:[%s116 + $0x410] sm:$0xff]
        %v268 = vld [vmem:[%s116 + $0x418] sm:$0xff]
        %v269 = vld [vmem:[%s116 + $0x420] sm:$0xff]
        %v270 = vld [vmem:[%s116 + $0x428] sm:$0xff]
        %v271 = vld [vmem:[%s116 + $0x430] sm:$0xff]
        %v272 = vld [vmem:[%s116 + $0x438] sm:$0xff]
        %v273 = vld [vmem:[%s116 + $0x440] sm:$0xff]
        %v274 = vld [vmem:[%s116 + $0x448] sm:$0xff]
        %v275 = vld [vmem:[%s116 + $0x450] sm:$0xff]
        %v276 = vld [vmem:[%s116 + $0x458] sm:$0xff]
        %v277 = vld [vmem:[%s116 + $0x460] sm:$0xff]
        %v278 = vld [vmem:[%s116 + $0x468] sm:$0xff]
        %v279 = vld [vmem:[%s116 + $0x470] sm:$0xff]
        %v280 = vld [vmem:[%s116 + $0x478] sm:$0xff]
        %v281 = vld [vmem:[%s116 + $0x480] sm:$0xff]
        %v282 = vld [vmem:[%s116 + $0x488] sm:$0xff]
        %v283 = vld [vmem:[%s116 + $0x490] sm:$0xff]
        %v284 = vld [vmem:[%s116 + $0x498] sm:$0xff]
        %v285 = vld [vmem:[%s116 + $0x4a0] sm:$0xff]
        %v286 = vld [vmem:[%s116 + $0x4a8] sm:$0xff]
        %v287 = vld [vmem:[%s116 + $0x4b0] sm:$0xff]
        %v288 = vld [vmem:[%s116 + $0x4b8] sm:$0xff]
        %v289 = vld [vmem:[%s116 + $0x4c0] sm:$0xff]
        %v290 = vld [vmem:[%s116 + $0x4c8] sm:$0xff]
        %v291 = vld [vmem:[%s116 + $0x4d0] sm:$0xff]
        %v292 = vld [vmem:[%s116 + $0x4d8] sm:$0xff]
        %v293 = vld [vmem:[%s116 + $0x4e0] sm:$0xff]
        %v294 = vld [vmem:[%s116 + $0x4e8] sm:$0xff]
        %v295 = vld [vmem:[%s116 + $0x4f0] sm:$0xff]
        %v296 = vld [vmem:[%s116 + $0x4f8] sm:$0xff]
        %v297 = vld [vmem:[%s116 + $0x500] sm:$0xff]
        %v298 = vld [vmem:[%s116 + $0x508] sm:$0xff]
        %v299 = vld [vmem:[%s116 + $0x510] sm:$0xff]
        %v300 = vld [vmem:[%s116 + $0x518] sm:$0xff]
        %v301 = vld [vmem:[%s116 + $0x520] sm:$0xff]
        %v302 = vld [vmem:[%s116 + $0x528] sm:$0xff]
        %v303 = vld [vmem:[%s116 + $0x530] sm:$0xff]
        %v304 = vld [vmem:[%s116 + $0x538] sm:$0xff]
        %v305 = vld [vmem:[%s116 + $0x540] sm:$0xff]
        %v306 = vld [vmem:[%s116 + $0x548] sm:$0xff]
        %v307 = vld [vmem:[%s116 + $0x550] sm:$0xff]
        %v308 = vld [vmem:[%s116 + $0x558] sm:$0xff]
        %v309 = vld [vmem:[%s116 + $0x560] sm:$0xff]
        %v310 = vld [vmem:[%s116 + $0x568] sm:$0xff]
        %v311 = vld [vmem:[%s116 + $0x570] sm:$0xff]
        %v312 = vld [vmem:[%s116 + $0x578] sm:$0xff]
        %v313 = vld [vmem:[%s116 + $0x580] sm:$0xff]
        %v314 = vld [vmem:[%s116 + $0x588] sm:$0xff]
        %v315 = vld [vmem:[%s116 + $0x590] sm:$0xff]
        %v316 = vld [vmem:[%s116 + $0x598] sm:$0xff]
        %v317 = vld [vmem:[%s116 + $0x5a0] sm:$0xff]
        %v318 = vld [vmem:[%s116 + $0x5a8] sm:$0xff]
        %v319 = vld [vmem:[%s116 + $0x5b0] sm:$0xff]
        %v320 = vld [vmem:[%s116 + $0x5b8] sm:$0xff]
        %v321 = vld [vmem:[%s116 + $0x5c0] sm:$0xff]
        %v322 = vld [vmem:[%s116 + $0x5c8] sm:$0xff]
        %v323 = vld [vmem:[%s116 + $0x5d0] sm:$0xff]
        %v324 = vld [vmem:[%s116 + $0x5d8] sm:$0xff]
        %v325 = vld [vmem:[%s116 + $0x5e0] sm:$0xff]
        %v326 = vld [vmem:[%s116 + $0x5e8] sm:$0xff]
        %v327 = vld [vmem:[%s116 + $0x5f0] sm:$0xff]
        %v328 = vld [vmem:[%s116 + $0x5f8] sm:$0xff]
        %v329 = vld [vmem:[%s116 + $0x600] sm:$0xff]
        %v330 = vld [vmem:[%s116 + $0x608] sm:$0xff]
        %v331 = vld [vmem:[%s116 + $0x610] sm:$0xff]
        %v332 = vld [vmem:[%s116 + $0x618] sm:$0xff]
        %v333 = vld [vmem:[%s116 + $0x620] sm:$0xff]
        %v334 = vld [vmem:[%s116 + $0x628] sm:$0xff]
        %v335 = vld [vmem:[%s116 + $0x630] sm:$0xff]
        %v336 = vld [vmem:[%s116 + $0x638] sm:$0xff]
        %v337 = vld [vmem:[%s116 + $0x640] sm:$0xff]
        %v338 = vld [vmem:[%s116 + $0x648] sm:$0xff]
        %v339 = vld [vmem:[%s116 + $0x650] sm:$0xff]
        %v340 = vld [vmem:[%s116 + $0x658] sm:$0xff]
        %v341 = vld [vmem:[%s116 + $0x660] sm:$0xff]
        %v342 = vld [vmem:[%s116 + $0x668] sm:$0xff]
        %v343 = vld [vmem:[%s116 + $0x670] sm:$0xff]
        %v344 = vld [vmem:[%s116 + $0x678] sm:$0xff]
        %v345 = vld [vmem:[%s116 + $0x680] sm:$0xff]
        %v346 = vld [vmem:[%s116 + $0x688] sm:$0xff]
        %v347 = vld [vmem:[%s116 + $0x690] sm:$0xff]
        %v348 = vld [vmem:[%s116 + $0x698] sm:$0xff]
        %v349 = vld [vmem:[%s116 + $0x6a0] sm:$0xff]
        %v350 = vld [vmem:[%s116 + $0x6a8] sm:$0xff]
        %v351 = vld [vmem:[%s116 + $0x6b0] sm:$0xff]
        %v352 = vld [vmem:[%s116 + $0x6b8] sm:$0xff]
        %v353 = vld [vmem:[%s116 + $0x6c0] sm:$0xff]
        %v354 = vld [vmem:[%s116 + $0x6c8] sm:$0xff]
        %v355 = vld [vmem:[%s116 + $0x6d0] sm:$0xff]
        %v356 = vld [vmem:[%s116 + $0x6d8] sm:$0xff]
        %v357 = vld [vmem:[%s116 + $0x6e0] sm:$0xff]
        %v358 = vld [vmem:[%s116 + $0x6e8] sm:$0xff]
        %v359 = vld [vmem:[%s116 + $0x6f0] sm:$0xff]
        %v360 = vld [vmem:[%s116 + $0x6f8] sm:$0xff]
        %v361 = vld [vmem:[%s116 + $0x700] sm:$0xff]
        %v362 = vld [vmem:[%s116 + $0x708] sm:$0xff]
        %v363 = vld [vmem:[%s116 + $0x710] sm:$0xff]
        %v364 = vld [vmem:[%s116 + $0x718] sm:$0xff]
        %v365 = vld [vmem:[%s116 + $0x720] sm:$0xff]
        %v366 = vld [vmem:[%s116 + $0x728] sm:$0xff]
        %v367 = vld [vmem:[%s116 + $0x730] sm:$0xff]
        %v368 = vld [vmem:[%s116 + $0x738] sm:$0xff]
        %v369 = vld [vmem:[%s116 + $0x740] sm:$0xff]
        %v370 = vld [vmem:[%s116 + $0x748] sm:$0xff]
        %v371 = vld [vmem:[%s116 + $0x750] sm:$0xff]
        %v372 = vld [vmem:[%s116 + $0x758] sm:$0xff]
        %v373 = vld [vmem:[%s116 + $0x760] sm:$0xff]
        %v374 = vld [vmem:[%s116 + $0x768] sm:$0xff]
        %v375 = vld [vmem:[%s116 + $0x770] sm:$0xff]
        %v376 = vld [vmem:[%s116 + $0x778] sm:$0xff]
        %v377 = vld [vmem:[%s116 + $0x780] sm:$0xff]
        %v378 = vld [vmem:[%s116 + $0x788] sm:$0xff]
        %v379 = vld [vmem:[%s116 + $0x790] sm:$0xff]
        %v380 = vld [vmem:[%s116 + $0x798] sm:$0xff]
        %v381 = vld [vmem:[%s116 + $0x7a0] sm:$0xff]
        %v382 = vld [vmem:[%s116 + $0x7a8] sm:$0xff]
        %v383 = vld [vmem:[%s116 + $0x7b0] sm:$0xff]
        %v384 = vld [vmem:[%s116 + $0x7b8] sm:$0xff]
        %v385 = vld [vmem:[%s116 + $0x7c0] sm:$0xff]
        %v386 = vld [vmem:[%s116 + $0x7c8] sm:$0xff]
        %v387 = vld [vmem:[%s116 + $0x7d0] sm:$0xff]
        %v388 = vld [vmem:[%s116 + $0x7d8] sm:$0xff]
        %v389 = vld [vmem:[%s116 + $0x7e0] sm:$0xff]
        %v390 = vld [vmem:[%s116 + $0x7e8] sm:$0xff]
        %v391 = vld [vmem:[%s116 + $0x7f0] sm:$0xff]
        %v392 = vld [vmem:[%s116 + $0x7f8] sm:$0xff]
        %v393 = vld [vmem:[%s116 + $0x800] sm:$0xff]
        %v394 = vld [vmem:[%s116 + $0x808] sm:$0xff]
        %v395 = vld [vmem:[%s116 + $0x810] sm:$0xff]
        %v396 = vld [vmem:[%s116 + $0x818] sm:$0xff]
        %v397 = vld [vmem:[%s116 + $0x820] sm:$0xff]
        %v398 = vld [vmem:[%s116 + $0x828] sm:$0xff]
        %v399 = vld [vmem:[%s116 + $0x830] sm:$0xff]
        %v400 = vld [vmem:[%s116 + $0x838] sm:$0xff]
        %v401 = vld [vmem:[%s116 + $0x840] sm:$0xff]
        %v402 = vld [vmem:[%s116 + $0x848] sm:$0xff]
        %v403 = vld [vmem:[%s116 + $0x850] sm:$0xff]
        %v404 = vld [vmem:[%s116 + $0x858] sm:$0xff]
        %v405 = vld [vmem:[%s116 + $0x860] sm:$0xff]
        %v406 = vld [vmem:[%s116 + $0x868] sm:$0xff]
        %v407 = vld [vmem:[%s116 + $0x870] sm:$0xff]
        %v408 = vld [vmem:[%s116 + $0x878] sm:$0xff]
        %v409 = vld [vmem:[%s116 + $0x880] sm:$0xff]
        %v410 = vld [vmem:[%s116 + $0x888] sm:$0xff]
        %v411 = vld [vmem:[%s116 + $0x890] sm:$0xff]
        %v412 = vld [vmem:[%s116 + $0x898] sm:$0xff]
        %v413 = vld [vmem:[%s116 + $0x8a0] sm:$0xff]
        %v414 = vld [vmem:[%s116 + $0x8a8] sm:$0xff]
        %v415 = vld [vmem:[%s116 + $0x8b0] sm:$0xff]
        %v416 = vld [vmem:[%s116 + $0x8b8] sm:$0xff]
        %v417 = vld [vmem:[%s116 + $0x8c0] sm:$0xff]
        %v418 = vld [vmem:[%s116 + $0x8c8] sm:$0xff]
        %v419 = vld [vmem:[%s116 + $0x8d0] sm:$0xff]
        %v420 = vld [vmem:[%s116 + $0x8d8] sm:$0xff]
        %v421 = vld [vmem:[%s116 + $0x8e0] sm:$0xff]
        %v422 = vld [vmem:[%s116 + $0x8e8] sm:$0xff]
        %v423 = vld [vmem:[%s116 + $0x8f0] sm:$0xff]
        %v424 = vld [vmem:[%s116 + $0x8f8] sm:$0xff]
        %v425 = vld [vmem:[%s116 + $0x900] sm:$0xff]
        %v426 = vld [vmem:[%s116 + $0x908] sm:$0xff]
        %v427 = vld [vmem:[%s116 + $0x910] sm:$0xff]
        %v428 = vld [vmem:[%s116 + $0x918] sm:$0xff]
        %v429 = vld [vmem:[%s116 + $0x920] sm:$0xff]
        %v430 = vld [vmem:[%s116 + $0x928] sm:$0xff]
        %v431 = vld [vmem:[%s116 + $0x930] sm:$0xff]
        %v432 = vld [vmem:[%s116 + $0x938] sm:$0xff]
        %v433 = vld [vmem:[%s116 + $0x940] sm:$0xff]
        %v434 = vld [vmem:[%s116 + $0x948] sm:$0xff]
        %v435 = vld [vmem:[%s116 + $0x950] sm:$0xff]
        %v436 = vld [vmem:[%s116 + $0x958] sm:$0xff]
        %v437 = vld [vmem:[%s116 + $0x960] sm:$0xff]
        %v438 = vld [vmem:[%s116 + $0x968] sm:$0xff]
        %v439 = vld [vmem:[%s116 + $0x970] sm:$0xff]
        %v440 = vld [vmem:[%s116 + $0x978] sm:$0xff]
        %v441 = vld [vmem:[%s116 + $0x980] sm:$0xff]
        %v442 = vld [vmem:[%s116 + $0x988] sm:$0xff]
        %v443 = vld [vmem:[%s116 + $0x990] sm:$0xff]
        %v444 = vld [vmem:[%s116 + $0x998] sm:$0xff]
        %v445 = vld [vmem:[%s116 + $0x9a0] sm:$0xff]
        %v446 = vld [vmem:[%s116 + $0x9a8] sm:$0xff]
        %v447 = vld [vmem:[%s116 + $0x9b0] sm:$0xff]
        %v448 = vld [vmem:[%s116 + $0x9b8] sm:$0xff]
        %v449 = vld [vmem:[%s116 + $0x9c0] sm:$0xff]
        %v450 = vld [vmem:[%s116 + $0x9c8] sm:$0xff]
        %v451 = vld [vmem:[%s116 + $0x9d0] sm:$0xff]
        %v452 = vld [vmem:[%s116 + $0x9d8] sm:$0xff]
        %v453 = vld [vmem:[%s116 + $0x9e0] sm:$0xff]
        %v454 = vld [vmem:[%s116 + $0x9e8] sm:$0xff]
        %v455 = vld [vmem:[%s116 + $0x9f0] sm:$0xff]
        %v456 = vld [vmem:[%s116 + $0x9f8] sm:$0xff]
        %v457 = vld [vmem:[%s116 + $0xa00] sm:$0xff]
        %v458 = vld [vmem:[%s116 + $0xa08] sm:$0xff]
        %v459 = vld [vmem:[%s116 + $0xa10] sm:$0xff]
        %v460 = vld [vmem:[%s116 + $0xa18] sm:$0xff]
        %v461 = vld [vmem:[%s116 + $0xa20] sm:$0xff]
        %v462 = vld [vmem:[%s116 + $0xa28] sm:$0xff]
        %v463 = vld [vmem:[%s116 + $0xa30] sm:$0xff]
        %v464 = vld [vmem:[%s116 + $0xa38] sm:$0xff]
        %v465 = vld [vmem:[%s116 + $0xa40] sm:$0xff]
        %v466 = vld [vmem:[%s116 + $0xa48] sm:$0xff]
        %v467 = vld [vmem:[%s116 + $0xa50] sm:$0xff]
        %v468 = vld [vmem:[%s116 + $0xa58] sm:$0xff]
        %v469 = vld [vmem:[%s116 + $0xa60] sm:$0xff]
        %v470 = vld [vmem:[%s116 + $0xa68] sm:$0xff]
        %v471 = vld [vmem:[%s116 + $0xa70] sm:$0xff]
        %v472 = vld [vmem:[%s116 + $0xa78] sm:$0xff]
        %v473 = vld [vmem:[%s116 + $0xa80] sm:$0xff]
        %v474 = vld [vmem:[%s116 + $0xa88] sm:$0xff]
        %v475 = vld [vmem:[%s116 + $0xa90] sm:$0xff]
        %v476 = vld [vmem:[%s116 + $0xa98] sm:$0xff]
        %v477 = vld [vmem:[%s116 + $0xaa0] sm:$0xff]
        %v478 = vld [vmem:[%s116 + $0xaa8] sm:$0xff]
        %v479 = vld [vmem:[%s116 + $0xab0] sm:$0xff]
        %v480 = vld [vmem:[%s116 + $0xab8] sm:$0xff]
        %v481 = vld [vmem:[%s116 + $0xac0] sm:$0xff]
        %v482 = vld [vmem:[%s116 + $0xac8] sm:$0xff]
        %v483 = vld [vmem:[%s116 + $0xad0] sm:$0xff]
        %v484 = vld [vmem:[%s116 + $0xad8] sm:$0xff]
        %v485 = vld [vmem:[%s116 + $0xae0] sm:$0xff]
        %v486 = vld [vmem:[%s116 + $0xae8] sm:$0xff]
        %v487 = vld [vmem:[%s116 + $0xaf0] sm:$0xff]
        %v488 = vld [vmem:[%s116 + $0xaf8] sm:$0xff]
        %v489 = vld [vmem:[%s116 + $0xb00] sm:$0xff]
        %v490 = vld [vmem:[%s116 + $0xb08] sm:$0xff]
        %v491 = vld [vmem:[%s116 + $0xb10] sm:$0xff]
        %v492 = vld [vmem:[%s116 + $0xb18] sm:$0xff]
        %v493 = vld [vmem:[%s116 + $0xb20] sm:$0xff]
        %v494 = vld [vmem:[%s116 + $0xb28] sm:$0xff]
        %v495 = vld [vmem:[%s116 + $0xb30] sm:$0xff]
        %v496 = vld [vmem:[%s116 + $0xb38] sm:$0xff]
        %v497 = vld [vmem:[%s116 + $0xb40] sm:$0xff]
        %v498 = vld [vmem:[%s116 + $0xb48] sm:$0xff]
        %v499 = vld [vmem:[%s116 + $0xb50] sm:$0xff]
        %v500 = vld [vmem:[%s116 + $0xb58] sm:$0xff]
        %v501 = vld [vmem:[%s116 + $0xb60] sm:$0xff]
        %v502 = vld [vmem:[%s116 + $0xb68] sm:$0xff]
        %v503 = vld [vmem:[%s116 + $0xb70] sm:$0xff]
        %v504 = vld [vmem:[%s116 + $0xb78] sm:$0xff]
        %v505 = vld [vmem:[%s116 + $0xb80] sm:$0xff]
        %v506 = vld [vmem:[%s116 + $0xb88] sm:$0xff]
        %v507 = vld [vmem:[%s116 + $0xb90] sm:$0xff]
        %v508 = vld [vmem:[%s116 + $0xb98] sm:$0xff]
        %v509 = vld [vmem:[%s116 + $0xba0] sm:$0xff]
        %v510 = vld [vmem:[%s116 + $0xba8] sm:$0xff]
        %v511 = vld [vmem:[%s116 + $0xbb0] sm:$0xff]
        %v512 = vld [vmem:[%s116 + $0xbb8] sm:$0xff]
        %v513 = vld [vmem:[%s116 + $0xbc0] sm:$0xff]
        %v514 = vld [vmem:[%s116 + $0xbc8] sm:$0xff]
        %v515 = vld [vmem:[%s116 + $0xbd0] sm:$0xff]
        %v516 = vld [vmem:[%s116 + $0xbd8] sm:$0xff]
        %v517 = vld [vmem:[%s116 + $0xbe0] sm:$0xff]
        %v518 = vld [vmem:[%s116 + $0xbe8] sm:$0xff]
        %v519 = vld [vmem:[%s116 + $0xbf0] sm:$0xff]
        %v520 = vld [vmem:[%s116 + $0xbf8] sm:$0xff]
        %v521 = vld [vmem:[%s116 + $0xc00] sm:$0xff]
        %v522 = vld [vmem:[%s116 + $0xc08] sm:$0xff]
        %v523 = vld [vmem:[%s116 + $0xc10] sm:$0xff]
        %v524 = vld [vmem:[%s116 + $0xc18] sm:$0xff]
        %v525 = vld [vmem:[%s116 + $0xc20] sm:$0xff]
        %v526 = vld [vmem:[%s116 + $0xc28] sm:$0xff]
        %v527 = vld [vmem:[%s116 + $0xc30] sm:$0xff]
        %v528 = vld [vmem:[%s116 + $0xc38] sm:$0xff]
        %v529 = vld [vmem:[%s116 + $0xc40] sm:$0xff]
        %v530 = vld [vmem:[%s116 + $0xc48] sm:$0xff]
        %v531 = vld [vmem:[%s116 + $0xc50] sm:$0xff]
        %v532 = vld [vmem:[%s116 + $0xc58] sm:$0xff]
        %v533 = vld [vmem:[%s116 + $0xc60] sm:$0xff]
        %v534 = vld [vmem:[%s116 + $0xc68] sm:$0xff]
        %v535 = vld [vmem:[%s116 + $0xc70] sm:$0xff]
        %v536 = vld [vmem:[%s116 + $0xc78] sm:$0xff]
        %v537 = vld [vmem:[%s116 + $0xc80] sm:$0xff]
        %v538 = vld [vmem:[%s116 + $0xc88] sm:$0xff]
        %v539 = vld [vmem:[%s116 + $0xc90] sm:$0xff]
        %v540 = vld [vmem:[%s116 + $0xc98] sm:$0xff]
        %v541 = vld [vmem:[%s116 + $0xca0] sm:$0xff]
        %v542 = vld [vmem:[%s116 + $0xca8] sm:$0xff]
        %v543 = vld [vmem:[%s116 + $0xcb0] sm:$0xff]
        %v544 = vld [vmem:[%s116 + $0xcb8] sm:$0xff]
        %v545 = vld [vmem:[%s116 + $0xcc0] sm:$0xff]
        %v546 = vld [vmem:[%s116 + $0xcc8] sm:$0xff]
        %v547 = vld [vmem:[%s116 + $0xcd0] sm:$0xff]
        %v548 = vld [vmem:[%s116 + $0xcd8] sm:$0xff]
        %v549 = vld [vmem:[%s116 + $0xce0] sm:$0xff]
        %v550 = vld [vmem:[%s116 + $0xce8] sm:$0xff]
        %v551 = vld [vmem:[%s116 + $0xcf0] sm:$0xff]
        %v552 = vld [vmem:[%s116 + $0xcf8] sm:$0xff]
        %v553 = vld [vmem:[%s116 + $0xd00] sm:$0xff]
        %v554 = vld [vmem:[%s116 + $0xd08] sm:$0xff]
        %v555 = vld [vmem:[%s116 + $0xd10] sm:$0xff]
        %v556 = vld [vmem:[%s116 + $0xd18] sm:$0xff]
        %v557 = vld [vmem:[%s116 + $0xd20] sm:$0xff]
        %v558 = vld [vmem:[%s116 + $0xd28] sm:$0xff]
        %v559 = vld [vmem:[%s116 + $0xd30] sm:$0xff]
        %v560 = vld [vmem:[%s116 + $0xd38] sm:$0xff]
        %v561 = vld [vmem:[%s116 + $0xd40] sm:$0xff]
        %v562 = vld [vmem:[%s116 + $0xd48] sm:$0xff]
        %v563 = vld [vmem:[%s116 + $0xd50] sm:$0xff]
        %v564 = vld [vmem:[%s116 + $0xd58] sm:$0xff]
        %v565 = vld [vmem:[%s116 + $0xd60] sm:$0xff]
        %v566 = vld [vmem:[%s116 + $0xd68] sm:$0xff]
        %v567 = vld [vmem:[%s116 + $0xd70] sm:$0xff]
        %v568 = vld [vmem:[%s116 + $0xd78] sm:$0xff]
        %v569 = vld [vmem:[%s116 + $0xd80] sm:$0xff]
        %v570 = vld [vmem:[%s116 + $0xd88] sm:$0xff]
        %v571 = vld [vmem:[%s116 + $0xd90] sm:$0xff]
        %v572 = vld [vmem:[%s116 + $0xd98] sm:$0xff]
        %v573 = vld [vmem:[%s116 + $0xda0] sm:$0xff]
        %v574 = vld [vmem:[%s116 + $0xda8] sm:$0xff]
        %v575 = vld [vmem:[%s116 + $0xdb0] sm:$0xff]
        %v576 = vld [vmem:[%s116 + $0xdb8] sm:$0xff]
        %v577 = vld [vmem:[%s116 + $0xdc0] sm:$0xff]
        %v578 = vld [vmem:[%s116 + $0xdc8] sm:$0xff]
        %v579 = vld [vmem:[%s116 + $0xdd0] sm:$0xff]
        %v580 = vld [vmem:[%s116 + $0xdd8] sm:$0xff]
        %v581 = vld [vmem:[%s116 + $0xde0] sm:$0xff]
        %v582 = vld [vmem:[%s116 + $0xde8] sm:$0xff]
        %v583 = vld [vmem:[%s116 + $0xdf0] sm:$0xff]
        %v584 = vld [vmem:[%s116 + $0xdf8] sm:$0xff]
        %v585 = vld [vmem:[%s116 + $0xe00] sm:$0xff]
        %v586 = vld [vmem:[%s116 + $0xe08] sm:$0xff]
        %v587 = vld [vmem:[%s116 + $0xe10] sm:$0xff]
        %v588 = vld [vmem:[%s116 + $0xe18] sm:$0xff]
        %v589 = vld [vmem:[%s116 + $0xe20] sm:$0xff]
        %v590 = vld [vmem:[%s116 + $0xe28] sm:$0xff]
        %v591 = vld [vmem:[%s116 + $0xe30] sm:$0xff]
        %v592 = vld [vmem:[%s116 + $0xe38] sm:$0xff]
        %v593 = vld [vmem:[%s116 + $0xe40] sm:$0xff]
        %v594 = vld [vmem:[%s116 + $0xe48] sm:$0xff]
        %v595 = vld [vmem:[%s116 + $0xe50] sm:$0xff]
        %v596 = vld [vmem:[%s116 + $0xe58] sm:$0xff]
        %v597 = vld [vmem:[%s116 + $0xe60] sm:$0xff]
        %v598 = vld [vmem:[%s116 + $0xe68] sm:$0xff]
        %v599 = vld [vmem:[%s116 + $0xe70] sm:$0xff]
        %v600 = vld [vmem:[%s116 + $0xe78] sm:$0xff]
        %v601 = vld [vmem:[%s116 + $0xe80] sm:$0xff]
        %v602 = vld [vmem:[%s116 + $0xe88] sm:$0xff]
        %v603 = vld [vmem:[%s116 + $0xe90] sm:$0xff]
        %v604 = vld [vmem:[%s116 + $0xe98] sm:$0xff]
        %v605 = vld [vmem:[%s116 + $0xea0] sm:$0xff]
        %v606 = vld [vmem:[%s116 + $0xea8] sm:$0xff]
        %v607 = vld [vmem:[%s116 + $0xeb0] sm:$0xff]
        %v608 = vld [vmem:[%s116 + $0xeb8] sm:$0xff]
        %v609 = vld [vmem:[%s116 + $0xec0] sm:$0xff]
        %v610 = vld [vmem:[%s116 + $0xec8] sm:$0xff]
        %v611 = vld [vmem:[%s116 + $0xed0] sm:$0xff]
        %v612 = vld [vmem:[%s116 + $0xed8] sm:$0xff]
        %v613 = vld [vmem:[%s116 + $0xee0] sm:$0xff]
        %v614 = vld [vmem:[%s116 + $0xee8] sm:$0xff]
        %v615 = vld [vmem:[%s116 + $0xef0] sm:$0xff]
        %v616 = vld [vmem:[%s116 + $0xef8] sm:$0xff]
        %v617 = vld [vmem:[%s116 + $0xf00] sm:$0xff]
        %v618 = vld [vmem:[%s116 + $0xf08] sm:$0xff]
        %v619 = vld [vmem:[%s116 + $0xf10] sm:$0xff]
        %v620 = vld [vmem:[%s116 + $0xf18] sm:$0xff]
        %v621 = vld [vmem:[%s116 + $0xf20] sm:$0xff]
        %v622 = vld [vmem:[%s116 + $0xf28] sm:$0xff]
        %v623 = vld [vmem:[%s116 + $0xf30] sm:$0xff]
        %v624 = vld [vmem:[%s116 + $0xf38] sm:$0xff]
        %v625 = vld [vmem:[%s116 + $0xf40] sm:$0xff]
        %v626 = vld [vmem:[%s116 + $0xf48] sm:$0xff]
        %v627 = vld [vmem:[%s116 + $0xf50] sm:$0xff]
        %v628 = vld [vmem:[%s116 + $0xf58] sm:$0xff]
        %v629 = vld [vmem:[%s116 + $0xf60] sm:$0xff]
        %v630 = vld [vmem:[%s116 + $0xf68] sm:$0xff]
        %v631 = vld [vmem:[%s116 + $0xf70] sm:$0xff]
        %v632 = vld [vmem:[%s116 + $0xf78] sm:$0xff]
        %v633 = vld [vmem:[%s116 + $0xf80] sm:$0xff]
        %v634 = vld [vmem:[%s116 + $0xf88] sm:$0xff]
        %v635 = vld [vmem:[%s116 + $0xf90] sm:$0xff]
        %v636 = vld [vmem:[%s116 + $0xf98] sm:$0xff]
        %v637 = vld [vmem:[%s116 + $0xfa0] sm:$0xff]
        %v638 = vld [vmem:[%s116 + $0xfa8] sm:$0xff]
        %v639 = vld [vmem:[%s116 + $0xfb0] sm:$0xff]
        %v640 = vld [vmem:[%s116 + $0xfb8] sm:$0xff]
        %v641 = vld [vmem:[%s116 + $0xfc0] sm:$0xff]
        %v642 = vld [vmem:[%s116 + $0xfc8] sm:$0xff]
        %v643 = vld [vmem:[%s116 + $0xfd0] sm:$0xff]
        %v644 = vld [vmem:[%s116 + $0xfd8] sm:$0xff]
        %v645 = vld [vmem:[%s116 + $0xfe0] sm:$0xff]
        %v646 = vld [vmem:[%s116 + $0xfe8] sm:$0xff]
        %v647 = vld [vmem:[%s116 + $0xff0] sm:$0xff]
        %v648 = vld [vmem:[%s116 + $0xff8] sm:$0xff]
        %v649 = vmin.f32 %v137, 20.0
        %v650 = vmin.f32 %v138, 20.0
        %v651 = vmin.f32 %v139, 20.0
        %v652 = vmin.f32 %v140, 20.0
        %v653 = vmin.f32 %v141, 20.0
        %v654 = vmin.f32 %v142, 20.0
        %v655 = vmin.f32 %v143, 20.0
        %v656 = vmin.f32 %v144, 20.0
        %v657 = vmin.f32 %v145, 20.0
        %v658 = vmin.f32 %v146, 20.0
        %v659 = vmin.f32 %v147, 20.0
        %v660 = vmin.f32 %v148, 20.0
        %v661 = vmin.f32 %v149, 20.0
        %v662 = vmin.f32 %v150, 20.0
        %v663 = vmin.f32 %v151, 20.0
        %v664 = vmin.f32 %v152, 20.0
        %v665 = vmin.f32 %v153, 20.0
        %v666 = vmin.f32 %v154, 20.0
        %v667 = vmin.f32 %v155, 20.0
        %v668 = vmin.f32 %v156, 20.0
        %v669 = vmin.f32 %v157, 20.0
        %v670 = vmin.f32 %v158, 20.0
        %v671 = vmin.f32 %v159, 20.0
        %v672 = vmin.f32 %v160, 20.0
        %v673 = vmin.f32 %v161, 20.0
        %v674 = vmin.f32 %v162, 20.0
        %v675 = vmin.f32 %v163, 20.0
        %v676 = vmin.f32 %v164, 20.0
        %v677 = vmin.f32 %v165, 20.0
        %v678 = vmin.f32 %v166, 20.0
        %v679 = vmin.f32 %v167, 20.0
        %v680 = vmin.f32 %v168, 20.0
        %v681 = vmin.f32 %v169, 20.0
        %v682 = vmin.f32 %v170, 20.0
        %v683 = vmin.f32 %v171, 20.0
        %v684 = vmin.f32 %v172, 20.0
        %v685 = vmin.f32 %v173, 20.0
        %v686 = vmin.f32 %v174, 20.0
        %v687 = vmin.f32 %v175, 20.0
        %v688 = vmin.f32 %v176, 20.0
        %v689 = vmin.f32 %v177, 20.0
        %v690 = vmin.f32 %v178, 20.0
        %v691 = vmin.f32 %v179, 20.0
        %v692 = vmin.f32 %v180, 20.0
        %v693 = vmin.f32 %v181, 20.0
        %v694 = vmin.f32 %v182, 20.0
        %v695 = vmin.f32 %v183, 20.0
        %v696 = vmin.f32 %v184, 20.0
        %v697 = vmin.f32 %v185, 20.0
        %v698 = vmin.f32 %v186, 20.0
        %v699 = vmin.f32 %v187, 20.0
        %v700 = vmin.f32 %v188, 20.0
        %v701 = vmin.f32 %v189, 20.0
        %v702 = vmin.f32 %v190, 20.0
        %v703 = vmin.f32 %v191, 20.0
        %v704 = vmin.f32 %v192, 20.0
        %v705 = vmin.f32 %v193, 20.0
        %v706 = vmin.f32 %v194, 20.0
        %v707 = vmin.f32 %v195, 20.0
        %v708 = vmin.f32 %v196, 20.0
        %v709 = vmin.f32 %v197, 20.0
        %v710 = vmin.f32 %v198, 20.0
        %v711 = vmin.f32 %v199, 20.0
        %v712 = vmin.f32 %v200, 20.0
        %v713 = vmin.f32 %v201, 20.0
        %v714 = vmin.f32 %v202, 20.0
        %v715 = vmin.f32 %v203, 20.0
        %v716 = vmin.f32 %v204, 20.0
        %v717 = vmin.f32 %v205, 20.0
        %v718 = vmin.f32 %v206, 20.0
        %v719 = vmin.f32 %v207, 20.0
        %v720 = vmin.f32 %v208, 20.0
        %v721 = vmin.f32 %v209, 20.0
        %v722 = vmin.f32 %v210, 20.0
        %v723 = vmin.f32 %v211, 20.0
        %v724 = vmin.f32 %v212, 20.0
        %v725 = vmin.f32 %v213, 20.0
        %v726 = vmin.f32 %v214, 20.0
        %v727 = vmin.f32 %v215, 20.0
        %v728 = vmin.f32 %v216, 20.0
        %v729 = vmin.f32 %v217, 20.0
        %v730 = vmin.f32 %v218, 20.0
        %v731 = vmin.f32 %v219, 20.0
        %v732 = vmin.f32 %v220, 20.0
        %v733 = vmin.f32 %v221, 20.0
        %v734 = vmin.f32 %v222, 20.0
        %v735 = vmin.f32 %v223, 20.0
        %v736 = vmin.f32 %v224, 20.0
        %v737 = vmin.f32 %v225, 20.0
        %v738 = vmin.f32 %v226, 20.0
        %v739 = vmin.f32 %v227, 20.0
        %v740 = vmin.f32 %v228, 20.0
        %v741 = vmin.f32 %v229, 20.0
        %v742 = vmin.f32 %v230, 20.0
        %v743 = vmin.f32 %v231, 20.0
        %v744 = vmin.f32 %v232, 20.0
        %v745 = vmin.f32 %v233, 20.0
        %v746 = vmin.f32 %v234, 20.0
        %v747 = vmin.f32 %v235, 20.0
        %v748 = vmin.f32 %v236, 20.0
        %v749 = vmin.f32 %v237, 20.0
        %v750 = vmin.f32 %v238, 20.0
        %v751 = vmin.f32 %v239, 20.0
        %v752 = vmin.f32 %v240, 20.0
        %v753 = vmin.f32 %v241, 20.0
        %v754 = vmin.f32 %v242, 20.0
        %v755 = vmin.f32 %v243, 20.0
        %v756 = vmin.f32 %v244, 20.0
        %v757 = vmin.f32 %v245, 20.0
        %v758 = vmin.f32 %v246, 20.0
        %v759 = vmin.f32 %v247, 20.0
        %v760 = vmin.f32 %v248, 20.0
        %v761 = vmin.f32 %v249, 20.0
        %v762 = vmin.f32 %v250, 20.0
        %v763 = vmin.f32 %v251, 20.0
        %v764 = vmin.f32 %v252, 20.0
        %v765 = vmin.f32 %v253, 20.0
        %v766 = vmin.f32 %v254, 20.0
        %v767 = vmin.f32 %v255, 20.0
        %v768 = vmin.f32 %v256, 20.0
        %v769 = vmin.f32 %v257, 20.0
        %v770 = vmin.f32 %v258, 20.0
        %v771 = vmin.f32 %v259, 20.0
        %v772 = vmin.f32 %v260, 20.0
        %v773 = vmin.f32 %v261, 20.0
        %v774 = vmin.f32 %v262, 20.0
        %v775 = vmin.f32 %v263, 20.0
        %v776 = vmin.f32 %v264, 20.0
        %v777 = vmin.f32 %v265, 20.0
        %v778 = vmin.f32 %v266, 20.0
        %v779 = vmin.f32 %v267, 20.0
        %v780 = vmin.f32 %v268, 20.0
        %v781 = vmin.f32 %v269, 20.0
        %v782 = vmin.f32 %v270, 20.0
        %v783 = vmin.f32 %v271, 20.0
        %v784 = vmin.f32 %v272, 20.0
        %v785 = vmin.f32 %v273, 20.0
        %v786 = vmin.f32 %v274, 20.0
        %v787 = vmin.f32 %v275, 20.0
        %v788 = vmin.f32 %v276, 20.0
        %v789 = vmin.f32 %v277, 20.0
        %v790 = vmin.f32 %v278, 20.0
        %v791 = vmin.f32 %v279, 20.0
        %v792 = vmin.f32 %v280, 20.0
        %v793 = vmin.f32 %v281, 20.0
        %v794 = vmin.f32 %v282, 20.0
        %v795 = vmin.f32 %v283, 20.0
        %v796 = vmin.f32 %v284, 20.0
        %v797 = vmin.f32 %v285, 20.0
        %v798 = vmin.f32 %v286, 20.0
        %v799 = vmin.f32 %v287, 20.0
        %v800 = vmin.f32 %v288, 20.0
        %v801 = vmin.f32 %v289, 20.0
        %v802 = vmin.f32 %v290, 20.0
        %v803 = vmin.f32 %v291, 20.0
        %v804 = vmin.f32 %v292, 20.0
        %v805 = vmin.f32 %v293, 20.0
        %v806 = vmin.f32 %v294, 20.0
        %v807 = vmin.f32 %v295, 20.0
        %v808 = vmin.f32 %v296, 20.0
        %v809 = vmin.f32 %v297, 20.0
        %v810 = vmin.f32 %v298, 20.0
        %v811 = vmin.f32 %v299, 20.0
        %v812 = vmin.f32 %v300, 20.0
        %v813 = vmin.f32 %v301, 20.0
        %v814 = vmin.f32 %v302, 20.0
        %v815 = vmin.f32 %v303, 20.0
        %v816 = vmin.f32 %v304, 20.0
        %v817 = vmin.f32 %v305, 20.0
        %v818 = vmin.f32 %v306, 20.0
        %v819 = vmin.f32 %v307, 20.0
        %v820 = vmin.f32 %v308, 20.0
        %v821 = vmin.f32 %v309, 20.0
        %v822 = vmin.f32 %v310, 20.0
        %v823 = vmin.f32 %v311, 20.0
        %v824 = vmin.f32 %v312, 20.0
        %v825 = vmin.f32 %v313, 20.0
        %v826 = vmin.f32 %v314, 20.0
        %v827 = vmin.f32 %v315, 20.0
        %v828 = vmin.f32 %v316, 20.0
        %v829 = vmin.f32 %v317, 20.0
        %v830 = vmin.f32 %v318, 20.0
        %v831 = vmin.f32 %v319, 20.0
        %v832 = vmin.f32 %v320, 20.0
        %v833 = vmin.f32 %v321, 20.0
        %v834 = vmin.f32 %v322, 20.0
        %v835 = vmin.f32 %v323, 20.0
        %v836 = vmin.f32 %v324, 20.0
        %v837 = vmin.f32 %v325, 20.0
        %v838 = vmin.f32 %v326, 20.0
        %v839 = vmin.f32 %v327, 20.0
        %v840 = vmin.f32 %v328, 20.0
        %v841 = vmin.f32 %v329, 20.0
        %v842 = vmin.f32 %v330, 20.0
        %v843 = vmin.f32 %v331, 20.0
        %v844 = vmin.f32 %v332, 20.0
        %v845 = vmin.f32 %v333, 20.0
        %v846 = vmin.f32 %v334, 20.0
        %v847 = vmin.f32 %v335, 20.0
        %v848 = vmin.f32 %v336, 20.0
        %v849 = vmin.f32 %v337, 20.0
        %v850 = vmin.f32 %v338, 20.0
        %v851 = vmin.f32 %v339, 20.0
        %v852 = vmin.f32 %v340, 20.0
        %v853 = vmin.f32 %v341, 20.0
        %v854 = vmin.f32 %v342, 20.0
        %v855 = vmin.f32 %v343, 20.0
        %v856 = vmin.f32 %v344, 20.0
        %v857 = vmin.f32 %v345, 20.0
        %v858 = vmin.f32 %v346, 20.0
        %v859 = vmin.f32 %v347, 20.0
        %v860 = vmin.f32 %v348, 20.0
        %v861 = vmin.f32 %v349, 20.0
        %v862 = vmin.f32 %v350, 20.0
        %v863 = vmin.f32 %v351, 20.0
        %v864 = vmin.f32 %v352, 20.0
        %v865 = vmin.f32 %v353, 20.0
        %v866 = vmin.f32 %v354, 20.0
        %v867 = vmin.f32 %v355, 20.0
        %v868 = vmin.f32 %v356, 20.0
        %v869 = vmin.f32 %v357, 20.0
        %v870 = vmin.f32 %v358, 20.0
        %v871 = vmin.f32 %v359, 20.0
        %v872 = vmin.f32 %v360, 20.0
        %v873 = vmin.f32 %v361, 20.0
        %v874 = vmin.f32 %v362, 20.0
        %v875 = vmin.f32 %v363, 20.0
        %v876 = vmin.f32 %v364, 20.0
        %v877 = vmin.f32 %v365, 20.0
        %v878 = vmin.f32 %v366, 20.0
        %v879 = vmin.f32 %v367, 20.0
        %v880 = vmin.f32 %v368, 20.0
        %v881 = vmin.f32 %v369, 20.0
        %v882 = vmin.f32 %v370, 20.0
        %v883 = vmin.f32 %v371, 20.0
        %v884 = vmin.f32 %v372, 20.0
        %v885 = vmin.f32 %v373, 20.0
        %v886 = vmin.f32 %v374, 20.0
        %v887 = vmin.f32 %v375, 20.0
        %v888 = vmin.f32 %v376, 20.0
        %v889 = vmin.f32 %v377, 20.0
        %v890 = vmin.f32 %v378, 20.0
        %v891 = vmin.f32 %v379, 20.0
        %v892 = vmin.f32 %v380, 20.0
        %v893 = vmin.f32 %v381, 20.0
        %v894 = vmin.f32 %v382, 20.0
        %v895 = vmin.f32 %v383, 20.0
        %v896 = vmin.f32 %v384, 20.0
        %v897 = vmin.f32 %v385, 20.0
        %v898 = vmin.f32 %v386, 20.0
        %v899 = vmin.f32 %v387, 20.0
        %v900 = vmin.f32 %v388, 20.0
        %v901 = vmin.f32 %v389, 20.0
        %v902 = vmin.f32 %v390, 20.0
        %v903 = vmin.f32 %v391, 20.0
        %v904 = vmin.f32 %v392, 20.0
        %v905 = vmin.f32 %v393, 20.0
        %v906 = vmin.f32 %v394, 20.0
        %v907 = vmin.f32 %v395, 20.0
        %v908 = vmin.f32 %v396, 20.0
        %v909 = vmin.f32 %v397, 20.0
        %v910 = vmin.f32 %v398, 20.0
        %v911 = vmin.f32 %v399, 20.0
        %v912 = vmin.f32 %v400, 20.0
        %v913 = vmin.f32 %v401, 20.0
        %v914 = vmin.f32 %v402, 20.0
        %v915 = vmin.f32 %v403, 20.0
        %v916 = vmin.f32 %v404, 20.0
        %v917 = vmin.f32 %v405, 20.0
        %v918 = vmin.f32 %v406, 20.0
        %v919 = vmin.f32 %v407, 20.0
        %v920 = vmin.f32 %v408, 20.0
        %v921 = vmin.f32 %v409, 20.0
        %v922 = vmin.f32 %v410, 20.0
        %v923 = vmin.f32 %v411, 20.0
        %v924 = vmin.f32 %v412, 20.0
        %v925 = vmin.f32 %v413, 20.0
        %v926 = vmin.f32 %v414, 20.0
        %v927 = vmin.f32 %v415, 20.0
        %v928 = vmin.f32 %v416, 20.0
        %v929 = vmin.f32 %v417, 20.0
        %v930 = vmin.f32 %v418, 20.0
        %v931 = vmin.f32 %v419, 20.0
        %v932 = vmin.f32 %v420, 20.0
        %v933 = vmin.f32 %v421, 20.0
        %v934 = vmin.f32 %v422, 20.0
        %v935 = vmin.f32 %v423, 20.0
        %v936 = vmin.f32 %v424, 20.0
        %v937 = vmin.f32 %v425, 20.0
        %v938 = vmin.f32 %v426, 20.0
        %v939 = vmin.f32 %v427, 20.0
        %v940 = vmin.f32 %v428, 20.0
        %v941 = vmin.f32 %v429, 20.0
        %v942 = vmin.f32 %v430, 20.0
        %v943 = vmin.f32 %v431, 20.0
        %v944 = vmin.f32 %v432, 20.0
        %v945 = vmin.f32 %v433, 20.0
        %v946 = vmin.f32 %v434, 20.0
        %v947 = vmin.f32 %v435, 20.0
        %v948 = vmin.f32 %v436, 20.0
        %v949 = vmin.f32 %v437, 20.0
        %v950 = vmin.f32 %v438, 20.0
        %v951 = vmin.f32 %v439, 20.0
        %v952 = vmin.f32 %v440, 20.0
        %v953 = vmin.f32 %v441, 20.0
        %v954 = vmin.f32 %v442, 20.0
        %v955 = vmin.f32 %v443, 20.0
        %v956 = vmin.f32 %v444, 20.0
        %v957 = vmin.f32 %v445, 20.0
        %v958 = vmin.f32 %v446, 20.0
        %v959 = vmin.f32 %v447, 20.0
        %v960 = vmin.f32 %v448, 20.0
        %v961 = vmin.f32 %v449, 20.0
        %v962 = vmin.f32 %v450, 20.0
        %v963 = vmin.f32 %v451, 20.0
        %v964 = vmin.f32 %v452, 20.0
        %v965 = vmin.f32 %v453, 20.0
        %v966 = vmin.f32 %v454, 20.0
        %v967 = vmin.f32 %v455, 20.0
        %v968 = vmin.f32 %v456, 20.0
        %v969 = vmin.f32 %v457, 20.0
        %v970 = vmin.f32 %v458, 20.0
        %v971 = vmin.f32 %v459, 20.0
        %v972 = vmin.f32 %v460, 20.0
        %v973 = vmin.f32 %v461, 20.0
        %v974 = vmin.f32 %v462, 20.0
        %v975 = vmin.f32 %v463, 20.0
        %v976 = vmin.f32 %v464, 20.0
        %v977 = vmin.f32 %v465, 20.0
        %v978 = vmin.f32 %v466, 20.0
        %v979 = vmin.f32 %v467, 20.0
        %v980 = vmin.f32 %v468, 20.0
        %v981 = vmin.f32 %v469, 20.0
        %v982 = vmin.f32 %v470, 20.0
        %v983 = vmin.f32 %v471, 20.0
        %v984 = vmin.f32 %v472, 20.0
        %v985 = vmin.f32 %v473, 20.0
        %v986 = vmin.f32 %v474, 20.0
        %v987 = vmin.f32 %v475, 20.0
        %v988 = vmin.f32 %v476, 20.0
        %v989 = vmin.f32 %v477, 20.0
        %v990 = vmin.f32 %v478, 20.0
        %v991 = vmin.f32 %v479, 20.0
        %v992 = vmin.f32 %v480, 20.0
        %v993 = vmin.f32 %v481, 20.0
        %v994 = vmin.f32 %v482, 20.0
        %v995 = vmin.f32 %v483, 20.0
        %v996 = vmin.f32 %v484, 20.0
        %v997 = vmin.f32 %v485, 20.0
        %v998 = vmin.f32 %v486, 20.0
        %v999 = vmin.f32 %v487, 20.0
        %v1000 = vmin.f32 %v488, 20.0
        %v1001 = vmin.f32 %v489, 20.0
        %v1002 = vmin.f32 %v490, 20.0
        %v1003 = vmin.f32 %v491, 20.0
        %v1004 = vmin.f32 %v492, 20.0
        %v1005 = vmin.f32 %v493, 20.0
        %v1006 = vmin.f32 %v494, 20.0
        %v1007 = vmin.f32 %v495, 20.0
        %v1008 = vmin.f32 %v496, 20.0
        %v1009 = vmin.f32 %v497, 20.0
        %v1010 = vmin.f32 %v498, 20.0
        %v1011 = vmin.f32 %v499, 20.0
        %v1012 = vmin.f32 %v500, 20.0
        %v1013 = vmin.f32 %v501, 20.0
        %v1014 = vmin.f32 %v502, 20.0
        %v1015 = vmin.f32 %v503, 20.0
        %v1016 = vmin.f32 %v504, 20.0
        %v1017 = vmin.f32 %v505, 20.0
        %v1018 = vmin.f32 %v506, 20.0
        %v1019 = vmin.f32 %v507, 20.0
        %v1020 = vmin.f32 %v508, 20.0
        %v1021 = vmin.f32 %v509, 20.0
        %v1022 = vmin.f32 %v510, 20.0
        %v1023 = vmin.f32 %v511, 20.0
        %v1024 = vmin.f32 %v512, 20.0
        %v1025 = vmin.f32 %v513, 20.0
        %v1026 = vmin.f32 %v514, 20.0
        %v1027 = vmin.f32 %v515, 20.0
        %v1028 = vmin.f32 %v516, 20.0
        %v1029 = vmin.f32 %v517, 20.0
        %v1030 = vmin.f32 %v518, 20.0
        %v1031 = vmin.f32 %v519, 20.0
        %v1032 = vmin.f32 %v520, 20.0
        %v1033 = vmin.f32 %v521, 20.0
        %v1034 = vmin.f32 %v522, 20.0
        %v1035 = vmin.f32 %v523, 20.0
        %v1036 = vmin.f32 %v524, 20.0
        %v1037 = vmin.f32 %v525, 20.0
        %v1038 = vmin.f32 %v526, 20.0
        %v1039 = vmin.f32 %v527, 20.0
        %v1040 = vmin.f32 %v528, 20.0
        %v1041 = vmin.f32 %v529, 20.0
        %v1042 = vmin.f32 %v530, 20.0
        %v1043 = vmin.f32 %v531, 20.0
        %v1044 = vmin.f32 %v532, 20.0
        %v1045 = vmin.f32 %v533, 20.0
        %v1046 = vmin.f32 %v534, 20.0
        %v1047 = vmin.f32 %v535, 20.0
        %v1048 = vmin.f32 %v536, 20.0
        %v1049 = vmin.f32 %v537, 20.0
        %v1050 = vmin.f32 %v538, 20.0
        %v1051 = vmin.f32 %v539, 20.0
        %v1052 = vmin.f32 %v540, 20.0
        %v1053 = vmin.f32 %v541, 20.0
        %v1054 = vmin.f32 %v542, 20.0
        %v1055 = vmin.f32 %v543, 20.0
        %v1056 = vmin.f32 %v544, 20.0
        %v1057 = vmin.f32 %v545, 20.0
        %v1058 = vmin.f32 %v546, 20.0
        %v1059 = vmin.f32 %v547, 20.0
        %v1060 = vmin.f32 %v548, 20.0
        %v1061 = vmin.f32 %v549, 20.0
        %v1062 = vmin.f32 %v550, 20.0
        %v1063 = vmin.f32 %v551, 20.0
        %v1064 = vmin.f32 %v552, 20.0
        %v1065 = vmin.f32 %v553, 20.0
        %v1066 = vmin.f32 %v554, 20.0
        %v1067 = vmin.f32 %v555, 20.0
        %v1068 = vmin.f32 %v556, 20.0
        %v1069 = vmin.f32 %v557, 20.0
        %v1070 = vmin.f32 %v558, 20.0
        %v1071 = vmin.f32 %v559, 20.0
        %v1072 = vmin.f32 %v560, 20.0
        %v1073 = vmin.f32 %v561, 20.0
        %v1074 = vmin.f32 %v562, 20.0
        %v1075 = vmin.f32 %v563, 20.0
        %v1076 = vmin.f32 %v564, 20.0
        %v1077 = vmin.f32 %v565, 20.0
        %v1078 = vmin.f32 %v566, 20.0
        %v1079 = vmin.f32 %v567, 20.0
        %v1080 = vmin.f32 %v568, 20.0
        %v1081 = vmin.f32 %v569, 20.0
        %v1082 = vmin.f32 %v570, 20.0
        %v1083 = vmin.f32 %v571, 20.0
        %v1084 = vmin.f32 %v572, 20.0
        %v1085 = vmin.f32 %v573, 20.0
        %v1086 = vmin.f32 %v574, 20.0
        %v1087 = vmin.f32 %v575, 20.0
        %v1088 = vmin.f32 %v576, 20.0
        %v1089 = vmin.f32 %v577, 20.0
        %v1090 = vmin.f32 %v578, 20.0
        %v1091 = vmin.f32 %v579, 20.0
        %v1092 = vmin.f32 %v580, 20.0
        %v1093 = vmin.f32 %v581, 20.0
        %v1094 = vmin.f32 %v582, 20.0
        %v1095 = vmin.f32 %v583, 20.0
        %v1096 = vmin.f32 %v584, 20.0
        %v1097 = vmin.f32 %v585, 20.0
        %v1098 = vmin.f32 %v586, 20.0
        %v1099 = vmin.f32 %v587, 20.0
        %v1100 = vmin.f32 %v588, 20.0
        %v1101 = vmin.f32 %v589, 20.0
        %v1102 = vmin.f32 %v590, 20.0
        %v1103 = vmin.f32 %v591, 20.0
        %v1104 = vmin.f32 %v592, 20.0
        %v1105 = vmin.f32 %v593, 20.0
        %v1106 = vmin.f32 %v594, 20.0
        %v1107 = vmin.f32 %v595, 20.0
        %v1108 = vmin.f32 %v596, 20.0
        %v1109 = vmin.f32 %v597, 20.0
        %v1110 = vmin.f32 %v598, 20.0
        %v1111 = vmin.f32 %v599, 20.0
        %v1112 = vmin.f32 %v600, 20.0
        %v1113 = vmin.f32 %v601, 20.0
        %v1114 = vmin.f32 %v602, 20.0
        %v1115 = vmin.f32 %v603, 20.0
        %v1116 = vmin.f32 %v604, 20.0
        %v1117 = vmin.f32 %v605, 20.0
        %v1118 = vmin.f32 %v606, 20.0
        %v1119 = vmin.f32 %v607, 20.0
        %v1120 = vmin.f32 %v608, 20.0
        %v1121 = vmin.f32 %v609, 20.0
        %v1122 = vmin.f32 %v610, 20.0
        %v1123 = vmin.f32 %v611, 20.0
        %v1124 = vmin.f32 %v612, 20.0
        %v1125 = vmin.f32 %v613, 20.0
        %v1126 = vmin.f32 %v614, 20.0
        %v1127 = vmin.f32 %v615, 20.0
        %v1128 = vmin.f32 %v616, 20.0
        %v1129 = vmin.f32 %v617, 20.0
        %v1130 = vmin.f32 %v618, 20.0
        %v1131 = vmin.f32 %v619, 20.0
        %v1132 = vmin.f32 %v620, 20.0
        %v1133 = vmin.f32 %v621, 20.0
        %v1134 = vmin.f32 %v622, 20.0
        %v1135 = vmin.f32 %v623, 20.0
        %v1136 = vmin.f32 %v624, 20.0
        %v1137 = vmin.f32 %v625, 20.0
        %v1138 = vmin.f32 %v626, 20.0
        %v1139 = vmin.f32 %v627, 20.0
        %v1140 = vmin.f32 %v628, 20.0
        %v1141 = vmin.f32 %v629, 20.0
        %v1142 = vmin.f32 %v630, 20.0
        %v1143 = vmin.f32 %v631, 20.0
        %v1144 = vmin.f32 %v632, 20.0
        %v1145 = vmin.f32 %v633, 20.0
        %v1146 = vmin.f32 %v634, 20.0
        %v1147 = vmin.f32 %v635, 20.0
        %v1148 = vmin.f32 %v636, 20.0
        %v1149 = vmin.f32 %v637, 20.0
        %v1150 = vmin.f32 %v638, 20.0
        %v1151 = vmin.f32 %v639, 20.0
        %v1152 = vmin.f32 %v640, 20.0
        %v1153 = vmin.f32 %v641, 20.0
        %v1154 = vmin.f32 %v642, 20.0
        %v1155 = vmin.f32 %v643, 20.0
        %v1156 = vmin.f32 %v644, 20.0
        %v1157 = vmin.f32 %v645, 20.0
        %v1158 = vmin.f32 %v646, 20.0
        %v1159 = vmin.f32 %v647, 20.0
        %v1160 = vmin.f32 %v648, 20.0
        %v1161 = vmul.f32 %v649, 1.442695
        %v1162 = vpow.pop %v1161
        %v1163 = vmul.f32 %v650, 1.442695
        %v1164 = vpow.pop %v1163
        %v1165 = vmul.f32 %v651, 1.442695
        %v1166 = vpow.pop %v1165
        %v1167 = vmul.f32 %v652, 1.442695
        %v1168 = vpow.pop %v1167
        %v1169 = vmul.f32 %v653, 1.442695
        %v1170 = vpow.pop %v1169
        %v1171 = vmul.f32 %v654, 1.442695
        %v1172 = vpow.pop %v1171
        %v1173 = vmul.f32 %v655, 1.442695
        %v1174 = vpow.pop %v1173
        %v1175 = vmul.f32 %v656, 1.442695
        %v1176 = vpow.pop %v1175
        %v1177 = vmul.f32 %v657, 1.442695
        %v1178 = vpow.pop %v1177
        %v1179 = vmul.f32 %v658, 1.442695
        %v1180 = vpow.pop %v1179
        %v1181 = vmul.f32 %v659, 1.442695
        %v1182 = vpow.pop %v1181
        %v1183 = vmul.f32 %v660, 1.442695
        %v1184 = vpow.pop %v1183
        %v1185 = vmul.f32 %v661, 1.442695
        %v1186 = vpow.pop %v1185
        %v1187 = vmul.f32 %v662, 1.442695
        %v1188 = vpow.pop %v1187
        %v1189 = vmul.f32 %v663, 1.442695
        %v1190 = vpow.pop %v1189
        %v1191 = vmul.f32 %v664, 1.442695
        %v1192 = vpow.pop %v1191
        %v1193 = vmul.f32 %v665, 1.442695
        %v1194 = vpow.pop %v1193
        %v1195 = vmul.f32 %v666, 1.442695
        %v1196 = vpow.pop %v1195
        %v1197 = vmul.f32 %v667, 1.442695
        %v1198 = vpow.pop %v1197
        %v1199 = vmul.f32 %v668, 1.442695
        %v1200 = vpow.pop %v1199
        %v1201 = vmul.f32 %v669, 1.442695
        %v1202 = vpow.pop %v1201
        %v1203 = vmul.f32 %v670, 1.442695
        %v1204 = vpow.pop %v1203
        %v1205 = vmul.f32 %v671, 1.442695
        %v1206 = vpow.pop %v1205
        %v1207 = vmul.f32 %v672, 1.442695
        %v1208 = vpow.pop %v1207
        %v1209 = vmul.f32 %v673, 1.442695
        %v1210 = vpow.pop %v1209
        %v1211 = vmul.f32 %v674, 1.442695
        %v1212 = vpow.pop %v1211
        %v1213 = vmul.f32 %v675, 1.442695
        %v1214 = vpow.pop %v1213
        %v1215 = vmul.f32 %v676, 1.442695
        %v1216 = vpow.pop %v1215
        %v1217 = vmul.f32 %v677, 1.442695
        %v1218 = vpow.pop %v1217
        %v1219 = vmul.f32 %v678, 1.442695
        %v1220 = vpow.pop %v1219
        %v1221 = vmul.f32 %v679, 1.442695
        %v1222 = vpow.pop %v1221
        %v1223 = vmul.f32 %v680, 1.442695
        %v1224 = vpow.pop %v1223
        %v1225 = vmul.f32 %v681, 1.442695
        %v1226 = vpow.pop %v1225
        %v1227 = vmul.f32 %v682, 1.442695
        %v1228 = vpow.pop %v1227
        %v1229 = vmul.f32 %v683, 1.442695
        %v1230 = vpow.pop %v1229
        %v1231 = vmul.f32 %v684, 1.442695
        %v1232 = vpow.pop %v1231
        %v1233 = vmul.f32 %v685, 1.442695
        %v1234 = vpow.pop %v1233
        %v1235 = vmul.f32 %v686, 1.442695
        %v1236 = vpow.pop %v1235
        %v1237 = vmul.f32 %v687, 1.442695
        %v1238 = vpow.pop %v1237
        %v1239 = vmul.f32 %v688, 1.442695
        %v1240 = vpow.pop %v1239
        %v1241 = vmul.f32 %v689, 1.442695
        %v1242 = vpow.pop %v1241
        %v1243 = vmul.f32 %v690, 1.442695
        %v1244 = vpow.pop %v1243
        %v1245 = vmul.f32 %v691, 1.442695
        %v1246 = vpow.pop %v1245
        %v1247 = vmul.f32 %v692, 1.442695
        %v1248 = vpow.pop %v1247
        %v1249 = vmul.f32 %v693, 1.442695
        %v1250 = vpow.pop %v1249
        %v1251 = vmul.f32 %v694, 1.442695
        %v1252 = vpow.pop %v1251
        %v1253 = vmul.f32 %v695, 1.442695
        %v1254 = vpow.pop %v1253
        %v1255 = vmul.f32 %v696, 1.442695
        %v1256 = vpow.pop %v1255
        %v1257 = vmul.f32 %v697, 1.442695
        %v1258 = vpow.pop %v1257
        %v1259 = vmul.f32 %v698, 1.442695
        %v1260 = vpow.pop %v1259
        %v1261 = vmul.f32 %v699, 1.442695
        %v1262 = vpow.pop %v1261
        %v1263 = vmul.f32 %v700, 1.442695
        %v1264 = vpow.pop %v1263
        %v1265 = vmul.f32 %v701, 1.442695
        %v1266 = vpow.pop %v1265
        %v1267 = vmul.f32 %v702, 1.442695
        %v1268 = vpow.pop %v1267
        %v1269 = vmul.f32 %v703, 1.442695
        %v1270 = vpow.pop %v1269
        %v1271 = vmul.f32 %v704, 1.442695
        %v1272 = vpow.pop %v1271
        %v1273 = vmul.f32 %v705, 1.442695
        %v1274 = vpow.pop %v1273
        %v1275 = vmul.f32 %v706, 1.442695
        %v1276 = vpow.pop %v1275
        %v1277 = vmul.f32 %v707, 1.442695
        %v1278 = vpow.pop %v1277
        %v1279 = vmul.f32 %v708, 1.442695
        %v1280 = vpow.pop %v1279
        %v1281 = vmul.f32 %v709, 1.442695
        %v1282 = vpow.pop %v1281
        %v1283 = vmul.f32 %v710, 1.442695
        %v1284 = vpow.pop %v1283
        %v1285 = vmul.f32 %v711, 1.442695
        %v1286 = vpow.pop %v1285
        %v1287 = vmul.f32 %v712, 1.442695
        %v1288 = vpow.pop %v1287
        %v1289 = vmul.f32 %v713, 1.442695
        %v1290 = vpow.pop %v1289
        %v1291 = vmul.f32 %v714, 1.442695
        %v1292 = vpow.pop %v1291
        %v1293 = vmul.f32 %v715, 1.442695
        %v1294 = vpow.pop %v1293
        %v1295 = vmul.f32 %v716, 1.442695
        %v1296 = vpow.pop %v1295
        %v1297 = vmul.f32 %v717, 1.442695
        %v1298 = vpow.pop %v1297
        %v1299 = vmul.f32 %v718, 1.442695
        %v1300 = vpow.pop %v1299
        %v1301 = vmul.f32 %v719, 1.442695
        %v1302 = vpow.pop %v1301
        %v1303 = vmul.f32 %v720, 1.442695
        %v1304 = vpow.pop %v1303
        %v1305 = vmul.f32 %v721, 1.442695
        %v1306 = vpow.pop %v1305
        %v1307 = vmul.f32 %v722, 1.442695
        %v1308 = vpow.pop %v1307
        %v1309 = vmul.f32 %v723, 1.442695
        %v1310 = vpow.pop %v1309
        %v1311 = vmul.f32 %v724, 1.442695
        %v1312 = vpow.pop %v1311
        %v1313 = vmul.f32 %v725, 1.442695
        %v1314 = vpow.pop %v1313
        %v1315 = vmul.f32 %v726, 1.442695
        %v1316 = vpow.pop %v1315
        %v1317 = vmul.f32 %v727, 1.442695
        %v1318 = vpow.pop %v1317
        %v1319 = vmul.f32 %v728, 1.442695
        %v1320 = vpow.pop %v1319
        %v1321 = vmul.f32 %v729, 1.442695
        %v1322 = vpow.pop %v1321
        %v1323 = vmul.f32 %v730, 1.442695
        %v1324 = vpow.pop %v1323
        %v1325 = vmul.f32 %v731, 1.442695
        %v1326 = vpow.pop %v1325
        %v1327 = vmul.f32 %v732, 1.442695
        %v1328 = vpow.pop %v1327
        %v1329 = vmul.f32 %v733, 1.442695
        %v1330 = vpow.pop %v1329
        %v1331 = vmul.f32 %v734, 1.442695
        %v1332 = vpow.pop %v1331
        %v1333 = vmul.f32 %v735, 1.442695
        %v1334 = vpow.pop %v1333
        %v1335 = vmul.f32 %v736, 1.442695
        %v1336 = vpow.pop %v1335
        %v1337 = vmul.f32 %v737, 1.442695
        %v1338 = vpow.pop %v1337
        %v1339 = vmul.f32 %v738, 1.442695
        %v1340 = vpow.pop %v1339
        %v1341 = vmul.f32 %v739, 1.442695
        %v1342 = vpow.pop %v1341
        %v1343 = vmul.f32 %v740, 1.442695
        %v1344 = vpow.pop %v1343
        %v1345 = vmul.f32 %v741, 1.442695
        %v1346 = vpow.pop %v1345
        %v1347 = vmul.f32 %v742, 1.442695
        %v1348 = vpow.pop %v1347
        %v1349 = vmul.f32 %v743, 1.442695
        %v1350 = vpow.pop %v1349
        %v1351 = vmul.f32 %v744, 1.442695
        %v1352 = vpow.pop %v1351
        %v1353 = vmul.f32 %v745, 1.442695
        %v1354 = vpow.pop %v1353
        %v1355 = vmul.f32 %v746, 1.442695
        %v1356 = vpow.pop %v1355
        %v1357 = vmul.f32 %v747, 1.442695
        %v1358 = vpow.pop %v1357
        %v1359 = vmul.f32 %v748, 1.442695
        %v1360 = vpow.pop %v1359
        %v1361 = vmul.f32 %v749, 1.442695
        %v1362 = vpow.pop %v1361
        %v1363 = vmul.f32 %v750, 1.442695
        %v1364 = vpow.pop %v1363
        %v1365 = vmul.f32 %v751, 1.442695
        %v1366 = vpow.pop %v1365
        %v1367 = vmul.f32 %v752, 1.442695
        %v1368 = vpow.pop %v1367
        %v1369 = vmul.f32 %v753, 1.442695
        %v1370 = vpow.pop %v1369
        %v1371 = vmul.f32 %v754, 1.442695
        %v1372 = vpow.pop %v1371
        %v1373 = vmul.f32 %v755, 1.442695
        %v1374 = vpow.pop %v1373
        %v1375 = vmul.f32 %v756, 1.442695
        %v1376 = vpow.pop %v1375
        %v1377 = vmul.f32 %v757, 1.442695
        %v1378 = vpow.pop %v1377
        %v1379 = vmul.f32 %v758, 1.442695
        %v1380 = vpow.pop %v1379
        %v1381 = vmul.f32 %v759, 1.442695
        %v1382 = vpow.pop %v1381
        %v1383 = vmul.f32 %v760, 1.442695
        %v1384 = vpow.pop %v1383
        %v1385 = vmul.f32 %v761, 1.442695
        %v1386 = vpow.pop %v1385
        %v1387 = vmul.f32 %v762, 1.442695
        %v1388 = vpow.pop %v1387
        %v1389 = vmul.f32 %v763, 1.442695
        %v1390 = vpow.pop %v1389
        %v1391 = vmul.f32 %v764, 1.442695
        %v1392 = vpow.pop %v1391
        %v1393 = vmul.f32 %v765, 1.442695
        %v1394 = vpow.pop %v1393
        %v1395 = vmul.f32 %v766, 1.442695
        %v1396 = vpow.pop %v1395
        %v1397 = vmul.f32 %v767, 1.442695
        %v1398 = vpow.pop %v1397
        %v1399 = vmul.f32 %v768, 1.442695
        %v1400 = vpow.pop %v1399
        %v1401 = vmul.f32 %v769, 1.442695
        %v1402 = vpow.pop %v1401
        %v1403 = vmul.f32 %v770, 1.442695
        %v1404 = vpow.pop %v1403
        %v1405 = vmul.f32 %v771, 1.442695
        %v1406 = vpow.pop %v1405
        %v1407 = vmul.f32 %v772, 1.442695
        %v1408 = vpow.pop %v1407
        %v1409 = vmul.f32 %v773, 1.442695
        %v1410 = vpow.pop %v1409
        %v1411 = vmul.f32 %v774, 1.442695
        %v1412 = vpow.pop %v1411
        %v1413 = vmul.f32 %v775, 1.442695
        %v1414 = vpow.pop %v1413
        %v1415 = vmul.f32 %v776, 1.442695
        %v1416 = vpow.pop %v1415
        %v1417 = vmul.f32 %v777, 1.442695
        %v1418 = vpow.pop %v1417
        %v1419 = vmul.f32 %v778, 1.442695
        %v1420 = vpow.pop %v1419
        %v1421 = vmul.f32 %v779, 1.442695
        %v1422 = vpow.pop %v1421
        %v1423 = vmul.f32 %v780, 1.442695
        %v1424 = vpow.pop %v1423
        %v1425 = vmul.f32 %v781, 1.442695
        %v1426 = vpow.pop %v1425
        %v1427 = vmul.f32 %v782, 1.442695
        %v1428 = vpow.pop %v1427
        %v1429 = vmul.f32 %v783, 1.442695
        %v1430 = vpow.pop %v1429
        %v1431 = vmul.f32 %v784, 1.442695
        %v1432 = vpow.pop %v1431
        %v1433 = vmul.f32 %v785, 1.442695
        %v1434 = vpow.pop %v1433
        %v1435 = vmul.f32 %v786, 1.442695
        %v1436 = vpow.pop %v1435
        %v1437 = vmul.f32 %v787, 1.442695
        %v1438 = vpow.pop %v1437
        %v1439 = vmul.f32 %v788, 1.442695
        %v1440 = vpow.pop %v1439
        %v1441 = vmul.f32 %v789, 1.442695
        %v1442 = vpow.pop %v1441
        %v1443 = vmul.f32 %v790, 1.442695
        %v1444 = vpow.pop %v1443
        %v1445 = vmul.f32 %v791, 1.442695
        %v1446 = vpow.pop %v1445
        %v1447 = vmul.f32 %v792, 1.442695
        %v1448 = vpow.pop %v1447
        %v1449 = vmul.f32 %v793, 1.442695
        %v1450 = vpow.pop %v1449
        %v1451 = vmul.f32 %v794, 1.442695
        %v1452 = vpow.pop %v1451
        %v1453 = vmul.f32 %v795, 1.442695
        %v1454 = vpow.pop %v1453
        %v1455 = vmul.f32 %v796, 1.442695
        %v1456 = vpow.pop %v1455
        %v1457 = vmul.f32 %v797, 1.442695
        %v1458 = vpow.pop %v1457
        %v1459 = vmul.f32 %v798, 1.442695
        %v1460 = vpow.pop %v1459
        %v1461 = vmul.f32 %v799, 1.442695
        %v1462 = vpow.pop %v1461
        %v1463 = vmul.f32 %v800, 1.442695
        %v1464 = vpow.pop %v1463
        %v1465 = vmul.f32 %v801, 1.442695
        %v1466 = vpow.pop %v1465
        %v1467 = vmul.f32 %v802, 1.442695
        %v1468 = vpow.pop %v1467
        %v1469 = vmul.f32 %v803, 1.442695
        %v1470 = vpow.pop %v1469
        %v1471 = vmul.f32 %v804, 1.442695
        %v1472 = vpow.pop %v1471
        %v1473 = vmul.f32 %v805, 1.442695
        %v1474 = vpow.pop %v1473
        %v1475 = vmul.f32 %v806, 1.442695
        %v1476 = vpow.pop %v1475
        %v1477 = vmul.f32 %v807, 1.442695
        %v1478 = vpow.pop %v1477
        %v1479 = vmul.f32 %v808, 1.442695
        %v1480 = vpow.pop %v1479
        %v1481 = vmul.f32 %v809, 1.442695
        %v1482 = vpow.pop %v1481
        %v1483 = vmul.f32 %v810, 1.442695
        %v1484 = vpow.pop %v1483
        %v1485 = vmul.f32 %v811, 1.442695
        %v1486 = vpow.pop %v1485
        %v1487 = vmul.f32 %v812, 1.442695
        %v1488 = vpow.pop %v1487
        %v1489 = vmul.f32 %v813, 1.442695
        %v1490 = vpow.pop %v1489
        %v1491 = vmul.f32 %v814, 1.442695
        %v1492 = vpow.pop %v1491
        %v1493 = vmul.f32 %v815, 1.442695
        %v1494 = vpow.pop %v1493
        %v1495 = vmul.f32 %v816, 1.442695
        %v1496 = vpow.pop %v1495
        %v1497 = vmul.f32 %v817, 1.442695
        %v1498 = vpow.pop %v1497
        %v1499 = vmul.f32 %v818, 1.442695
        %v1500 = vpow.pop %v1499
        %v1501 = vmul.f32 %v819, 1.442695
        %v1502 = vpow.pop %v1501
        %v1503 = vmul.f32 %v820, 1.442695
        %v1504 = vpow.pop %v1503
        %v1505 = vmul.f32 %v821, 1.442695
        %v1506 = vpow.pop %v1505
        %v1507 = vmul.f32 %v822, 1.442695
        %v1508 = vpow.pop %v1507
        %v1509 = vmul.f32 %v823, 1.442695
        %v1510 = vpow.pop %v1509
        %v1511 = vmul.f32 %v824, 1.442695
        %v1512 = vpow.pop %v1511
        %v1513 = vmul.f32 %v825, 1.442695
        %v1514 = vpow.pop %v1513
        %v1515 = vmul.f32 %v826, 1.442695
        %v1516 = vpow.pop %v1515
        %v1517 = vmul.f32 %v827, 1.442695
        %v1518 = vpow.pop %v1517
        %v1519 = vmul.f32 %v828, 1.442695
        %v1520 = vpow.pop %v1519
        %v1521 = vmul.f32 %v829, 1.442695
        %v1522 = vpow.pop %v1521
        %v1523 = vmul.f32 %v830, 1.442695
        %v1524 = vpow.pop %v1523
        %v1525 = vmul.f32 %v831, 1.442695
        %v1526 = vpow.pop %v1525
        %v1527 = vmul.f32 %v832, 1.442695
        %v1528 = vpow.pop %v1527
        %v1529 = vmul.f32 %v833, 1.442695
        %v1530 = vpow.pop %v1529
        %v1531 = vmul.f32 %v834, 1.442695
        %v1532 = vpow.pop %v1531
        %v1533 = vmul.f32 %v835, 1.442695
        %v1534 = vpow.pop %v1533
        %v1535 = vmul.f32 %v836, 1.442695
        %v1536 = vpow.pop %v1535
        %v1537 = vmul.f32 %v837, 1.442695
        %v1538 = vpow.pop %v1537
        %v1539 = vmul.f32 %v838, 1.442695
        %v1540 = vpow.pop %v1539
        %v1541 = vmul.f32 %v839, 1.442695
        %v1542 = vpow.pop %v1541
        %v1543 = vmul.f32 %v840, 1.442695
        %v1544 = vpow.pop %v1543
        %v1545 = vmul.f32 %v841, 1.442695
        %v1546 = vpow.pop %v1545
        %v1547 = vmul.f32 %v842, 1.442695
        %v1548 = vpow.pop %v1547
        %v1549 = vmul.f32 %v843, 1.442695
        %v1550 = vpow.pop %v1549
        %v1551 = vmul.f32 %v844, 1.442695
        %v1552 = vpow.pop %v1551
        %v1553 = vmul.f32 %v845, 1.442695
        %v1554 = vpow.pop %v1553
        %v1555 = vmul.f32 %v846, 1.442695
        %v1556 = vpow.pop %v1555
        %v1557 = vmul.f32 %v847, 1.442695
        %v1558 = vpow.pop %v1557
        %v1559 = vmul.f32 %v848, 1.442695
        %v1560 = vpow.pop %v1559
        %v1561 = vmul.f32 %v849, 1.442695
        %v1562 = vpow.pop %v1561
        %v1563 = vmul.f32 %v850, 1.442695
        %v1564 = vpow.pop %v1563
        %v1565 = vmul.f32 %v851, 1.442695
        %v1566 = vpow.pop %v1565
        %v1567 = vmul.f32 %v852, 1.442695
        %v1568 = vpow.pop %v1567
        %v1569 = vmul.f32 %v853, 1.442695
        %v1570 = vpow.pop %v1569
        %v1571 = vmul.f32 %v854, 1.442695
        %v1572 = vpow.pop %v1571
        %v1573 = vmul.f32 %v855, 1.442695
        %v1574 = vpow.pop %v1573
        %v1575 = vmul.f32 %v856, 1.442695
        %v1576 = vpow.pop %v1575
        %v1577 = vmul.f32 %v857, 1.442695
        %v1578 = vpow.pop %v1577
        %v1579 = vmul.f32 %v858, 1.442695
        %v1580 = vpow.pop %v1579
        %v1581 = vmul.f32 %v859, 1.442695
        %v1582 = vpow.pop %v1581
        %v1583 = vmul.f32 %v860, 1.442695
        %v1584 = vpow.pop %v1583
        %v1585 = vmul.f32 %v861, 1.442695
        %v1586 = vpow.pop %v1585
        %v1587 = vmul.f32 %v862, 1.442695
        %v1588 = vpow.pop %v1587
        %v1589 = vmul.f32 %v863, 1.442695
        %v1590 = vpow.pop %v1589
        %v1591 = vmul.f32 %v864, 1.442695
        %v1592 = vpow.pop %v1591
        %v1593 = vmul.f32 %v865, 1.442695
        %v1594 = vpow.pop %v1593
        %v1595 = vmul.f32 %v866, 1.442695
        %v1596 = vpow.pop %v1595
        %v1597 = vmul.f32 %v867, 1.442695
        %v1598 = vpow.pop %v1597
        %v1599 = vmul.f32 %v868, 1.442695
        %v1600 = vpow.pop %v1599
        %v1601 = vmul.f32 %v869, 1.442695
        %v1602 = vpow.pop %v1601
        %v1603 = vmul.f32 %v870, 1.442695
        %v1604 = vpow.pop %v1603
        %v1605 = vmul.f32 %v871, 1.442695
        %v1606 = vpow.pop %v1605
        %v1607 = vmul.f32 %v872, 1.442695
        %v1608 = vpow.pop %v1607
        %v1609 = vmul.f32 %v873, 1.442695
        %v1610 = vpow.pop %v1609
        %v1611 = vmul.f32 %v874, 1.442695
        %v1612 = vpow.pop %v1611
        %v1613 = vmul.f32 %v875, 1.442695
        %v1614 = vpow.pop %v1613
        %v1615 = vmul.f32 %v876, 1.442695
        %v1616 = vpow.pop %v1615
        %v1617 = vmul.f32 %v877, 1.442695
        %v1618 = vpow.pop %v1617
        %v1619 = vmul.f32 %v878, 1.442695
        %v1620 = vpow.pop %v1619
        %v1621 = vmul.f32 %v879, 1.442695
        %v1622 = vpow.pop %v1621
        %v1623 = vmul.f32 %v880, 1.442695
        %v1624 = vpow.pop %v1623
        %v1625 = vmul.f32 %v881, 1.442695
        %v1626 = vpow.pop %v1625
        %v1627 = vmul.f32 %v882, 1.442695
        %v1628 = vpow.pop %v1627
        %v1629 = vmul.f32 %v883, 1.442695
        %v1630 = vpow.pop %v1629
        %v1631 = vmul.f32 %v884, 1.442695
        %v1632 = vpow.pop %v1631
        %v1633 = vmul.f32 %v885, 1.442695
        %v1634 = vpow.pop %v1633
        %v1635 = vmul.f32 %v886, 1.442695
        %v1636 = vpow.pop %v1635
        %v1637 = vmul.f32 %v887, 1.442695
        %v1638 = vpow.pop %v1637
        %v1639 = vmul.f32 %v888, 1.442695
        %v1640 = vpow.pop %v1639
        %v1641 = vmul.f32 %v889, 1.442695
        %v1642 = vpow.pop %v1641
        %v1643 = vmul.f32 %v890, 1.442695
        %v1644 = vpow.pop %v1643
        %v1645 = vmul.f32 %v891, 1.442695
        %v1646 = vpow.pop %v1645
        %v1647 = vmul.f32 %v892, 1.442695
        %v1648 = vpow.pop %v1647
        %v1649 = vmul.f32 %v893, 1.442695
        %v1650 = vpow.pop %v1649
        %v1651 = vmul.f32 %v894, 1.442695
        %v1652 = vpow.pop %v1651
        %v1653 = vmul.f32 %v895, 1.442695
        %v1654 = vpow.pop %v1653
        %v1655 = vmul.f32 %v896, 1.442695
        %v1656 = vpow.pop %v1655
        %v1657 = vmul.f32 %v897, 1.442695
        %v1658 = vpow.pop %v1657
        %v1659 = vmul.f32 %v898, 1.442695
        %v1660 = vpow.pop %v1659
        %v1661 = vmul.f32 %v899, 1.442695
        %v1662 = vpow.pop %v1661
        %v1663 = vmul.f32 %v900, 1.442695
        %v1664 = vpow.pop %v1663
        %v1665 = vmul.f32 %v901, 1.442695
        %v1666 = vpow.pop %v1665
        %v1667 = vmul.f32 %v902, 1.442695
        %v1668 = vpow.pop %v1667
        %v1669 = vmul.f32 %v903, 1.442695
        %v1670 = vpow.pop %v1669
        %v1671 = vmul.f32 %v904, 1.442695
        %v1672 = vpow.pop %v1671
        %v1673 = vmul.f32 %v905, 1.442695
        %v1674 = vpow.pop %v1673
        %v1675 = vmul.f32 %v906, 1.442695
        %v1676 = vpow.pop %v1675
        %v1677 = vmul.f32 %v907, 1.442695
        %v1678 = vpow.pop %v1677
        %v1679 = vmul.f32 %v908, 1.442695
        %v1680 = vpow.pop %v1679
        %v1681 = vmul.f32 %v909, 1.442695
        %v1682 = vpow.pop %v1681
        %v1683 = vmul.f32 %v910, 1.442695
        %v1684 = vpow.pop %v1683
        %v1685 = vmul.f32 %v911, 1.442695
        %v1686 = vpow.pop %v1685
        %v1687 = vmul.f32 %v912, 1.442695
        %v1688 = vpow.pop %v1687
        %v1689 = vmul.f32 %v913, 1.442695
        %v1690 = vpow.pop %v1689
        %v1691 = vmul.f32 %v914, 1.442695
        %v1692 = vpow.pop %v1691
        %v1693 = vmul.f32 %v915, 1.442695
        %v1694 = vpow.pop %v1693
        %v1695 = vmul.f32 %v916, 1.442695
        %v1696 = vpow.pop %v1695
        %v1697 = vmul.f32 %v917, 1.442695
        %v1698 = vpow.pop %v1697
        %v1699 = vmul.f32 %v918, 1.442695
        %v1700 = vpow.pop %v1699
        %v1701 = vmul.f32 %v919, 1.442695
        %v1702 = vpow.pop %v1701
        %v1703 = vmul.f32 %v920, 1.442695
        %v1704 = vpow.pop %v1703
        %v1705 = vmul.f32 %v921, 1.442695
        %v1706 = vpow.pop %v1705
        %v1707 = vmul.f32 %v922, 1.442695
        %v1708 = vpow.pop %v1707
        %v1709 = vmul.f32 %v923, 1.442695
        %v1710 = vpow.pop %v1709
        %v1711 = vmul.f32 %v924, 1.442695
        %v1712 = vpow.pop %v1711
        %v1713 = vmul.f32 %v925, 1.442695
        %v1714 = vpow.pop %v1713
        %v1715 = vmul.f32 %v926, 1.442695
        %v1716 = vpow.pop %v1715
        %v1717 = vmul.f32 %v927, 1.442695
        %v1718 = vpow.pop %v1717
        %v1719 = vmul.f32 %v928, 1.442695
        %v1720 = vpow.pop %v1719
        %v1721 = vmul.f32 %v929, 1.442695
        %v1722 = vpow.pop %v1721
        %v1723 = vmul.f32 %v930, 1.442695
        %v1724 = vpow.pop %v1723
        %v1725 = vmul.f32 %v931, 1.442695
        %v1726 = vpow.pop %v1725
        %v1727 = vmul.f32 %v932, 1.442695
        %v1728 = vpow.pop %v1727
        %v1729 = vmul.f32 %v933, 1.442695
        %v1730 = vpow.pop %v1729
        %v1731 = vmul.f32 %v934, 1.442695
        %v1732 = vpow.pop %v1731
        %v1733 = vmul.f32 %v935, 1.442695
        %v1734 = vpow.pop %v1733
        %v1735 = vmul.f32 %v936, 1.442695
        %v1736 = vpow.pop %v1735
        %v1737 = vmul.f32 %v937, 1.442695
        %v1738 = vpow.pop %v1737
        %v1739 = vmul.f32 %v938, 1.442695
        %v1740 = vpow.pop %v1739
        %v1741 = vmul.f32 %v939, 1.442695
        %v1742 = vpow.pop %v1741
        %v1743 = vmul.f32 %v940, 1.442695
        %v1744 = vpow.pop %v1743
        %v1745 = vmul.f32 %v941, 1.442695
        %v1746 = vpow.pop %v1745
        %v1747 = vmul.f32 %v942, 1.442695
        %v1748 = vpow.pop %v1747
        %v1749 = vmul.f32 %v943, 1.442695
        %v1750 = vpow.pop %v1749
        %v1751 = vmul.f32 %v944, 1.442695
        %v1752 = vpow.pop %v1751
        %v1753 = vmul.f32 %v945, 1.442695
        %v1754 = vpow.pop %v1753
        %v1755 = vmul.f32 %v946, 1.442695
        %v1756 = vpow.pop %v1755
        %v1757 = vmul.f32 %v947, 1.442695
        %v1758 = vpow.pop %v1757
        %v1759 = vmul.f32 %v948, 1.442695
        %v1760 = vpow.pop %v1759
        %v1761 = vmul.f32 %v949, 1.442695
        %v1762 = vpow.pop %v1761
        %v1763 = vmul.f32 %v950, 1.442695
        %v1764 = vpow.pop %v1763
        %v1765 = vmul.f32 %v951, 1.442695
        %v1766 = vpow.pop %v1765
        %v1767 = vmul.f32 %v952, 1.442695
        %v1768 = vpow.pop %v1767
        %v1769 = vmul.f32 %v953, 1.442695
        %v1770 = vpow.pop %v1769
        %v1771 = vmul.f32 %v954, 1.442695
        %v1772 = vpow.pop %v1771
        %v1773 = vmul.f32 %v955, 1.442695
        %v1774 = vpow.pop %v1773
        %v1775 = vmul.f32 %v956, 1.442695
        %v1776 = vpow.pop %v1775
        %v1777 = vmul.f32 %v957, 1.442695
        %v1778 = vpow.pop %v1777
        %v1779 = vmul.f32 %v958, 1.442695
        %v1780 = vpow.pop %v1779
        %v1781 = vmul.f32 %v959, 1.442695
        %v1782 = vpow.pop %v1781
        %v1783 = vmul.f32 %v960, 1.442695
        %v1784 = vpow.pop %v1783
        %v1785 = vmul.f32 %v961, 1.442695
        %v1786 = vpow.pop %v1785
        %v1787 = vmul.f32 %v962, 1.442695
        %v1788 = vpow.pop %v1787
        %v1789 = vmul.f32 %v963, 1.442695
        %v1790 = vpow.pop %v1789
        %v1791 = vmul.f32 %v964, 1.442695
        %v1792 = vpow.pop %v1791
        %v1793 = vmul.f32 %v965, 1.442695
        %v1794 = vpow.pop %v1793
        %v1795 = vmul.f32 %v966, 1.442695
        %v1796 = vpow.pop %v1795
        %v1797 = vmul.f32 %v967, 1.442695
        %v1798 = vpow.pop %v1797
        %v1799 = vmul.f32 %v968, 1.442695
        %v1800 = vpow.pop %v1799
        %v1801 = vmul.f32 %v969, 1.442695
        %v1802 = vpow.pop %v1801
        %v1803 = vmul.f32 %v970, 1.442695
        %v1804 = vpow.pop %v1803
        %v1805 = vmul.f32 %v971, 1.442695
        %v1806 = vpow.pop %v1805
        %v1807 = vmul.f32 %v972, 1.442695
        %v1808 = vpow.pop %v1807
        %v1809 = vmul.f32 %v973, 1.442695
        %v1810 = vpow.pop %v1809
        %v1811 = vmul.f32 %v974, 1.442695
        %v1812 = vpow.pop %v1811
        %v1813 = vmul.f32 %v975, 1.442695
        %v1814 = vpow.pop %v1813
        %v1815 = vmul.f32 %v976, 1.442695
        %v1816 = vpow.pop %v1815
        %v1817 = vmul.f32 %v977, 1.442695
        %v1818 = vpow.pop %v1817
        %v1819 = vmul.f32 %v978, 1.442695
        %v1820 = vpow.pop %v1819
        %v1821 = vmul.f32 %v979, 1.442695
        %v1822 = vpow.pop %v1821
        %v1823 = vmul.f32 %v980, 1.442695
        %v1824 = vpow.pop %v1823
        %v1825 = vmul.f32 %v981, 1.442695
        %v1826 = vpow.pop %v1825
        %v1827 = vmul.f32 %v982, 1.442695
        %v1828 = vpow.pop %v1827
        %v1829 = vmul.f32 %v983, 1.442695
        %v1830 = vpow.pop %v1829
        %v1831 = vmul.f32 %v984, 1.442695
        %v1832 = vpow.pop %v1831
        %v1833 = vmul.f32 %v985, 1.442695
        %v1834 = vpow.pop %v1833
        %v1835 = vmul.f32 %v986, 1.442695
        %v1836 = vpow.pop %v1835
        %v1837 = vmul.f32 %v987, 1.442695
        %v1838 = vpow.pop %v1837
        %v1839 = vmul.f32 %v988, 1.442695
        %v1840 = vpow.pop %v1839
        %v1841 = vmul.f32 %v989, 1.442695
        %v1842 = vpow.pop %v1841
        %v1843 = vmul.f32 %v990, 1.442695
        %v1844 = vpow.pop %v1843
        %v1845 = vmul.f32 %v991, 1.442695
        %v1846 = vpow.pop %v1845
        %v1847 = vmul.f32 %v992, 1.442695
        %v1848 = vpow.pop %v1847
        %v1849 = vmul.f32 %v993, 1.442695
        %v1850 = vpow.pop %v1849
        %v1851 = vmul.f32 %v994, 1.442695
        %v1852 = vpow.pop %v1851
        %v1853 = vmul.f32 %v995, 1.442695
        %v1854 = vpow.pop %v1853
        %v1855 = vmul.f32 %v996, 1.442695
        %v1856 = vpow.pop %v1855
        %v1857 = vmul.f32 %v997, 1.442695
        %v1858 = vpow.pop %v1857
        %v1859 = vmul.f32 %v998, 1.442695
        %v1860 = vpow.pop %v1859
        %v1861 = vmul.f32 %v999, 1.442695
        %v1862 = vpow.pop %v1861
        %v1863 = vmul.f32 %v1000, 1.442695
        %v1864 = vpow.pop %v1863
        %v1865 = vmul.f32 %v1001, 1.442695
        %v1866 = vpow.pop %v1865
        %v1867 = vmul.f32 %v1002, 1.442695
        %v1868 = vpow.pop %v1867
        %v1869 = vmul.f32 %v1003, 1.442695
        %v1870 = vpow.pop %v1869
        %v1871 = vmul.f32 %v1004, 1.442695
        %v1872 = vpow.pop %v1871
        %v1873 = vmul.f32 %v1005, 1.442695
        %v1874 = vpow.pop %v1873
        %v1875 = vmul.f32 %v1006, 1.442695
        %v1876 = vpow.pop %v1875
        %v1877 = vmul.f32 %v1007, 1.442695
        %v1878 = vpow.pop %v1877
        %v1879 = vmul.f32 %v1008, 1.442695
        %v1880 = vpow.pop %v1879
        %v1881 = vmul.f32 %v1009, 1.442695
        %v1882 = vpow.pop %v1881
        %v1883 = vmul.f32 %v1010, 1.442695
        %v1884 = vpow.pop %v1883
        %v1885 = vmul.f32 %v1011, 1.442695
        %v1886 = vpow.pop %v1885
        %v1887 = vmul.f32 %v1012, 1.442695
        %v1888 = vpow.pop %v1887
        %v1889 = vmul.f32 %v1013, 1.442695
        %v1890 = vpow.pop %v1889
        %v1891 = vmul.f32 %v1014, 1.442695
        %v1892 = vpow.pop %v1891
        %v1893 = vmul.f32 %v1015, 1.442695
        %v1894 = vpow.pop %v1893
        %v1895 = vmul.f32 %v1016, 1.442695
        %v1896 = vpow.pop %v1895
        %v1897 = vmul.f32 %v1017, 1.442695
        %v1898 = vpow.pop %v1897
        %v1899 = vmul.f32 %v1018, 1.442695
        %v1900 = vpow.pop %v1899
        %v1901 = vmul.f32 %v1019, 1.442695
        %v1902 = vpow.pop %v1901
        %v1903 = vmul.f32 %v1020, 1.442695
        %v1904 = vpow.pop %v1903
        %v1905 = vmul.f32 %v1021, 1.442695
        %v1906 = vpow.pop %v1905
        %v1907 = vmul.f32 %v1022, 1.442695
        %v1908 = vpow.pop %v1907
        %v1909 = vmul.f32 %v1023, 1.442695
        %v1910 = vpow.pop %v1909
        %v1911 = vmul.f32 %v1024, 1.442695
        %v1912 = vpow.pop %v1911
        %v1913 = vmul.f32 %v1025, 1.442695
        %v1914 = vpow.pop %v1913
        %v1915 = vmul.f32 %v1026, 1.442695
        %v1916 = vpow.pop %v1915
        %v1917 = vmul.f32 %v1027, 1.442695
        %v1918 = vpow.pop %v1917
        %v1919 = vmul.f32 %v1028, 1.442695
        %v1920 = vpow.pop %v1919
        %v1921 = vmul.f32 %v1029, 1.442695
        %v1922 = vpow.pop %v1921
        %v1923 = vmul.f32 %v1030, 1.442695
        %v1924 = vpow.pop %v1923
        %v1925 = vmul.f32 %v1031, 1.442695
        %v1926 = vpow.pop %v1925
        %v1927 = vmul.f32 %v1032, 1.442695
        %v1928 = vpow.pop %v1927
        %v1929 = vmul.f32 %v1033, 1.442695
        %v1930 = vpow.pop %v1929
        %v1931 = vmul.f32 %v1034, 1.442695
        %v1932 = vpow.pop %v1931
        %v1933 = vmul.f32 %v1035, 1.442695
        %v1934 = vpow.pop %v1933
        %v1935 = vmul.f32 %v1036, 1.442695
        %v1936 = vpow.pop %v1935
        %v1937 = vmul.f32 %v1037, 1.442695
        %v1938 = vpow.pop %v1937
        %v1939 = vmul.f32 %v1038, 1.442695
        %v1940 = vpow.pop %v1939
        %v1941 = vmul.f32 %v1039, 1.442695
        %v1942 = vpow.pop %v1941
        %v1943 = vmul.f32 %v1040, 1.442695
        %v1944 = vpow.pop %v1943
        %v1945 = vmul.f32 %v1041, 1.442695
        %v1946 = vpow.pop %v1945
        %v1947 = vmul.f32 %v1042, 1.442695
        %v1948 = vpow.pop %v1947
        %v1949 = vmul.f32 %v1043, 1.442695
        %v1950 = vpow.pop %v1949
        %v1951 = vmul.f32 %v1044, 1.442695
        %v1952 = vpow.pop %v1951
        %v1953 = vmul.f32 %v1045, 1.442695
        %v1954 = vpow.pop %v1953
        %v1955 = vmul.f32 %v1046, 1.442695
        %v1956 = vpow.pop %v1955
        %v1957 = vmul.f32 %v1047, 1.442695
        %v1958 = vpow.pop %v1957
        %v1959 = vmul.f32 %v1048, 1.442695
        %v1960 = vpow.pop %v1959
        %v1961 = vmul.f32 %v1049, 1.442695
        %v1962 = vpow.pop %v1961
        %v1963 = vmul.f32 %v1050, 1.442695
        %v1964 = vpow.pop %v1963
        %v1965 = vmul.f32 %v1051, 1.442695
        %v1966 = vpow.pop %v1965
        %v1967 = vmul.f32 %v1052, 1.442695
        %v1968 = vpow.pop %v1967
        %v1969 = vmul.f32 %v1053, 1.442695
        %v1970 = vpow.pop %v1969
        %v1971 = vmul.f32 %v1054, 1.442695
        %v1972 = vpow.pop %v1971
        %v1973 = vmul.f32 %v1055, 1.442695
        %v1974 = vpow.pop %v1973
        %v1975 = vmul.f32 %v1056, 1.442695
        %v1976 = vpow.pop %v1975
        %v1977 = vmul.f32 %v1057, 1.442695
        %v1978 = vpow.pop %v1977
        %v1979 = vmul.f32 %v1058, 1.442695
        %v1980 = vpow.pop %v1979
        %v1981 = vmul.f32 %v1059, 1.442695
        %v1982 = vpow.pop %v1981
        %v1983 = vmul.f32 %v1060, 1.442695
        %v1984 = vpow.pop %v1983
        %v1985 = vmul.f32 %v1061, 1.442695
        %v1986 = vpow.pop %v1985
        %v1987 = vmul.f32 %v1062, 1.442695
        %v1988 = vpow.pop %v1987
        %v1989 = vmul.f32 %v1063, 1.442695
        %v1990 = vpow.pop %v1989
        %v1991 = vmul.f32 %v1064, 1.442695
        %v1992 = vpow.pop %v1991
        %v1993 = vmul.f32 %v1065, 1.442695
        %v1994 = vpow.pop %v1993
        %v1995 = vmul.f32 %v1066, 1.442695
        %v1996 = vpow.pop %v1995
        %v1997 = vmul.f32 %v1067, 1.442695
        %v1998 = vpow.pop %v1997
        %v1999 = vmul.f32 %v1068, 1.442695
        %v2000 = vpow.pop %v1999
        %v2001 = vmul.f32 %v1069, 1.442695
        %v2002 = vpow.pop %v2001
        %v2003 = vmul.f32 %v1070, 1.442695
        %v2004 = vpow.pop %v2003
        %v2005 = vmul.f32 %v1071, 1.442695
        %v2006 = vpow.pop %v2005
        %v2007 = vmul.f32 %v1072, 1.442695
        %v2008 = vpow.pop %v2007
        %v2009 = vmul.f32 %v1073, 1.442695
        %v2010 = vpow.pop %v2009
        %v2011 = vmul.f32 %v1074, 1.442695
        %v2012 = vpow.pop %v2011
        %v2013 = vmul.f32 %v1075, 1.442695
        %v2014 = vpow.pop %v2013
        %v2015 = vmul.f32 %v1076, 1.442695
        %v2016 = vpow.pop %v2015
        %v2017 = vmul.f32 %v1077, 1.442695
        %v2018 = vpow.pop %v2017
        %v2019 = vmul.f32 %v1078, 1.442695
        %v2020 = vpow.pop %v2019
        %v2021 = vmul.f32 %v1079, 1.442695
        %v2022 = vpow.pop %v2021
        %v2023 = vmul.f32 %v1080, 1.442695
        %v2024 = vpow.pop %v2023
        %v2025 = vmul.f32 %v1081, 1.442695
        %v2026 = vpow.pop %v2025
        %v2027 = vmul.f32 %v1082, 1.442695
        %v2028 = vpow.pop %v2027
        %v2029 = vmul.f32 %v1083, 1.442695
        %v2030 = vpow.pop %v2029
        %v2031 = vmul.f32 %v1084, 1.442695
        %v2032 = vpow.pop %v2031
        %v2033 = vmul.f32 %v1085, 1.442695
        %v2034 = vpow.pop %v2033
        %v2035 = vmul.f32 %v1086, 1.442695
        %v2036 = vpow.pop %v2035
        %v2037 = vmul.f32 %v1087, 1.442695
        %v2038 = vpow.pop %v2037
        %v2039 = vmul.f32 %v1088, 1.442695
        %v2040 = vpow.pop %v2039
        %v2041 = vmul.f32 %v1089, 1.442695
        %v2042 = vpow.pop %v2041
        %v2043 = vmul.f32 %v1090, 1.442695
        %v2044 = vpow.pop %v2043
        %v2045 = vmul.f32 %v1091, 1.442695
        %v2046 = vpow.pop %v2045
        %v2047 = vmul.f32 %v1092, 1.442695
        %v2048 = vpow.pop %v2047
        %v2049 = vmul.f32 %v1093, 1.442695
        %v2050 = vpow.pop %v2049
        %v2051 = vmul.f32 %v1094, 1.442695
        %v2052 = vpow.pop %v2051
        %v2053 = vmul.f32 %v1095, 1.442695
        %v2054 = vpow.pop %v2053
        %v2055 = vmul.f32 %v1096, 1.442695
        %v2056 = vpow.pop %v2055
        %v2057 = vmul.f32 %v1097, 1.442695
        %v2058 = vpow.pop %v2057
        %v2059 = vmul.f32 %v1098, 1.442695
        %v2060 = vpow.pop %v2059
        %v2061 = vmul.f32 %v1099, 1.442695
        %v2062 = vpow.pop %v2061
        %v2063 = vmul.f32 %v1100, 1.442695
        %v2064 = vpow.pop %v2063
        %v2065 = vmul.f32 %v1101, 1.442695
        %v2066 = vpow.pop %v2065
        %v2067 = vmul.f32 %v1102, 1.442695
        %v2068 = vpow.pop %v2067
        %v2069 = vmul.f32 %v1103, 1.442695
        %v2070 = vpow.pop %v2069
        %v2071 = vmul.f32 %v1104, 1.442695
        %v2072 = vpow.pop %v2071
        %v2073 = vmul.f32 %v1105, 1.442695
        %v2074 = vpow.pop %v2073
        %v2075 = vmul.f32 %v1106, 1.442695
        %v2076 = vpow.pop %v2075
        %v2077 = vmul.f32 %v1107, 1.442695
        %v2078 = vpow.pop %v2077
        %v2079 = vmul.f32 %v1108, 1.442695
        %v2080 = vpow.pop %v2079
        %v2081 = vmul.f32 %v1109, 1.442695
        %v2082 = vpow.pop %v2081
        %v2083 = vmul.f32 %v1110, 1.442695
        %v2084 = vpow.pop %v2083
        %v2085 = vmul.f32 %v1111, 1.442695
        %v2086 = vpow.pop %v2085
        %v2087 = vmul.f32 %v1112, 1.442695
        %v2088 = vpow.pop %v2087
        %v2089 = vmul.f32 %v1113, 1.442695
        %v2090 = vpow.pop %v2089
        %v2091 = vmul.f32 %v1114, 1.442695
        %v2092 = vpow.pop %v2091
        %v2093 = vmul.f32 %v1115, 1.442695
        %v2094 = vpow.pop %v2093
        %v2095 = vmul.f32 %v1116, 1.442695
        %v2096 = vpow.pop %v2095
        %v2097 = vmul.f32 %v1117, 1.442695
        %v2098 = vpow.pop %v2097
        %v2099 = vmul.f32 %v1118, 1.442695
        %v2100 = vpow.pop %v2099
        %v2101 = vmul.f32 %v1119, 1.442695
        %v2102 = vpow.pop %v2101
        %v2103 = vmul.f32 %v1120, 1.442695
        %v2104 = vpow.pop %v2103
        %v2105 = vmul.f32 %v1121, 1.442695
        %v2106 = vpow.pop %v2105
        %v2107 = vmul.f32 %v1122, 1.442695
        %v2108 = vpow.pop %v2107
        %v2109 = vmul.f32 %v1123, 1.442695
        %v2110 = vpow.pop %v2109
        %v2111 = vmul.f32 %v1124, 1.442695
        %v2112 = vpow.pop %v2111
        %v2113 = vmul.f32 %v1125, 1.442695
        %v2114 = vpow.pop %v2113
        %v2115 = vmul.f32 %v1126, 1.442695
        %v2116 = vpow.pop %v2115
        %v2117 = vmul.f32 %v1127, 1.442695
        %v2118 = vpow.pop %v2117
        %v2119 = vmul.f32 %v1128, 1.442695
        %v2120 = vpow.pop %v2119
        %v2121 = vmul.f32 %v1129, 1.442695
        %v2122 = vpow.pop %v2121
        %v2123 = vmul.f32 %v1130, 1.442695
        %v2124 = vpow.pop %v2123
        %v2125 = vmul.f32 %v1131, 1.442695
        %v2126 = vpow.pop %v2125
        %v2127 = vmul.f32 %v1132, 1.442695
        %v2128 = vpow.pop %v2127
        %v2129 = vmul.f32 %v1133, 1.442695
        %v2130 = vpow.pop %v2129
        %v2131 = vmul.f32 %v1134, 1.442695
        %v2132 = vpow.pop %v2131
        %v2133 = vmul.f32 %v1135, 1.442695
        %v2134 = vpow.pop %v2133
        %v2135 = vmul.f32 %v1136, 1.442695
        %v2136 = vpow.pop %v2135
        %v2137 = vmul.f32 %v1137, 1.442695
        %v2138 = vpow.pop %v2137
        %v2139 = vmul.f32 %v1138, 1.442695
        %v2140 = vpow.pop %v2139
        %v2141 = vmul.f32 %v1139, 1.442695
        %v2142 = vpow.pop %v2141
        %v2143 = vmul.f32 %v1140, 1.442695
        %v2144 = vpow.pop %v2143
        %v2145 = vmul.f32 %v1141, 1.442695
        %v2146 = vpow.pop %v2145
        %v2147 = vmul.f32 %v1142, 1.442695
        %v2148 = vpow.pop %v2147
        %v2149 = vmul.f32 %v1143, 1.442695
        %v2150 = vpow.pop %v2149
        %v2151 = vmul.f32 %v1144, 1.442695
        %v2152 = vpow.pop %v2151
        %v2153 = vmul.f32 %v1145, 1.442695
        %v2154 = vpow.pop %v2153
        %v2155 = vmul.f32 %v1146, 1.442695
        %v2156 = vpow.pop %v2155
        %v2157 = vmul.f32 %v1147, 1.442695
        %v2158 = vpow.pop %v2157
        %v2159 = vmul.f32 %v1148, 1.442695
        %v2160 = vpow.pop %v2159
        %v2161 = vmul.f32 %v1149, 1.442695
        %v2162 = vpow.pop %v2161
        %v2163 = vmul.f32 %v1150, 1.442695
        %v2164 = vpow.pop %v2163
        %v2165 = vmul.f32 %v1151, 1.442695
        %v2166 = vpow.pop %v2165
        %v2167 = vmul.f32 %v1152, 1.442695
        %v2168 = vpow.pop %v2167
        %v2169 = vmul.f32 %v1153, 1.442695
        %v2170 = vpow.pop %v2169
        %v2171 = vmul.f32 %v1154, 1.442695
        %v2172 = vpow.pop %v2171
        %v2173 = vmul.f32 %v1155, 1.442695
        %v2174 = vpow.pop %v2173
        %v2175 = vmul.f32 %v1156, 1.442695
        %v2176 = vpow.pop %v2175
        %v2177 = vmul.f32 %v1157, 1.442695
        %v2178 = vpow.pop %v2177
        %v2179 = vmul.f32 %v1158, 1.442695
        %v2180 = vpow.pop %v2179
        %v2181 = vmul.f32 %v1159, 1.442695
        %v2182 = vpow.pop %v2181
        %v2183 = vmul.f32 %v1160, 1.442695
        %v2184 = vpow.pop %v2183
        %v2185 = vadd.f32 %v1162, 2.0
        %v2186 = vadd.f32 %v1164, 2.0
        %v2187 = vadd.f32 %v1166, 2.0
        %v2188 = vadd.f32 %v1168, 2.0
        %v2189 = vadd.f32 %v1170, 2.0
        %v2190 = vadd.f32 %v1172, 2.0
        %v2191 = vadd.f32 %v1174, 2.0
        %v2192 = vadd.f32 %v1176, 2.0
        %v2193 = vadd.f32 %v1178, 2.0
        %v2194 = vadd.f32 %v1180, 2.0
        %v2195 = vadd.f32 %v1182, 2.0
        %v2196 = vadd.f32 %v1184, 2.0
        %v2197 = vadd.f32 %v1186, 2.0
        %v2198 = vadd.f32 %v1188, 2.0
        %v2199 = vadd.f32 %v1190, 2.0
        %v2200 = vadd.f32 %v1192, 2.0
        %v2201 = vadd.f32 %v1194, 2.0
        %v2202 = vadd.f32 %v1196, 2.0
        %v2203 = vadd.f32 %v1198, 2.0
        %v2204 = vadd.f32 %v1200, 2.0
        %v2205 = vadd.f32 %v1202, 2.0
        %v2206 = vadd.f32 %v1204, 2.0
        %v2207 = vadd.f32 %v1206, 2.0
        %v2208 = vadd.f32 %v1208, 2.0
        %v2209 = vadd.f32 %v1210, 2.0
        %v2210 = vadd.f32 %v1212, 2.0
        %v2211 = vadd.f32 %v1214, 2.0
        %v2212 = vadd.f32 %v1216, 2.0
        %v2213 = vadd.f32 %v1218, 2.0
        %v2214 = vadd.f32 %v1220, 2.0
        %v2215 = vadd.f32 %v1222, 2.0
        %v2216 = vadd.f32 %v1224, 2.0
        %v2217 = vadd.f32 %v1226, 2.0
        %v2218 = vadd.f32 %v1228, 2.0
        %v2219 = vadd.f32 %v1230, 2.0
        %v2220 = vadd.f32 %v1232, 2.0
        %v2221 = vadd.f32 %v1234, 2.0
        %v2222 = vadd.f32 %v1236, 2.0
        %v2223 = vadd.f32 %v1238, 2.0
        %v2224 = vadd.f32 %v1240, 2.0
        %v2225 = vadd.f32 %v1242, 2.0
        %v2226 = vadd.f32 %v1244, 2.0
        %v2227 = vadd.f32 %v1246, 2.0
        %v2228 = vadd.f32 %v1248, 2.0
        %v2229 = vadd.f32 %v1250, 2.0
        %v2230 = vadd.f32 %v1252, 2.0
        %v2231 = vadd.f32 %v1254, 2.0
        %v2232 = vadd.f32 %v1256, 2.0
        %v2233 = vadd.f32 %v1258, 2.0
        %v2234 = vadd.f32 %v1260, 2.0
        %v2235 = vadd.f32 %v1262, 2.0
        %v2236 = vadd.f32 %v1264, 2.0
        %v2237 = vadd.f32 %v1266, 2.0
        %v2238 = vadd.f32 %v1268, 2.0
        %v2239 = vadd.f32 %v1270, 2.0
        %v2240 = vadd.f32 %v1272, 2.0
        %v2241 = vadd.f32 %v1274, 2.0
        %v2242 = vadd.f32 %v1276, 2.0
        %v2243 = vadd.f32 %v1278, 2.0
        %v2244 = vadd.f32 %v1280, 2.0
        %v2245 = vadd.f32 %v1282, 2.0
        %v2246 = vadd.f32 %v1284, 2.0
        %v2247 = vadd.f32 %v1286, 2.0
        %v2248 = vadd.f32 %v1288, 2.0
        %v2249 = vadd.f32 %v1290, 2.0
        %v2250 = vadd.f32 %v1292, 2.0
        %v2251 = vadd.f32 %v1294, 2.0
        %v2252 = vadd.f32 %v1296, 2.0
        %v2253 = vadd.f32 %v1298, 2.0
        %v2254 = vadd.f32 %v1300, 2.0
        %v2255 = vadd.f32 %v1302, 2.0
        %v2256 = vadd.f32 %v1304, 2.0
        %v2257 = vadd.f32 %v1306, 2.0
        %v2258 = vadd.f32 %v1308, 2.0
        %v2259 = vadd.f32 %v1310, 2.0
        %v2260 = vadd.f32 %v1312, 2.0
        %v2261 = vadd.f32 %v1314, 2.0
        %v2262 = vadd.f32 %v1316, 2.0
        %v2263 = vadd.f32 %v1318, 2.0
        %v2264 = vadd.f32 %v1320, 2.0
        %v2265 = vadd.f32 %v1322, 2.0
        %v2266 = vadd.f32 %v1324, 2.0
        %v2267 = vadd.f32 %v1326, 2.0
        %v2268 = vadd.f32 %v1328, 2.0
        %v2269 = vadd.f32 %v1330, 2.0
        %v2270 = vadd.f32 %v1332, 2.0
        %v2271 = vadd.f32 %v1334, 2.0
        %v2272 = vadd.f32 %v1336, 2.0
        %v2273 = vadd.f32 %v1338, 2.0
        %v2274 = vadd.f32 %v1340, 2.0
        %v2275 = vadd.f32 %v1342, 2.0
        %v2276 = vadd.f32 %v1344, 2.0
        %v2277 = vadd.f32 %v1346, 2.0
        %v2278 = vadd.f32 %v1348, 2.0
        %v2279 = vadd.f32 %v1350, 2.0
        %v2280 = vadd.f32 %v1352, 2.0
        %v2281 = vadd.f32 %v1354, 2.0
        %v2282 = vadd.f32 %v1356, 2.0
        %v2283 = vadd.f32 %v1358, 2.0
        %v2284 = vadd.f32 %v1360, 2.0
        %v2285 = vadd.f32 %v1362, 2.0
        %v2286 = vadd.f32 %v1364, 2.0
        %v2287 = vadd.f32 %v1366, 2.0
        %v2288 = vadd.f32 %v1368, 2.0
        %v2289 = vadd.f32 %v1370, 2.0
        %v2290 = vadd.f32 %v1372, 2.0
        %v2291 = vadd.f32 %v1374, 2.0
        %v2292 = vadd.f32 %v1376, 2.0
        %v2293 = vadd.f32 %v1378, 2.0
        %v2294 = vadd.f32 %v1380, 2.0
        %v2295 = vadd.f32 %v1382, 2.0
        %v2296 = vadd.f32 %v1384, 2.0
        %v2297 = vadd.f32 %v1386, 2.0
        %v2298 = vadd.f32 %v1388, 2.0
        %v2299 = vadd.f32 %v1390, 2.0
        %v2300 = vadd.f32 %v1392, 2.0
        %v2301 = vadd.f32 %v1394, 2.0
        %v2302 = vadd.f32 %v1396, 2.0
        %v2303 = vadd.f32 %v1398, 2.0
        %v2304 = vadd.f32 %v1400, 2.0
        %v2305 = vadd.f32 %v1402, 2.0
        %v2306 = vadd.f32 %v1404, 2.0
        %v2307 = vadd.f32 %v1406, 2.0
        %v2308 = vadd.f32 %v1408, 2.0
        %v2309 = vadd.f32 %v1410, 2.0
        %v2310 = vadd.f32 %v1412, 2.0
        %v2311 = vadd.f32 %v1414, 2.0
        %v2312 = vadd.f32 %v1416, 2.0
        %v2313 = vadd.f32 %v1418, 2.0
        %v2314 = vadd.f32 %v1420, 2.0
        %v2315 = vadd.f32 %v1422, 2.0
        %v2316 = vadd.f32 %v1424, 2.0
        %v2317 = vadd.f32 %v1426, 2.0
        %v2318 = vadd.f32 %v1428, 2.0
        %v2319 = vadd.f32 %v1430, 2.0
        %v2320 = vadd.f32 %v1432, 2.0
        %v2321 = vadd.f32 %v1434, 2.0
        %v2322 = vadd.f32 %v1436, 2.0
        %v2323 = vadd.f32 %v1438, 2.0
        %v2324 = vadd.f32 %v1440, 2.0
        %v2325 = vadd.f32 %v1442, 2.0
        %v2326 = vadd.f32 %v1444, 2.0
        %v2327 = vadd.f32 %v1446, 2.0
        %v2328 = vadd.f32 %v1448, 2.0
        %v2329 = vadd.f32 %v1450, 2.0
        %v2330 = vadd.f32 %v1452, 2.0
        %v2331 = vadd.f32 %v1454, 2.0
        %v2332 = vadd.f32 %v1456, 2.0
        %v2333 = vadd.f32 %v1458, 2.0
        %v2334 = vadd.f32 %v1460, 2.0
        %v2335 = vadd.f32 %v1462, 2.0
        %v2336 = vadd.f32 %v1464, 2.0
        %v2337 = vadd.f32 %v1466, 2.0
        %v2338 = vadd.f32 %v1468, 2.0
        %v2339 = vadd.f32 %v1470, 2.0
        %v2340 = vadd.f32 %v1472, 2.0
        %v2341 = vadd.f32 %v1474, 2.0
        %v2342 = vadd.f32 %v1476, 2.0
        %v2343 = vadd.f32 %v1478, 2.0
        %v2344 = vadd.f32 %v1480, 2.0
        %v2345 = vadd.f32 %v1482, 2.0
        %v2346 = vadd.f32 %v1484, 2.0
        %v2347 = vadd.f32 %v1486, 2.0
        %v2348 = vadd.f32 %v1488, 2.0
        %v2349 = vadd.f32 %v1490, 2.0
        %v2350 = vadd.f32 %v1492, 2.0
        %v2351 = vadd.f32 %v1494, 2.0
        %v2352 = vadd.f32 %v1496, 2.0
        %v2353 = vadd.f32 %v1498, 2.0
        %v2354 = vadd.f32 %v1500, 2.0
        %v2355 = vadd.f32 %v1502, 2.0
        %v2356 = vadd.f32 %v1504, 2.0
        %v2357 = vadd.f32 %v1506, 2.0
        %v2358 = vadd.f32 %v1508, 2.0
        %v2359 = vadd.f32 %v1510, 2.0
        %v2360 = vadd.f32 %v1512, 2.0
        %v2361 = vadd.f32 %v1514, 2.0
        %v2362 = vadd.f32 %v1516, 2.0
        %v2363 = vadd.f32 %v1518, 2.0
        %v2364 = vadd.f32 %v1520, 2.0
        %v2365 = vadd.f32 %v1522, 2.0
        %v2366 = vadd.f32 %v1524, 2.0
        %v2367 = vadd.f32 %v1526, 2.0
        %v2368 = vadd.f32 %v1528, 2.0
        %v2369 = vadd.f32 %v1530, 2.0
        %v2370 = vadd.f32 %v1532, 2.0
        %v2371 = vadd.f32 %v1534, 2.0
        %v2372 = vadd.f32 %v1536, 2.0
        %v2373 = vadd.f32 %v1538, 2.0
        %v2374 = vadd.f32 %v1540, 2.0
        %v2375 = vadd.f32 %v1542, 2.0
        %v2376 = vadd.f32 %v1544, 2.0
        %v2377 = vadd.f32 %v1546, 2.0
        %v2378 = vadd.f32 %v1548, 2.0
        %v2379 = vadd.f32 %v1550, 2.0
        %v2380 = vadd.f32 %v1552, 2.0
        %v2381 = vadd.f32 %v1554, 2.0
        %v2382 = vadd.f32 %v1556, 2.0
        %v2383 = vadd.f32 %v1558, 2.0
        %v2384 = vadd.f32 %v1560, 2.0
        %v2385 = vadd.f32 %v1562, 2.0
        %v2386 = vadd.f32 %v1564, 2.0
        %v2387 = vadd.f32 %v1566, 2.0
        %v2388 = vadd.f32 %v1568, 2.0
        %v2389 = vadd.f32 %v1570, 2.0
        %v2390 = vadd.f32 %v1572, 2.0
        %v2391 = vadd.f32 %v1574, 2.0
        %v2392 = vadd.f32 %v1576, 2.0
        %v2393 = vadd.f32 %v1578, 2.0
        %v2394 = vadd.f32 %v1580, 2.0
        %v2395 = vadd.f32 %v1582, 2.0
        %v2396 = vadd.f32 %v1584, 2.0
        %v2397 = vadd.f32 %v1586, 2.0
        %v2398 = vadd.f32 %v1588, 2.0
        %v2399 = vadd.f32 %v1590, 2.0
        %v2400 = vadd.f32 %v1592, 2.0
        %v2401 = vadd.f32 %v1594, 2.0
        %v2402 = vadd.f32 %v1596, 2.0
        %v2403 = vadd.f32 %v1598, 2.0
        %v2404 = vadd.f32 %v1600, 2.0
        %v2405 = vadd.f32 %v1602, 2.0
        %v2406 = vadd.f32 %v1604, 2.0
        %v2407 = vadd.f32 %v1606, 2.0
        %v2408 = vadd.f32 %v1608, 2.0
        %v2409 = vadd.f32 %v1610, 2.0
        %v2410 = vadd.f32 %v1612, 2.0
        %v2411 = vadd.f32 %v1614, 2.0
        %v2412 = vadd.f32 %v1616, 2.0
        %v2413 = vadd.f32 %v1618, 2.0
        %v2414 = vadd.f32 %v1620, 2.0
        %v2415 = vadd.f32 %v1622, 2.0
        %v2416 = vadd.f32 %v1624, 2.0
        %v2417 = vadd.f32 %v1626, 2.0
        %v2418 = vadd.f32 %v1628, 2.0
        %v2419 = vadd.f32 %v1630, 2.0
        %v2420 = vadd.f32 %v1632, 2.0
        %v2421 = vadd.f32 %v1634, 2.0
        %v2422 = vadd.f32 %v1636, 2.0
        %v2423 = vadd.f32 %v1638, 2.0
        %v2424 = vadd.f32 %v1640, 2.0
        %v2425 = vadd.f32 %v1642, 2.0
        %v2426 = vadd.f32 %v1644, 2.0
        %v2427 = vadd.f32 %v1646, 2.0
        %v2428 = vadd.f32 %v1648, 2.0
        %v2429 = vadd.f32 %v1650, 2.0
        %v2430 = vadd.f32 %v1652, 2.0
        %v2431 = vadd.f32 %v1654, 2.0
        %v2432 = vadd.f32 %v1656, 2.0
        %v2433 = vadd.f32 %v1658, 2.0
        %v2434 = vadd.f32 %v1660, 2.0
        %v2435 = vadd.f32 %v1662, 2.0
        %v2436 = vadd.f32 %v1664, 2.0
        %v2437 = vadd.f32 %v1666, 2.0
        %v2438 = vadd.f32 %v1668, 2.0
        %v2439 = vadd.f32 %v1670, 2.0
        %v2440 = vadd.f32 %v1672, 2.0
        %v2441 = vadd.f32 %v1674, 2.0
        %v2442 = vadd.f32 %v1676, 2.0
        %v2443 = vadd.f32 %v1678, 2.0
        %v2444 = vadd.f32 %v1680, 2.0
        %v2445 = vadd.f32 %v1682, 2.0
        %v2446 = vadd.f32 %v1684, 2.0
        %v2447 = vadd.f32 %v1686, 2.0
        %v2448 = vadd.f32 %v1688, 2.0
        %v2449 = vadd.f32 %v1690, 2.0
        %v2450 = vadd.f32 %v1692, 2.0
        %v2451 = vadd.f32 %v1694, 2.0
        %v2452 = vadd.f32 %v1696, 2.0
        %v2453 = vadd.f32 %v1698, 2.0
        %v2454 = vadd.f32 %v1700, 2.0
        %v2455 = vadd.f32 %v1702, 2.0
        %v2456 = vadd.f32 %v1704, 2.0
        %v2457 = vadd.f32 %v1706, 2.0
        %v2458 = vadd.f32 %v1708, 2.0
        %v2459 = vadd.f32 %v1710, 2.0
        %v2460 = vadd.f32 %v1712, 2.0
        %v2461 = vadd.f32 %v1714, 2.0
        %v2462 = vadd.f32 %v1716, 2.0
        %v2463 = vadd.f32 %v1718, 2.0
        %v2464 = vadd.f32 %v1720, 2.0
        %v2465 = vadd.f32 %v1722, 2.0
        %v2466 = vadd.f32 %v1724, 2.0
        %v2467 = vadd.f32 %v1726, 2.0
        %v2468 = vadd.f32 %v1728, 2.0
        %v2469 = vadd.f32 %v1730, 2.0
        %v2470 = vadd.f32 %v1732, 2.0
        %v2471 = vadd.f32 %v1734, 2.0
        %v2472 = vadd.f32 %v1736, 2.0
        %v2473 = vadd.f32 %v1738, 2.0
        %v2474 = vadd.f32 %v1740, 2.0
        %v2475 = vadd.f32 %v1742, 2.0
        %v2476 = vadd.f32 %v1744, 2.0
        %v2477 = vadd.f32 %v1746, 2.0
        %v2478 = vadd.f32 %v1748, 2.0
        %v2479 = vadd.f32 %v1750, 2.0
        %v2480 = vadd.f32 %v1752, 2.0
        %v2481 = vadd.f32 %v1754, 2.0
        %v2482 = vadd.f32 %v1756, 2.0
        %v2483 = vadd.f32 %v1758, 2.0
        %v2484 = vadd.f32 %v1760, 2.0
        %v2485 = vadd.f32 %v1762, 2.0
        %v2486 = vadd.f32 %v1764, 2.0
        %v2487 = vadd.f32 %v1766, 2.0
        %v2488 = vadd.f32 %v1768, 2.0
        %v2489 = vadd.f32 %v1770, 2.0
        %v2490 = vadd.f32 %v1772, 2.0
        %v2491 = vadd.f32 %v1774, 2.0
        %v2492 = vadd.f32 %v1776, 2.0
        %v2493 = vadd.f32 %v1778, 2.0
        %v2494 = vadd.f32 %v1780, 2.0
        %v2495 = vadd.f32 %v1782, 2.0
        %v2496 = vadd.f32 %v1784, 2.0
        %v2497 = vadd.f32 %v1786, 2.0
        %v2498 = vadd.f32 %v1788, 2.0
        %v2499 = vadd.f32 %v1790, 2.0
        %v2500 = vadd.f32 %v1792, 2.0
        %v2501 = vadd.f32 %v1794, 2.0
        %v2502 = vadd.f32 %v1796, 2.0
        %v2503 = vadd.f32 %v1798, 2.0
        %v2504 = vadd.f32 %v1800, 2.0
        %v2505 = vadd.f32 %v1802, 2.0
        %v2506 = vadd.f32 %v1804, 2.0
        %v2507 = vadd.f32 %v1806, 2.0
        %v2508 = vadd.f32 %v1808, 2.0
        %v2509 = vadd.f32 %v1810, 2.0
        %v2510 = vadd.f32 %v1812, 2.0
        %v2511 = vadd.f32 %v1814, 2.0
        %v2512 = vadd.f32 %v1816, 2.0
        %v2513 = vadd.f32 %v1818, 2.0
        %v2514 = vadd.f32 %v1820, 2.0
        %v2515 = vadd.f32 %v1822, 2.0
        %v2516 = vadd.f32 %v1824, 2.0
        %v2517 = vadd.f32 %v1826, 2.0
        %v2518 = vadd.f32 %v1828, 2.0
        %v2519 = vadd.f32 %v1830, 2.0
        %v2520 = vadd.f32 %v1832, 2.0
        %v2521 = vadd.f32 %v1834, 2.0
        %v2522 = vadd.f32 %v1836, 2.0
        %v2523 = vadd.f32 %v1838, 2.0
        %v2524 = vadd.f32 %v1840, 2.0
        %v2525 = vadd.f32 %v1842, 2.0
        %v2526 = vadd.f32 %v1844, 2.0
        %v2527 = vadd.f32 %v1846, 2.0
        %v2528 = vadd.f32 %v1848, 2.0
        %v2529 = vadd.f32 %v1850, 2.0
        %v2530 = vadd.f32 %v1852, 2.0
        %v2531 = vadd.f32 %v1854, 2.0
        %v2532 = vadd.f32 %v1856, 2.0
        %v2533 = vadd.f32 %v1858, 2.0
        %v2534 = vadd.f32 %v1860, 2.0
        %v2535 = vadd.f32 %v1862, 2.0
        %v2536 = vadd.f32 %v1864, 2.0
        %v2537 = vadd.f32 %v1866, 2.0
        %v2538 = vadd.f32 %v1868, 2.0
        %v2539 = vadd.f32 %v1870, 2.0
        %v2540 = vadd.f32 %v1872, 2.0
        %v2541 = vadd.f32 %v1874, 2.0
        %v2542 = vadd.f32 %v1876, 2.0
        %v2543 = vadd.f32 %v1878, 2.0
        %v2544 = vadd.f32 %v1880, 2.0
        %v2545 = vadd.f32 %v1882, 2.0
        %v2546 = vadd.f32 %v1884, 2.0
        %v2547 = vadd.f32 %v1886, 2.0
        %v2548 = vadd.f32 %v1888, 2.0
        %v2549 = vadd.f32 %v1890, 2.0
        %v2550 = vadd.f32 %v1892, 2.0
        %v2551 = vadd.f32 %v1894, 2.0
        %v2552 = vadd.f32 %v1896, 2.0
        %v2553 = vadd.f32 %v1898, 2.0
        %v2554 = vadd.f32 %v1900, 2.0
        %v2555 = vadd.f32 %v1902, 2.0
        %v2556 = vadd.f32 %v1904, 2.0
        %v2557 = vadd.f32 %v1906, 2.0
        %v2558 = vadd.f32 %v1908, 2.0
        %v2559 = vadd.f32 %v1910, 2.0
        %v2560 = vadd.f32 %v1912, 2.0
        %v2561 = vadd.f32 %v1914, 2.0
        %v2562 = vadd.f32 %v1916, 2.0
        %v2563 = vadd.f32 %v1918, 2.0
        %v2564 = vadd.f32 %v1920, 2.0
        %v2565 = vadd.f32 %v1922, 2.0
        %v2566 = vadd.f32 %v1924, 2.0
        %v2567 = vadd.f32 %v1926, 2.0
        %v2568 = vadd.f32 %v1928, 2.0
        %v2569 = vadd.f32 %v1930, 2.0
        %v2570 = vadd.f32 %v1932, 2.0
        %v2571 = vadd.f32 %v1934, 2.0
        %v2572 = vadd.f32 %v1936, 2.0
        %v2573 = vadd.f32 %v1938, 2.0
        %v2574 = vadd.f32 %v1940, 2.0
        %v2575 = vadd.f32 %v1942, 2.0
        %v2576 = vadd.f32 %v1944, 2.0
        %v2577 = vadd.f32 %v1946, 2.0
        %v2578 = vadd.f32 %v1948, 2.0
        %v2579 = vadd.f32 %v1950, 2.0
        %v2580 = vadd.f32 %v1952, 2.0
        %v2581 = vadd.f32 %v1954, 2.0
        %v2582 = vadd.f32 %v1956, 2.0
        %v2583 = vadd.f32 %v1958, 2.0
        %v2584 = vadd.f32 %v1960, 2.0
        %v2585 = vadd.f32 %v1962, 2.0
        %v2586 = vadd.f32 %v1964, 2.0
        %v2587 = vadd.f32 %v1966, 2.0
        %v2588 = vadd.f32 %v1968, 2.0
        %v2589 = vadd.f32 %v1970, 2.0
        %v2590 = vadd.f32 %v1972, 2.0
        %v2591 = vadd.f32 %v1974, 2.0
        %v2592 = vadd.f32 %v1976, 2.0
        %v2593 = vadd.f32 %v1978, 2.0
        %v2594 = vadd.f32 %v1980, 2.0
        %v2595 = vadd.f32 %v1982, 2.0
        %v2596 = vadd.f32 %v1984, 2.0
        %v2597 = vadd.f32 %v1986, 2.0
        %v2598 = vadd.f32 %v1988, 2.0
        %v2599 = vadd.f32 %v1990, 2.0
        %v2600 = vadd.f32 %v1992, 2.0
        %v2601 = vadd.f32 %v1994, 2.0
        %v2602 = vadd.f32 %v1996, 2.0
        %v2603 = vadd.f32 %v1998, 2.0
        %v2604 = vadd.f32 %v2000, 2.0
        %v2605 = vadd.f32 %v2002, 2.0
        %v2606 = vadd.f32 %v2004, 2.0
        %v2607 = vadd.f32 %v2006, 2.0
        %v2608 = vadd.f32 %v2008, 2.0
        %v2609 = vadd.f32 %v2010, 2.0
        %v2610 = vadd.f32 %v2012, 2.0
        %v2611 = vadd.f32 %v2014, 2.0
        %v2612 = vadd.f32 %v2016, 2.0
        %v2613 = vadd.f32 %v2018, 2.0
        %v2614 = vadd.f32 %v2020, 2.0
        %v2615 = vadd.f32 %v2022, 2.0
        %v2616 = vadd.f32 %v2024, 2.0
        %v2617 = vadd.f32 %v2026, 2.0
        %v2618 = vadd.f32 %v2028, 2.0
        %v2619 = vadd.f32 %v2030, 2.0
        %v2620 = vadd.f32 %v2032, 2.0
        %v2621 = vadd.f32 %v2034, 2.0
        %v2622 = vadd.f32 %v2036, 2.0
        %v2623 = vadd.f32 %v2038, 2.0
        %v2624 = vadd.f32 %v2040, 2.0
        %v2625 = vadd.f32 %v2042, 2.0
        %v2626 = vadd.f32 %v2044, 2.0
        %v2627 = vadd.f32 %v2046, 2.0
        %v2628 = vadd.f32 %v2048, 2.0
        %v2629 = vadd.f32 %v2050, 2.0
        %v2630 = vadd.f32 %v2052, 2.0
        %v2631 = vadd.f32 %v2054, 2.0
        %v2632 = vadd.f32 %v2056, 2.0
        %v2633 = vadd.f32 %v2058, 2.0
        %v2634 = vadd.f32 %v2060, 2.0
        %v2635 = vadd.f32 %v2062, 2.0
        %v2636 = vadd.f32 %v2064, 2.0
        %v2637 = vadd.f32 %v2066, 2.0
        %v2638 = vadd.f32 %v2068, 2.0
        %v2639 = vadd.f32 %v2070, 2.0
        %v2640 = vadd.f32 %v2072, 2.0
        %v2641 = vadd.f32 %v2074, 2.0
        %v2642 = vadd.f32 %v2076, 2.0
        %v2643 = vadd.f32 %v2078, 2.0
        %v2644 = vadd.f32 %v2080, 2.0
        %v2645 = vadd.f32 %v2082, 2.0
        %v2646 = vadd.f32 %v2084, 2.0
        %v2647 = vadd.f32 %v2086, 2.0
        %v2648 = vadd.f32 %v2088, 2.0
        %v2649 = vadd.f32 %v2090, 2.0
        %v2650 = vadd.f32 %v2092, 2.0
        %v2651 = vadd.f32 %v2094, 2.0
        %v2652 = vadd.f32 %v2096, 2.0
        %v2653 = vadd.f32 %v2098, 2.0
        %v2654 = vadd.f32 %v2100, 2.0
        %v2655 = vadd.f32 %v2102, 2.0
        %v2656 = vadd.f32 %v2104, 2.0
        %v2657 = vadd.f32 %v2106, 2.0
        %v2658 = vadd.f32 %v2108, 2.0
        %v2659 = vadd.f32 %v2110, 2.0
        %v2660 = vadd.f32 %v2112, 2.0
        %v2661 = vadd.f32 %v2114, 2.0
        %v2662 = vadd.f32 %v2116, 2.0
        %v2663 = vadd.f32 %v2118, 2.0
        %v2664 = vadd.f32 %v2120, 2.0
        %v2665 = vadd.f32 %v2122, 2.0
        %v2666 = vadd.f32 %v2124, 2.0
        %v2667 = vadd.f32 %v2126, 2.0
        %v2668 = vadd.f32 %v2128, 2.0
        %v2669 = vadd.f32 %v2130, 2.0
        %v2670 = vadd.f32 %v2132, 2.0
        %v2671 = vadd.f32 %v2134, 2.0
        %v2672 = vadd.f32 %v2136, 2.0
        %v2673 = vadd.f32 %v2138, 2.0
        %v2674 = vadd.f32 %v2140, 2.0
        %v2675 = vadd.f32 %v2142, 2.0
        %v2676 = vadd.f32 %v2144, 2.0
        %v2677 = vadd.f32 %v2146, 2.0
        %v2678 = vadd.f32 %v2148, 2.0
        %v2679 = vadd.f32 %v2150, 2.0
        %v2680 = vadd.f32 %v2152, 2.0
        %v2681 = vadd.f32 %v2154, 2.0
        %v2682 = vadd.f32 %v2156, 2.0
        %v2683 = vadd.f32 %v2158, 2.0
        %v2684 = vadd.f32 %v2160, 2.0
        %v2685 = vadd.f32 %v2162, 2.0
        %v2686 = vadd.f32 %v2164, 2.0
        %v2687 = vadd.f32 %v2166, 2.0
        %v2688 = vadd.f32 %v2168, 2.0
        %v2689 = vadd.f32 %v2170, 2.0
        %v2690 = vadd.f32 %v2172, 2.0
        %v2691 = vadd.f32 %v2174, 2.0
        %v2692 = vadd.f32 %v2176, 2.0
        %v2693 = vadd.f32 %v2178, 2.0
        %v2694 = vadd.f32 %v2180, 2.0
        %v2695 = vadd.f32 %v2182, 2.0
        %v2696 = vadd.f32 %v2184, 2.0
        %v2697 = vmul.f32 %v1162, %v2185
        %v2698 = vmul.f32 %v1164, %v2186
        %v2699 = vmul.f32 %v1166, %v2187
        %v2700 = vmul.f32 %v1168, %v2188
        %v2701 = vmul.f32 %v1170, %v2189
        %v2702 = vmul.f32 %v1172, %v2190
        %v2703 = vmul.f32 %v1174, %v2191
        %v2704 = vmul.f32 %v1176, %v2192
        %v2705 = vmul.f32 %v1178, %v2193
        %v2706 = vmul.f32 %v1180, %v2194
        %v2707 = vmul.f32 %v1182, %v2195
        %v2708 = vmul.f32 %v1184, %v2196
        %v2709 = vmul.f32 %v1186, %v2197
        %v2710 = vmul.f32 %v1188, %v2198
        %v2711 = vmul.f32 %v1190, %v2199
        %v2712 = vmul.f32 %v1192, %v2200
        %v2713 = vmul.f32 %v1194, %v2201
        %v2714 = vmul.f32 %v1196, %v2202
        %v2715 = vmul.f32 %v1198, %v2203
        %v2716 = vmul.f32 %v1200, %v2204
        %v2717 = vmul.f32 %v1202, %v2205
        %v2718 = vmul.f32 %v1204, %v2206
        %v2719 = vmul.f32 %v1206, %v2207
        %v2720 = vmul.f32 %v1208, %v2208
        %v2721 = vmul.f32 %v1210, %v2209
        %v2722 = vmul.f32 %v1212, %v2210
        %v2723 = vmul.f32 %v1214, %v2211
        %v2724 = vmul.f32 %v1216, %v2212
        %v2725 = vmul.f32 %v1218, %v2213
        %v2726 = vmul.f32 %v1220, %v2214
        %v2727 = vmul.f32 %v1222, %v2215
        %v2728 = vmul.f32 %v1224, %v2216
        %v2729 = vmul.f32 %v1226, %v2217
        %v2730 = vmul.f32 %v1228, %v2218
        %v2731 = vmul.f32 %v1230, %v2219
        %v2732 = vmul.f32 %v1232, %v2220
        %v2733 = vmul.f32 %v1234, %v2221
        %v2734 = vmul.f32 %v1236, %v2222
        %v2735 = vmul.f32 %v1238, %v2223
        %v2736 = vmul.f32 %v1240, %v2224
        %v2737 = vmul.f32 %v1242, %v2225
        %v2738 = vmul.f32 %v1244, %v2226
        %v2739 = vmul.f32 %v1246, %v2227
        %v2740 = vmul.f32 %v1248, %v2228
        %v2741 = vmul.f32 %v1250, %v2229
        %v2742 = vmul.f32 %v1252, %v2230
        %v2743 = vmul.f32 %v1254, %v2231
        %v2744 = vmul.f32 %v1256, %v2232
        %v2745 = vmul.f32 %v1258, %v2233
        %v2746 = vmul.f32 %v1260, %v2234
        %v2747 = vmul.f32 %v1262, %v2235
        %v2748 = vmul.f32 %v1264, %v2236
        %v2749 = vmul.f32 %v1266, %v2237
        %v2750 = vmul.f32 %v1268, %v2238
        %v2751 = vmul.f32 %v1270, %v2239
        %v2752 = vmul.f32 %v1272, %v2240
        %v2753 = vmul.f32 %v1274, %v2241
        %v2754 = vmul.f32 %v1276, %v2242
        %v2755 = vmul.f32 %v1278, %v2243
        %v2756 = vmul.f32 %v1280, %v2244
        %v2757 = vmul.f32 %v1282, %v2245
        %v2758 = vmul.f32 %v1284, %v2246
        %v2759 = vmul.f32 %v1286, %v2247
        %v2760 = vmul.f32 %v1288, %v2248
        %v2761 = vmul.f32 %v1290, %v2249
        %v2762 = vmul.f32 %v1292, %v2250
        %v2763 = vmul.f32 %v1294, %v2251
        %v2764 = vmul.f32 %v1296, %v2252
        %v2765 = vmul.f32 %v1298, %v2253
        %v2766 = vmul.f32 %v1300, %v2254
        %v2767 = vmul.f32 %v1302, %v2255
        %v2768 = vmul.f32 %v1304, %v2256
        %v2769 = vmul.f32 %v1306, %v2257
        %v2770 = vmul.f32 %v1308, %v2258
        %v2771 = vmul.f32 %v1310, %v2259
        %v2772 = vmul.f32 %v1312, %v2260
        %v2773 = vmul.f32 %v1314, %v2261
        %v2774 = vmul.f32 %v1316, %v2262
        %v2775 = vmul.f32 %v1318, %v2263
        %v2776 = vmul.f32 %v1320, %v2264
        %v2777 = vmul.f32 %v1322, %v2265
        %v2778 = vmul.f32 %v1324, %v2266
        %v2779 = vmul.f32 %v1326, %v2267
        %v2780 = vmul.f32 %v1328, %v2268
        %v2781 = vmul.f32 %v1330, %v2269
        %v2782 = vmul.f32 %v1332, %v2270
        %v2783 = vmul.f32 %v1334, %v2271
        %v2784 = vmul.f32 %v1336, %v2272
        %v2785 = vmul.f32 %v1338, %v2273
        %v2786 = vmul.f32 %v1340, %v2274
        %v2787 = vmul.f32 %v1342, %v2275
        %v2788 = vmul.f32 %v1344, %v2276
        %v2789 = vmul.f32 %v1346, %v2277
        %v2790 = vmul.f32 %v1348, %v2278
        %v2791 = vmul.f32 %v1350, %v2279
        %v2792 = vmul.f32 %v1352, %v2280
        %v2793 = vmul.f32 %v1354, %v2281
        %v2794 = vmul.f32 %v1356, %v2282
        %v2795 = vmul.f32 %v1358, %v2283
        %v2796 = vmul.f32 %v1360, %v2284
        %v2797 = vmul.f32 %v1362, %v2285
        %v2798 = vmul.f32 %v1364, %v2286
        %v2799 = vmul.f32 %v1366, %v2287
        %v2800 = vmul.f32 %v1368, %v2288
        %v2801 = vmul.f32 %v1370, %v2289
        %v2802 = vmul.f32 %v1372, %v2290
        %v2803 = vmul.f32 %v1374, %v2291
        %v2804 = vmul.f32 %v1376, %v2292
        %v2805 = vmul.f32 %v1378, %v2293
        %v2806 = vmul.f32 %v1380, %v2294
        %v2807 = vmul.f32 %v1382, %v2295
        %v2808 = vmul.f32 %v1384, %v2296
        %v2809 = vmul.f32 %v1386, %v2297
        %v2810 = vmul.f32 %v1388, %v2298
        %v2811 = vmul.f32 %v1390, %v2299
        %v2812 = vmul.f32 %v1392, %v2300
        %v2813 = vmul.f32 %v1394, %v2301
        %v2814 = vmul.f32 %v1396, %v2302
        %v2815 = vmul.f32 %v1398, %v2303
        %v2816 = vmul.f32 %v1400, %v2304
        %v2817 = vmul.f32 %v1402, %v2305
        %v2818 = vmul.f32 %v1404, %v2306
        %v2819 = vmul.f32 %v1406, %v2307
        %v2820 = vmul.f32 %v1408, %v2308
        %v2821 = vmul.f32 %v1410, %v2309
        %v2822 = vmul.f32 %v1412, %v2310
        %v2823 = vmul.f32 %v1414, %v2311
        %v2824 = vmul.f32 %v1416, %v2312
        %v2825 = vmul.f32 %v1418, %v2313
        %v2826 = vmul.f32 %v1420, %v2314
        %v2827 = vmul.f32 %v1422, %v2315
        %v2828 = vmul.f32 %v1424, %v2316
        %v2829 = vmul.f32 %v1426, %v2317
        %v2830 = vmul.f32 %v1428, %v2318
        %v2831 = vmul.f32 %v1430, %v2319
        %v2832 = vmul.f32 %v1432, %v2320
        %v2833 = vmul.f32 %v1434, %v2321
        %v2834 = vmul.f32 %v1436, %v2322
        %v2835 = vmul.f32 %v1438, %v2323
        %v2836 = vmul.f32 %v1440, %v2324
        %v2837 = vmul.f32 %v1442, %v2325
        %v2838 = vmul.f32 %v1444, %v2326
        %v2839 = vmul.f32 %v1446, %v2327
        %v2840 = vmul.f32 %v1448, %v2328
        %v2841 = vmul.f32 %v1450, %v2329
        %v2842 = vmul.f32 %v1452, %v2330
        %v2843 = vmul.f32 %v1454, %v2331
        %v2844 = vmul.f32 %v1456, %v2332
        %v2845 = vmul.f32 %v1458, %v2333
        %v2846 = vmul.f32 %v1460, %v2334
        %v2847 = vmul.f32 %v1462, %v2335
        %v2848 = vmul.f32 %v1464, %v2336
        %v2849 = vmul.f32 %v1466, %v2337
        %v2850 = vmul.f32 %v1468, %v2338
        %v2851 = vmul.f32 %v1470, %v2339
        %v2852 = vmul.f32 %v1472, %v2340
        %v2853 = vmul.f32 %v1474, %v2341
        %v2854 = vmul.f32 %v1476, %v2342
        %v2855 = vmul.f32 %v1478, %v2343
        %v2856 = vmul.f32 %v1480, %v2344
        %v2857 = vmul.f32 %v1482, %v2345
        %v2858 = vmul.f32 %v1484, %v2346
        %v2859 = vmul.f32 %v1486, %v2347
        %v2860 = vmul.f32 %v1488, %v2348
        %v2861 = vmul.f32 %v1490, %v2349
        %v2862 = vmul.f32 %v1492, %v2350
        %v2863 = vmul.f32 %v1494, %v2351
        %v2864 = vmul.f32 %v1496, %v2352
        %v2865 = vmul.f32 %v1498, %v2353
        %v2866 = vmul.f32 %v1500, %v2354
        %v2867 = vmul.f32 %v1502, %v2355
        %v2868 = vmul.f32 %v1504, %v2356
        %v2869 = vmul.f32 %v1506, %v2357
        %v2870 = vmul.f32 %v1508, %v2358
        %v2871 = vmul.f32 %v1510, %v2359
        %v2872 = vmul.f32 %v1512, %v2360
        %v2873 = vmul.f32 %v1514, %v2361
        %v2874 = vmul.f32 %v1516, %v2362
        %v2875 = vmul.f32 %v1518, %v2363
        %v2876 = vmul.f32 %v1520, %v2364
        %v2877 = vmul.f32 %v1522, %v2365
        %v2878 = vmul.f32 %v1524, %v2366
        %v2879 = vmul.f32 %v1526, %v2367
        %v2880 = vmul.f32 %v1528, %v2368
        %v2881 = vmul.f32 %v1530, %v2369
        %v2882 = vmul.f32 %v1532, %v2370
        %v2883 = vmul.f32 %v1534, %v2371
        %v2884 = vmul.f32 %v1536, %v2372
        %v2885 = vmul.f32 %v1538, %v2373
        %v2886 = vmul.f32 %v1540, %v2374
        %v2887 = vmul.f32 %v1542, %v2375
        %v2888 = vmul.f32 %v1544, %v2376
        %v2889 = vmul.f32 %v1546, %v2377
        %v2890 = vmul.f32 %v1548, %v2378
        %v2891 = vmul.f32 %v1550, %v2379
        %v2892 = vmul.f32 %v1552, %v2380
        %v2893 = vmul.f32 %v1554, %v2381
        %v2894 = vmul.f32 %v1556, %v2382
        %v2895 = vmul.f32 %v1558, %v2383
        %v2896 = vmul.f32 %v1560, %v2384
        %v2897 = vmul.f32 %v1562, %v2385
        %v2898 = vmul.f32 %v1564, %v2386
        %v2899 = vmul.f32 %v1566, %v2387
        %v2900 = vmul.f32 %v1568, %v2388
        %v2901 = vmul.f32 %v1570, %v2389
        %v2902 = vmul.f32 %v1572, %v2390
        %v2903 = vmul.f32 %v1574, %v2391
        %v2904 = vmul.f32 %v1576, %v2392
        %v2905 = vmul.f32 %v1578, %v2393
        %v2906 = vmul.f32 %v1580, %v2394
        %v2907 = vmul.f32 %v1582, %v2395
        %v2908 = vmul.f32 %v1584, %v2396
        %v2909 = vmul.f32 %v1586, %v2397
        %v2910 = vmul.f32 %v1588, %v2398
        %v2911 = vmul.f32 %v1590, %v2399
        %v2912 = vmul.f32 %v1592, %v2400
        %v2913 = vmul.f32 %v1594, %v2401
        %v2914 = vmul.f32 %v1596, %v2402
        %v2915 = vmul.f32 %v1598, %v2403
        %v2916 = vmul.f32 %v1600, %v2404
        %v2917 = vmul.f32 %v1602, %v2405
        %v2918 = vmul.f32 %v1604, %v2406
        %v2919 = vmul.f32 %v1606, %v2407
        %v2920 = vmul.f32 %v1608, %v2408
        %v2921 = vmul.f32 %v1610, %v2409
        %v2922 = vmul.f32 %v1612, %v2410
        %v2923 = vmul.f32 %v1614, %v2411
        %v2924 = vmul.f32 %v1616, %v2412
        %v2925 = vmul.f32 %v1618, %v2413
        %v2926 = vmul.f32 %v1620, %v2414
        %v2927 = vmul.f32 %v1622, %v2415
        %v2928 = vmul.f32 %v1624, %v2416
        %v2929 = vmul.f32 %v1626, %v2417
        %v2930 = vmul.f32 %v1628, %v2418
        %v2931 = vmul.f32 %v1630, %v2419
        %v2932 = vmul.f32 %v1632, %v2420
        %v2933 = vmul.f32 %v1634, %v2421
        %v2934 = vmul.f32 %v1636, %v2422
        %v2935 = vmul.f32 %v1638, %v2423
        %v2936 = vmul.f32 %v1640, %v2424
        %v2937 = vmul.f32 %v1642, %v2425
        %v2938 = vmul.f32 %v1644, %v2426
        %v2939 = vmul.f32 %v1646, %v2427
        %v2940 = vmul.f32 %v1648, %v2428
        %v2941 = vmul.f32 %v1650, %v2429
        %v2942 = vmul.f32 %v1652, %v2430
        %v2943 = vmul.f32 %v1654, %v2431
        %v2944 = vmul.f32 %v1656, %v2432
        %v2945 = vmul.f32 %v1658, %v2433
        %v2946 = vmul.f32 %v1660, %v2434
        %v2947 = vmul.f32 %v1662, %v2435
        %v2948 = vmul.f32 %v1664, %v2436
        %v2949 = vmul.f32 %v1666, %v2437
        %v2950 = vmul.f32 %v1668, %v2438
        %v2951 = vmul.f32 %v1670, %v2439
        %v2952 = vmul.f32 %v1672, %v2440
        %v2953 = vmul.f32 %v1674, %v2441
        %v2954 = vmul.f32 %v1676, %v2442
        %v2955 = vmul.f32 %v1678, %v2443
        %v2956 = vmul.f32 %v1680, %v2444
        %v2957 = vmul.f32 %v1682, %v2445
        %v2958 = vmul.f32 %v1684, %v2446
        %v2959 = vmul.f32 %v1686, %v2447
        %v2960 = vmul.f32 %v1688, %v2448
        %v2961 = vmul.f32 %v1690, %v2449
        %v2962 = vmul.f32 %v1692, %v2450
        %v2963 = vmul.f32 %v1694, %v2451
        %v2964 = vmul.f32 %v1696, %v2452
        %v2965 = vmul.f32 %v1698, %v2453
        %v2966 = vmul.f32 %v1700, %v2454
        %v2967 = vmul.f32 %v1702, %v2455
        %v2968 = vmul.f32 %v1704, %v2456
        %v2969 = vmul.f32 %v1706, %v2457
        %v2970 = vmul.f32 %v1708, %v2458
        %v2971 = vmul.f32 %v1710, %v2459
        %v2972 = vmul.f32 %v1712, %v2460
        %v2973 = vmul.f32 %v1714, %v2461
        %v2974 = vmul.f32 %v1716, %v2462
        %v2975 = vmul.f32 %v1718, %v2463
        %v2976 = vmul.f32 %v1720, %v2464
        %v2977 = vmul.f32 %v1722, %v2465
        %v2978 = vmul.f32 %v1724, %v2466
        %v2979 = vmul.f32 %v1726, %v2467
        %v2980 = vmul.f32 %v1728, %v2468
        %v2981 = vmul.f32 %v1730, %v2469
        %v2982 = vmul.f32 %v1732, %v2470
        %v2983 = vmul.f32 %v1734, %v2471
        %v2984 = vmul.f32 %v1736, %v2472
        %v2985 = vmul.f32 %v1738, %v2473
        %v2986 = vmul.f32 %v1740, %v2474
        %v2987 = vmul.f32 %v1742, %v2475
        %v2988 = vmul.f32 %v1744, %v2476
        %v2989 = vmul.f32 %v1746, %v2477
        %v2990 = vmul.f32 %v1748, %v2478
        %v2991 = vmul.f32 %v1750, %v2479
        %v2992 = vmul.f32 %v1752, %v2480
        %v2993 = vmul.f32 %v1754, %v2481
        %v2994 = vmul.f32 %v1756, %v2482
        %v2995 = vmul.f32 %v1758, %v2483
        %v2996 = vmul.f32 %v1760, %v2484
        %v2997 = vmul.f32 %v1762, %v2485
        %v2998 = vmul.f32 %v1764, %v2486
        %v2999 = vmul.f32 %v1766, %v2487
        %v3000 = vmul.f32 %v1768, %v2488
        %v3001 = vmul.f32 %v1770, %v2489
        %v3002 = vmul.f32 %v1772, %v2490
        %v3003 = vmul.f32 %v1774, %v2491
        %v3004 = vmul.f32 %v1776, %v2492
        %v3005 = vmul.f32 %v1778, %v2493
        %v3006 = vmul.f32 %v1780, %v2494
        %v3007 = vmul.f32 %v1782, %v2495
        %v3008 = vmul.f32 %v1784, %v2496
        %v3009 = vmul.f32 %v1786, %v2497
        %v3010 = vmul.f32 %v1788, %v2498
        %v3011 = vmul.f32 %v1790, %v2499
        %v3012 = vmul.f32 %v1792, %v2500
        %v3013 = vmul.f32 %v1794, %v2501
        %v3014 = vmul.f32 %v1796, %v2502
        %v3015 = vmul.f32 %v1798, %v2503
        %v3016 = vmul.f32 %v1800, %v2504
        %v3017 = vmul.f32 %v1802, %v2505
        %v3018 = vmul.f32 %v1804, %v2506
        %v3019 = vmul.f32 %v1806, %v2507
        %v3020 = vmul.f32 %v1808, %v2508
        %v3021 = vmul.f32 %v1810, %v2509
        %v3022 = vmul.f32 %v1812, %v2510
        %v3023 = vmul.f32 %v1814, %v2511
        %v3024 = vmul.f32 %v1816, %v2512
        %v3025 = vmul.f32 %v1818, %v2513
        %v3026 = vmul.f32 %v1820, %v2514
        %v3027 = vmul.f32 %v1822, %v2515
        %v3028 = vmul.f32 %v1824, %v2516
        %v3029 = vmul.f32 %v1826, %v2517
        %v3030 = vmul.f32 %v1828, %v2518
        %v3031 = vmul.f32 %v1830, %v2519
        %v3032 = vmul.f32 %v1832, %v2520
        %v3033 = vmul.f32 %v1834, %v2521
        %v3034 = vmul.f32 %v1836, %v2522
        %v3035 = vmul.f32 %v1838, %v2523
        %v3036 = vmul.f32 %v1840, %v2524
        %v3037 = vmul.f32 %v1842, %v2525
        %v3038 = vmul.f32 %v1844, %v2526
        %v3039 = vmul.f32 %v1846, %v2527
        %v3040 = vmul.f32 %v1848, %v2528
        %v3041 = vmul.f32 %v1850, %v2529
        %v3042 = vmul.f32 %v1852, %v2530
        %v3043 = vmul.f32 %v1854, %v2531
        %v3044 = vmul.f32 %v1856, %v2532
        %v3045 = vmul.f32 %v1858, %v2533
        %v3046 = vmul.f32 %v1860, %v2534
        %v3047 = vmul.f32 %v1862, %v2535
        %v3048 = vmul.f32 %v1864, %v2536
        %v3049 = vmul.f32 %v1866, %v2537
        %v3050 = vmul.f32 %v1868, %v2538
        %v3051 = vmul.f32 %v1870, %v2539
        %v3052 = vmul.f32 %v1872, %v2540
        %v3053 = vmul.f32 %v1874, %v2541
        %v3054 = vmul.f32 %v1876, %v2542
        %v3055 = vmul.f32 %v1878, %v2543
        %v3056 = vmul.f32 %v1880, %v2544
        %v3057 = vmul.f32 %v1882, %v2545
        %v3058 = vmul.f32 %v1884, %v2546
        %v3059 = vmul.f32 %v1886, %v2547
        %v3060 = vmul.f32 %v1888, %v2548
        %v3061 = vmul.f32 %v1890, %v2549
        %v3062 = vmul.f32 %v1892, %v2550
        %v3063 = vmul.f32 %v1894, %v2551
        %v3064 = vmul.f32 %v1896, %v2552
        %v3065 = vmul.f32 %v1898, %v2553
        %v3066 = vmul.f32 %v1900, %v2554
        %v3067 = vmul.f32 %v1902, %v2555
        %v3068 = vmul.f32 %v1904, %v2556
        %v3069 = vmul.f32 %v1906, %v2557
        %v3070 = vmul.f32 %v1908, %v2558
        %v3071 = vmul.f32 %v1910, %v2559
        %v3072 = vmul.f32 %v1912, %v2560
        %v3073 = vmul.f32 %v1914, %v2561
        %v3074 = vmul.f32 %v1916, %v2562
        %v3075 = vmul.f32 %v1918, %v2563
        %v3076 = vmul.f32 %v1920, %v2564
        %v3077 = vmul.f32 %v1922, %v2565
        %v3078 = vmul.f32 %v1924, %v2566
        %v3079 = vmul.f32 %v1926, %v2567
        %v3080 = vmul.f32 %v1928, %v2568
        %v3081 = vmul.f32 %v1930, %v2569
        %v3082 = vmul.f32 %v1932, %v2570
        %v3083 = vmul.f32 %v1934, %v2571
        %v3084 = vmul.f32 %v1936, %v2572
        %v3085 = vmul.f32 %v1938, %v2573
        %v3086 = vmul.f32 %v1940, %v2574
        %v3087 = vmul.f32 %v1942, %v2575
        %v3088 = vmul.f32 %v1944, %v2576
        %v3089 = vmul.f32 %v1946, %v2577
        %v3090 = vmul.f32 %v1948, %v2578
        %v3091 = vmul.f32 %v1950, %v2579
        %v3092 = vmul.f32 %v1952, %v2580
        %v3093 = vmul.f32 %v1954, %v2581
        %v3094 = vmul.f32 %v1956, %v2582
        %v3095 = vmul.f32 %v1958, %v2583
        %v3096 = vmul.f32 %v1960, %v2584
        %v3097 = vmul.f32 %v1962, %v2585
        %v3098 = vmul.f32 %v1964, %v2586
        %v3099 = vmul.f32 %v1966, %v2587
        %v3100 = vmul.f32 %v1968, %v2588
        %v3101 = vmul.f32 %v1970, %v2589
        %v3102 = vmul.f32 %v1972, %v2590
        %v3103 = vmul.f32 %v1974, %v2591
        %v3104 = vmul.f32 %v1976, %v2592
        %v3105 = vmul.f32 %v1978, %v2593
        %v3106 = vmul.f32 %v1980, %v2594
        %v3107 = vmul.f32 %v1982, %v2595
        %v3108 = vmul.f32 %v1984, %v2596
        %v3109 = vmul.f32 %v1986, %v2597
        %v3110 = vmul.f32 %v1988, %v2598
        %v3111 = vmul.f32 %v1990, %v2599
        %v3112 = vmul.f32 %v1992, %v2600
        %v3113 = vmul.f32 %v1994, %v2601
        %v3114 = vmul.f32 %v1996, %v2602
        %v3115 = vmul.f32 %v1998, %v2603
        %v3116 = vmul.f32 %v2000, %v2604
        %v3117 = vmul.f32 %v2002, %v2605
        %v3118 = vmul.f32 %v2004, %v2606
        %v3119 = vmul.f32 %v2006, %v2607
        %v3120 = vmul.f32 %v2008, %v2608
        %v3121 = vmul.f32 %v2010, %v2609
        %v3122 = vmul.f32 %v2012, %v2610
        %v3123 = vmul.f32 %v2014, %v2611
        %v3124 = vmul.f32 %v2016, %v2612
        %v3125 = vmul.f32 %v2018, %v2613
        %v3126 = vmul.f32 %v2020, %v2614
        %v3127 = vmul.f32 %v2022, %v2615
        %v3128 = vmul.f32 %v2024, %v2616
        %v3129 = vmul.f32 %v2026, %v2617
        %v3130 = vmul.f32 %v2028, %v2618
        %v3131 = vmul.f32 %v2030, %v2619
        %v3132 = vmul.f32 %v2032, %v2620
        %v3133 = vmul.f32 %v2034, %v2621
        %v3134 = vmul.f32 %v2036, %v2622
        %v3135 = vmul.f32 %v2038, %v2623
        %v3136 = vmul.f32 %v2040, %v2624
        %v3137 = vmul.f32 %v2042, %v2625
        %v3138 = vmul.f32 %v2044, %v2626
        %v3139 = vmul.f32 %v2046, %v2627
        %v3140 = vmul.f32 %v2048, %v2628
        %v3141 = vmul.f32 %v2050, %v2629
        %v3142 = vmul.f32 %v2052, %v2630
        %v3143 = vmul.f32 %v2054, %v2631
        %v3144 = vmul.f32 %v2056, %v2632
        %v3145 = vmul.f32 %v2058, %v2633
        %v3146 = vmul.f32 %v2060, %v2634
        %v3147 = vmul.f32 %v2062, %v2635
        %v3148 = vmul.f32 %v2064, %v2636
        %v3149 = vmul.f32 %v2066, %v2637
        %v3150 = vmul.f32 %v2068, %v2638
        %v3151 = vmul.f32 %v2070, %v2639
        %v3152 = vmul.f32 %v2072, %v2640
        %v3153 = vmul.f32 %v2074, %v2641
        %v3154 = vmul.f32 %v2076, %v2642
        %v3155 = vmul.f32 %v2078, %v2643
        %v3156 = vmul.f32 %v2080, %v2644
        %v3157 = vmul.f32 %v2082, %v2645
        %v3158 = vmul.f32 %v2084, %v2646
        %v3159 = vmul.f32 %v2086, %v2647
        %v3160 = vmul.f32 %v2088, %v2648
        %v3161 = vmul.f32 %v2090, %v2649
        %v3162 = vmul.f32 %v2092, %v2650
        %v3163 = vmul.f32 %v2094, %v2651
        %v3164 = vmul.f32 %v2096, %v2652
        %v3165 = vmul.f32 %v2098, %v2653
        %v3166 = vmul.f32 %v2100, %v2654
        %v3167 = vmul.f32 %v2102, %v2655
        %v3168 = vmul.f32 %v2104, %v2656
        %v3169 = vmul.f32 %v2106, %v2657
        %v3170 = vmul.f32 %v2108, %v2658
        %v3171 = vmul.f32 %v2110, %v2659
        %v3172 = vmul.f32 %v2112, %v2660
        %v3173 = vmul.f32 %v2114, %v2661
        %v3174 = vmul.f32 %v2116, %v2662
        %v3175 = vmul.f32 %v2118, %v2663
        %v3176 = vmul.f32 %v2120, %v2664
        %v3177 = vmul.f32 %v2122, %v2665
        %v3178 = vmul.f32 %v2124, %v2666
        %v3179 = vmul.f32 %v2126, %v2667
        %v3180 = vmul.f32 %v2128, %v2668
        %v3181 = vmul.f32 %v2130, %v2669
        %v3182 = vmul.f32 %v2132, %v2670
        %v3183 = vmul.f32 %v2134, %v2671
        %v3184 = vmul.f32 %v2136, %v2672
        %v3185 = vmul.f32 %v2138, %v2673
        %v3186 = vmul.f32 %v2140, %v2674
        %v3187 = vmul.f32 %v2142, %v2675
        %v3188 = vmul.f32 %v2144, %v2676
        %v3189 = vmul.f32 %v2146, %v2677
        %v3190 = vmul.f32 %v2148, %v2678
        %v3191 = vmul.f32 %v2150, %v2679
        %v3192 = vmul.f32 %v2152, %v2680
        %v3193 = vmul.f32 %v2154, %v2681
        %v3194 = vmul.f32 %v2156, %v2682
        %v3195 = vmul.f32 %v2158, %v2683
        %v3196 = vmul.f32 %v2160, %v2684
        %v3197 = vmul.f32 %v2162, %v2685
        %v3198 = vmul.f32 %v2164, %v2686
        %v3199 = vmul.f32 %v2166, %v2687
        %v3200 = vmul.f32 %v2168, %v2688
        %v3201 = vmul.f32 %v2170, %v2689
        %v3202 = vmul.f32 %v2172, %v2690
        %v3203 = vmul.f32 %v2174, %v2691
        %v3204 = vmul.f32 %v2176, %v2692
        %v3205 = vmul.f32 %v2178, %v2693
        %v3206 = vmul.f32 %v2180, %v2694
        %v3207 = vmul.f32 %v2182, %v2695
        %v3208 = vmul.f32 %v2184, %v2696
        %v3209 = vmul.f32 %v137, %v2697
        %v3210 = vmul.f32 %v138, %v2698
        %v3211 = vmul.f32 %v139, %v2699
        %v3212 = vmul.f32 %v140, %v2700
        %v3213 = vmul.f32 %v141, %v2701
        %v3214 = vmul.f32 %v142, %v2702
        %v3215 = vmul.f32 %v143, %v2703
        %v3216 = vmul.f32 %v144, %v2704
        %v3217 = vmul.f32 %v145, %v2705
        %v3218 = vmul.f32 %v146, %v2706
        %v3219 = vmul.f32 %v147, %v2707
        %v3220 = vmul.f32 %v148, %v2708
        %v3221 = vmul.f32 %v149, %v2709
        %v3222 = vmul.f32 %v150, %v2710
        %v3223 = vmul.f32 %v151, %v2711
        %v3224 = vmul.f32 %v152, %v2712
        %v3225 = vmul.f32 %v153, %v2713
        %v3226 = vmul.f32 %v154, %v2714
        %v3227 = vmul.f32 %v155, %v2715
        %v3228 = vmul.f32 %v156, %v2716
        %v3229 = vmul.f32 %v157, %v2717
        %v3230 = vmul.f32 %v158, %v2718
        %v3231 = vmul.f32 %v159, %v2719
        %v3232 = vmul.f32 %v160, %v2720
        %v3233 = vmul.f32 %v161, %v2721
        %v3234 = vmul.f32 %v162, %v2722
        %v3235 = vmul.f32 %v163, %v2723
        %v3236 = vmul.f32 %v164, %v2724
        %v3237 = vmul.f32 %v165, %v2725
        %v3238 = vmul.f32 %v166, %v2726
        %v3239 = vmul.f32 %v167, %v2727
        %v3240 = vmul.f32 %v168, %v2728
        %v3241 = vmul.f32 %v169, %v2729
        %v3242 = vmul.f32 %v170, %v2730
        %v3243 = vmul.f32 %v171, %v2731
        %v3244 = vmul.f32 %v172, %v2732
        %v3245 = vmul.f32 %v173, %v2733
        %v3246 = vmul.f32 %v174, %v2734
        %v3247 = vmul.f32 %v175, %v2735
        %v3248 = vmul.f32 %v176, %v2736
        %v3249 = vmul.f32 %v177, %v2737
        %v3250 = vmul.f32 %v178, %v2738
        %v3251 = vmul.f32 %v179, %v2739
        %v3252 = vmul.f32 %v180, %v2740
        %v3253 = vmul.f32 %v181, %v2741
        %v3254 = vmul.f32 %v182, %v2742
        %v3255 = vmul.f32 %v183, %v2743
        %v3256 = vmul.f32 %v184, %v2744
        %v3257 = vmul.f32 %v185, %v2745
        %v3258 = vmul.f32 %v186, %v2746
        %v3259 = vmul.f32 %v187, %v2747
        %v3260 = vmul.f32 %v188, %v2748
        %v3261 = vmul.f32 %v189, %v2749
        %v3262 = vmul.f32 %v190, %v2750
        %v3263 = vmul.f32 %v191, %v2751
        %v3264 = vmul.f32 %v192, %v2752
        %v3265 = vmul.f32 %v193, %v2753
        %v3266 = vmul.f32 %v194, %v2754
        %v3267 = vmul.f32 %v195, %v2755
        %v3268 = vmul.f32 %v196, %v2756
        %v3269 = vmul.f32 %v197, %v2757
        %v3270 = vmul.f32 %v198, %v2758
        %v3271 = vmul.f32 %v199, %v2759
        %v3272 = vmul.f32 %v200, %v2760
        %v3273 = vmul.f32 %v201, %v2761
        %v3274 = vmul.f32 %v202, %v2762
        %v3275 = vmul.f32 %v203, %v2763
        %v3276 = vmul.f32 %v204, %v2764
        %v3277 = vmul.f32 %v205, %v2765
        %v3278 = vmul.f32 %v206, %v2766
        %v3279 = vmul.f32 %v207, %v2767
        %v3280 = vmul.f32 %v208, %v2768
        %v3281 = vmul.f32 %v209, %v2769
        %v3282 = vmul.f32 %v210, %v2770
        %v3283 = vmul.f32 %v211, %v2771
        %v3284 = vmul.f32 %v212, %v2772
        %v3285 = vmul.f32 %v213, %v2773
        %v3286 = vmul.f32 %v214, %v2774
        %v3287 = vmul.f32 %v215, %v2775
        %v3288 = vmul.f32 %v216, %v2776
        %v3289 = vmul.f32 %v217, %v2777
        %v3290 = vmul.f32 %v218, %v2778
        %v3291 = vmul.f32 %v219, %v2779
        %v3292 = vmul.f32 %v220, %v2780
        %v3293 = vmul.f32 %v221, %v2781
        %v3294 = vmul.f32 %v222, %v2782
        %v3295 = vmul.f32 %v223, %v2783
        %v3296 = vmul.f32 %v224, %v2784
        %v3297 = vmul.f32 %v225, %v2785
        %v3298 = vmul.f32 %v226, %v2786
        %v3299 = vmul.f32 %v227, %v2787
        %v3300 = vmul.f32 %v228, %v2788
        %v3301 = vmul.f32 %v229, %v2789
        %v3302 = vmul.f32 %v230, %v2790
        %v3303 = vmul.f32 %v231, %v2791
        %v3304 = vmul.f32 %v232, %v2792
        %v3305 = vmul.f32 %v233, %v2793
        %v3306 = vmul.f32 %v234, %v2794
        %v3307 = vmul.f32 %v235, %v2795
        %v3308 = vmul.f32 %v236, %v2796
        %v3309 = vmul.f32 %v237, %v2797
        %v3310 = vmul.f32 %v238, %v2798
        %v3311 = vmul.f32 %v239, %v2799
        %v3312 = vmul.f32 %v240, %v2800
        %v3313 = vmul.f32 %v241, %v2801
        %v3314 = vmul.f32 %v242, %v2802
        %v3315 = vmul.f32 %v243, %v2803
        %v3316 = vmul.f32 %v244, %v2804
        %v3317 = vmul.f32 %v245, %v2805
        %v3318 = vmul.f32 %v246, %v2806
        %v3319 = vmul.f32 %v247, %v2807
        %v3320 = vmul.f32 %v248, %v2808
        %v3321 = vmul.f32 %v249, %v2809
        %v3322 = vmul.f32 %v250, %v2810
        %v3323 = vmul.f32 %v251, %v2811
        %v3324 = vmul.f32 %v252, %v2812
        %v3325 = vmul.f32 %v253, %v2813
        %v3326 = vmul.f32 %v254, %v2814
        %v3327 = vmul.f32 %v255, %v2815
        %v3328 = vmul.f32 %v256, %v2816
        %v3329 = vmul.f32 %v257, %v2817
        %v3330 = vmul.f32 %v258, %v2818
        %v3331 = vmul.f32 %v259, %v2819
        %v3332 = vmul.f32 %v260, %v2820
        %v3333 = vmul.f32 %v261, %v2821
        %v3334 = vmul.f32 %v262, %v2822
        %v3335 = vmul.f32 %v263, %v2823
        %v3336 = vmul.f32 %v264, %v2824
        %v3337 = vmul.f32 %v265, %v2825
        %v3338 = vmul.f32 %v266, %v2826
        %v3339 = vmul.f32 %v267, %v2827
        %v3340 = vmul.f32 %v268, %v2828
        %v3341 = vmul.f32 %v269, %v2829
        %v3342 = vmul.f32 %v270, %v2830
        %v3343 = vmul.f32 %v271, %v2831
        %v3344 = vmul.f32 %v272, %v2832
        %v3345 = vmul.f32 %v273, %v2833
        %v3346 = vmul.f32 %v274, %v2834
        %v3347 = vmul.f32 %v275, %v2835
        %v3348 = vmul.f32 %v276, %v2836
        %v3349 = vmul.f32 %v277, %v2837
        %v3350 = vmul.f32 %v278, %v2838
        %v3351 = vmul.f32 %v279, %v2839
        %v3352 = vmul.f32 %v280, %v2840
        %v3353 = vmul.f32 %v281, %v2841
        %v3354 = vmul.f32 %v282, %v2842
        %v3355 = vmul.f32 %v283, %v2843
        %v3356 = vmul.f32 %v284, %v2844
        %v3357 = vmul.f32 %v285, %v2845
        %v3358 = vmul.f32 %v286, %v2846
        %v3359 = vmul.f32 %v287, %v2847
        %v3360 = vmul.f32 %v288, %v2848
        %v3361 = vmul.f32 %v289, %v2849
        %v3362 = vmul.f32 %v290, %v2850
        %v3363 = vmul.f32 %v291, %v2851
        %v3364 = vmul.f32 %v292, %v2852
        %v3365 = vmul.f32 %v293, %v2853
        %v3366 = vmul.f32 %v294, %v2854
        %v3367 = vmul.f32 %v295, %v2855
        %v3368 = vmul.f32 %v296, %v2856
        %v3369 = vmul.f32 %v297, %v2857
        %v3370 = vmul.f32 %v298, %v2858
        %v3371 = vmul.f32 %v299, %v2859
        %v3372 = vmul.f32 %v300, %v2860
        %v3373 = vmul.f32 %v301, %v2861
        %v3374 = vmul.f32 %v302, %v2862
        %v3375 = vmul.f32 %v303, %v2863
        %v3376 = vmul.f32 %v304, %v2864
        %v3377 = vmul.f32 %v305, %v2865
        %v3378 = vmul.f32 %v306, %v2866
        %v3379 = vmul.f32 %v307, %v2867
        %v3380 = vmul.f32 %v308, %v2868
        %v3381 = vmul.f32 %v309, %v2869
        %v3382 = vmul.f32 %v310, %v2870
        %v3383 = vmul.f32 %v311, %v2871
        %v3384 = vmul.f32 %v312, %v2872
        %v3385 = vmul.f32 %v313, %v2873
        %v3386 = vmul.f32 %v314, %v2874
        %v3387 = vmul.f32 %v315, %v2875
        %v3388 = vmul.f32 %v316, %v2876
        %v3389 = vmul.f32 %v317, %v2877
        %v3390 = vmul.f32 %v318, %v2878
        %v3391 = vmul.f32 %v319, %v2879
        %v3392 = vmul.f32 %v320, %v2880
        %v3393 = vmul.f32 %v321, %v2881
        %v3394 = vmul.f32 %v322, %v2882
        %v3395 = vmul.f32 %v323, %v2883
        %v3396 = vmul.f32 %v324, %v2884
        %v3397 = vmul.f32 %v325, %v2885
        %v3398 = vmul.f32 %v326, %v2886
        %v3399 = vmul.f32 %v327, %v2887
        %v3400 = vmul.f32 %v328, %v2888
        %v3401 = vmul.f32 %v329, %v2889
        %v3402 = vmul.f32 %v330, %v2890
        %v3403 = vmul.f32 %v331, %v2891
        %v3404 = vmul.f32 %v332, %v2892
        %v3405 = vmul.f32 %v333, %v2893
        %v3406 = vmul.f32 %v334, %v2894
        %v3407 = vmul.f32 %v335, %v2895
        %v3408 = vmul.f32 %v336, %v2896
        %v3409 = vmul.f32 %v337, %v2897
        %v3410 = vmul.f32 %v338, %v2898
        %v3411 = vmul.f32 %v339, %v2899
        %v3412 = vmul.f32 %v340, %v2900
        %v3413 = vmul.f32 %v341, %v2901
        %v3414 = vmul.f32 %v342, %v2902
        %v3415 = vmul.f32 %v343, %v2903
        %v3416 = vmul.f32 %v344, %v2904
        %v3417 = vmul.f32 %v345, %v2905
        %v3418 = vmul.f32 %v346, %v2906
        %v3419 = vmul.f32 %v347, %v2907
        %v3420 = vmul.f32 %v348, %v2908
        %v3421 = vmul.f32 %v349, %v2909
        %v3422 = vmul.f32 %v350, %v2910
        %v3423 = vmul.f32 %v351, %v2911
        %v3424 = vmul.f32 %v352, %v2912
        %v3425 = vmul.f32 %v353, %v2913
        %v3426 = vmul.f32 %v354, %v2914
        %v3427 = vmul.f32 %v355, %v2915
        %v3428 = vmul.f32 %v356, %v2916
        %v3429 = vmul.f32 %v357, %v2917
        %v3430 = vmul.f32 %v358, %v2918
        %v3431 = vmul.f32 %v359, %v2919
        %v3432 = vmul.f32 %v360, %v2920
        %v3433 = vmul.f32 %v361, %v2921
        %v3434 = vmul.f32 %v362, %v2922
        %v3435 = vmul.f32 %v363, %v2923
        %v3436 = vmul.f32 %v364, %v2924
        %v3437 = vmul.f32 %v365, %v2925
        %v3438 = vmul.f32 %v366, %v2926
        %v3439 = vmul.f32 %v367, %v2927
        %v3440 = vmul.f32 %v368, %v2928
        %v3441 = vmul.f32 %v369, %v2929
        %v3442 = vmul.f32 %v370, %v2930
        %v3443 = vmul.f32 %v371, %v2931
        %v3444 = vmul.f32 %v372, %v2932
        %v3445 = vmul.f32 %v373, %v2933
        %v3446 = vmul.f32 %v374, %v2934
        %v3447 = vmul.f32 %v375, %v2935
        %v3448 = vmul.f32 %v376, %v2936
        %v3449 = vmul.f32 %v377, %v2937
        %v3450 = vmul.f32 %v378, %v2938
        %v3451 = vmul.f32 %v379, %v2939
        %v3452 = vmul.f32 %v380, %v2940
        %v3453 = vmul.f32 %v381, %v2941
        %v3454 = vmul.f32 %v382, %v2942
        %v3455 = vmul.f32 %v383, %v2943
        %v3456 = vmul.f32 %v384, %v2944
        %v3457 = vmul.f32 %v385, %v2945
        %v3458 = vmul.f32 %v386, %v2946
        %v3459 = vmul.f32 %v387, %v2947
        %v3460 = vmul.f32 %v388, %v2948
        %v3461 = vmul.f32 %v389, %v2949
        %v3462 = vmul.f32 %v390, %v2950
        %v3463 = vmul.f32 %v391, %v2951
        %v3464 = vmul.f32 %v392, %v2952
        %v3465 = vmul.f32 %v393, %v2953
        %v3466 = vmul.f32 %v394, %v2954
        %v3467 = vmul.f32 %v395, %v2955
        %v3468 = vmul.f32 %v396, %v2956
        %v3469 = vmul.f32 %v397, %v2957
        %v3470 = vmul.f32 %v398, %v2958
        %v3471 = vmul.f32 %v399, %v2959
        %v3472 = vmul.f32 %v400, %v2960
        %v3473 = vmul.f32 %v401, %v2961
        %v3474 = vmul.f32 %v402, %v2962
        %v3475 = vmul.f32 %v403, %v2963
        %v3476 = vmul.f32 %v404, %v2964
        %v3477 = vmul.f32 %v405, %v2965
        %v3478 = vmul.f32 %v406, %v2966
        %v3479 = vmul.f32 %v407, %v2967
        %v3480 = vmul.f32 %v408, %v2968
        %v3481 = vmul.f32 %v409, %v2969
        %v3482 = vmul.f32 %v410, %v2970
        %v3483 = vmul.f32 %v411, %v2971
        %v3484 = vmul.f32 %v412, %v2972
        %v3485 = vmul.f32 %v413, %v2973
        %v3486 = vmul.f32 %v414, %v2974
        %v3487 = vmul.f32 %v415, %v2975
        %v3488 = vmul.f32 %v416, %v2976
        %v3489 = vmul.f32 %v417, %v2977
        %v3490 = vmul.f32 %v418, %v2978
        %v3491 = vmul.f32 %v419, %v2979
        %v3492 = vmul.f32 %v420, %v2980
        %v3493 = vmul.f32 %v421, %v2981
        %v3494 = vmul.f32 %v422, %v2982
        %v3495 = vmul.f32 %v423, %v2983
        %v3496 = vmul.f32 %v424, %v2984
        %v3497 = vmul.f32 %v425, %v2985
        %v3498 = vmul.f32 %v426, %v2986
        %v3499 = vmul.f32 %v427, %v2987
        %v3500 = vmul.f32 %v428, %v2988
        %v3501 = vmul.f32 %v429, %v2989
        %v3502 = vmul.f32 %v430, %v2990
        %v3503 = vmul.f32 %v431, %v2991
        %v3504 = vmul.f32 %v432, %v2992
        %v3505 = vmul.f32 %v433, %v2993
        %v3506 = vmul.f32 %v434, %v2994
        %v3507 = vmul.f32 %v435, %v2995
        %v3508 = vmul.f32 %v436, %v2996
        %v3509 = vmul.f32 %v437, %v2997
        %v3510 = vmul.f32 %v438, %v2998
        %v3511 = vmul.f32 %v439, %v2999
        %v3512 = vmul.f32 %v440, %v3000
        %v3513 = vmul.f32 %v441, %v3001
        %v3514 = vmul.f32 %v442, %v3002
        %v3515 = vmul.f32 %v443, %v3003
        %v3516 = vmul.f32 %v444, %v3004
        %v3517 = vmul.f32 %v445, %v3005
        %v3518 = vmul.f32 %v446, %v3006
        %v3519 = vmul.f32 %v447, %v3007
        %v3520 = vmul.f32 %v448, %v3008
        %v3521 = vmul.f32 %v449, %v3009
        %v3522 = vmul.f32 %v450, %v3010
        %v3523 = vmul.f32 %v451, %v3011
        %v3524 = vmul.f32 %v452, %v3012
        %v3525 = vmul.f32 %v453, %v3013
        %v3526 = vmul.f32 %v454, %v3014
        %v3527 = vmul.f32 %v455, %v3015
        %v3528 = vmul.f32 %v456, %v3016
        %v3529 = vmul.f32 %v457, %v3017
        %v3530 = vmul.f32 %v458, %v3018
        %v3531 = vmul.f32 %v459, %v3019
        %v3532 = vmul.f32 %v460, %v3020
        %v3533 = vmul.f32 %v461, %v3021
        %v3534 = vmul.f32 %v462, %v3022
        %v3535 = vmul.f32 %v463, %v3023
        %v3536 = vmul.f32 %v464, %v3024
        %v3537 = vmul.f32 %v465, %v3025
        %v3538 = vmul.f32 %v466, %v3026
        %v3539 = vmul.f32 %v467, %v3027
        %v3540 = vmul.f32 %v468, %v3028
        %v3541 = vmul.f32 %v469, %v3029
        %v3542 = vmul.f32 %v470, %v3030
        %v3543 = vmul.f32 %v471, %v3031
        %v3544 = vmul.f32 %v472, %v3032
        %v3545 = vmul.f32 %v473, %v3033
        %v3546 = vmul.f32 %v474, %v3034
        %v3547 = vmul.f32 %v475, %v3035
        %v3548 = vmul.f32 %v476, %v3036
        %v3549 = vmul.f32 %v477, %v3037
        %v3550 = vmul.f32 %v478, %v3038
        %v3551 = vmul.f32 %v479, %v3039
        %v3552 = vmul.f32 %v480, %v3040
        %v3553 = vmul.f32 %v481, %v3041
        %v3554 = vmul.f32 %v482, %v3042
        %v3555 = vmul.f32 %v483, %v3043
        %v3556 = vmul.f32 %v484, %v3044
        %v3557 = vmul.f32 %v485, %v3045
        %v3558 = vmul.f32 %v486, %v3046
        %v3559 = vmul.f32 %v487, %v3047
        %v3560 = vmul.f32 %v488, %v3048
        %v3561 = vmul.f32 %v489, %v3049
        %v3562 = vmul.f32 %v490, %v3050
        %v3563 = vmul.f32 %v491, %v3051
        %v3564 = vmul.f32 %v492, %v3052
        %v3565 = vmul.f32 %v493, %v3053
        %v3566 = vmul.f32 %v494, %v3054
        %v3567 = vmul.f32 %v495, %v3055
        %v3568 = vmul.f32 %v496, %v3056
        %v3569 = vmul.f32 %v497, %v3057
        %v3570 = vmul.f32 %v498, %v3058
        %v3571 = vmul.f32 %v499, %v3059
        %v3572 = vmul.f32 %v500, %v3060
        %v3573 = vmul.f32 %v501, %v3061
        %v3574 = vmul.f32 %v502, %v3062
        %v3575 = vmul.f32 %v503, %v3063
        %v3576 = vmul.f32 %v504, %v3064
        %v3577 = vmul.f32 %v505, %v3065
        %v3578 = vmul.f32 %v506, %v3066
        %v3579 = vmul.f32 %v507, %v3067
        %v3580 = vmul.f32 %v508, %v3068
        %v3581 = vmul.f32 %v509, %v3069
        %v3582 = vmul.f32 %v510, %v3070
        %v3583 = vmul.f32 %v511, %v3071
        %v3584 = vmul.f32 %v512, %v3072
        %v3585 = vmul.f32 %v513, %v3073
        %v3586 = vmul.f32 %v514, %v3074
        %v3587 = vmul.f32 %v515, %v3075
        %v3588 = vmul.f32 %v516, %v3076
        %v3589 = vmul.f32 %v517, %v3077
        %v3590 = vmul.f32 %v518, %v3078
        %v3591 = vmul.f32 %v519, %v3079
        %v3592 = vmul.f32 %v520, %v3080
        %v3593 = vmul.f32 %v521, %v3081
        %v3594 = vmul.f32 %v522, %v3082
        %v3595 = vmul.f32 %v523, %v3083
        %v3596 = vmul.f32 %v524, %v3084
        %v3597 = vmul.f32 %v525, %v3085
        %v3598 = vmul.f32 %v526, %v3086
        %v3599 = vmul.f32 %v527, %v3087
        %v3600 = vmul.f32 %v528, %v3088
        %v3601 = vmul.f32 %v529, %v3089
        %v3602 = vmul.f32 %v530, %v3090
        %v3603 = vmul.f32 %v531, %v3091
        %v3604 = vmul.f32 %v532, %v3092
        %v3605 = vmul.f32 %v533, %v3093
        %v3606 = vmul.f32 %v534, %v3094
        %v3607 = vmul.f32 %v535, %v3095
        %v3608 = vmul.f32 %v536, %v3096
        %v3609 = vmul.f32 %v537, %v3097
        %v3610 = vmul.f32 %v538, %v3098
        %v3611 = vmul.f32 %v539, %v3099
        %v3612 = vmul.f32 %v540, %v3100
        %v3613 = vmul.f32 %v541, %v3101
        %v3614 = vmul.f32 %v542, %v3102
        %v3615 = vmul.f32 %v543, %v3103
        %v3616 = vmul.f32 %v544, %v3104
        %v3617 = vmul.f32 %v545, %v3105
        %v3618 = vmul.f32 %v546, %v3106
        %v3619 = vmul.f32 %v547, %v3107
        %v3620 = vmul.f32 %v548, %v3108
        %v3621 = vmul.f32 %v549, %v3109
        %v3622 = vmul.f32 %v550, %v3110
        %v3623 = vmul.f32 %v551, %v3111
        %v3624 = vmul.f32 %v552, %v3112
        %v3625 = vmul.f32 %v553, %v3113
        %v3626 = vmul.f32 %v554, %v3114
        %v3627 = vmul.f32 %v555, %v3115
        %v3628 = vmul.f32 %v556, %v3116
        %v3629 = vmul.f32 %v557, %v3117
        %v3630 = vmul.f32 %v558, %v3118
        %v3631 = vmul.f32 %v559, %v3119
        %v3632 = vmul.f32 %v560, %v3120
        %v3633 = vmul.f32 %v561, %v3121
        %v3634 = vmul.f32 %v562, %v3122
        %v3635 = vmul.f32 %v563, %v3123
        %v3636 = vmul.f32 %v564, %v3124
        %v3637 = vmul.f32 %v565, %v3125
        %v3638 = vmul.f32 %v566, %v3126
        %v3639 = vmul.f32 %v567, %v3127
        %v3640 = vmul.f32 %v568, %v3128
        %v3641 = vmul.f32 %v569, %v3129
        %v3642 = vmul.f32 %v570, %v3130
        %v3643 = vmul.f32 %v571, %v3131
        %v3644 = vmul.f32 %v572, %v3132
        %v3645 = vmul.f32 %v573, %v3133
        %v3646 = vmul.f32 %v574, %v3134
        %v3647 = vmul.f32 %v575, %v3135
        %v3648 = vmul.f32 %v576, %v3136
        %v3649 = vmul.f32 %v577, %v3137
        %v3650 = vmul.f32 %v578, %v3138
        %v3651 = vmul.f32 %v579, %v3139
        %v3652 = vmul.f32 %v580, %v3140
        %v3653 = vmul.f32 %v581, %v3141
        %v3654 = vmul.f32 %v582, %v3142
        %v3655 = vmul.f32 %v583, %v3143
        %v3656 = vmul.f32 %v584, %v3144
        %v3657 = vmul.f32 %v585, %v3145
        %v3658 = vmul.f32 %v586, %v3146
        %v3659 = vmul.f32 %v587, %v3147
        %v3660 = vmul.f32 %v588, %v3148
        %v3661 = vmul.f32 %v589, %v3149
        %v3662 = vmul.f32 %v590, %v3150
        %v3663 = vmul.f32 %v591, %v3151
        %v3664 = vmul.f32 %v592, %v3152
        %v3665 = vmul.f32 %v593, %v3153
        %v3666 = vmul.f32 %v594, %v3154
        %v3667 = vmul.f32 %v595, %v3155
        %v3668 = vmul.f32 %v596, %v3156
        %v3669 = vmul.f32 %v597, %v3157
        %v3670 = vmul.f32 %v598, %v3158
        %v3671 = vmul.f32 %v599, %v3159
        %v3672 = vmul.f32 %v600, %v3160
        %v3673 = vmul.f32 %v601, %v3161
        %v3674 = vmul.f32 %v602, %v3162
        %v3675 = vmul.f32 %v603, %v3163
        %v3676 = vmul.f32 %v604, %v3164
        %v3677 = vmul.f32 %v605, %v3165
        %v3678 = vmul.f32 %v606, %v3166
        %v3679 = vmul.f32 %v607, %v3167
        %v3680 = vmul.f32 %v608, %v3168
        %v3681 = vmul.f32 %v609, %v3169
        %v3682 = vmul.f32 %v610, %v3170
        %v3683 = vmul.f32 %v611, %v3171
        %v3684 = vmul.f32 %v612, %v3172
        %v3685 = vmul.f32 %v613, %v3173
        %v3686 = vmul.f32 %v614, %v3174
        %v3687 = vmul.f32 %v615, %v3175
        %v3688 = vmul.f32 %v616, %v3176
        %v3689 = vmul.f32 %v617, %v3177
        %v3690 = vmul.f32 %v618, %v3178
        %v3691 = vmul.f32 %v619, %v3179
        %v3692 = vmul.f32 %v620, %v3180
        %v3693 = vmul.f32 %v621, %v3181
        %v3694 = vmul.f32 %v622, %v3182
        %v3695 = vmul.f32 %v623, %v3183
        %v3696 = vmul.f32 %v624, %v3184
        %v3697 = vmul.f32 %v625, %v3185
        %v3698 = vmul.f32 %v626, %v3186
        %v3699 = vmul.f32 %v627, %v3187
        %v3700 = vmul.f32 %v628, %v3188
        %v3701 = vmul.f32 %v629, %v3189
        %v3702 = vmul.f32 %v630, %v3190
        %v3703 = vmul.f32 %v631, %v3191
        %v3704 = vmul.f32 %v632, %v3192
        %v3705 = vmul.f32 %v633, %v3193
        %v3706 = vmul.f32 %v634, %v3194
        %v3707 = vmul.f32 %v635, %v3195
        %v3708 = vmul.f32 %v636, %v3196
        %v3709 = vmul.f32 %v637, %v3197
        %v3710 = vmul.f32 %v638, %v3198
        %v3711 = vmul.f32 %v639, %v3199
        %v3712 = vmul.f32 %v640, %v3200
        %v3713 = vmul.f32 %v641, %v3201
        %v3714 = vmul.f32 %v642, %v3202
        %v3715 = vmul.f32 %v643, %v3203
        %v3716 = vmul.f32 %v644, %v3204
        %v3717 = vmul.f32 %v645, %v3205
        %v3718 = vmul.f32 %v646, %v3206
        %v3719 = vmul.f32 %v647, %v3207
        %v3720 = vmul.f32 %v648, %v3208
        %v3721 = vadd.f32 %v2697, 2.0
        %v3722 = vadd.f32 %v2698, 2.0
        %v3723 = vadd.f32 %v2699, 2.0
        %v3724 = vadd.f32 %v2700, 2.0
        %v3725 = vadd.f32 %v2701, 2.0
        %v3726 = vadd.f32 %v2702, 2.0
        %v3727 = vadd.f32 %v2703, 2.0
        %v3728 = vadd.f32 %v2704, 2.0
        %v3729 = vadd.f32 %v2705, 2.0
        %v3730 = vadd.f32 %v2706, 2.0
        %v3731 = vadd.f32 %v2707, 2.0
        %v3732 = vadd.f32 %v2708, 2.0
        %v3733 = vadd.f32 %v2709, 2.0
        %v3734 = vadd.f32 %v2710, 2.0
        %v3735 = vadd.f32 %v2711, 2.0
        %v3736 = vadd.f32 %v2712, 2.0
        %v3737 = vadd.f32 %v2713, 2.0
        %v3738 = vadd.f32 %v2714, 2.0
        %v3739 = vadd.f32 %v2715, 2.0
        %v3740 = vadd.f32 %v2716, 2.0
        %v3741 = vadd.f32 %v2717, 2.0
        %v3742 = vadd.f32 %v2718, 2.0
        %v3743 = vadd.f32 %v2719, 2.0
        %v3744 = vadd.f32 %v2720, 2.0
        %v3745 = vadd.f32 %v2721, 2.0
        %v3746 = vadd.f32 %v2722, 2.0
        %v3747 = vadd.f32 %v2723, 2.0
        %v3748 = vadd.f32 %v2724, 2.0
        %v3749 = vadd.f32 %v2725, 2.0
        %v3750 = vadd.f32 %v2726, 2.0
        %v3751 = vadd.f32 %v2727, 2.0
        %v3752 = vadd.f32 %v2728, 2.0
        %v3753 = vadd.f32 %v2729, 2.0
        %v3754 = vadd.f32 %v2730, 2.0
        %v3755 = vadd.f32 %v2731, 2.0
        %v3756 = vadd.f32 %v2732, 2.0
        %v3757 = vadd.f32 %v2733, 2.0
        %v3758 = vadd.f32 %v2734, 2.0
        %v3759 = vadd.f32 %v2735, 2.0
        %v3760 = vadd.f32 %v2736, 2.0
        %v3761 = vadd.f32 %v2737, 2.0
        %v3762 = vadd.f32 %v2738, 2.0
        %v3763 = vadd.f32 %v2739, 2.0
        %v3764 = vadd.f32 %v2740, 2.0
        %v3765 = vadd.f32 %v2741, 2.0
        %v3766 = vadd.f32 %v2742, 2.0
        %v3767 = vadd.f32 %v2743, 2.0
        %v3768 = vadd.f32 %v2744, 2.0
        %v3769 = vadd.f32 %v2745, 2.0
        %v3770 = vadd.f32 %v2746, 2.0
        %v3771 = vadd.f32 %v2747, 2.0
        %v3772 = vadd.f32 %v2748, 2.0
        %v3773 = vadd.f32 %v2749, 2.0
        %v3774 = vadd.f32 %v2750, 2.0
        %v3775 = vadd.f32 %v2751, 2.0
        %v3776 = vadd.f32 %v2752, 2.0
        %v3777 = vadd.f32 %v2753, 2.0
        %v3778 = vadd.f32 %v2754, 2.0
        %v3779 = vadd.f32 %v2755, 2.0
        %v3780 = vadd.f32 %v2756, 2.0
        %v3781 = vadd.f32 %v2757, 2.0
        %v3782 = vadd.f32 %v2758, 2.0
        %v3783 = vadd.f32 %v2759, 2.0
        %v3784 = vadd.f32 %v2760, 2.0
        %v3785 = vadd.f32 %v2761, 2.0
        %v3786 = vadd.f32 %v2762, 2.0
        %v3787 = vadd.f32 %v2763, 2.0
        %v3788 = vadd.f32 %v2764, 2.0
        %v3789 = vadd.f32 %v2765, 2.0
        %v3790 = vadd.f32 %v2766, 2.0
        %v3791 = vadd.f32 %v2767, 2.0
        %v3792 = vadd.f32 %v2768, 2.0
        %v3793 = vadd.f32 %v2769, 2.0
        %v3794 = vadd.f32 %v2770, 2.0
        %v3795 = vadd.f32 %v2771, 2.0
        %v3796 = vadd.f32 %v2772, 2.0
        %v3797 = vadd.f32 %v2773, 2.0
        %v3798 = vadd.f32 %v2774, 2.0
        %v3799 = vadd.f32 %v2775, 2.0
        %v3800 = vadd.f32 %v2776, 2.0
        %v3801 = vadd.f32 %v2777, 2.0
        %v3802 = vadd.f32 %v2778, 2.0
        %v3803 = vadd.f32 %v2779, 2.0
        %v3804 = vadd.f32 %v2780, 2.0
        %v3805 = vadd.f32 %v2781, 2.0
        %v3806 = vadd.f32 %v2782, 2.0
        %v3807 = vadd.f32 %v2783, 2.0
        %v3808 = vadd.f32 %v2784, 2.0
        %v3809 = vadd.f32 %v2785, 2.0
        %v3810 = vadd.f32 %v2786, 2.0
        %v3811 = vadd.f32 %v2787, 2.0
        %v3812 = vadd.f32 %v2788, 2.0
        %v3813 = vadd.f32 %v2789, 2.0
        %v3814 = vadd.f32 %v2790, 2.0
        %v3815 = vadd.f32 %v2791, 2.0
        %v3816 = vadd.f32 %v2792, 2.0
        %v3817 = vadd.f32 %v2793, 2.0
        %v3818 = vadd.f32 %v2794, 2.0
        %v3819 = vadd.f32 %v2795, 2.0
        %v3820 = vadd.f32 %v2796, 2.0
        %v3821 = vadd.f32 %v2797, 2.0
        %v3822 = vadd.f32 %v2798, 2.0
        %v3823 = vadd.f32 %v2799, 2.0
        %v3824 = vadd.f32 %v2800, 2.0
        %v3825 = vadd.f32 %v2801, 2.0
        %v3826 = vadd.f32 %v2802, 2.0
        %v3827 = vadd.f32 %v2803, 2.0
        %v3828 = vadd.f32 %v2804, 2.0
        %v3829 = vadd.f32 %v2805, 2.0
        %v3830 = vadd.f32 %v2806, 2.0
        %v3831 = vadd.f32 %v2807, 2.0
        %v3832 = vadd.f32 %v2808, 2.0
        %v3833 = vadd.f32 %v2809, 2.0
        %v3834 = vadd.f32 %v2810, 2.0
        %v3835 = vadd.f32 %v2811, 2.0
        %v3836 = vadd.f32 %v2812, 2.0
        %v3837 = vadd.f32 %v2813, 2.0
        %v3838 = vadd.f32 %v2814, 2.0
        %v3839 = vadd.f32 %v2815, 2.0
        %v3840 = vadd.f32 %v2816, 2.0
        %v3841 = vadd.f32 %v2817, 2.0
        %v3842 = vadd.f32 %v2818, 2.0
        %v3843 = vadd.f32 %v2819, 2.0
        %v3844 = vadd.f32 %v2820, 2.0
        %v3845 = vadd.f32 %v2821, 2.0
        %v3846 = vadd.f32 %v2822, 2.0
        %v3847 = vadd.f32 %v2823, 2.0
        %v3848 = vadd.f32 %v2824, 2.0
        %v3849 = vadd.f32 %v2825, 2.0
        %v3850 = vadd.f32 %v2826, 2.0
        %v3851 = vadd.f32 %v2827, 2.0
        %v3852 = vadd.f32 %v2828, 2.0
        %v3853 = vadd.f32 %v2829, 2.0
        %v3854 = vadd.f32 %v2830, 2.0
        %v3855 = vadd.f32 %v2831, 2.0
        %v3856 = vadd.f32 %v2832, 2.0
        %v3857 = vadd.f32 %v2833, 2.0
        %v3858 = vadd.f32 %v2834, 2.0
        %v3859 = vadd.f32 %v2835, 2.0
        %v3860 = vadd.f32 %v2836, 2.0
        %v3861 = vadd.f32 %v2837, 2.0
        %v3862 = vadd.f32 %v2838, 2.0
        %v3863 = vadd.f32 %v2839, 2.0
        %v3864 = vadd.f32 %v2840, 2.0
        %v3865 = vadd.f32 %v2841, 2.0
        %v3866 = vadd.f32 %v2842, 2.0
        %v3867 = vadd.f32 %v2843, 2.0
        %v3868 = vadd.f32 %v2844, 2.0
        %v3869 = vadd.f32 %v2845, 2.0
        %v3870 = vadd.f32 %v2846, 2.0
        %v3871 = vadd.f32 %v2847, 2.0
        %v3872 = vadd.f32 %v2848, 2.0
        %v3873 = vadd.f32 %v2849, 2.0
        %v3874 = vadd.f32 %v2850, 2.0
        %v3875 = vadd.f32 %v2851, 2.0
        %v3876 = vadd.f32 %v2852, 2.0
        %v3877 = vadd.f32 %v2853, 2.0
        %v3878 = vadd.f32 %v2854, 2.0
        %v3879 = vadd.f32 %v2855, 2.0
        %v3880 = vadd.f32 %v2856, 2.0
        %v3881 = vadd.f32 %v2857, 2.0
        %v3882 = vadd.f32 %v2858, 2.0
        %v3883 = vadd.f32 %v2859, 2.0
        %v3884 = vadd.f32 %v2860, 2.0
        %v3885 = vadd.f32 %v2861, 2.0
        %v3886 = vadd.f32 %v2862, 2.0
        %v3887 = vadd.f32 %v2863, 2.0
        %v3888 = vadd.f32 %v2864, 2.0
        %v3889 = vadd.f32 %v2865, 2.0
        %v3890 = vadd.f32 %v2866, 2.0
        %v3891 = vadd.f32 %v2867, 2.0
        %v3892 = vadd.f32 %v2868, 2.0
        %v3893 = vadd.f32 %v2869, 2.0
        %v3894 = vadd.f32 %v2870, 2.0
        %v3895 = vadd.f32 %v2871, 2.0
        %v3896 = vadd.f32 %v2872, 2.0
        %v3897 = vadd.f32 %v2873, 2.0
        %v3898 = vadd.f32 %v2874, 2.0
        %v3899 = vadd.f32 %v2875, 2.0
        %v3900 = vadd.f32 %v2876, 2.0
        %v3901 = vadd.f32 %v2877, 2.0
        %v3902 = vadd.f32 %v2878, 2.0
        %v3903 = vadd.f32 %v2879, 2.0
        %v3904 = vadd.f32 %v2880, 2.0
        %v3905 = vadd.f32 %v2881, 2.0
        %v3906 = vadd.f32 %v2882, 2.0
        %v3907 = vadd.f32 %v2883, 2.0
        %v3908 = vadd.f32 %v2884, 2.0
        %v3909 = vadd.f32 %v2885, 2.0
        %v3910 = vadd.f32 %v2886, 2.0
        %v3911 = vadd.f32 %v2887, 2.0
        %v3912 = vadd.f32 %v2888, 2.0
        %v3913 = vadd.f32 %v2889, 2.0
        %v3914 = vadd.f32 %v2890, 2.0
        %v3915 = vadd.f32 %v2891, 2.0
        %v3916 = vadd.f32 %v2892, 2.0
        %v3917 = vadd.f32 %v2893, 2.0
        %v3918 = vadd.f32 %v2894, 2.0
        %v3919 = vadd.f32 %v2895, 2.0
        %v3920 = vadd.f32 %v2896, 2.0
        %v3921 = vadd.f32 %v2897, 2.0
        %v3922 = vadd.f32 %v2898, 2.0
        %v3923 = vadd.f32 %v2899, 2.0
        %v3924 = vadd.f32 %v2900, 2.0
        %v3925 = vadd.f32 %v2901, 2.0
        %v3926 = vadd.f32 %v2902, 2.0
        %v3927 = vadd.f32 %v2903, 2.0
        %v3928 = vadd.f32 %v2904, 2.0
        %v3929 = vadd.f32 %v2905, 2.0
        %v3930 = vadd.f32 %v2906, 2.0
        %v3931 = vadd.f32 %v2907, 2.0
        %v3932 = vadd.f32 %v2908, 2.0
        %v3933 = vadd.f32 %v2909, 2.0
        %v3934 = vadd.f32 %v2910, 2.0
        %v3935 = vadd.f32 %v2911, 2.0
        %v3936 = vadd.f32 %v2912, 2.0
        %v3937 = vadd.f32 %v2913, 2.0
        %v3938 = vadd.f32 %v2914, 2.0
        %v3939 = vadd.f32 %v2915, 2.0
        %v3940 = vadd.f32 %v2916, 2.0
        %v3941 = vadd.f32 %v2917, 2.0
        %v3942 = vadd.f32 %v2918, 2.0
        %v3943 = vadd.f32 %v2919, 2.0
        %v3944 = vadd.f32 %v2920, 2.0
        %v3945 = vadd.f32 %v2921, 2.0
        %v3946 = vadd.f32 %v2922, 2.0
        %v3947 = vadd.f32 %v2923, 2.0
        %v3948 = vadd.f32 %v2924, 2.0
        %v3949 = vadd.f32 %v2925, 2.0
        %v3950 = vadd.f32 %v2926, 2.0
        %v3951 = vadd.f32 %v2927, 2.0
        %v3952 = vadd.f32 %v2928, 2.0
        %v3953 = vadd.f32 %v2929, 2.0
        %v3954 = vadd.f32 %v2930, 2.0
        %v3955 = vadd.f32 %v2931, 2.0
        %v3956 = vadd.f32 %v2932, 2.0
        %v3957 = vadd.f32 %v2933, 2.0
        %v3958 = vadd.f32 %v2934, 2.0
        %v3959 = vadd.f32 %v2935, 2.0
        %v3960 = vadd.f32 %v2936, 2.0
        %v3961 = vadd.f32 %v2937, 2.0
        %v3962 = vadd.f32 %v2938, 2.0
        %v3963 = vadd.f32 %v2939, 2.0
        %v3964 = vadd.f32 %v2940, 2.0
        %v3965 = vadd.f32 %v2941, 2.0
        %v3966 = vadd.f32 %v2942, 2.0
        %v3967 = vadd.f32 %v2943, 2.0
        %v3968 = vadd.f32 %v2944, 2.0
        %v3969 = vadd.f32 %v2945, 2.0
        %v3970 = vadd.f32 %v2946, 2.0
        %v3971 = vadd.f32 %v2947, 2.0
        %v3972 = vadd.f32 %v2948, 2.0
        %v3973 = vadd.f32 %v2949, 2.0
        %v3974 = vadd.f32 %v2950, 2.0
        %v3975 = vadd.f32 %v2951, 2.0
        %v3976 = vadd.f32 %v2952, 2.0
        %v3977 = vadd.f32 %v2953, 2.0
        %v3978 = vadd.f32 %v2954, 2.0
        %v3979 = vadd.f32 %v2955, 2.0
        %v3980 = vadd.f32 %v2956, 2.0
        %v3981 = vadd.f32 %v2957, 2.0
        %v3982 = vadd.f32 %v2958, 2.0
        %v3983 = vadd.f32 %v2959, 2.0
        %v3984 = vadd.f32 %v2960, 2.0
        %v3985 = vadd.f32 %v2961, 2.0
        %v3986 = vadd.f32 %v2962, 2.0
        %v3987 = vadd.f32 %v2963, 2.0
        %v3988 = vadd.f32 %v2964, 2.0
        %v3989 = vadd.f32 %v2965, 2.0
        %v3990 = vadd.f32 %v2966, 2.0
        %v3991 = vadd.f32 %v2967, 2.0
        %v3992 = vadd.f32 %v2968, 2.0
        %v3993 = vadd.f32 %v2969, 2.0
        %v3994 = vadd.f32 %v2970, 2.0
        %v3995 = vadd.f32 %v2971, 2.0
        %v3996 = vadd.f32 %v2972, 2.0
        %v3997 = vadd.f32 %v2973, 2.0
        %v3998 = vadd.f32 %v2974, 2.0
        %v3999 = vadd.f32 %v2975, 2.0
        %v4000 = vadd.f32 %v2976, 2.0
        %v4001 = vadd.f32 %v2977, 2.0
        %v4002 = vadd.f32 %v2978, 2.0
        %v4003 = vadd.f32 %v2979, 2.0
        %v4004 = vadd.f32 %v2980, 2.0
        %v4005 = vadd.f32 %v2981, 2.0
        %v4006 = vadd.f32 %v2982, 2.0
        %v4007 = vadd.f32 %v2983, 2.0
        %v4008 = vadd.f32 %v2984, 2.0
        %v4009 = vadd.f32 %v2985, 2.0
        %v4010 = vadd.f32 %v2986, 2.0
        %v4011 = vadd.f32 %v2987, 2.0
        %v4012 = vadd.f32 %v2988, 2.0
        %v4013 = vadd.f32 %v2989, 2.0
        %v4014 = vadd.f32 %v2990, 2.0
        %v4015 = vadd.f32 %v2991, 2.0
        %v4016 = vadd.f32 %v2992, 2.0
        %v4017 = vadd.f32 %v2993, 2.0
        %v4018 = vadd.f32 %v2994, 2.0
        %v4019 = vadd.f32 %v2995, 2.0
        %v4020 = vadd.f32 %v2996, 2.0
        %v4021 = vadd.f32 %v2997, 2.0
        %v4022 = vadd.f32 %v2998, 2.0
        %v4023 = vadd.f32 %v2999, 2.0
        %v4024 = vadd.f32 %v3000, 2.0
        %v4025 = vadd.f32 %v3001, 2.0
        %v4026 = vadd.f32 %v3002, 2.0
        %v4027 = vadd.f32 %v3003, 2.0
        %v4028 = vadd.f32 %v3004, 2.0
        %v4029 = vadd.f32 %v3005, 2.0
        %v4030 = vadd.f32 %v3006, 2.0
        %v4031 = vadd.f32 %v3007, 2.0
        %v4032 = vadd.f32 %v3008, 2.0
        %v4033 = vadd.f32 %v3009, 2.0
        %v4034 = vadd.f32 %v3010, 2.0
        %v4035 = vadd.f32 %v3011, 2.0
        %v4036 = vadd.f32 %v3012, 2.0
        %v4037 = vadd.f32 %v3013, 2.0
        %v4038 = vadd.f32 %v3014, 2.0
        %v4039 = vadd.f32 %v3015, 2.0
        %v4040 = vadd.f32 %v3016, 2.0
        %v4041 = vadd.f32 %v3017, 2.0
        %v4042 = vadd.f32 %v3018, 2.0
        %v4043 = vadd.f32 %v3019, 2.0
        %v4044 = vadd.f32 %v3020, 2.0
        %v4045 = vadd.f32 %v3021, 2.0
        %v4046 = vadd.f32 %v3022, 2.0
        %v4047 = vadd.f32 %v3023, 2.0
        %v4048 = vadd.f32 %v3024, 2.0
        %v4049 = vadd.f32 %v3025, 2.0
        %v4050 = vadd.f32 %v3026, 2.0
        %v4051 = vadd.f32 %v3027, 2.0
        %v4052 = vadd.f32 %v3028, 2.0
        %v4053 = vadd.f32 %v3029, 2.0
        %v4054 = vadd.f32 %v3030, 2.0
        %v4055 = vadd.f32 %v3031, 2.0
        %v4056 = vadd.f32 %v3032, 2.0
        %v4057 = vadd.f32 %v3033, 2.0
        %v4058 = vadd.f32 %v3034, 2.0
        %v4059 = vadd.f32 %v3035, 2.0
        %v4060 = vadd.f32 %v3036, 2.0
        %v4061 = vadd.f32 %v3037, 2.0
        %v4062 = vadd.f32 %v3038, 2.0
        %v4063 = vadd.f32 %v3039, 2.0
        %v4064 = vadd.f32 %v3040, 2.0
        %v4065 = vadd.f32 %v3041, 2.0
        %v4066 = vadd.f32 %v3042, 2.0
        %v4067 = vadd.f32 %v3043, 2.0
        %v4068 = vadd.f32 %v3044, 2.0
        %v4069 = vadd.f32 %v3045, 2.0
        %v4070 = vadd.f32 %v3046, 2.0
        %v4071 = vadd.f32 %v3047, 2.0
        %v4072 = vadd.f32 %v3048, 2.0
        %v4073 = vadd.f32 %v3049, 2.0
        %v4074 = vadd.f32 %v3050, 2.0
        %v4075 = vadd.f32 %v3051, 2.0
        %v4076 = vadd.f32 %v3052, 2.0
        %v4077 = vadd.f32 %v3053, 2.0
        %v4078 = vadd.f32 %v3054, 2.0
        %v4079 = vadd.f32 %v3055, 2.0
        %v4080 = vadd.f32 %v3056, 2.0
        %v4081 = vadd.f32 %v3057, 2.0
        %v4082 = vadd.f32 %v3058, 2.0
        %v4083 = vadd.f32 %v3059, 2.0
        %v4084 = vadd.f32 %v3060, 2.0
        %v4085 = vadd.f32 %v3061, 2.0
        %v4086 = vadd.f32 %v3062, 2.0
        %v4087 = vadd.f32 %v3063, 2.0
        %v4088 = vadd.f32 %v3064, 2.0
        %v4089 = vadd.f32 %v3065, 2.0
        %v4090 = vadd.f32 %v3066, 2.0
        %v4091 = vadd.f32 %v3067, 2.0
        %v4092 = vadd.f32 %v3068, 2.0
        %v4093 = vadd.f32 %v3069, 2.0
        %v4094 = vadd.f32 %v3070, 2.0
        %v4095 = vadd.f32 %v3071, 2.0
        %v4096 = vadd.f32 %v3072, 2.0
        %v4097 = vadd.f32 %v3073, 2.0
        %v4098 = vadd.f32 %v3074, 2.0
        %v4099 = vadd.f32 %v3075, 2.0
        %v4100 = vadd.f32 %v3076, 2.0
        %v4101 = vadd.f32 %v3077, 2.0
        %v4102 = vadd.f32 %v3078, 2.0
        %v4103 = vadd.f32 %v3079, 2.0
        %v4104 = vadd.f32 %v3080, 2.0
        %v4105 = vadd.f32 %v3081, 2.0
        %v4106 = vadd.f32 %v3082, 2.0
        %v4107 = vadd.f32 %v3083, 2.0
        %v4108 = vadd.f32 %v3084, 2.0
        %v4109 = vadd.f32 %v3085, 2.0
        %v4110 = vadd.f32 %v3086, 2.0
        %v4111 = vadd.f32 %v3087, 2.0
        %v4112 = vadd.f32 %v3088, 2.0
        %v4113 = vadd.f32 %v3089, 2.0
        %v4114 = vadd.f32 %v3090, 2.0
        %v4115 = vadd.f32 %v3091, 2.0
        %v4116 = vadd.f32 %v3092, 2.0
        %v4117 = vadd.f32 %v3093, 2.0
        %v4118 = vadd.f32 %v3094, 2.0
        %v4119 = vadd.f32 %v3095, 2.0
        %v4120 = vadd.f32 %v3096, 2.0
        %v4121 = vadd.f32 %v3097, 2.0
        %v4122 = vadd.f32 %v3098, 2.0
        %v4123 = vadd.f32 %v3099, 2.0
        %v4124 = vadd.f32 %v3100, 2.0
        %v4125 = vadd.f32 %v3101, 2.0
        %v4126 = vadd.f32 %v3102, 2.0
        %v4127 = vadd.f32 %v3103, 2.0
        %v4128 = vadd.f32 %v3104, 2.0
        %v4129 = vadd.f32 %v3105, 2.0
        %v4130 = vadd.f32 %v3106, 2.0
        %v4131 = vadd.f32 %v3107, 2.0
        %v4132 = vadd.f32 %v3108, 2.0
        %v4133 = vadd.f32 %v3109, 2.0
        %v4134 = vadd.f32 %v3110, 2.0
        %v4135 = vadd.f32 %v3111, 2.0
        %v4136 = vadd.f32 %v3112, 2.0
        %v4137 = vadd.f32 %v3113, 2.0
        %v4138 = vadd.f32 %v3114, 2.0
        %v4139 = vadd.f32 %v3115, 2.0
        %v4140 = vadd.f32 %v3116, 2.0
        %v4141 = vadd.f32 %v3117, 2.0
        %v4142 = vadd.f32 %v3118, 2.0
        %v4143 = vadd.f32 %v3119, 2.0
        %v4144 = vadd.f32 %v3120, 2.0
        %v4145 = vadd.f32 %v3121, 2.0
        %v4146 = vadd.f32 %v3122, 2.0
        %v4147 = vadd.f32 %v3123, 2.0
        %v4148 = vadd.f32 %v3124, 2.0
        %v4149 = vadd.f32 %v3125, 2.0
        %v4150 = vadd.f32 %v3126, 2.0
        %v4151 = vadd.f32 %v3127, 2.0
        %v4152 = vadd.f32 %v3128, 2.0
        %v4153 = vadd.f32 %v3129, 2.0
        %v4154 = vadd.f32 %v3130, 2.0
        %v4155 = vadd.f32 %v3131, 2.0
        %v4156 = vadd.f32 %v3132, 2.0
        %v4157 = vadd.f32 %v3133, 2.0
        %v4158 = vadd.f32 %v3134, 2.0
        %v4159 = vadd.f32 %v3135, 2.0
        %v4160 = vadd.f32 %v3136, 2.0
        %v4161 = vadd.f32 %v3137, 2.0
        %v4162 = vadd.f32 %v3138, 2.0
        %v4163 = vadd.f32 %v3139, 2.0
        %v4164 = vadd.f32 %v3140, 2.0
        %v4165 = vadd.f32 %v3141, 2.0
        %v4166 = vadd.f32 %v3142, 2.0
        %v4167 = vadd.f32 %v3143, 2.0
        %v4168 = vadd.f32 %v3144, 2.0
        %v4169 = vadd.f32 %v3145, 2.0
        %v4170 = vadd.f32 %v3146, 2.0
        %v4171 = vadd.f32 %v3147, 2.0
        %v4172 = vadd.f32 %v3148, 2.0
        %v4173 = vadd.f32 %v3149, 2.0
        %v4174 = vadd.f32 %v3150, 2.0
        %v4175 = vadd.f32 %v3151, 2.0
        %v4176 = vadd.f32 %v3152, 2.0
        %v4177 = vadd.f32 %v3153, 2.0
        %v4178 = vadd.f32 %v3154, 2.0
        %v4179 = vadd.f32 %v3155, 2.0
        %v4180 = vadd.f32 %v3156, 2.0
        %v4181 = vadd.f32 %v3157, 2.0
        %v4182 = vadd.f32 %v3158, 2.0
        %v4183 = vadd.f32 %v3159, 2.0
        %v4184 = vadd.f32 %v3160, 2.0
        %v4185 = vadd.f32 %v3161, 2.0
        %v4186 = vadd.f32 %v3162, 2.0
        %v4187 = vadd.f32 %v3163, 2.0
        %v4188 = vadd.f32 %v3164, 2.0
        %v4189 = vadd.f32 %v3165, 2.0
        %v4190 = vadd.f32 %v3166, 2.0
        %v4191 = vadd.f32 %v3167, 2.0
        %v4192 = vadd.f32 %v3168, 2.0
        %v4193 = vadd.f32 %v3169, 2.0
        %v4194 = vadd.f32 %v3170, 2.0
        %v4195 = vadd.f32 %v3171, 2.0
        %v4196 = vadd.f32 %v3172, 2.0
        %v4197 = vadd.f32 %v3173, 2.0
        %v4198 = vadd.f32 %v3174, 2.0
        %v4199 = vadd.f32 %v3175, 2.0
        %v4200 = vadd.f32 %v3176, 2.0
        %v4201 = vadd.f32 %v3177, 2.0
        %v4202 = vadd.f32 %v3178, 2.0
        %v4203 = vadd.f32 %v3179, 2.0
        %v4204 = vadd.f32 %v3180, 2.0
        %v4205 = vadd.f32 %v3181, 2.0
        %v4206 = vadd.f32 %v3182, 2.0
        %v4207 = vadd.f32 %v3183, 2.0
        %v4208 = vadd.f32 %v3184, 2.0
        %v4209 = vadd.f32 %v3185, 2.0
        %v4210 = vadd.f32 %v3186, 2.0
        %v4211 = vadd.f32 %v3187, 2.0
        %v4212 = vadd.f32 %v3188, 2.0
        %v4213 = vadd.f32 %v3189, 2.0
        %v4214 = vadd.f32 %v3190, 2.0
        %v4215 = vadd.f32 %v3191, 2.0
        %v4216 = vadd.f32 %v3192, 2.0
        %v4217 = vadd.f32 %v3193, 2.0
        %v4218 = vadd.f32 %v3194, 2.0
        %v4219 = vadd.f32 %v3195, 2.0
        %v4220 = vadd.f32 %v3196, 2.0
        %v4221 = vadd.f32 %v3197, 2.0
        %v4222 = vadd.f32 %v3198, 2.0
        %v4223 = vadd.f32 %v3199, 2.0
        %v4224 = vadd.f32 %v3200, 2.0
        %v4225 = vadd.f32 %v3201, 2.0
        %v4226 = vadd.f32 %v3202, 2.0
        %v4227 = vadd.f32 %v3203, 2.0
        %v4228 = vadd.f32 %v3204, 2.0
        %v4229 = vadd.f32 %v3205, 2.0
        %v4230 = vadd.f32 %v3206, 2.0
        %v4231 = vadd.f32 %v3207, 2.0
        %v4232 = vadd.f32 %v3208, 2.0
        %v4233 = vrcp.pop %v3721
        %v4234 = vrcp.pop %v3722
        %v4235 = vrcp.pop %v3723
        %v4236 = vrcp.pop %v3724
        %v4237 = vrcp.pop %v3725
        %v4238 = vrcp.pop %v3726
        %v4239 = vrcp.pop %v3727
        %v4240 = vrcp.pop %v3728
        %v4241 = vrcp.pop %v3729
        %v4242 = vrcp.pop %v3730
        %v4243 = vrcp.pop %v3731
        %v4244 = vrcp.pop %v3732
        %v4245 = vrcp.pop %v3733
        %v4246 = vrcp.pop %v3734
        %v4247 = vrcp.pop %v3735
        %v4248 = vrcp.pop %v3736
        %v4249 = vrcp.pop %v3737
        %v4250 = vrcp.pop %v3738
        %v4251 = vrcp.pop %v3739
        %v4252 = vrcp.pop %v3740
        %v4253 = vrcp.pop %v3741
        %v4254 = vrcp.pop %v3742
        %v4255 = vrcp.pop %v3743
        %v4256 = vrcp.pop %v3744
        %v4257 = vrcp.pop %v3745
        %v4258 = vrcp.pop %v3746
        %v4259 = vrcp.pop %v3747
        %v4260 = vrcp.pop %v3748
        %v4261 = vrcp.pop %v3749
        %v4262 = vrcp.pop %v3750
        %v4263 = vrcp.pop %v3751
        %v4264 = vrcp.pop %v3752
        %v4265 = vrcp.pop %v3753
        %v4266 = vrcp.pop %v3754
        %v4267 = vrcp.pop %v3755
        %v4268 = vrcp.pop %v3756
        %v4269 = vrcp.pop %v3757
        %v4270 = vrcp.pop %v3758
        %v4271 = vrcp.pop %v3759
        %v4272 = vrcp.pop %v3760
        %v4273 = vrcp.pop %v3761
        %v4274 = vrcp.pop %v3762
        %v4275 = vrcp.pop %v3763
        %v4276 = vrcp.pop %v3764
        %v4277 = vrcp.pop %v3765
        %v4278 = vrcp.pop %v3766
        %v4279 = vrcp.pop %v3767
        %v4280 = vrcp.pop %v3768
        %v4281 = vrcp.pop %v3769
        %v4282 = vrcp.pop %v3770
        %v4283 = vrcp.pop %v3771
        %v4284 = vrcp.pop %v3772
        %v4285 = vrcp.pop %v3773
        %v4286 = vrcp.pop %v3774
        %v4287 = vrcp.pop %v3775
        %v4288 = vrcp.pop %v3776
        %v4289 = vrcp.pop %v3777
        %v4290 = vrcp.pop %v3778
        %v4291 = vrcp.pop %v3779
        %v4292 = vrcp.pop %v3780
        %v4293 = vrcp.pop %v3781
        %v4294 = vrcp.pop %v3782
        %v4295 = vrcp.pop %v3783
        %v4296 = vrcp.pop %v3784
        %v4297 = vrcp.pop %v3785
        %v4298 = vrcp.pop %v3786
        %v4299 = vrcp.pop %v3787
        %v4300 = vrcp.pop %v3788
        %v4301 = vrcp.pop %v3789
        %v4302 = vrcp.pop %v3790
        %v4303 = vrcp.pop %v3791
        %v4304 = vrcp.pop %v3792
        %v4305 = vrcp.pop %v3793
        %v4306 = vrcp.pop %v3794
        %v4307 = vrcp.pop %v3795
        %v4308 = vrcp.pop %v3796
        %v4309 = vrcp.pop %v3797
        %v4310 = vrcp.pop %v3798
        %v4311 = vrcp.pop %v3799
        %v4312 = vrcp.pop %v3800
        %v4313 = vrcp.pop %v3801
        %v4314 = vrcp.pop %v3802
        %v4315 = vrcp.pop %v3803
        %v4316 = vrcp.pop %v3804
        %v4317 = vrcp.pop %v3805
        %v4318 = vrcp.pop %v3806
        %v4319 = vrcp.pop %v3807
        %v4320 = vrcp.pop %v3808
        %v4321 = vrcp.pop %v3809
        %v4322 = vrcp.pop %v3810
        %v4323 = vrcp.pop %v3811
        %v4324 = vrcp.pop %v3812
        %v4325 = vrcp.pop %v3813
        %v4326 = vrcp.pop %v3814
        %v4327 = vrcp.pop %v3815
        %v4328 = vrcp.pop %v3816
        %v4329 = vrcp.pop %v3817
        %v4330 = vrcp.pop %v3818
        %v4331 = vrcp.pop %v3819
        %v4332 = vrcp.pop %v3820
        %v4333 = vrcp.pop %v3821
        %v4334 = vrcp.pop %v3822
        %v4335 = vrcp.pop %v3823
        %v4336 = vrcp.pop %v3824
        %v4337 = vrcp.pop %v3825
        %v4338 = vrcp.pop %v3826
        %v4339 = vrcp.pop %v3827
        %v4340 = vrcp.pop %v3828
        %v4341 = vrcp.pop %v3829
        %v4342 = vrcp.pop %v3830
        %v4343 = vrcp.pop %v3831
        %v4344 = vrcp.pop %v3832
        %v4345 = vrcp.pop %v3833
        %v4346 = vrcp.pop %v3834
        %v4347 = vrcp.pop %v3835
        %v4348 = vrcp.pop %v3836
        %v4349 = vrcp.pop %v3837
        %v4350 = vrcp.pop %v3838
        %v4351 = vrcp.pop %v3839
        %v4352 = vrcp.pop %v3840
        %v4353 = vrcp.pop %v3841
        %v4354 = vrcp.pop %v3842
        %v4355 = vrcp.pop %v3843
        %v4356 = vrcp.pop %v3844
        %v4357 = vrcp.pop %v3845
        %v4358 = vrcp.pop %v3846
        %v4359 = vrcp.pop %v3847
        %v4360 = vrcp.pop %v3848
        %v4361 = vrcp.pop %v3849
        %v4362 = vrcp.pop %v3850
        %v4363 = vrcp.pop %v3851
        %v4364 = vrcp.pop %v3852
        %v4365 = vrcp.pop %v3853
        %v4366 = vrcp.pop %v3854
        %v4367 = vrcp.pop %v3855
        %v4368 = vrcp.pop %v3856
        %v4369 = vrcp.pop %v3857
        %v4370 = vrcp.pop %v3858
        %v4371 = vrcp.pop %v3859
        %v4372 = vrcp.pop %v3860
        %v4373 = vrcp.pop %v3861
        %v4374 = vrcp.pop %v3862
        %v4375 = vrcp.pop %v3863
        %v4376 = vrcp.pop %v3864
        %v4377 = vrcp.pop %v3865
        %v4378 = vrcp.pop %v3866
        %v4379 = vrcp.pop %v3867
        %v4380 = vrcp.pop %v3868
        %v4381 = vrcp.pop %v3869
        %v4382 = vrcp.pop %v3870
        %v4383 = vrcp.pop %v3871
        %v4384 = vrcp.pop %v3872
        %v4385 = vrcp.pop %v3873
        %v4386 = vrcp.pop %v3874
        %v4387 = vrcp.pop %v3875
        %v4388 = vrcp.pop %v3876
        %v4389 = vrcp.pop %v3877
        %v4390 = vrcp.pop %v3878
        %v4391 = vrcp.pop %v3879
        %v4392 = vrcp.pop %v3880
        %v4393 = vrcp.pop %v3881
        %v4394 = vrcp.pop %v3882
        %v4395 = vrcp.pop %v3883
        %v4396 = vrcp.pop %v3884
        %v4397 = vrcp.pop %v3885
        %v4398 = vrcp.pop %v3886
        %v4399 = vrcp.pop %v3887
        %v4400 = vrcp.pop %v3888
        %v4401 = vrcp.pop %v3889
        %v4402 = vrcp.pop %v3890
        %v4403 = vrcp.pop %v3891
        %v4404 = vrcp.pop %v3892
        %v4405 = vrcp.pop %v3893
        %v4406 = vrcp.pop %v3894
        %v4407 = vrcp.pop %v3895
        %v4408 = vrcp.pop %v3896
        %v4409 = vrcp.pop %v3897
        %v4410 = vrcp.pop %v3898
        %v4411 = vrcp.pop %v3899
        %v4412 = vrcp.pop %v3900
        %v4413 = vrcp.pop %v3901
        %v4414 = vrcp.pop %v3902
        %v4415 = vrcp.pop %v3903
        %v4416 = vrcp.pop %v3904
        %v4417 = vrcp.pop %v3905
        %v4418 = vrcp.pop %v3906
        %v4419 = vrcp.pop %v3907
        %v4420 = vrcp.pop %v3908
        %v4421 = vrcp.pop %v3909
        %v4422 = vrcp.pop %v3910
        %v4423 = vrcp.pop %v3911
        %v4424 = vrcp.pop %v3912
        %v4425 = vrcp.pop %v3913
        %v4426 = vrcp.pop %v3914
        %v4427 = vrcp.pop %v3915
        %v4428 = vrcp.pop %v3916
        %v4429 = vrcp.pop %v3917
        %v4430 = vrcp.pop %v3918
        %v4431 = vrcp.pop %v3919
        %v4432 = vrcp.pop %v3920
        %v4433 = vrcp.pop %v3921
        %v4434 = vrcp.pop %v3922
        %v4435 = vrcp.pop %v3923
        %v4436 = vrcp.pop %v3924
        %v4437 = vrcp.pop %v3925
        %v4438 = vrcp.pop %v3926
        %v4439 = vrcp.pop %v3927
        %v4440 = vrcp.pop %v3928
        %v4441 = vrcp.pop %v3929
        %v4442 = vrcp.pop %v3930
        %v4443 = vrcp.pop %v3931
        %v4444 = vrcp.pop %v3932
        %v4445 = vrcp.pop %v3933
        %v4446 = vrcp.pop %v3934
        %v4447 = vrcp.pop %v3935
        %v4448 = vrcp.pop %v3936
        %v4449 = vrcp.pop %v3937
        %v4450 = vrcp.pop %v3938
        %v4451 = vrcp.pop %v3939
        %v4452 = vrcp.pop %v3940
        %v4453 = vrcp.pop %v3941
        %v4454 = vrcp.pop %v3942
        %v4455 = vrcp.pop %v3943
        %v4456 = vrcp.pop %v3944
        %v4457 = vrcp.pop %v3945
        %v4458 = vrcp.pop %v3946
        %v4459 = vrcp.pop %v3947
        %v4460 = vrcp.pop %v3948
        %v4461 = vrcp.pop %v3949
        %v4462 = vrcp.pop %v3950
        %v4463 = vrcp.pop %v3951
        %v4464 = vrcp.pop %v3952
        %v4465 = vrcp.pop %v3953
        %v4466 = vrcp.pop %v3954
        %v4467 = vrcp.pop %v3955
        %v4468 = vrcp.pop %v3956
        %v4469 = vrcp.pop %v3957
        %v4470 = vrcp.pop %v3958
        %v4471 = vrcp.pop %v3959
        %v4472 = vrcp.pop %v3960
        %v4473 = vrcp.pop %v3961
        %v4474 = vrcp.pop %v3962
        %v4475 = vrcp.pop %v3963
        %v4476 = vrcp.pop %v3964
        %v4477 = vrcp.pop %v3965
        %v4478 = vrcp.pop %v3966
        %v4479 = vrcp.pop %v3967
        %v4480 = vrcp.pop %v3968
        %v4481 = vrcp.pop %v3969
        %v4482 = vrcp.pop %v3970
        %v4483 = vrcp.pop %v3971
        %v4484 = vrcp.pop %v3972
        %v4485 = vrcp.pop %v3973
        %v4486 = vrcp.pop %v3974
        %v4487 = vrcp.pop %v3975
        %v4488 = vrcp.pop %v3976
        %v4489 = vrcp.pop %v3977
        %v4490 = vrcp.pop %v3978
        %v4491 = vrcp.pop %v3979
        %v4492 = vrcp.pop %v3980
        %v4493 = vrcp.pop %v3981
        %v4494 = vrcp.pop %v3982
        %v4495 = vrcp.pop %v3983
        %v4496 = vrcp.pop %v3984
        %v4497 = vrcp.pop %v3985
        %v4498 = vrcp.pop %v3986
        %v4499 = vrcp.pop %v3987
        %v4500 = vrcp.pop %v3988
        %v4501 = vrcp.pop %v3989
        %v4502 = vrcp.pop %v3990
        %v4503 = vrcp.pop %v3991
        %v4504 = vrcp.pop %v3992
        %v4505 = vrcp.pop %v3993
        %v4506 = vrcp.pop %v3994
        %v4507 = vrcp.pop %v3995
        %v4508 = vrcp.pop %v3996
        %v4509 = vrcp.pop %v3997
        %v4510 = vrcp.pop %v3998
        %v4511 = vrcp.pop %v3999
        %v4512 = vrcp.pop %v4000
        %v4513 = vrcp.pop %v4001
        %v4514 = vrcp.pop %v4002
        %v4515 = vrcp.pop %v4003
        %v4516 = vrcp.pop %v4004
        %v4517 = vrcp.pop %v4005
        %v4518 = vrcp.pop %v4006
        %v4519 = vrcp.pop %v4007
        %v4520 = vrcp.pop %v4008
        %v4521 = vrcp.pop %v4009
        %v4522 = vrcp.pop %v4010
        %v4523 = vrcp.pop %v4011
        %v4524 = vrcp.pop %v4012
        %v4525 = vrcp.pop %v4013
        %v4526 = vrcp.pop %v4014
        %v4527 = vrcp.pop %v4015
        %v4528 = vrcp.pop %v4016
        %v4529 = vrcp.pop %v4017
        %v4530 = vrcp.pop %v4018
        %v4531 = vrcp.pop %v4019
        %v4532 = vrcp.pop %v4020
        %v4533 = vrcp.pop %v4021
        %v4534 = vrcp.pop %v4022
        %v4535 = vrcp.pop %v4023
        %v4536 = vrcp.pop %v4024
        %v4537 = vrcp.pop %v4025
        %v4538 = vrcp.pop %v4026
        %v4539 = vrcp.pop %v4027
        %v4540 = vrcp.pop %v4028
        %v4541 = vrcp.pop %v4029
        %v4542 = vrcp.pop %v4030
        %v4543 = vrcp.pop %v4031
        %v4544 = vrcp.pop %v4032
        %v4545 = vrcp.pop %v4033
        %v4546 = vrcp.pop %v4034
        %v4547 = vrcp.pop %v4035
        %v4548 = vrcp.pop %v4036
        %v4549 = vrcp.pop %v4037
        %v4550 = vrcp.pop %v4038
        %v4551 = vrcp.pop %v4039
        %v4552 = vrcp.pop %v4040
        %v4553 = vrcp.pop %v4041
        %v4554 = vrcp.pop %v4042
        %v4555 = vrcp.pop %v4043
        %v4556 = vrcp.pop %v4044
        %v4557 = vrcp.pop %v4045
        %v4558 = vrcp.pop %v4046
        %v4559 = vrcp.pop %v4047
        %v4560 = vrcp.pop %v4048
        %v4561 = vrcp.pop %v4049
        %v4562 = vrcp.pop %v4050
        %v4563 = vrcp.pop %v4051
        %v4564 = vrcp.pop %v4052
        %v4565 = vrcp.pop %v4053
        %v4566 = vrcp.pop %v4054
        %v4567 = vrcp.pop %v4055
        %v4568 = vrcp.pop %v4056
        %v4569 = vrcp.pop %v4057
        %v4570 = vrcp.pop %v4058
        %v4571 = vrcp.pop %v4059
        %v4572 = vrcp.pop %v4060
        %v4573 = vrcp.pop %v4061
        %v4574 = vrcp.pop %v4062
        %v4575 = vrcp.pop %v4063
        %v4576 = vrcp.pop %v4064
        %v4577 = vrcp.pop %v4065
        %v4578 = vrcp.pop %v4066
        %v4579 = vrcp.pop %v4067
        %v4580 = vrcp.pop %v4068
        %v4581 = vrcp.pop %v4069
        %v4582 = vrcp.pop %v4070
        %v4583 = vrcp.pop %v4071
        %v4584 = vrcp.pop %v4072
        %v4585 = vrcp.pop %v4073
        %v4586 = vrcp.pop %v4074
        %v4587 = vrcp.pop %v4075
        %v4588 = vrcp.pop %v4076
        %v4589 = vrcp.pop %v4077
        %v4590 = vrcp.pop %v4078
        %v4591 = vrcp.pop %v4079
        %v4592 = vrcp.pop %v4080
        %v4593 = vrcp.pop %v4081
        %v4594 = vrcp.pop %v4082
        %v4595 = vrcp.pop %v4083
        %v4596 = vrcp.pop %v4084
        %v4597 = vrcp.pop %v4085
        %v4598 = vrcp.pop %v4086
        %v4599 = vrcp.pop %v4087
        %v4600 = vrcp.pop %v4088
        %v4601 = vrcp.pop %v4089
        %v4602 = vrcp.pop %v4090
        %v4603 = vrcp.pop %v4091
        %v4604 = vrcp.pop %v4092
        %v4605 = vrcp.pop %v4093
        %v4606 = vrcp.pop %v4094
        %v4607 = vrcp.pop %v4095
        %v4608 = vrcp.pop %v4096
        %v4609 = vrcp.pop %v4097
        %v4610 = vrcp.pop %v4098
        %v4611 = vrcp.pop %v4099
        %v4612 = vrcp.pop %v4100
        %v4613 = vrcp.pop %v4101
        %v4614 = vrcp.pop %v4102
        %v4615 = vrcp.pop %v4103
        %v4616 = vrcp.pop %v4104
        %v4617 = vrcp.pop %v4105
        %v4618 = vrcp.pop %v4106
        %v4619 = vrcp.pop %v4107
        %v4620 = vrcp.pop %v4108
        %v4621 = vrcp.pop %v4109
        %v4622 = vrcp.pop %v4110
        %v4623 = vrcp.pop %v4111
        %v4624 = vrcp.pop %v4112
        %v4625 = vrcp.pop %v4113
        %v4626 = vrcp.pop %v4114
        %v4627 = vrcp.pop %v4115
        %v4628 = vrcp.pop %v4116
        %v4629 = vrcp.pop %v4117
        %v4630 = vrcp.pop %v4118
        %v4631 = vrcp.pop %v4119
        %v4632 = vrcp.pop %v4120
        %v4633 = vrcp.pop %v4121
        %v4634 = vrcp.pop %v4122
        %v4635 = vrcp.pop %v4123
        %v4636 = vrcp.pop %v4124
        %v4637 = vrcp.pop %v4125
        %v4638 = vrcp.pop %v4126
        %v4639 = vrcp.pop %v4127
        %v4640 = vrcp.pop %v4128
        %v4641 = vrcp.pop %v4129
        %v4642 = vrcp.pop %v4130
        %v4643 = vrcp.pop %v4131
        %v4644 = vrcp.pop %v4132
        %v4645 = vrcp.pop %v4133
        %v4646 = vrcp.pop %v4134
        %v4647 = vrcp.pop %v4135
        %v4648 = vrcp.pop %v4136
        %v4649 = vrcp.pop %v4137
        %v4650 = vrcp.pop %v4138
        %v4651 = vrcp.pop %v4139
        %v4652 = vrcp.pop %v4140
        %v4653 = vrcp.pop %v4141
        %v4654 = vrcp.pop %v4142
        %v4655 = vrcp.pop %v4143
        %v4656 = vrcp.pop %v4144
        %v4657 = vrcp.pop %v4145
        %v4658 = vrcp.pop %v4146
        %v4659 = vrcp.pop %v4147
        %v4660 = vrcp.pop %v4148
        %v4661 = vrcp.pop %v4149
        %v4662 = vrcp.pop %v4150
        %v4663 = vrcp.pop %v4151
        %v4664 = vrcp.pop %v4152
        %v4665 = vrcp.pop %v4153
        %v4666 = vrcp.pop %v4154
        %v4667 = vrcp.pop %v4155
        %v4668 = vrcp.pop %v4156
        %v4669 = vrcp.pop %v4157
        %v4670 = vrcp.pop %v4158
        %v4671 = vrcp.pop %v4159
        %v4672 = vrcp.pop %v4160
        %v4673 = vrcp.pop %v4161
        %v4674 = vrcp.pop %v4162
        %v4675 = vrcp.pop %v4163
        %v4676 = vrcp.pop %v4164
        %v4677 = vrcp.pop %v4165
        %v4678 = vrcp.pop %v4166
        %v4679 = vrcp.pop %v4167
        %v4680 = vrcp.pop %v4168
        %v4681 = vrcp.pop %v4169
        %v4682 = vrcp.pop %v4170
        %v4683 = vrcp.pop %v4171
        %v4684 = vrcp.pop %v4172
        %v4685 = vrcp.pop %v4173
        %v4686 = vrcp.pop %v4174
        %v4687 = vrcp.pop %v4175
        %v4688 = vrcp.pop %v4176
        %v4689 = vrcp.pop %v4177
        %v4690 = vrcp.pop %v4178
        %v4691 = vrcp.pop %v4179
        %v4692 = vrcp.pop %v4180
        %v4693 = vrcp.pop %v4181
        %v4694 = vrcp.pop %v4182
        %v4695 = vrcp.pop %v4183
        %v4696 = vrcp.pop %v4184
        %v4697 = vrcp.pop %v4185
        %v4698 = vrcp.pop %v4186
        %v4699 = vrcp.pop %v4187
        %v4700 = vrcp.pop %v4188
        %v4701 = vrcp.pop %v4189
        %v4702 = vrcp.pop %v4190
        %v4703 = vrcp.pop %v4191
        %v4704 = vrcp.pop %v4192
        %v4705 = vrcp.pop %v4193
        %v4706 = vrcp.pop %v4194
        %v4707 = vrcp.pop %v4195
        %v4708 = vrcp.pop %v4196
        %v4709 = vrcp.pop %v4197
        %v4710 = vrcp.pop %v4198
        %v4711 = vrcp.pop %v4199
        %v4712 = vrcp.pop %v4200
        %v4713 = vrcp.pop %v4201
        %v4714 = vrcp.pop %v4202
        %v4715 = vrcp.pop %v4203
        %v4716 = vrcp.pop %v4204
        %v4717 = vrcp.pop %v4205
        %v4718 = vrcp.pop %v4206
        %v4719 = vrcp.pop %v4207
        %v4720 = vrcp.pop %v4208
        %v4721 = vrcp.pop %v4209
        %v4722 = vrcp.pop %v4210
        %v4723 = vrcp.pop %v4211
        %v4724 = vrcp.pop %v4212
        %v4725 = vrcp.pop %v4213
        %v4726 = vrcp.pop %v4214
        %v4727 = vrcp.pop %v4215
        %v4728 = vrcp.pop %v4216
        %v4729 = vrcp.pop %v4217
        %v4730 = vrcp.pop %v4218
        %v4731 = vrcp.pop %v4219
        %v4732 = vrcp.pop %v4220
        %v4733 = vrcp.pop %v4221
        %v4734 = vrcp.pop %v4222
        %v4735 = vrcp.pop %v4223
        %v4736 = vrcp.pop %v4224
        %v4737 = vrcp.pop %v4225
        %v4738 = vrcp.pop %v4226
        %v4739 = vrcp.pop %v4227
        %v4740 = vrcp.pop %v4228
        %v4741 = vrcp.pop %v4229
        %v4742 = vrcp.pop %v4230
        %v4743 = vrcp.pop %v4231
        %v4744 = vrcp.pop %v4232
        %v4745 = vmul.f32 %v3209, %v4233
        %v4746 = vmul.f32 %v3210, %v4234
        %v4747 = vmul.f32 %v3211, %v4235
        %v4748 = vmul.f32 %v3212, %v4236
        %v4749 = vmul.f32 %v3213, %v4237
        %v4750 = vmul.f32 %v3214, %v4238
        %v4751 = vmul.f32 %v3215, %v4239
        %v4752 = vmul.f32 %v3216, %v4240
        %v4753 = vmul.f32 %v3217, %v4241
        %v4754 = vmul.f32 %v3218, %v4242
        %v4755 = vmul.f32 %v3219, %v4243
        %v4756 = vmul.f32 %v3220, %v4244
        %v4757 = vmul.f32 %v3221, %v4245
        %v4758 = vmul.f32 %v3222, %v4246
        %v4759 = vmul.f32 %v3223, %v4247
        %v4760 = vmul.f32 %v3224, %v4248
        %v4761 = vmul.f32 %v3225, %v4249
        %v4762 = vmul.f32 %v3226, %v4250
        %v4763 = vmul.f32 %v3227, %v4251
        %v4764 = vmul.f32 %v3228, %v4252
        %v4765 = vmul.f32 %v3229, %v4253
        %v4766 = vmul.f32 %v3230, %v4254
        %v4767 = vmul.f32 %v3231, %v4255
        %v4768 = vmul.f32 %v3232, %v4256
        %v4769 = vmul.f32 %v3233, %v4257
        %v4770 = vmul.f32 %v3234, %v4258
        %v4771 = vmul.f32 %v3235, %v4259
        %v4772 = vmul.f32 %v3236, %v4260
        %v4773 = vmul.f32 %v3237, %v4261
        %v4774 = vmul.f32 %v3238, %v4262
        %v4775 = vmul.f32 %v3239, %v4263
        %v4776 = vmul.f32 %v3240, %v4264
        %v4777 = vmul.f32 %v3241, %v4265
        %v4778 = vmul.f32 %v3242, %v4266
        %v4779 = vmul.f32 %v3243, %v4267
        %v4780 = vmul.f32 %v3244, %v4268
        %v4781 = vmul.f32 %v3245, %v4269
        %v4782 = vmul.f32 %v3246, %v4270
        %v4783 = vmul.f32 %v3247, %v4271
        %v4784 = vmul.f32 %v3248, %v4272
        %v4785 = vmul.f32 %v3249, %v4273
        %v4786 = vmul.f32 %v3250, %v4274
        %v4787 = vmul.f32 %v3251, %v4275
        %v4788 = vmul.f32 %v3252, %v4276
        %v4789 = vmul.f32 %v3253, %v4277
        %v4790 = vmul.f32 %v3254, %v4278
        %v4791 = vmul.f32 %v3255, %v4279
        %v4792 = vmul.f32 %v3256, %v4280
        %v4793 = vmul.f32 %v3257, %v4281
        %v4794 = vmul.f32 %v3258, %v4282
        %v4795 = vmul.f32 %v3259, %v4283
        %v4796 = vmul.f32 %v3260, %v4284
        %v4797 = vmul.f32 %v3261, %v4285
        %v4798 = vmul.f32 %v3262, %v4286
        %v4799 = vmul.f32 %v3263, %v4287
        %v4800 = vmul.f32 %v3264, %v4288
        %v4801 = vmul.f32 %v3265, %v4289
        %v4802 = vmul.f32 %v3266, %v4290
        %v4803 = vmul.f32 %v3267, %v4291
        %v4804 = vmul.f32 %v3268, %v4292
        %v4805 = vmul.f32 %v3269, %v4293
        %v4806 = vmul.f32 %v3270, %v4294
        %v4807 = vmul.f32 %v3271, %v4295
        %v4808 = vmul.f32 %v3272, %v4296
        %v4809 = vmul.f32 %v3273, %v4297
        %v4810 = vmul.f32 %v3274, %v4298
        %v4811 = vmul.f32 %v3275, %v4299
        %v4812 = vmul.f32 %v3276, %v4300
        %v4813 = vmul.f32 %v3277, %v4301
        %v4814 = vmul.f32 %v3278, %v4302
        %v4815 = vmul.f32 %v3279, %v4303
        %v4816 = vmul.f32 %v3280, %v4304
        %v4817 = vmul.f32 %v3281, %v4305
        %v4818 = vmul.f32 %v3282, %v4306
        %v4819 = vmul.f32 %v3283, %v4307
        %v4820 = vmul.f32 %v3284, %v4308
        %v4821 = vmul.f32 %v3285, %v4309
        %v4822 = vmul.f32 %v3286, %v4310
        %v4823 = vmul.f32 %v3287, %v4311
        %v4824 = vmul.f32 %v3288, %v4312
        %v4825 = vmul.f32 %v3289, %v4313
        %v4826 = vmul.f32 %v3290, %v4314
        %v4827 = vmul.f32 %v3291, %v4315
        %v4828 = vmul.f32 %v3292, %v4316
        %v4829 = vmul.f32 %v3293, %v4317
        %v4830 = vmul.f32 %v3294, %v4318
        %v4831 = vmul.f32 %v3295, %v4319
        %v4832 = vmul.f32 %v3296, %v4320
        %v4833 = vmul.f32 %v3297, %v4321
        %v4834 = vmul.f32 %v3298, %v4322
        %v4835 = vmul.f32 %v3299, %v4323
        %v4836 = vmul.f32 %v3300, %v4324
        %v4837 = vmul.f32 %v3301, %v4325
        %v4838 = vmul.f32 %v3302, %v4326
        %v4839 = vmul.f32 %v3303, %v4327
        %v4840 = vmul.f32 %v3304, %v4328
        %v4841 = vmul.f32 %v3305, %v4329
        %v4842 = vmul.f32 %v3306, %v4330
        %v4843 = vmul.f32 %v3307, %v4331
        %v4844 = vmul.f32 %v3308, %v4332
        %v4845 = vmul.f32 %v3309, %v4333
        %v4846 = vmul.f32 %v3310, %v4334
        %v4847 = vmul.f32 %v3311, %v4335
        %v4848 = vmul.f32 %v3312, %v4336
        %v4849 = vmul.f32 %v3313, %v4337
        %v4850 = vmul.f32 %v3314, %v4338
        %v4851 = vmul.f32 %v3315, %v4339
        %v4852 = vmul.f32 %v3316, %v4340
        %v4853 = vmul.f32 %v3317, %v4341
        %v4854 = vmul.f32 %v3318, %v4342
        %v4855 = vmul.f32 %v3319, %v4343
        %v4856 = vmul.f32 %v3320, %v4344
        %v4857 = vmul.f32 %v3321, %v4345
        %v4858 = vmul.f32 %v3322, %v4346
        %v4859 = vmul.f32 %v3323, %v4347
        %v4860 = vmul.f32 %v3324, %v4348
        %v4861 = vmul.f32 %v3325, %v4349
        %v4862 = vmul.f32 %v3326, %v4350
        %v4863 = vmul.f32 %v3327, %v4351
        %v4864 = vmul.f32 %v3328, %v4352
        %v4865 = vmul.f32 %v3329, %v4353
        %v4866 = vmul.f32 %v3330, %v4354
        %v4867 = vmul.f32 %v3331, %v4355
        %v4868 = vmul.f32 %v3332, %v4356
        %v4869 = vmul.f32 %v3333, %v4357
        %v4870 = vmul.f32 %v3334, %v4358
        %v4871 = vmul.f32 %v3335, %v4359
        %v4872 = vmul.f32 %v3336, %v4360
        %v4873 = vmul.f32 %v3337, %v4361
        %v4874 = vmul.f32 %v3338, %v4362
        %v4875 = vmul.f32 %v3339, %v4363
        %v4876 = vmul.f32 %v3340, %v4364
        %v4877 = vmul.f32 %v3341, %v4365
        %v4878 = vmul.f32 %v3342, %v4366
        %v4879 = vmul.f32 %v3343, %v4367
        %v4880 = vmul.f32 %v3344, %v4368
        %v4881 = vmul.f32 %v3345, %v4369
        %v4882 = vmul.f32 %v3346, %v4370
        %v4883 = vmul.f32 %v3347, %v4371
        %v4884 = vmul.f32 %v3348, %v4372
        %v4885 = vmul.f32 %v3349, %v4373
        %v4886 = vmul.f32 %v3350, %v4374
        %v4887 = vmul.f32 %v3351, %v4375
        %v4888 = vmul.f32 %v3352, %v4376
        %v4889 = vmul.f32 %v3353, %v4377
        %v4890 = vmul.f32 %v3354, %v4378
        %v4891 = vmul.f32 %v3355, %v4379
        %v4892 = vmul.f32 %v3356, %v4380
        %v4893 = vmul.f32 %v3357, %v4381
        %v4894 = vmul.f32 %v3358, %v4382
        %v4895 = vmul.f32 %v3359, %v4383
        %v4896 = vmul.f32 %v3360, %v4384
        %v4897 = vmul.f32 %v3361, %v4385
        %v4898 = vmul.f32 %v3362, %v4386
        %v4899 = vmul.f32 %v3363, %v4387
        %v4900 = vmul.f32 %v3364, %v4388
        %v4901 = vmul.f32 %v3365, %v4389
        %v4902 = vmul.f32 %v3366, %v4390
        %v4903 = vmul.f32 %v3367, %v4391
        %v4904 = vmul.f32 %v3368, %v4392
        %v4905 = vmul.f32 %v3369, %v4393
        %v4906 = vmul.f32 %v3370, %v4394
        %v4907 = vmul.f32 %v3371, %v4395
        %v4908 = vmul.f32 %v3372, %v4396
        %v4909 = vmul.f32 %v3373, %v4397
        %v4910 = vmul.f32 %v3374, %v4398
        %v4911 = vmul.f32 %v3375, %v4399
        %v4912 = vmul.f32 %v3376, %v4400
        %v4913 = vmul.f32 %v3377, %v4401
        %v4914 = vmul.f32 %v3378, %v4402
        %v4915 = vmul.f32 %v3379, %v4403
        %v4916 = vmul.f32 %v3380, %v4404
        %v4917 = vmul.f32 %v3381, %v4405
        %v4918 = vmul.f32 %v3382, %v4406
        %v4919 = vmul.f32 %v3383, %v4407
        %v4920 = vmul.f32 %v3384, %v4408
        %v4921 = vmul.f32 %v3385, %v4409
        %v4922 = vmul.f32 %v3386, %v4410
        %v4923 = vmul.f32 %v3387, %v4411
        %v4924 = vmul.f32 %v3388, %v4412
        %v4925 = vmul.f32 %v3389, %v4413
        %v4926 = vmul.f32 %v3390, %v4414
        %v4927 = vmul.f32 %v3391, %v4415
        %v4928 = vmul.f32 %v3392, %v4416
        %v4929 = vmul.f32 %v3393, %v4417
        %v4930 = vmul.f32 %v3394, %v4418
        %v4931 = vmul.f32 %v3395, %v4419
        %v4932 = vmul.f32 %v3396, %v4420
        %v4933 = vmul.f32 %v3397, %v4421
        %v4934 = vmul.f32 %v3398, %v4422
        %v4935 = vmul.f32 %v3399, %v4423
        %v4936 = vmul.f32 %v3400, %v4424
        %v4937 = vmul.f32 %v3401, %v4425
        %v4938 = vmul.f32 %v3402, %v4426
        %v4939 = vmul.f32 %v3403, %v4427
        %v4940 = vmul.f32 %v3404, %v4428
        %v4941 = vmul.f32 %v3405, %v4429
        %v4942 = vmul.f32 %v3406, %v4430
        %v4943 = vmul.f32 %v3407, %v4431
        %v4944 = vmul.f32 %v3408, %v4432
        %v4945 = vmul.f32 %v3409, %v4433
        %v4946 = vmul.f32 %v3410, %v4434
        %v4947 = vmul.f32 %v3411, %v4435
        %v4948 = vmul.f32 %v3412, %v4436
        %v4949 = vmul.f32 %v3413, %v4437
        %v4950 = vmul.f32 %v3414, %v4438
        %v4951 = vmul.f32 %v3415, %v4439
        %v4952 = vmul.f32 %v3416, %v4440
        %v4953 = vmul.f32 %v3417, %v4441
        %v4954 = vmul.f32 %v3418, %v4442
        %v4955 = vmul.f32 %v3419, %v4443
        %v4956 = vmul.f32 %v3420, %v4444
        %v4957 = vmul.f32 %v3421, %v4445
        %v4958 = vmul.f32 %v3422, %v4446
        %v4959 = vmul.f32 %v3423, %v4447
        %v4960 = vmul.f32 %v3424, %v4448
        %v4961 = vmul.f32 %v3425, %v4449
        %v4962 = vmul.f32 %v3426, %v4450
        %v4963 = vmul.f32 %v3427, %v4451
        %v4964 = vmul.f32 %v3428, %v4452
        %v4965 = vmul.f32 %v3429, %v4453
        %v4966 = vmul.f32 %v3430, %v4454
        %v4967 = vmul.f32 %v3431, %v4455
        %v4968 = vmul.f32 %v3432, %v4456
        %v4969 = vmul.f32 %v3433, %v4457
        %v4970 = vmul.f32 %v3434, %v4458
        %v4971 = vmul.f32 %v3435, %v4459
        %v4972 = vmul.f32 %v3436, %v4460
        %v4973 = vmul.f32 %v3437, %v4461
        %v4974 = vmul.f32 %v3438, %v4462
        %v4975 = vmul.f32 %v3439, %v4463
        %v4976 = vmul.f32 %v3440, %v4464
        %v4977 = vmul.f32 %v3441, %v4465
        %v4978 = vmul.f32 %v3442, %v4466
        %v4979 = vmul.f32 %v3443, %v4467
        %v4980 = vmul.f32 %v3444, %v4468
        %v4981 = vmul.f32 %v3445, %v4469
        %v4982 = vmul.f32 %v3446, %v4470
        %v4983 = vmul.f32 %v3447, %v4471
        %v4984 = vmul.f32 %v3448, %v4472
        %v4985 = vmul.f32 %v3449, %v4473
        %v4986 = vmul.f32 %v3450, %v4474
        %v4987 = vmul.f32 %v3451, %v4475
        %v4988 = vmul.f32 %v3452, %v4476
        %v4989 = vmul.f32 %v3453, %v4477
        %v4990 = vmul.f32 %v3454, %v4478
        %v4991 = vmul.f32 %v3455, %v4479
        %v4992 = vmul.f32 %v3456, %v4480
        %v4993 = vmul.f32 %v3457, %v4481
        %v4994 = vmul.f32 %v3458, %v4482
        %v4995 = vmul.f32 %v3459, %v4483
        %v4996 = vmul.f32 %v3460, %v4484
        %v4997 = vmul.f32 %v3461, %v4485
        %v4998 = vmul.f32 %v3462, %v4486
        %v4999 = vmul.f32 %v3463, %v4487
        %v5000 = vmul.f32 %v3464, %v4488
        %v5001 = vmul.f32 %v3465, %v4489
        %v5002 = vmul.f32 %v3466, %v4490
        %v5003 = vmul.f32 %v3467, %v4491
        %v5004 = vmul.f32 %v3468, %v4492
        %v5005 = vmul.f32 %v3469, %v4493
        %v5006 = vmul.f32 %v3470, %v4494
        %v5007 = vmul.f32 %v3471, %v4495
        %v5008 = vmul.f32 %v3472, %v4496
        %v5009 = vmul.f32 %v3473, %v4497
        %v5010 = vmul.f32 %v3474, %v4498
        %v5011 = vmul.f32 %v3475, %v4499
        %v5012 = vmul.f32 %v3476, %v4500
        %v5013 = vmul.f32 %v3477, %v4501
        %v5014 = vmul.f32 %v3478, %v4502
        %v5015 = vmul.f32 %v3479, %v4503
        %v5016 = vmul.f32 %v3480, %v4504
        %v5017 = vmul.f32 %v3481, %v4505
        %v5018 = vmul.f32 %v3482, %v4506
        %v5019 = vmul.f32 %v3483, %v4507
        %v5020 = vmul.f32 %v3484, %v4508
        %v5021 = vmul.f32 %v3485, %v4509
        %v5022 = vmul.f32 %v3486, %v4510
        %v5023 = vmul.f32 %v3487, %v4511
        %v5024 = vmul.f32 %v3488, %v4512
        %v5025 = vmul.f32 %v3489, %v4513
        %v5026 = vmul.f32 %v3490, %v4514
        %v5027 = vmul.f32 %v3491, %v4515
        %v5028 = vmul.f32 %v3492, %v4516
        %v5029 = vmul.f32 %v3493, %v4517
        %v5030 = vmul.f32 %v3494, %v4518
        %v5031 = vmul.f32 %v3495, %v4519
        %v5032 = vmul.f32 %v3496, %v4520
        %v5033 = vmul.f32 %v3497, %v4521
        %v5034 = vmul.f32 %v3498, %v4522
        %v5035 = vmul.f32 %v3499, %v4523
        %v5036 = vmul.f32 %v3500, %v4524
        %v5037 = vmul.f32 %v3501, %v4525
        %v5038 = vmul.f32 %v3502, %v4526
        %v5039 = vmul.f32 %v3503, %v4527
        %v5040 = vmul.f32 %v3504, %v4528
        %v5041 = vmul.f32 %v3505, %v4529
        %v5042 = vmul.f32 %v3506, %v4530
        %v5043 = vmul.f32 %v3507, %v4531
        %v5044 = vmul.f32 %v3508, %v4532
        %v5045 = vmul.f32 %v3509, %v4533
        %v5046 = vmul.f32 %v3510, %v4534
        %v5047 = vmul.f32 %v3511, %v4535
        %v5048 = vmul.f32 %v3512, %v4536
        %v5049 = vmul.f32 %v3513, %v4537
        %v5050 = vmul.f32 %v3514, %v4538
        %v5051 = vmul.f32 %v3515, %v4539
        %v5052 = vmul.f32 %v3516, %v4540
        %v5053 = vmul.f32 %v3517, %v4541
        %v5054 = vmul.f32 %v3518, %v4542
        %v5055 = vmul.f32 %v3519, %v4543
        %v5056 = vmul.f32 %v3520, %v4544
        %v5057 = vmul.f32 %v3521, %v4545
        %v5058 = vmul.f32 %v3522, %v4546
        %v5059 = vmul.f32 %v3523, %v4547
        %v5060 = vmul.f32 %v3524, %v4548
        %v5061 = vmul.f32 %v3525, %v4549
        %v5062 = vmul.f32 %v3526, %v4550
        %v5063 = vmul.f32 %v3527, %v4551
        %v5064 = vmul.f32 %v3528, %v4552
        %v5065 = vmul.f32 %v3529, %v4553
        %v5066 = vmul.f32 %v3530, %v4554
        %v5067 = vmul.f32 %v3531, %v4555
        %v5068 = vmul.f32 %v3532, %v4556
        %v5069 = vmul.f32 %v3533, %v4557
        %v5070 = vmul.f32 %v3534, %v4558
        %v5071 = vmul.f32 %v3535, %v4559
        %v5072 = vmul.f32 %v3536, %v4560
        %v5073 = vmul.f32 %v3537, %v4561
        %v5074 = vmul.f32 %v3538, %v4562
        %v5075 = vmul.f32 %v3539, %v4563
        %v5076 = vmul.f32 %v3540, %v4564
        %v5077 = vmul.f32 %v3541, %v4565
        %v5078 = vmul.f32 %v3542, %v4566
        %v5079 = vmul.f32 %v3543, %v4567
        %v5080 = vmul.f32 %v3544, %v4568
        %v5081 = vmul.f32 %v3545, %v4569
        %v5082 = vmul.f32 %v3546, %v4570
        %v5083 = vmul.f32 %v3547, %v4571
        %v5084 = vmul.f32 %v3548, %v4572
        %v5085 = vmul.f32 %v3549, %v4573
        %v5086 = vmul.f32 %v3550, %v4574
        %v5087 = vmul.f32 %v3551, %v4575
        %v5088 = vmul.f32 %v3552, %v4576
        %v5089 = vmul.f32 %v3553, %v4577
        %v5090 = vmul.f32 %v3554, %v4578
        %v5091 = vmul.f32 %v3555, %v4579
        %v5092 = vmul.f32 %v3556, %v4580
        %v5093 = vmul.f32 %v3557, %v4581
        %v5094 = vmul.f32 %v3558, %v4582
        %v5095 = vmul.f32 %v3559, %v4583
        %v5096 = vmul.f32 %v3560, %v4584
        %v5097 = vmul.f32 %v3561, %v4585
        %v5098 = vmul.f32 %v3562, %v4586
        %v5099 = vmul.f32 %v3563, %v4587
        %v5100 = vmul.f32 %v3564, %v4588
        %v5101 = vmul.f32 %v3565, %v4589
        %v5102 = vmul.f32 %v3566, %v4590
        %v5103 = vmul.f32 %v3567, %v4591
        %v5104 = vmul.f32 %v3568, %v4592
        %v5105 = vmul.f32 %v3569, %v4593
        %v5106 = vmul.f32 %v3570, %v4594
        %v5107 = vmul.f32 %v3571, %v4595
        %v5108 = vmul.f32 %v3572, %v4596
        %v5109 = vmul.f32 %v3573, %v4597
        %v5110 = vmul.f32 %v3574, %v4598
        %v5111 = vmul.f32 %v3575, %v4599
        %v5112 = vmul.f32 %v3576, %v4600
        %v5113 = vmul.f32 %v3577, %v4601
        %v5114 = vmul.f32 %v3578, %v4602
        %v5115 = vmul.f32 %v3579, %v4603
        %v5116 = vmul.f32 %v3580, %v4604
        %v5117 = vmul.f32 %v3581, %v4605
        %v5118 = vmul.f32 %v3582, %v4606
        %v5119 = vmul.f32 %v3583, %v4607
        %v5120 = vmul.f32 %v3584, %v4608
        %v5121 = vmul.f32 %v3585, %v4609
        %v5122 = vmul.f32 %v3586, %v4610
        %v5123 = vmul.f32 %v3587, %v4611
        %v5124 = vmul.f32 %v3588, %v4612
        %v5125 = vmul.f32 %v3589, %v4613
        %v5126 = vmul.f32 %v3590, %v4614
        %v5127 = vmul.f32 %v3591, %v4615
        %v5128 = vmul.f32 %v3592, %v4616
        %v5129 = vmul.f32 %v3593, %v4617
        %v5130 = vmul.f32 %v3594, %v4618
        %v5131 = vmul.f32 %v3595, %v4619
        %v5132 = vmul.f32 %v3596, %v4620
        %v5133 = vmul.f32 %v3597, %v4621
        %v5134 = vmul.f32 %v3598, %v4622
        %v5135 = vmul.f32 %v3599, %v4623
        %v5136 = vmul.f32 %v3600, %v4624
        %v5137 = vmul.f32 %v3601, %v4625
        %v5138 = vmul.f32 %v3602, %v4626
        %v5139 = vmul.f32 %v3603, %v4627
        %v5140 = vmul.f32 %v3604, %v4628
        %v5141 = vmul.f32 %v3605, %v4629
        %v5142 = vmul.f32 %v3606, %v4630
        %v5143 = vmul.f32 %v3607, %v4631
        %v5144 = vmul.f32 %v3608, %v4632
        %v5145 = vmul.f32 %v3609, %v4633
        %v5146 = vmul.f32 %v3610, %v4634
        %v5147 = vmul.f32 %v3611, %v4635
        %v5148 = vmul.f32 %v3612, %v4636
        %v5149 = vmul.f32 %v3613, %v4637
        %v5150 = vmul.f32 %v3614, %v4638
        %v5151 = vmul.f32 %v3615, %v4639
        %v5152 = vmul.f32 %v3616, %v4640
        %v5153 = vmul.f32 %v3617, %v4641
        %v5154 = vmul.f32 %v3618, %v4642
        %v5155 = vmul.f32 %v3619, %v4643
        %v5156 = vmul.f32 %v3620, %v4644
        %v5157 = vmul.f32 %v3621, %v4645
        %v5158 = vmul.f32 %v3622, %v4646
        %v5159 = vmul.f32 %v3623, %v4647
        %v5160 = vmul.f32 %v3624, %v4648
        %v5161 = vmul.f32 %v3625, %v4649
        %v5162 = vmul.f32 %v3626, %v4650
        %v5163 = vmul.f32 %v3627, %v4651
        %v5164 = vmul.f32 %v3628, %v4652
        %v5165 = vmul.f32 %v3629, %v4653
        %v5166 = vmul.f32 %v3630, %v4654
        %v5167 = vmul.f32 %v3631, %v4655
        %v5168 = vmul.f32 %v3632, %v4656
        %v5169 = vmul.f32 %v3633, %v4657
        %v5170 = vmul.f32 %v3634, %v4658
        %v5171 = vmul.f32 %v3635, %v4659
        %v5172 = vmul.f32 %v3636, %v4660
        %v5173 = vmul.f32 %v3637, %v4661
        %v5174 = vmul.f32 %v3638, %v4662
        %v5175 = vmul.f32 %v3639, %v4663
        %v5176 = vmul.f32 %v3640, %v4664
        %v5177 = vmul.f32 %v3641, %v4665
        %v5178 = vmul.f32 %v3642, %v4666
        %v5179 = vmul.f32 %v3643, %v4667
        %v5180 = vmul.f32 %v3644, %v4668
        %v5181 = vmul.f32 %v3645, %v4669
        %v5182 = vmul.f32 %v3646, %v4670
        %v5183 = vmul.f32 %v3647, %v4671
        %v5184 = vmul.f32 %v3648, %v4672
        %v5185 = vmul.f32 %v3649, %v4673
        %v5186 = vmul.f32 %v3650, %v4674
        %v5187 = vmul.f32 %v3651, %v4675
        %v5188 = vmul.f32 %v3652, %v4676
        %v5189 = vmul.f32 %v3653, %v4677
        %v5190 = vmul.f32 %v3654, %v4678
        %v5191 = vmul.f32 %v3655, %v4679
        %v5192 = vmul.f32 %v3656, %v4680
        %v5193 = vmul.f32 %v3657, %v4681
        %v5194 = vmul.f32 %v3658, %v4682
        %v5195 = vmul.f32 %v3659, %v4683
        %v5196 = vmul.f32 %v3660, %v4684
        %v5197 = vmul.f32 %v3661, %v4685
        %v5198 = vmul.f32 %v3662, %v4686
        %v5199 = vmul.f32 %v3663, %v4687
        %v5200 = vmul.f32 %v3664, %v4688
        %v5201 = vmul.f32 %v3665, %v4689
        %v5202 = vmul.f32 %v3666, %v4690
        %v5203 = vmul.f32 %v3667, %v4691
        %v5204 = vmul.f32 %v3668, %v4692
        %v5205 = vmul.f32 %v3669, %v4693
        %v5206 = vmul.f32 %v3670, %v4694
        %v5207 = vmul.f32 %v3671, %v4695
        %v5208 = vmul.f32 %v3672, %v4696
        %v5209 = vmul.f32 %v3673, %v4697
        %v5210 = vmul.f32 %v3674, %v4698
        %v5211 = vmul.f32 %v3675, %v4699
        %v5212 = vmul.f32 %v3676, %v4700
        %v5213 = vmul.f32 %v3677, %v4701
        %v5214 = vmul.f32 %v3678, %v4702
        %v5215 = vmul.f32 %v3679, %v4703
        %v5216 = vmul.f32 %v3680, %v4704
        %v5217 = vmul.f32 %v3681, %v4705
        %v5218 = vmul.f32 %v3682, %v4706
        %v5219 = vmul.f32 %v3683, %v4707
        %v5220 = vmul.f32 %v3684, %v4708
        %v5221 = vmul.f32 %v3685, %v4709
        %v5222 = vmul.f32 %v3686, %v4710
        %v5223 = vmul.f32 %v3687, %v4711
        %v5224 = vmul.f32 %v3688, %v4712
        %v5225 = vmul.f32 %v3689, %v4713
        %v5226 = vmul.f32 %v3690, %v4714
        %v5227 = vmul.f32 %v3691, %v4715
        %v5228 = vmul.f32 %v3692, %v4716
        %v5229 = vmul.f32 %v3693, %v4717
        %v5230 = vmul.f32 %v3694, %v4718
        %v5231 = vmul.f32 %v3695, %v4719
        %v5232 = vmul.f32 %v3696, %v4720
        %v5233 = vmul.f32 %v3697, %v4721
        %v5234 = vmul.f32 %v3698, %v4722
        %v5235 = vmul.f32 %v3699, %v4723
        %v5236 = vmul.f32 %v3700, %v4724
        %v5237 = vmul.f32 %v3701, %v4725
        %v5238 = vmul.f32 %v3702, %v4726
        %v5239 = vmul.f32 %v3703, %v4727
        %v5240 = vmul.f32 %v3704, %v4728
        %v5241 = vmul.f32 %v3705, %v4729
        %v5242 = vmul.f32 %v3706, %v4730
        %v5243 = vmul.f32 %v3707, %v4731
        %v5244 = vmul.f32 %v3708, %v4732
        %v5245 = vmul.f32 %v3709, %v4733
        %v5246 = vmul.f32 %v3710, %v4734
        %v5247 = vmul.f32 %v3711, %v4735
        %v5248 = vmul.f32 %v3712, %v4736
        %v5249 = vmul.f32 %v3713, %v4737
        %v5250 = vmul.f32 %v3714, %v4738
        %v5251 = vmul.f32 %v3715, %v4739
        %v5252 = vmul.f32 %v3716, %v4740
        %v5253 = vmul.f32 %v3717, %v4741
        %v5254 = vmul.f32 %v3718, %v4742
        %v5255 = vmul.f32 %v3719, %v4743
        %v5256 = vmul.f32 %v3720, %v4744
        %vm5257 = vcmp.gt.f32.partialorder %v137, 20.0
        %vm5258 = vcmp.gt.f32.partialorder %v138, 20.0
        %vm5259 = vcmp.gt.f32.partialorder %v139, 20.0
        %vm5260 = vcmp.gt.f32.partialorder %v140, 20.0
        %vm5261 = vcmp.gt.f32.partialorder %v141, 20.0
        %vm5262 = vcmp.gt.f32.partialorder %v142, 20.0
        %vm5263 = vcmp.gt.f32.partialorder %v143, 20.0
        %vm5264 = vcmp.gt.f32.partialorder %v144, 20.0
        %vm5265 = vcmp.gt.f32.partialorder %v145, 20.0
        %vm5266 = vcmp.gt.f32.partialorder %v146, 20.0
        %vm5267 = vcmp.gt.f32.partialorder %v147, 20.0
        %vm5268 = vcmp.gt.f32.partialorder %v148, 20.0
        %vm5269 = vcmp.gt.f32.partialorder %v149, 20.0
        %vm5270 = vcmp.gt.f32.partialorder %v150, 20.0
        %vm5271 = vcmp.gt.f32.partialorder %v151, 20.0
        %vm5272 = vcmp.gt.f32.partialorder %v152, 20.0
        %vm5273 = vcmp.gt.f32.partialorder %v153, 20.0
        %vm5274 = vcmp.gt.f32.partialorder %v154, 20.0
        %vm5275 = vcmp.gt.f32.partialorder %v155, 20.0
        %vm5276 = vcmp.gt.f32.partialorder %v156, 20.0
        %vm5277 = vcmp.gt.f32.partialorder %v157, 20.0
        %vm5278 = vcmp.gt.f32.partialorder %v158, 20.0
        %vm5279 = vcmp.gt.f32.partialorder %v159, 20.0
        %vm5280 = vcmp.gt.f32.partialorder %v160, 20.0
        %vm5281 = vcmp.gt.f32.partialorder %v161, 20.0
        %vm5282 = vcmp.gt.f32.partialorder %v162, 20.0
        %vm5283 = vcmp.gt.f32.partialorder %v163, 20.0
        %vm5284 = vcmp.gt.f32.partialorder %v164, 20.0
        %vm5285 = vcmp.gt.f32.partialorder %v165, 20.0
        %vm5286 = vcmp.gt.f32.partialorder %v166, 20.0
        %vm5287 = vcmp.gt.f32.partialorder %v167, 20.0
        %vm5288 = vcmp.gt.f32.partialorder %v168, 20.0
        %vm5289 = vcmp.gt.f32.partialorder %v169, 20.0
        %vm5290 = vcmp.gt.f32.partialorder %v170, 20.0
        %vm5291 = vcmp.gt.f32.partialorder %v171, 20.0
        %vm5292 = vcmp.gt.f32.partialorder %v172, 20.0
        %vm5293 = vcmp.gt.f32.partialorder %v173, 20.0
        %vm5294 = vcmp.gt.f32.partialorder %v174, 20.0
        %vm5295 = vcmp.gt.f32.partialorder %v175, 20.0
        %vm5296 = vcmp.gt.f32.partialorder %v176, 20.0
        %vm5297 = vcmp.gt.f32.partialorder %v177, 20.0
        %vm5298 = vcmp.gt.f32.partialorder %v178, 20.0
        %vm5299 = vcmp.gt.f32.partialorder %v179, 20.0
        %vm5300 = vcmp.gt.f32.partialorder %v180, 20.0
        %vm5301 = vcmp.gt.f32.partialorder %v181, 20.0
        %vm5302 = vcmp.gt.f32.partialorder %v182, 20.0
        %vm5303 = vcmp.gt.f32.partialorder %v183, 20.0
        %vm5304 = vcmp.gt.f32.partialorder %v184, 20.0
        %vm5305 = vcmp.gt.f32.partialorder %v185, 20.0
        %vm5306 = vcmp.gt.f32.partialorder %v186, 20.0
        %vm5307 = vcmp.gt.f32.partialorder %v187, 20.0
        %vm5308 = vcmp.gt.f32.partialorder %v188, 20.0
        %vm5309 = vcmp.gt.f32.partialorder %v189, 20.0
        %vm5310 = vcmp.gt.f32.partialorder %v190, 20.0
        %vm5311 = vcmp.gt.f32.partialorder %v191, 20.0
        %vm5312 = vcmp.gt.f32.partialorder %v192, 20.0
        %vm5313 = vcmp.gt.f32.partialorder %v193, 20.0
        %vm5314 = vcmp.gt.f32.partialorder %v194, 20.0
        %vm5315 = vcmp.gt.f32.partialorder %v195, 20.0
        %vm5316 = vcmp.gt.f32.partialorder %v196, 20.0
        %vm5317 = vcmp.gt.f32.partialorder %v197, 20.0
        %vm5318 = vcmp.gt.f32.partialorder %v198, 20.0
        %vm5319 = vcmp.gt.f32.partialorder %v199, 20.0
        %vm5320 = vcmp.gt.f32.partialorder %v200, 20.0
        %vm5321 = vcmp.gt.f32.partialorder %v201, 20.0
        %vm5322 = vcmp.gt.f32.partialorder %v202, 20.0
        %vm5323 = vcmp.gt.f32.partialorder %v203, 20.0
        %vm5324 = vcmp.gt.f32.partialorder %v204, 20.0
        %vm5325 = vcmp.gt.f32.partialorder %v205, 20.0
        %vm5326 = vcmp.gt.f32.partialorder %v206, 20.0
        %vm5327 = vcmp.gt.f32.partialorder %v207, 20.0
        %vm5328 = vcmp.gt.f32.partialorder %v208, 20.0
        %vm5329 = vcmp.gt.f32.partialorder %v209, 20.0
        %vm5330 = vcmp.gt.f32.partialorder %v210, 20.0
        %vm5331 = vcmp.gt.f32.partialorder %v211, 20.0
        %vm5332 = vcmp.gt.f32.partialorder %v212, 20.0
        %vm5333 = vcmp.gt.f32.partialorder %v213, 20.0
        %vm5334 = vcmp.gt.f32.partialorder %v214, 20.0
        %vm5335 = vcmp.gt.f32.partialorder %v215, 20.0
        %vm5336 = vcmp.gt.f32.partialorder %v216, 20.0
        %vm5337 = vcmp.gt.f32.partialorder %v217, 20.0
        %vm5338 = vcmp.gt.f32.partialorder %v218, 20.0
        %vm5339 = vcmp.gt.f32.partialorder %v219, 20.0
        %vm5340 = vcmp.gt.f32.partialorder %v220, 20.0
        %vm5341 = vcmp.gt.f32.partialorder %v221, 20.0
        %vm5342 = vcmp.gt.f32.partialorder %v222, 20.0
        %vm5343 = vcmp.gt.f32.partialorder %v223, 20.0
        %vm5344 = vcmp.gt.f32.partialorder %v224, 20.0
        %vm5345 = vcmp.gt.f32.partialorder %v225, 20.0
        %vm5346 = vcmp.gt.f32.partialorder %v226, 20.0
        %vm5347 = vcmp.gt.f32.partialorder %v227, 20.0
        %vm5348 = vcmp.gt.f32.partialorder %v228, 20.0
        %vm5349 = vcmp.gt.f32.partialorder %v229, 20.0
        %vm5350 = vcmp.gt.f32.partialorder %v230, 20.0
        %vm5351 = vcmp.gt.f32.partialorder %v231, 20.0
        %vm5352 = vcmp.gt.f32.partialorder %v232, 20.0
        %vm5353 = vcmp.gt.f32.partialorder %v233, 20.0
        %vm5354 = vcmp.gt.f32.partialorder %v234, 20.0
        %vm5355 = vcmp.gt.f32.partialorder %v235, 20.0
        %vm5356 = vcmp.gt.f32.partialorder %v236, 20.0
        %vm5357 = vcmp.gt.f32.partialorder %v237, 20.0
        %vm5358 = vcmp.gt.f32.partialorder %v238, 20.0
        %vm5359 = vcmp.gt.f32.partialorder %v239, 20.0
        %vm5360 = vcmp.gt.f32.partialorder %v240, 20.0
        %vm5361 = vcmp.gt.f32.partialorder %v241, 20.0
        %vm5362 = vcmp.gt.f32.partialorder %v242, 20.0
        %vm5363 = vcmp.gt.f32.partialorder %v243, 20.0
        %vm5364 = vcmp.gt.f32.partialorder %v244, 20.0
        %vm5365 = vcmp.gt.f32.partialorder %v245, 20.0
        %vm5366 = vcmp.gt.f32.partialorder %v246, 20.0
        %vm5367 = vcmp.gt.f32.partialorder %v247, 20.0
        %vm5368 = vcmp.gt.f32.partialorder %v248, 20.0
        %vm5369 = vcmp.gt.f32.partialorder %v249, 20.0
        %vm5370 = vcmp.gt.f32.partialorder %v250, 20.0
        %vm5371 = vcmp.gt.f32.partialorder %v251, 20.0
        %vm5372 = vcmp.gt.f32.partialorder %v252, 20.0
        %vm5373 = vcmp.gt.f32.partialorder %v253, 20.0
        %vm5374 = vcmp.gt.f32.partialorder %v254, 20.0
        %vm5375 = vcmp.gt.f32.partialorder %v255, 20.0
        %vm5376 = vcmp.gt.f32.partialorder %v256, 20.0
        %vm5377 = vcmp.gt.f32.partialorder %v257, 20.0
        %vm5378 = vcmp.gt.f32.partialorder %v258, 20.0
        %vm5379 = vcmp.gt.f32.partialorder %v259, 20.0
        %vm5380 = vcmp.gt.f32.partialorder %v260, 20.0
        %vm5381 = vcmp.gt.f32.partialorder %v261, 20.0
        %vm5382 = vcmp.gt.f32.partialorder %v262, 20.0
        %vm5383 = vcmp.gt.f32.partialorder %v263, 20.0
        %vm5384 = vcmp.gt.f32.partialorder %v264, 20.0
        %vm5385 = vcmp.gt.f32.partialorder %v265, 20.0
        %vm5386 = vcmp.gt.f32.partialorder %v266, 20.0
        %vm5387 = vcmp.gt.f32.partialorder %v267, 20.0
        %vm5388 = vcmp.gt.f32.partialorder %v268, 20.0
        %vm5389 = vcmp.gt.f32.partialorder %v269, 20.0
        %vm5390 = vcmp.gt.f32.partialorder %v270, 20.0
        %vm5391 = vcmp.gt.f32.partialorder %v271, 20.0
        %vm5392 = vcmp.gt.f32.partialorder %v272, 20.0
        %vm5393 = vcmp.gt.f32.partialorder %v273, 20.0
        %vm5394 = vcmp.gt.f32.partialorder %v274, 20.0
        %vm5395 = vcmp.gt.f32.partialorder %v275, 20.0
        %vm5396 = vcmp.gt.f32.partialorder %v276, 20.0
        %vm5397 = vcmp.gt.f32.partialorder %v277, 20.0
        %vm5398 = vcmp.gt.f32.partialorder %v278, 20.0
        %vm5399 = vcmp.gt.f32.partialorder %v279, 20.0
        %vm5400 = vcmp.gt.f32.partialorder %v280, 20.0
        %vm5401 = vcmp.gt.f32.partialorder %v281, 20.0
        %vm5402 = vcmp.gt.f32.partialorder %v282, 20.0
        %vm5403 = vcmp.gt.f32.partialorder %v283, 20.0
        %vm5404 = vcmp.gt.f32.partialorder %v284, 20.0
        %vm5405 = vcmp.gt.f32.partialorder %v285, 20.0
        %vm5406 = vcmp.gt.f32.partialorder %v286, 20.0
        %vm5407 = vcmp.gt.f32.partialorder %v287, 20.0
        %vm5408 = vcmp.gt.f32.partialorder %v288, 20.0
        %vm5409 = vcmp.gt.f32.partialorder %v289, 20.0
        %vm5410 = vcmp.gt.f32.partialorder %v290, 20.0
        %vm5411 = vcmp.gt.f32.partialorder %v291, 20.0
        %vm5412 = vcmp.gt.f32.partialorder %v292, 20.0
        %vm5413 = vcmp.gt.f32.partialorder %v293, 20.0
        %vm5414 = vcmp.gt.f32.partialorder %v294, 20.0
        %vm5415 = vcmp.gt.f32.partialorder %v295, 20.0
        %vm5416 = vcmp.gt.f32.partialorder %v296, 20.0
        %vm5417 = vcmp.gt.f32.partialorder %v297, 20.0
        %vm5418 = vcmp.gt.f32.partialorder %v298, 20.0
        %vm5419 = vcmp.gt.f32.partialorder %v299, 20.0
        %vm5420 = vcmp.gt.f32.partialorder %v300, 20.0
        %vm5421 = vcmp.gt.f32.partialorder %v301, 20.0
        %vm5422 = vcmp.gt.f32.partialorder %v302, 20.0
        %vm5423 = vcmp.gt.f32.partialorder %v303, 20.0
        %vm5424 = vcmp.gt.f32.partialorder %v304, 20.0
        %vm5425 = vcmp.gt.f32.partialorder %v305, 20.0
        %vm5426 = vcmp.gt.f32.partialorder %v306, 20.0
        %vm5427 = vcmp.gt.f32.partialorder %v307, 20.0
        %vm5428 = vcmp.gt.f32.partialorder %v308, 20.0
        %vm5429 = vcmp.gt.f32.partialorder %v309, 20.0
        %vm5430 = vcmp.gt.f32.partialorder %v310, 20.0
        %vm5431 = vcmp.gt.f32.partialorder %v311, 20.0
        %vm5432 = vcmp.gt.f32.partialorder %v312, 20.0
        %vm5433 = vcmp.gt.f32.partialorder %v313, 20.0
        %vm5434 = vcmp.gt.f32.partialorder %v314, 20.0
        %vm5435 = vcmp.gt.f32.partialorder %v315, 20.0
        %vm5436 = vcmp.gt.f32.partialorder %v316, 20.0
        %vm5437 = vcmp.gt.f32.partialorder %v317, 20.0
        %vm5438 = vcmp.gt.f32.partialorder %v318, 20.0
        %vm5439 = vcmp.gt.f32.partialorder %v319, 20.0
        %vm5440 = vcmp.gt.f32.partialorder %v320, 20.0
        %vm5441 = vcmp.gt.f32.partialorder %v321, 20.0
        %vm5442 = vcmp.gt.f32.partialorder %v322, 20.0
        %vm5443 = vcmp.gt.f32.partialorder %v323, 20.0
        %vm5444 = vcmp.gt.f32.partialorder %v324, 20.0
        %vm5445 = vcmp.gt.f32.partialorder %v325, 20.0
        %vm5446 = vcmp.gt.f32.partialorder %v326, 20.0
        %vm5447 = vcmp.gt.f32.partialorder %v327, 20.0
        %vm5448 = vcmp.gt.f32.partialorder %v328, 20.0
        %vm5449 = vcmp.gt.f32.partialorder %v329, 20.0
        %vm5450 = vcmp.gt.f32.partialorder %v330, 20.0
        %vm5451 = vcmp.gt.f32.partialorder %v331, 20.0
        %vm5452 = vcmp.gt.f32.partialorder %v332, 20.0
        %vm5453 = vcmp.gt.f32.partialorder %v333, 20.0
        %vm5454 = vcmp.gt.f32.partialorder %v334, 20.0
        %vm5455 = vcmp.gt.f32.partialorder %v335, 20.0
        %vm5456 = vcmp.gt.f32.partialorder %v336, 20.0
        %vm5457 = vcmp.gt.f32.partialorder %v337, 20.0
        %vm5458 = vcmp.gt.f32.partialorder %v338, 20.0
        %vm5459 = vcmp.gt.f32.partialorder %v339, 20.0
        %vm5460 = vcmp.gt.f32.partialorder %v340, 20.0
        %vm5461 = vcmp.gt.f32.partialorder %v341, 20.0
        %vm5462 = vcmp.gt.f32.partialorder %v342, 20.0
        %vm5463 = vcmp.gt.f32.partialorder %v343, 20.0
        %vm5464 = vcmp.gt.f32.partialorder %v344, 20.0
        %vm5465 = vcmp.gt.f32.partialorder %v345, 20.0
        %vm5466 = vcmp.gt.f32.partialorder %v346, 20.0
        %vm5467 = vcmp.gt.f32.partialorder %v347, 20.0
        %vm5468 = vcmp.gt.f32.partialorder %v348, 20.0
        %vm5469 = vcmp.gt.f32.partialorder %v349, 20.0
        %vm5470 = vcmp.gt.f32.partialorder %v350, 20.0
        %vm5471 = vcmp.gt.f32.partialorder %v351, 20.0
        %vm5472 = vcmp.gt.f32.partialorder %v352, 20.0
        %vm5473 = vcmp.gt.f32.partialorder %v353, 20.0
        %vm5474 = vcmp.gt.f32.partialorder %v354, 20.0
        %vm5475 = vcmp.gt.f32.partialorder %v355, 20.0
        %vm5476 = vcmp.gt.f32.partialorder %v356, 20.0
        %vm5477 = vcmp.gt.f32.partialorder %v357, 20.0
        %vm5478 = vcmp.gt.f32.partialorder %v358, 20.0
        %vm5479 = vcmp.gt.f32.partialorder %v359, 20.0
        %vm5480 = vcmp.gt.f32.partialorder %v360, 20.0
        %vm5481 = vcmp.gt.f32.partialorder %v361, 20.0
        %vm5482 = vcmp.gt.f32.partialorder %v362, 20.0
        %vm5483 = vcmp.gt.f32.partialorder %v363, 20.0
        %vm5484 = vcmp.gt.f32.partialorder %v364, 20.0
        %vm5485 = vcmp.gt.f32.partialorder %v365, 20.0
        %vm5486 = vcmp.gt.f32.partialorder %v366, 20.0
        %vm5487 = vcmp.gt.f32.partialorder %v367, 20.0
        %vm5488 = vcmp.gt.f32.partialorder %v368, 20.0
        %vm5489 = vcmp.gt.f32.partialorder %v369, 20.0
        %vm5490 = vcmp.gt.f32.partialorder %v370, 20.0
        %vm5491 = vcmp.gt.f32.partialorder %v371, 20.0
        %vm5492 = vcmp.gt.f32.partialorder %v372, 20.0
        %vm5493 = vcmp.gt.f32.partialorder %v373, 20.0
        %vm5494 = vcmp.gt.f32.partialorder %v374, 20.0
        %vm5495 = vcmp.gt.f32.partialorder %v375, 20.0
        %vm5496 = vcmp.gt.f32.partialorder %v376, 20.0
        %vm5497 = vcmp.gt.f32.partialorder %v377, 20.0
        %vm5498 = vcmp.gt.f32.partialorder %v378, 20.0
        %vm5499 = vcmp.gt.f32.partialorder %v379, 20.0
        %vm5500 = vcmp.gt.f32.partialorder %v380, 20.0
        %vm5501 = vcmp.gt.f32.partialorder %v381, 20.0
        %vm5502 = vcmp.gt.f32.partialorder %v382, 20.0
        %vm5503 = vcmp.gt.f32.partialorder %v383, 20.0
        %vm5504 = vcmp.gt.f32.partialorder %v384, 20.0
        %vm5505 = vcmp.gt.f32.partialorder %v385, 20.0
        %vm5506 = vcmp.gt.f32.partialorder %v386, 20.0
        %vm5507 = vcmp.gt.f32.partialorder %v387, 20.0
        %vm5508 = vcmp.gt.f32.partialorder %v388, 20.0
        %vm5509 = vcmp.gt.f32.partialorder %v389, 20.0
        %vm5510 = vcmp.gt.f32.partialorder %v390, 20.0
        %vm5511 = vcmp.gt.f32.partialorder %v391, 20.0
        %vm5512 = vcmp.gt.f32.partialorder %v392, 20.0
        %vm5513 = vcmp.gt.f32.partialorder %v393, 20.0
        %vm5514 = vcmp.gt.f32.partialorder %v394, 20.0
        %vm5515 = vcmp.gt.f32.partialorder %v395, 20.0
        %vm5516 = vcmp.gt.f32.partialorder %v396, 20.0
        %vm5517 = vcmp.gt.f32.partialorder %v397, 20.0
        %vm5518 = vcmp.gt.f32.partialorder %v398, 20.0
        %vm5519 = vcmp.gt.f32.partialorder %v399, 20.0
        %vm5520 = vcmp.gt.f32.partialorder %v400, 20.0
        %vm5521 = vcmp.gt.f32.partialorder %v401, 20.0
        %vm5522 = vcmp.gt.f32.partialorder %v402, 20.0
        %vm5523 = vcmp.gt.f32.partialorder %v403, 20.0
        %vm5524 = vcmp.gt.f32.partialorder %v404, 20.0
        %vm5525 = vcmp.gt.f32.partialorder %v405, 20.0
        %vm5526 = vcmp.gt.f32.partialorder %v406, 20.0
        %vm5527 = vcmp.gt.f32.partialorder %v407, 20.0
        %vm5528 = vcmp.gt.f32.partialorder %v408, 20.0
        %vm5529 = vcmp.gt.f32.partialorder %v409, 20.0
        %vm5530 = vcmp.gt.f32.partialorder %v410, 20.0
        %vm5531 = vcmp.gt.f32.partialorder %v411, 20.0
        %vm5532 = vcmp.gt.f32.partialorder %v412, 20.0
        %vm5533 = vcmp.gt.f32.partialorder %v413, 20.0
        %vm5534 = vcmp.gt.f32.partialorder %v414, 20.0
        %vm5535 = vcmp.gt.f32.partialorder %v415, 20.0
        %vm5536 = vcmp.gt.f32.partialorder %v416, 20.0
        %vm5537 = vcmp.gt.f32.partialorder %v417, 20.0
        %vm5538 = vcmp.gt.f32.partialorder %v418, 20.0
        %vm5539 = vcmp.gt.f32.partialorder %v419, 20.0
        %vm5540 = vcmp.gt.f32.partialorder %v420, 20.0
        %vm5541 = vcmp.gt.f32.partialorder %v421, 20.0
        %vm5542 = vcmp.gt.f32.partialorder %v422, 20.0
        %vm5543 = vcmp.gt.f32.partialorder %v423, 20.0
        %vm5544 = vcmp.gt.f32.partialorder %v424, 20.0
        %vm5545 = vcmp.gt.f32.partialorder %v425, 20.0
        %vm5546 = vcmp.gt.f32.partialorder %v426, 20.0
        %vm5547 = vcmp.gt.f32.partialorder %v427, 20.0
        %vm5548 = vcmp.gt.f32.partialorder %v428, 20.0
        %vm5549 = vcmp.gt.f32.partialorder %v429, 20.0
        %vm5550 = vcmp.gt.f32.partialorder %v430, 20.0
        %vm5551 = vcmp.gt.f32.partialorder %v431, 20.0
        %vm5552 = vcmp.gt.f32.partialorder %v432, 20.0
        %vm5553 = vcmp.gt.f32.partialorder %v433, 20.0
        %vm5554 = vcmp.gt.f32.partialorder %v434, 20.0
        %vm5555 = vcmp.gt.f32.partialorder %v435, 20.0
        %vm5556 = vcmp.gt.f32.partialorder %v436, 20.0
        %vm5557 = vcmp.gt.f32.partialorder %v437, 20.0
        %vm5558 = vcmp.gt.f32.partialorder %v438, 20.0
        %vm5559 = vcmp.gt.f32.partialorder %v439, 20.0
        %vm5560 = vcmp.gt.f32.partialorder %v440, 20.0
        %vm5561 = vcmp.gt.f32.partialorder %v441, 20.0
        %vm5562 = vcmp.gt.f32.partialorder %v442, 20.0
        %vm5563 = vcmp.gt.f32.partialorder %v443, 20.0
        %vm5564 = vcmp.gt.f32.partialorder %v444, 20.0
        %vm5565 = vcmp.gt.f32.partialorder %v445, 20.0
        %vm5566 = vcmp.gt.f32.partialorder %v446, 20.0
        %vm5567 = vcmp.gt.f32.partialorder %v447, 20.0
        %vm5568 = vcmp.gt.f32.partialorder %v448, 20.0
        %vm5569 = vcmp.gt.f32.partialorder %v449, 20.0
        %vm5570 = vcmp.gt.f32.partialorder %v450, 20.0
        %vm5571 = vcmp.gt.f32.partialorder %v451, 20.0
        %vm5572 = vcmp.gt.f32.partialorder %v452, 20.0
        %vm5573 = vcmp.gt.f32.partialorder %v453, 20.0
        %vm5574 = vcmp.gt.f32.partialorder %v454, 20.0
        %vm5575 = vcmp.gt.f32.partialorder %v455, 20.0
        %vm5576 = vcmp.gt.f32.partialorder %v456, 20.0
        %vm5577 = vcmp.gt.f32.partialorder %v457, 20.0
        %vm5578 = vcmp.gt.f32.partialorder %v458, 20.0
        %vm5579 = vcmp.gt.f32.partialorder %v459, 20.0
        %vm5580 = vcmp.gt.f32.partialorder %v460, 20.0
        %vm5581 = vcmp.gt.f32.partialorder %v461, 20.0
        %vm5582 = vcmp.gt.f32.partialorder %v462, 20.0
        %vm5583 = vcmp.gt.f32.partialorder %v463, 20.0
        %vm5584 = vcmp.gt.f32.partialorder %v464, 20.0
        %vm5585 = vcmp.gt.f32.partialorder %v465, 20.0
        %vm5586 = vcmp.gt.f32.partialorder %v466, 20.0
        %vm5587 = vcmp.gt.f32.partialorder %v467, 20.0
        %vm5588 = vcmp.gt.f32.partialorder %v468, 20.0
        %vm5589 = vcmp.gt.f32.partialorder %v469, 20.0
        %vm5590 = vcmp.gt.f32.partialorder %v470, 20.0
        %vm5591 = vcmp.gt.f32.partialorder %v471, 20.0
        %vm5592 = vcmp.gt.f32.partialorder %v472, 20.0
        %vm5593 = vcmp.gt.f32.partialorder %v473, 20.0
        %vm5594 = vcmp.gt.f32.partialorder %v474, 20.0
        %vm5595 = vcmp.gt.f32.partialorder %v475, 20.0
        %vm5596 = vcmp.gt.f32.partialorder %v476, 20.0
        %vm5597 = vcmp.gt.f32.partialorder %v477, 20.0
        %vm5598 = vcmp.gt.f32.partialorder %v478, 20.0
        %vm5599 = vcmp.gt.f32.partialorder %v479, 20.0
        %vm5600 = vcmp.gt.f32.partialorder %v480, 20.0
        %vm5601 = vcmp.gt.f32.partialorder %v481, 20.0
        %vm5602 = vcmp.gt.f32.partialorder %v482, 20.0
        %vm5603 = vcmp.gt.f32.partialorder %v483, 20.0
        %vm5604 = vcmp.gt.f32.partialorder %v484, 20.0
        %vm5605 = vcmp.gt.f32.partialorder %v485, 20.0
        %vm5606 = vcmp.gt.f32.partialorder %v486, 20.0
        %vm5607 = vcmp.gt.f32.partialorder %v487, 20.0
        %vm5608 = vcmp.gt.f32.partialorder %v488, 20.0
        %vm5609 = vcmp.gt.f32.partialorder %v489, 20.0
        %vm5610 = vcmp.gt.f32.partialorder %v490, 20.0
        %vm5611 = vcmp.gt.f32.partialorder %v491, 20.0
        %vm5612 = vcmp.gt.f32.partialorder %v492, 20.0
        %vm5613 = vcmp.gt.f32.partialorder %v493, 20.0
        %vm5614 = vcmp.gt.f32.partialorder %v494, 20.0
        %vm5615 = vcmp.gt.f32.partialorder %v495, 20.0
        %vm5616 = vcmp.gt.f32.partialorder %v496, 20.0
        %vm5617 = vcmp.gt.f32.partialorder %v497, 20.0
        %vm5618 = vcmp.gt.f32.partialorder %v498, 20.0
        %vm5619 = vcmp.gt.f32.partialorder %v499, 20.0
        %vm5620 = vcmp.gt.f32.partialorder %v500, 20.0
        %vm5621 = vcmp.gt.f32.partialorder %v501, 20.0
        %vm5622 = vcmp.gt.f32.partialorder %v502, 20.0
        %vm5623 = vcmp.gt.f32.partialorder %v503, 20.0
        %vm5624 = vcmp.gt.f32.partialorder %v504, 20.0
        %vm5625 = vcmp.gt.f32.partialorder %v505, 20.0
        %vm5626 = vcmp.gt.f32.partialorder %v506, 20.0
        %vm5627 = vcmp.gt.f32.partialorder %v507, 20.0
        %vm5628 = vcmp.gt.f32.partialorder %v508, 20.0
        %vm5629 = vcmp.gt.f32.partialorder %v509, 20.0
        %vm5630 = vcmp.gt.f32.partialorder %v510, 20.0
        %vm5631 = vcmp.gt.f32.partialorder %v511, 20.0
        %vm5632 = vcmp.gt.f32.partialorder %v512, 20.0
        %vm5633 = vcmp.gt.f32.partialorder %v513, 20.0
        %vm5634 = vcmp.gt.f32.partialorder %v514, 20.0
        %vm5635 = vcmp.gt.f32.partialorder %v515, 20.0
        %vm5636 = vcmp.gt.f32.partialorder %v516, 20.0
        %vm5637 = vcmp.gt.f32.partialorder %v517, 20.0
        %vm5638 = vcmp.gt.f32.partialorder %v518, 20.0
        %vm5639 = vcmp.gt.f32.partialorder %v519, 20.0
        %vm5640 = vcmp.gt.f32.partialorder %v520, 20.0
        %vm5641 = vcmp.gt.f32.partialorder %v521, 20.0
        %vm5642 = vcmp.gt.f32.partialorder %v522, 20.0
        %vm5643 = vcmp.gt.f32.partialorder %v523, 20.0
        %vm5644 = vcmp.gt.f32.partialorder %v524, 20.0
        %vm5645 = vcmp.gt.f32.partialorder %v525, 20.0
        %vm5646 = vcmp.gt.f32.partialorder %v526, 20.0
        %vm5647 = vcmp.gt.f32.partialorder %v527, 20.0
        %vm5648 = vcmp.gt.f32.partialorder %v528, 20.0
        %vm5649 = vcmp.gt.f32.partialorder %v529, 20.0
        %vm5650 = vcmp.gt.f32.partialorder %v530, 20.0
        %vm5651 = vcmp.gt.f32.partialorder %v531, 20.0
        %vm5652 = vcmp.gt.f32.partialorder %v532, 20.0
        %vm5653 = vcmp.gt.f32.partialorder %v533, 20.0
        %vm5654 = vcmp.gt.f32.partialorder %v534, 20.0
        %vm5655 = vcmp.gt.f32.partialorder %v535, 20.0
        %vm5656 = vcmp.gt.f32.partialorder %v536, 20.0
        %vm5657 = vcmp.gt.f32.partialorder %v537, 20.0
        %vm5658 = vcmp.gt.f32.partialorder %v538, 20.0
        %vm5659 = vcmp.gt.f32.partialorder %v539, 20.0
        %vm5660 = vcmp.gt.f32.partialorder %v540, 20.0
        %vm5661 = vcmp.gt.f32.partialorder %v541, 20.0
        %vm5662 = vcmp.gt.f32.partialorder %v542, 20.0
        %vm5663 = vcmp.gt.f32.partialorder %v543, 20.0
        %vm5664 = vcmp.gt.f32.partialorder %v544, 20.0
        %vm5665 = vcmp.gt.f32.partialorder %v545, 20.0
        %vm5666 = vcmp.gt.f32.partialorder %v546, 20.0
        %vm5667 = vcmp.gt.f32.partialorder %v547, 20.0
        %vm5668 = vcmp.gt.f32.partialorder %v548, 20.0
        %vm5669 = vcmp.gt.f32.partialorder %v549, 20.0
        %vm5670 = vcmp.gt.f32.partialorder %v550, 20.0
        %vm5671 = vcmp.gt.f32.partialorder %v551, 20.0
        %vm5672 = vcmp.gt.f32.partialorder %v552, 20.0
        %vm5673 = vcmp.gt.f32.partialorder %v553, 20.0
        %vm5674 = vcmp.gt.f32.partialorder %v554, 20.0
        %vm5675 = vcmp.gt.f32.partialorder %v555, 20.0
        %vm5676 = vcmp.gt.f32.partialorder %v556, 20.0
        %vm5677 = vcmp.gt.f32.partialorder %v557, 20.0
        %vm5678 = vcmp.gt.f32.partialorder %v558, 20.0
        %vm5679 = vcmp.gt.f32.partialorder %v559, 20.0
        %vm5680 = vcmp.gt.f32.partialorder %v560, 20.0
        %vm5681 = vcmp.gt.f32.partialorder %v561, 20.0
        %vm5682 = vcmp.gt.f32.partialorder %v562, 20.0
        %vm5683 = vcmp.gt.f32.partialorder %v563, 20.0
        %vm5684 = vcmp.gt.f32.partialorder %v564, 20.0
        %vm5685 = vcmp.gt.f32.partialorder %v565, 20.0
        %vm5686 = vcmp.gt.f32.partialorder %v566, 20.0
        %vm5687 = vcmp.gt.f32.partialorder %v567, 20.0
        %vm5688 = vcmp.gt.f32.partialorder %v568, 20.0
        %vm5689 = vcmp.gt.f32.partialorder %v569, 20.0
        %vm5690 = vcmp.gt.f32.partialorder %v570, 20.0
        %vm5691 = vcmp.gt.f32.partialorder %v571, 20.0
        %vm5692 = vcmp.gt.f32.partialorder %v572, 20.0
        %vm5693 = vcmp.gt.f32.partialorder %v573, 20.0
        %vm5694 = vcmp.gt.f32.partialorder %v574, 20.0
        %vm5695 = vcmp.gt.f32.partialorder %v575, 20.0
        %vm5696 = vcmp.gt.f32.partialorder %v576, 20.0
        %vm5697 = vcmp.gt.f32.partialorder %v577, 20.0
        %vm5698 = vcmp.gt.f32.partialorder %v578, 20.0
        %vm5699 = vcmp.gt.f32.partialorder %v579, 20.0
        %vm5700 = vcmp.gt.f32.partialorder %v580, 20.0
        %vm5701 = vcmp.gt.f32.partialorder %v581, 20.0
        %vm5702 = vcmp.gt.f32.partialorder %v582, 20.0
        %vm5703 = vcmp.gt.f32.partialorder %v583, 20.0
        %vm5704 = vcmp.gt.f32.partialorder %v584, 20.0
        %vm5705 = vcmp.gt.f32.partialorder %v585, 20.0
        %vm5706 = vcmp.gt.f32.partialorder %v586, 20.0
        %vm5707 = vcmp.gt.f32.partialorder %v587, 20.0
        %vm5708 = vcmp.gt.f32.partialorder %v588, 20.0
        %vm5709 = vcmp.gt.f32.partialorder %v589, 20.0
        %vm5710 = vcmp.gt.f32.partialorder %v590, 20.0
        %vm5711 = vcmp.gt.f32.partialorder %v591, 20.0
        %vm5712 = vcmp.gt.f32.partialorder %v592, 20.0
        %vm5713 = vcmp.gt.f32.partialorder %v593, 20.0
        %vm5714 = vcmp.gt.f32.partialorder %v594, 20.0
        %vm5715 = vcmp.gt.f32.partialorder %v595, 20.0
        %vm5716 = vcmp.gt.f32.partialorder %v596, 20.0
        %vm5717 = vcmp.gt.f32.partialorder %v597, 20.0
        %vm5718 = vcmp.gt.f32.partialorder %v598, 20.0
        %vm5719 = vcmp.gt.f32.partialorder %v599, 20.0
        %vm5720 = vcmp.gt.f32.partialorder %v600, 20.0
        %vm5721 = vcmp.gt.f32.partialorder %v601, 20.0
        %vm5722 = vcmp.gt.f32.partialorder %v602, 20.0
        %vm5723 = vcmp.gt.f32.partialorder %v603, 20.0
        %vm5724 = vcmp.gt.f32.partialorder %v604, 20.0
        %vm5725 = vcmp.gt.f32.partialorder %v605, 20.0
        %vm5726 = vcmp.gt.f32.partialorder %v606, 20.0
        %vm5727 = vcmp.gt.f32.partialorder %v607, 20.0
        %vm5728 = vcmp.gt.f32.partialorder %v608, 20.0
        %vm5729 = vcmp.gt.f32.partialorder %v609, 20.0
        %vm5730 = vcmp.gt.f32.partialorder %v610, 20.0
        %vm5731 = vcmp.gt.f32.partialorder %v611, 20.0
        %vm5732 = vcmp.gt.f32.partialorder %v612, 20.0
        %vm5733 = vcmp.gt.f32.partialorder %v613, 20.0
        %vm5734 = vcmp.gt.f32.partialorder %v614, 20.0
        %vm5735 = vcmp.gt.f32.partialorder %v615, 20.0
        %vm5736 = vcmp.gt.f32.partialorder %v616, 20.0
        %vm5737 = vcmp.gt.f32.partialorder %v617, 20.0
        %vm5738 = vcmp.gt.f32.partialorder %v618, 20.0
        %vm5739 = vcmp.gt.f32.partialorder %v619, 20.0
        %vm5740 = vcmp.gt.f32.partialorder %v620, 20.0
        %vm5741 = vcmp.gt.f32.partialorder %v621, 20.0
        %vm5742 = vcmp.gt.f32.partialorder %v622, 20.0
        %vm5743 = vcmp.gt.f32.partialorder %v623, 20.0
        %vm5744 = vcmp.gt.f32.partialorder %v624, 20.0
        %vm5745 = vcmp.gt.f32.partialorder %v625, 20.0
        %vm5746 = vcmp.gt.f32.partialorder %v626, 20.0
        %vm5747 = vcmp.gt.f32.partialorder %v627, 20.0
        %vm5748 = vcmp.gt.f32.partialorder %v628, 20.0
        %vm5749 = vcmp.gt.f32.partialorder %v629, 20.0
        %vm5750 = vcmp.gt.f32.partialorder %v630, 20.0
        %vm5751 = vcmp.gt.f32.partialorder %v631, 20.0
        %vm5752 = vcmp.gt.f32.partialorder %v632, 20.0
        %vm5753 = vcmp.gt.f32.partialorder %v633, 20.0
        %vm5754 = vcmp.gt.f32.partialorder %v634, 20.0
        %vm5755 = vcmp.gt.f32.partialorder %v635, 20.0
        %vm5756 = vcmp.gt.f32.partialorder %v636, 20.0
        %vm5757 = vcmp.gt.f32.partialorder %v637, 20.0
        %vm5758 = vcmp.gt.f32.partialorder %v638, 20.0
        %vm5759 = vcmp.gt.f32.partialorder %v639, 20.0
        %vm5760 = vcmp.gt.f32.partialorder %v640, 20.0
        %vm5761 = vcmp.gt.f32.partialorder %v641, 20.0
        %vm5762 = vcmp.gt.f32.partialorder %v642, 20.0
        %vm5763 = vcmp.gt.f32.partialorder %v643, 20.0
        %vm5764 = vcmp.gt.f32.partialorder %v644, 20.0
        %vm5765 = vcmp.gt.f32.partialorder %v645, 20.0
        %vm5766 = vcmp.gt.f32.partialorder %v646, 20.0
        %vm5767 = vcmp.gt.f32.partialorder %v647, 20.0
        %vm5768 = vcmp.gt.f32.partialorder %v648, 20.0
        %v5769 = vsel %vm5257, %v137, %v4745
        %v5770 = vsel %vm5258, %v138, %v4746
        %v5771 = vsel %vm5259, %v139, %v4747
        %v5772 = vsel %vm5260, %v140, %v4748
        %v5773 = vsel %vm5261, %v141, %v4749
        %v5774 = vsel %vm5262, %v142, %v4750
        %v5775 = vsel %vm5263, %v143, %v4751
        %v5776 = vsel %vm5264, %v144, %v4752
        %v5777 = vsel %vm5265, %v145, %v4753
        %v5778 = vsel %vm5266, %v146, %v4754
        %v5779 = vsel %vm5267, %v147, %v4755
        %v5780 = vsel %vm5268, %v148, %v4756
        %v5781 = vsel %vm5269, %v149, %v4757
        %v5782 = vsel %vm5270, %v150, %v4758
        %v5783 = vsel %vm5271, %v151, %v4759
        %v5784 = vsel %vm5272, %v152, %v4760
        %v5785 = vsel %vm5273, %v153, %v4761
        %v5786 = vsel %vm5274, %v154, %v4762
        %v5787 = vsel %vm5275, %v155, %v4763
        %v5788 = vsel %vm5276, %v156, %v4764
        %v5789 = vsel %vm5277, %v157, %v4765
        %v5790 = vsel %vm5278, %v158, %v4766
        %v5791 = vsel %vm5279, %v159, %v4767
        %v5792 = vsel %vm5280, %v160, %v4768
        %v5793 = vsel %vm5281, %v161, %v4769
        %v5794 = vsel %vm5282, %v162, %v4770
        %v5795 = vsel %vm5283, %v163, %v4771
        %v5796 = vsel %vm5284, %v164, %v4772
        %v5797 = vsel %vm5285, %v165, %v4773
        %v5798 = vsel %vm5286, %v166, %v4774
        %v5799 = vsel %vm5287, %v167, %v4775
        %v5800 = vsel %vm5288, %v168, %v4776
        %v5801 = vsel %vm5289, %v169, %v4777
        %v5802 = vsel %vm5290, %v170, %v4778
        %v5803 = vsel %vm5291, %v171, %v4779
        %v5804 = vsel %vm5292, %v172, %v4780
        %v5805 = vsel %vm5293, %v173, %v4781
        %v5806 = vsel %vm5294, %v174, %v4782
        %v5807 = vsel %vm5295, %v175, %v4783
        %v5808 = vsel %vm5296, %v176, %v4784
        %v5809 = vsel %vm5297, %v177, %v4785
        %v5810 = vsel %vm5298, %v178, %v4786
        %v5811 = vsel %vm5299, %v179, %v4787
        %v5812 = vsel %vm5300, %v180, %v4788
        %v5813 = vsel %vm5301, %v181, %v4789
        %v5814 = vsel %vm5302, %v182, %v4790
        %v5815 = vsel %vm5303, %v183, %v4791
        %v5816 = vsel %vm5304, %v184, %v4792
        %v5817 = vsel %vm5305, %v185, %v4793
        %v5818 = vsel %vm5306, %v186, %v4794
        %v5819 = vsel %vm5307, %v187, %v4795
        %v5820 = vsel %vm5308, %v188, %v4796
        %v5821 = vsel %vm5309, %v189, %v4797
        %v5822 = vsel %vm5310, %v190, %v4798
        %v5823 = vsel %vm5311, %v191, %v4799
        %v5824 = vsel %vm5312, %v192, %v4800
        %v5825 = vsel %vm5313, %v193, %v4801
        %v5826 = vsel %vm5314, %v194, %v4802
        %v5827 = vsel %vm5315, %v195, %v4803
        %v5828 = vsel %vm5316, %v196, %v4804
        %v5829 = vsel %vm5317, %v197, %v4805
        %v5830 = vsel %vm5318, %v198, %v4806
        %v5831 = vsel %vm5319, %v199, %v4807
        %v5832 = vsel %vm5320, %v200, %v4808
        %v5833 = vsel %vm5321, %v201, %v4809
        %v5834 = vsel %vm5322, %v202, %v4810
        %v5835 = vsel %vm5323, %v203, %v4811
        %v5836 = vsel %vm5324, %v204, %v4812
        %v5837 = vsel %vm5325, %v205, %v4813
        %v5838 = vsel %vm5326, %v206, %v4814
        %v5839 = vsel %vm5327, %v207, %v4815
        %v5840 = vsel %vm5328, %v208, %v4816
        %v5841 = vsel %vm5329, %v209, %v4817
        %v5842 = vsel %vm5330, %v210, %v4818
        %v5843 = vsel %vm5331, %v211, %v4819
        %v5844 = vsel %vm5332, %v212, %v4820
        %v5845 = vsel %vm5333, %v213, %v4821
        %v5846 = vsel %vm5334, %v214, %v4822
        %v5847 = vsel %vm5335, %v215, %v4823
        %v5848 = vsel %vm5336, %v216, %v4824
        %v5849 = vsel %vm5337, %v217, %v4825
        %v5850 = vsel %vm5338, %v218, %v4826
        %v5851 = vsel %vm5339, %v219, %v4827
        %v5852 = vsel %vm5340, %v220, %v4828
        %v5853 = vsel %vm5341, %v221, %v4829
        %v5854 = vsel %vm5342, %v222, %v4830
        %v5855 = vsel %vm5343, %v223, %v4831
        %v5856 = vsel %vm5344, %v224, %v4832
        %v5857 = vsel %vm5345, %v225, %v4833
        %v5858 = vsel %vm5346, %v226, %v4834
        %v5859 = vsel %vm5347, %v227, %v4835
        %v5860 = vsel %vm5348, %v228, %v4836
        %v5861 = vsel %vm5349, %v229, %v4837
        %v5862 = vsel %vm5350, %v230, %v4838
        %v5863 = vsel %vm5351, %v231, %v4839
        %v5864 = vsel %vm5352, %v232, %v4840
        %v5865 = vsel %vm5353, %v233, %v4841
        %v5866 = vsel %vm5354, %v234, %v4842
        %v5867 = vsel %vm5355, %v235, %v4843
        %v5868 = vsel %vm5356, %v236, %v4844
        %v5869 = vsel %vm5357, %v237, %v4845
        %v5870 = vsel %vm5358, %v238, %v4846
        %v5871 = vsel %vm5359, %v239, %v4847
        %v5872 = vsel %vm5360, %v240, %v4848
        %v5873 = vsel %vm5361, %v241, %v4849
        %v5874 = vsel %vm5362, %v242, %v4850
        %v5875 = vsel %vm5363, %v243, %v4851
        %v5876 = vsel %vm5364, %v244, %v4852
        %v5877 = vsel %vm5365, %v245, %v4853
        %v5878 = vsel %vm5366, %v246, %v4854
        %v5879 = vsel %vm5367, %v247, %v4855
        %v5880 = vsel %vm5368, %v248, %v4856
        %v5881 = vsel %vm5369, %v249, %v4857
        %v5882 = vsel %vm5370, %v250, %v4858
        %v5883 = vsel %vm5371, %v251, %v4859
        %v5884 = vsel %vm5372, %v252, %v4860
        %v5885 = vsel %vm5373, %v253, %v4861
        %v5886 = vsel %vm5374, %v254, %v4862
        %v5887 = vsel %vm5375, %v255, %v4863
        %v5888 = vsel %vm5376, %v256, %v4864
        %v5889 = vsel %vm5377, %v257, %v4865
        %v5890 = vsel %vm5378, %v258, %v4866
        %v5891 = vsel %vm5379, %v259, %v4867
        %v5892 = vsel %vm5380, %v260, %v4868
        %v5893 = vsel %vm5381, %v261, %v4869
        %v5894 = vsel %vm5382, %v262, %v4870
        %v5895 = vsel %vm5383, %v263, %v4871
        %v5896 = vsel %vm5384, %v264, %v4872
        %v5897 = vsel %vm5385, %v265, %v4873
        %v5898 = vsel %vm5386, %v266, %v4874
        %v5899 = vsel %vm5387, %v267, %v4875
        %v5900 = vsel %vm5388, %v268, %v4876
        %v5901 = vsel %vm5389, %v269, %v4877
        %v5902 = vsel %vm5390, %v270, %v4878
        %v5903 = vsel %vm5391, %v271, %v4879
        %v5904 = vsel %vm5392, %v272, %v4880
        %v5905 = vsel %vm5393, %v273, %v4881
        %v5906 = vsel %vm5394, %v274, %v4882
        %v5907 = vsel %vm5395, %v275, %v4883
        %v5908 = vsel %vm5396, %v276, %v4884
        %v5909 = vsel %vm5397, %v277, %v4885
        %v5910 = vsel %vm5398, %v278, %v4886
        %v5911 = vsel %vm5399, %v279, %v4887
        %v5912 = vsel %vm5400, %v280, %v4888
        %v5913 = vsel %vm5401, %v281, %v4889
        %v5914 = vsel %vm5402, %v282, %v4890
        %v5915 = vsel %vm5403, %v283, %v4891
        %v5916 = vsel %vm5404, %v284, %v4892
        %v5917 = vsel %vm5405, %v285, %v4893
        %v5918 = vsel %vm5406, %v286, %v4894
        %v5919 = vsel %vm5407, %v287, %v4895
        %v5920 = vsel %vm5408, %v288, %v4896
        %v5921 = vsel %vm5409, %v289, %v4897
        %v5922 = vsel %vm5410, %v290, %v4898
        %v5923 = vsel %vm5411, %v291, %v4899
        %v5924 = vsel %vm5412, %v292, %v4900
        %v5925 = vsel %vm5413, %v293, %v4901
        %v5926 = vsel %vm5414, %v294, %v4902
        %v5927 = vsel %vm5415, %v295, %v4903
        %v5928 = vsel %vm5416, %v296, %v4904
        %v5929 = vsel %vm5417, %v297, %v4905
        %v5930 = vsel %vm5418, %v298, %v4906
        %v5931 = vsel %vm5419, %v299, %v4907
        %v5932 = vsel %vm5420, %v300, %v4908
        %v5933 = vsel %vm5421, %v301, %v4909
        %v5934 = vsel %vm5422, %v302, %v4910
        %v5935 = vsel %vm5423, %v303, %v4911
        %v5936 = vsel %vm5424, %v304, %v4912
        %v5937 = vsel %vm5425, %v305, %v4913
        %v5938 = vsel %vm5426, %v306, %v4914
        %v5939 = vsel %vm5427, %v307, %v4915
        %v5940 = vsel %vm5428, %v308, %v4916
        %v5941 = vsel %vm5429, %v309, %v4917
        %v5942 = vsel %vm5430, %v310, %v4918
        %v5943 = vsel %vm5431, %v311, %v4919
        %v5944 = vsel %vm5432, %v312, %v4920
        %v5945 = vsel %vm5433, %v313, %v4921
        %v5946 = vsel %vm5434, %v314, %v4922
        %v5947 = vsel %vm5435, %v315, %v4923
        %v5948 = vsel %vm5436, %v316, %v4924
        %v5949 = vsel %vm5437, %v317, %v4925
        %v5950 = vsel %vm5438, %v318, %v4926
        %v5951 = vsel %vm5439, %v319, %v4927
        %v5952 = vsel %vm5440, %v320, %v4928
        %v5953 = vsel %vm5441, %v321, %v4929
        %v5954 = vsel %vm5442, %v322, %v4930
        %v5955 = vsel %vm5443, %v323, %v4931
        %v5956 = vsel %vm5444, %v324, %v4932
        %v5957 = vsel %vm5445, %v325, %v4933
        %v5958 = vsel %vm5446, %v326, %v4934
        %v5959 = vsel %vm5447, %v327, %v4935
        %v5960 = vsel %vm5448, %v328, %v4936
        %v5961 = vsel %vm5449, %v329, %v4937
        %v5962 = vsel %vm5450, %v330, %v4938
        %v5963 = vsel %vm5451, %v331, %v4939
        %v5964 = vsel %vm5452, %v332, %v4940
        %v5965 = vsel %vm5453, %v333, %v4941
        %v5966 = vsel %vm5454, %v334, %v4942
        %v5967 = vsel %vm5455, %v335, %v4943
        %v5968 = vsel %vm5456, %v336, %v4944
        %v5969 = vsel %vm5457, %v337, %v4945
        %v5970 = vsel %vm5458, %v338, %v4946
        %v5971 = vsel %vm5459, %v339, %v4947
        %v5972 = vsel %vm5460, %v340, %v4948
        %v5973 = vsel %vm5461, %v341, %v4949
        %v5974 = vsel %vm5462, %v342, %v4950
        %v5975 = vsel %vm5463, %v343, %v4951
        %v5976 = vsel %vm5464, %v344, %v4952
        %v5977 = vsel %vm5465, %v345, %v4953
        %v5978 = vsel %vm5466, %v346, %v4954
        %v5979 = vsel %vm5467, %v347, %v4955
        %v5980 = vsel %vm5468, %v348, %v4956
        %v5981 = vsel %vm5469, %v349, %v4957
        %v5982 = vsel %vm5470, %v350, %v4958
        %v5983 = vsel %vm5471, %v351, %v4959
        %v5984 = vsel %vm5472, %v352, %v4960
        %v5985 = vsel %vm5473, %v353, %v4961
        %v5986 = vsel %vm5474, %v354, %v4962
        %v5987 = vsel %vm5475, %v355, %v4963
        %v5988 = vsel %vm5476, %v356, %v4964
        %v5989 = vsel %vm5477, %v357, %v4965
        %v5990 = vsel %vm5478, %v358, %v4966
        %v5991 = vsel %vm5479, %v359, %v4967
        %v5992 = vsel %vm5480, %v360, %v4968
        %v5993 = vsel %vm5481, %v361, %v4969
        %v5994 = vsel %vm5482, %v362, %v4970
        %v5995 = vsel %vm5483, %v363, %v4971
        %v5996 = vsel %vm5484, %v364, %v4972
        %v5997 = vsel %vm5485, %v365, %v4973
        %v5998 = vsel %vm5486, %v366, %v4974
        %v5999 = vsel %vm5487, %v367, %v4975
        %v6000 = vsel %vm5488, %v368, %v4976
        %v6001 = vsel %vm5489, %v369, %v4977
        %v6002 = vsel %vm5490, %v370, %v4978
        %v6003 = vsel %vm5491, %v371, %v4979
        %v6004 = vsel %vm5492, %v372, %v4980
        %v6005 = vsel %vm5493, %v373, %v4981
        %v6006 = vsel %vm5494, %v374, %v4982
        %v6007 = vsel %vm5495, %v375, %v4983
        %v6008 = vsel %vm5496, %v376, %v4984
        %v6009 = vsel %vm5497, %v377, %v4985
        %v6010 = vsel %vm5498, %v378, %v4986
        %v6011 = vsel %vm5499, %v379, %v4987
        %v6012 = vsel %vm5500, %v380, %v4988
        %v6013 = vsel %vm5501, %v381, %v4989
        %v6014 = vsel %vm5502, %v382, %v4990
        %v6015 = vsel %vm5503, %v383, %v4991
        %v6016 = vsel %vm5504, %v384, %v4992
        %v6017 = vsel %vm5505, %v385, %v4993
        %v6018 = vsel %vm5506, %v386, %v4994
        %v6019 = vsel %vm5507, %v387, %v4995
        %v6020 = vsel %vm5508, %v388, %v4996
        %v6021 = vsel %vm5509, %v389, %v4997
        %v6022 = vsel %vm5510, %v390, %v4998
        %v6023 = vsel %vm5511, %v391, %v4999
        %v6024 = vsel %vm5512, %v392, %v5000
        %v6025 = vsel %vm5513, %v393, %v5001
        %v6026 = vsel %vm5514, %v394, %v5002
        %v6027 = vsel %vm5515, %v395, %v5003
        %v6028 = vsel %vm5516, %v396, %v5004
        %v6029 = vsel %vm5517, %v397, %v5005
        %v6030 = vsel %vm5518, %v398, %v5006
        %v6031 = vsel %vm5519, %v399, %v5007
        %v6032 = vsel %vm5520, %v400, %v5008
        %v6033 = vsel %vm5521, %v401, %v5009
        %v6034 = vsel %vm5522, %v402, %v5010
        %v6035 = vsel %vm5523, %v403, %v5011
        %v6036 = vsel %vm5524, %v404, %v5012
        %v6037 = vsel %vm5525, %v405, %v5013
        %v6038 = vsel %vm5526, %v406, %v5014
        %v6039 = vsel %vm5527, %v407, %v5015
        %v6040 = vsel %vm5528, %v408, %v5016
        %v6041 = vsel %vm5529, %v409, %v5017
        %v6042 = vsel %vm5530, %v410, %v5018
        %v6043 = vsel %vm5531, %v411, %v5019
        %v6044 = vsel %vm5532, %v412, %v5020
        %v6045 = vsel %vm5533, %v413, %v5021
        %v6046 = vsel %vm5534, %v414, %v5022
        %v6047 = vsel %vm5535, %v415, %v5023
        %v6048 = vsel %vm5536, %v416, %v5024
        %v6049 = vsel %vm5537, %v417, %v5025
        %v6050 = vsel %vm5538, %v418, %v5026
        %v6051 = vsel %vm5539, %v419, %v5027
        %v6052 = vsel %vm5540, %v420, %v5028
        %v6053 = vsel %vm5541, %v421, %v5029
        %v6054 = vsel %vm5542, %v422, %v5030
        %v6055 = vsel %vm5543, %v423, %v5031
        %v6056 = vsel %vm5544, %v424, %v5032
        %v6057 = vsel %vm5545, %v425, %v5033
        %v6058 = vsel %vm5546, %v426, %v5034
        %v6059 = vsel %vm5547, %v427, %v5035
        %v6060 = vsel %vm5548, %v428, %v5036
        %v6061 = vsel %vm5549, %v429, %v5037
        %v6062 = vsel %vm5550, %v430, %v5038
        %v6063 = vsel %vm5551, %v431, %v5039
        %v6064 = vsel %vm5552, %v432, %v5040
        %v6065 = vsel %vm5553, %v433, %v5041
        %v6066 = vsel %vm5554, %v434, %v5042
        %v6067 = vsel %vm5555, %v435, %v5043
        %v6068 = vsel %vm5556, %v436, %v5044
        %v6069 = vsel %vm5557, %v437, %v5045
        %v6070 = vsel %vm5558, %v438, %v5046
        %v6071 = vsel %vm5559, %v439, %v5047
        %v6072 = vsel %vm5560, %v440, %v5048
        %v6073 = vsel %vm5561, %v441, %v5049
        %v6074 = vsel %vm5562, %v442, %v5050
        %v6075 = vsel %vm5563, %v443, %v5051
        %v6076 = vsel %vm5564, %v444, %v5052
        %v6077 = vsel %vm5565, %v445, %v5053
        %v6078 = vsel %vm5566, %v446, %v5054
        %v6079 = vsel %vm5567, %v447, %v5055
        %v6080 = vsel %vm5568, %v448, %v5056
        %v6081 = vsel %vm5569, %v449, %v5057
        %v6082 = vsel %vm5570, %v450, %v5058
        %v6083 = vsel %vm5571, %v451, %v5059
        %v6084 = vsel %vm5572, %v452, %v5060
        %v6085 = vsel %vm5573, %v453, %v5061
        %v6086 = vsel %vm5574, %v454, %v5062
        %v6087 = vsel %vm5575, %v455, %v5063
        %v6088 = vsel %vm5576, %v456, %v5064
        %v6089 = vsel %vm5577, %v457, %v5065
        %v6090 = vsel %vm5578, %v458, %v5066
        %v6091 = vsel %vm5579, %v459, %v5067
        %v6092 = vsel %vm5580, %v460, %v5068
        %v6093 = vsel %vm5581, %v461, %v5069
        %v6094 = vsel %vm5582, %v462, %v5070
        %v6095 = vsel %vm5583, %v463, %v5071
        %v6096 = vsel %vm5584, %v464, %v5072
        %v6097 = vsel %vm5585, %v465, %v5073
        %v6098 = vsel %vm5586, %v466, %v5074
        %v6099 = vsel %vm5587, %v467, %v5075
        %v6100 = vsel %vm5588, %v468, %v5076
        %v6101 = vsel %vm5589, %v469, %v5077
        %v6102 = vsel %vm5590, %v470, %v5078
        %v6103 = vsel %vm5591, %v471, %v5079
        %v6104 = vsel %vm5592, %v472, %v5080
        %v6105 = vsel %vm5593, %v473, %v5081
        %v6106 = vsel %vm5594, %v474, %v5082
        %v6107 = vsel %vm5595, %v475, %v5083
        %v6108 = vsel %vm5596, %v476, %v5084
        %v6109 = vsel %vm5597, %v477, %v5085
        %v6110 = vsel %vm5598, %v478, %v5086
        %v6111 = vsel %vm5599, %v479, %v5087
        %v6112 = vsel %vm5600, %v480, %v5088
        %v6113 = vsel %vm5601, %v481, %v5089
        %v6114 = vsel %vm5602, %v482, %v5090
        %v6115 = vsel %vm5603, %v483, %v5091
        %v6116 = vsel %vm5604, %v484, %v5092
        %v6117 = vsel %vm5605, %v485, %v5093
        %v6118 = vsel %vm5606, %v486, %v5094
        %v6119 = vsel %vm5607, %v487, %v5095
        %v6120 = vsel %vm5608, %v488, %v5096
        %v6121 = vsel %vm5609, %v489, %v5097
        %v6122 = vsel %vm5610, %v490, %v5098
        %v6123 = vsel %vm5611, %v491, %v5099
        %v6124 = vsel %vm5612, %v492, %v5100
        %v6125 = vsel %vm5613, %v493, %v5101
        %v6126 = vsel %vm5614, %v494, %v5102
        %v6127 = vsel %vm5615, %v495, %v5103
        %v6128 = vsel %vm5616, %v496, %v5104
        %v6129 = vsel %vm5617, %v497, %v5105
        %v6130 = vsel %vm5618, %v498, %v5106
        %v6131 = vsel %vm5619, %v499, %v5107
        %v6132 = vsel %vm5620, %v500, %v5108
        %v6133 = vsel %vm5621, %v501, %v5109
        %v6134 = vsel %vm5622, %v502, %v5110
        %v6135 = vsel %vm5623, %v503, %v5111
        %v6136 = vsel %vm5624, %v504, %v5112
        %v6137 = vsel %vm5625, %v505, %v5113
        %v6138 = vsel %vm5626, %v506, %v5114
        %v6139 = vsel %vm5627, %v507, %v5115
        %v6140 = vsel %vm5628, %v508, %v5116
        %v6141 = vsel %vm5629, %v509, %v5117
        %v6142 = vsel %vm5630, %v510, %v5118
        %v6143 = vsel %vm5631, %v511, %v5119
        %v6144 = vsel %vm5632, %v512, %v5120
        %v6145 = vsel %vm5633, %v513, %v5121
        %v6146 = vsel %vm5634, %v514, %v5122
        %v6147 = vsel %vm5635, %v515, %v5123
        %v6148 = vsel %vm5636, %v516, %v5124
        %v6149 = vsel %vm5637, %v517, %v5125
        %v6150 = vsel %vm5638, %v518, %v5126
        %v6151 = vsel %vm5639, %v519, %v5127
        %v6152 = vsel %vm5640, %v520, %v5128
        %v6153 = vsel %vm5641, %v521, %v5129
        %v6154 = vsel %vm5642, %v522, %v5130
        %v6155 = vsel %vm5643, %v523, %v5131
        %v6156 = vsel %vm5644, %v524, %v5132
        %v6157 = vsel %vm5645, %v525, %v5133
        %v6158 = vsel %vm5646, %v526, %v5134
        %v6159 = vsel %vm5647, %v527, %v5135
        %v6160 = vsel %vm5648, %v528, %v5136
        %v6161 = vsel %vm5649, %v529, %v5137
        %v6162 = vsel %vm5650, %v530, %v5138
        %v6163 = vsel %vm5651, %v531, %v5139
        %v6164 = vsel %vm5652, %v532, %v5140
        %v6165 = vsel %vm5653, %v533, %v5141
        %v6166 = vsel %vm5654, %v534, %v5142
        %v6167 = vsel %vm5655, %v535, %v5143
        %v6168 = vsel %vm5656, %v536, %v5144
        %v6169 = vsel %vm5657, %v537, %v5145
        %v6170 = vsel %vm5658, %v538, %v5146
        %v6171 = vsel %vm5659, %v539, %v5147
        %v6172 = vsel %vm5660, %v540, %v5148
        %v6173 = vsel %vm5661, %v541, %v5149
        %v6174 = vsel %vm5662, %v542, %v5150
        %v6175 = vsel %vm5663, %v543, %v5151
        %v6176 = vsel %vm5664, %v544, %v5152
        %v6177 = vsel %vm5665, %v545, %v5153
        %v6178 = vsel %vm5666, %v546, %v5154
        %v6179 = vsel %vm5667, %v547, %v5155
        %v6180 = vsel %vm5668, %v548, %v5156
        %v6181 = vsel %vm5669, %v549, %v5157
        %v6182 = vsel %vm5670, %v550, %v5158
        %v6183 = vsel %vm5671, %v551, %v5159
        %v6184 = vsel %vm5672, %v552, %v5160
        %v6185 = vsel %vm5673, %v553, %v5161
        %v6186 = vsel %vm5674, %v554, %v5162
        %v6187 = vsel %vm5675, %v555, %v5163
        %v6188 = vsel %vm5676, %v556, %v5164
        %v6189 = vsel %vm5677, %v557, %v5165
        %v6190 = vsel %vm5678, %v558, %v5166
        %v6191 = vsel %vm5679, %v559, %v5167
        %v6192 = vsel %vm5680, %v560, %v5168
        %v6193 = vsel %vm5681, %v561, %v5169
        %v6194 = vsel %vm5682, %v562, %v5170
        %v6195 = vsel %vm5683, %v563, %v5171
        %v6196 = vsel %vm5684, %v564, %v5172
        %v6197 = vsel %vm5685, %v565, %v5173
        %v6198 = vsel %vm5686, %v566, %v5174
        %v6199 = vsel %vm5687, %v567, %v5175
        %v6200 = vsel %vm5688, %v568, %v5176
        %v6201 = vsel %vm5689, %v569, %v5177
        %v6202 = vsel %vm5690, %v570, %v5178
        %v6203 = vsel %vm5691, %v571, %v5179
        %v6204 = vsel %vm5692, %v572, %v5180
        %v6205 = vsel %vm5693, %v573, %v5181
        %v6206 = vsel %vm5694, %v574, %v5182
        %v6207 = vsel %vm5695, %v575, %v5183
        %v6208 = vsel %vm5696, %v576, %v5184
        %v6209 = vsel %vm5697, %v577, %v5185
        %v6210 = vsel %vm5698, %v578, %v5186
        %v6211 = vsel %vm5699, %v579, %v5187
        %v6212 = vsel %vm5700, %v580, %v5188
        %v6213 = vsel %vm5701, %v581, %v5189
        %v6214 = vsel %vm5702, %v582, %v5190
        %v6215 = vsel %vm5703, %v583, %v5191
        %v6216 = vsel %vm5704, %v584, %v5192
        %v6217 = vsel %vm5705, %v585, %v5193
        %v6218 = vsel %vm5706, %v586, %v5194
        %v6219 = vsel %vm5707, %v587, %v5195
        %v6220 = vsel %vm5708, %v588, %v5196
        %v6221 = vsel %vm5709, %v589, %v5197
        %v6222 = vsel %vm5710, %v590, %v5198
        %v6223 = vsel %vm5711, %v591, %v5199
        %v6224 = vsel %vm5712, %v592, %v5200
        %v6225 = vsel %vm5713, %v593, %v5201
        %v6226 = vsel %vm5714, %v594, %v5202
        %v6227 = vsel %vm5715, %v595, %v5203
        %v6228 = vsel %vm5716, %v596, %v5204
        %v6229 = vsel %vm5717, %v597, %v5205
        %v6230 = vsel %vm5718, %v598, %v5206
        %v6231 = vsel %vm5719, %v599, %v5207
        %v6232 = vsel %vm5720, %v600, %v5208
        %v6233 = vsel %vm5721, %v601, %v5209
        %v6234 = vsel %vm5722, %v602, %v5210
        %v6235 = vsel %vm5723, %v603, %v5211
        %v6236 = vsel %vm5724, %v604, %v5212
        %v6237 = vsel %vm5725, %v605, %v5213
        %v6238 = vsel %vm5726, %v606, %v5214
        %v6239 = vsel %vm5727, %v607, %v5215
        %v6240 = vsel %vm5728, %v608, %v5216
        %v6241 = vsel %vm5729, %v609, %v5217
        %v6242 = vsel %vm5730, %v610, %v5218
        %v6243 = vsel %vm5731, %v611, %v5219
        %v6244 = vsel %vm5732, %v612, %v5220
        %v6245 = vsel %vm5733, %v613, %v5221
        %v6246 = vsel %vm5734, %v614, %v5222
        %v6247 = vsel %vm5735, %v615, %v5223
        %v6248 = vsel %vm5736, %v616, %v5224
        %v6249 = vsel %vm5737, %v617, %v5225
        %v6250 = vsel %vm5738, %v618, %v5226
        %v6251 = vsel %vm5739, %v619, %v5227
        %v6252 = vsel %vm5740, %v620, %v5228
        %v6253 = vsel %vm5741, %v621, %v5229
        %v6254 = vsel %vm5742, %v622, %v5230
        %v6255 = vsel %vm5743, %v623, %v5231
        %v6256 = vsel %vm5744, %v624, %v5232
        %v6257 = vsel %vm5745, %v625, %v5233
        %v6258 = vsel %vm5746, %v626, %v5234
        %v6259 = vsel %vm5747, %v627, %v5235
        %v6260 = vsel %vm5748, %v628, %v5236
        %v6261 = vsel %vm5749, %v629, %v5237
        %v6262 = vsel %vm5750, %v630, %v5238
        %v6263 = vsel %vm5751, %v631, %v5239
        %v6264 = vsel %vm5752, %v632, %v5240
        %v6265 = vsel %vm5753, %v633, %v5241
        %v6266 = vsel %vm5754, %v634, %v5242
        %v6267 = vsel %vm5755, %v635, %v5243
        %v6268 = vsel %vm5756, %v636, %v5244
        %v6269 = vsel %vm5757, %v637, %v5245
        %v6270 = vsel %vm5758, %v638, %v5246
        %v6271 = vsel %vm5759, %v639, %v5247
        %v6272 = vsel %vm5760, %v640, %v5248
        %v6273 = vsel %vm5761, %v641, %v5249
        %v6274 = vsel %vm5762, %v642, %v5250
        %v6275 = vsel %vm5763, %v643, %v5251
        %v6276 = vsel %vm5764, %v644, %v5252
        %v6277 = vsel %vm5765, %v645, %v5253
        %v6278 = vsel %vm5766, %v646, %v5254
        %v6279 = vsel %vm5767, %v647, %v5255
        %v6280 = vsel %vm5768, %v648, %v5256
        %6281 = vst [vmem:[%s134] sm:$0xff] %v5769
        %6282 = vst [vmem:[%s134 + $0x8] sm:$0xff] %v5770
        %6283 = vst [vmem:[%s134 + $0x10] sm:$0xff] %v5771
        %6284 = vst [vmem:[%s134 + $0x18] sm:$0xff] %v5772
        %6285 = vst [vmem:[%s134 + $0x20] sm:$0xff] %v5773
        %6286 = vst [vmem:[%s134 + $0x28] sm:$0xff] %v5774
        %6287 = vst [vmem:[%s134 + $0x30] sm:$0xff] %v5775
        %6288 = vst [vmem:[%s134 + $0x38] sm:$0xff] %v5776
        %6289 = vst [vmem:[%s134 + $0x40] sm:$0xff] %v5777
        %6290 = vst [vmem:[%s134 + $0x48] sm:$0xff] %v5778
        %6291 = vst [vmem:[%s134 + $0x50] sm:$0xff] %v5779
        %6292 = vst [vmem:[%s134 + $0x58] sm:$0xff] %v5780
        %6293 = vst [vmem:[%s134 + $0x60] sm:$0xff] %v5781
        %6294 = vst [vmem:[%s134 + $0x68] sm:$0xff] %v5782
        %6295 = vst [vmem:[%s134 + $0x70] sm:$0xff] %v5783
        %6296 = vst [vmem:[%s134 + $0x78] sm:$0xff] %v5784
        %6297 = vst [vmem:[%s134 + $0x80] sm:$0xff] %v5785
        %6298 = vst [vmem:[%s134 + $0x88] sm:$0xff] %v5786
        %6299 = vst [vmem:[%s134 + $0x90] sm:$0xff] %v5787
        %6300 = vst [vmem:[%s134 + $0x98] sm:$0xff] %v5788
        %6301 = vst [vmem:[%s134 + $0xa0] sm:$0xff] %v5789
        %6302 = vst [vmem:[%s134 + $0xa8] sm:$0xff] %v5790
        %6303 = vst [vmem:[%s134 + $0xb0] sm:$0xff] %v5791
        %6304 = vst [vmem:[%s134 + $0xb8] sm:$0xff] %v5792
        %6305 = vst [vmem:[%s134 + $0xc0] sm:$0xff] %v5793
        %6306 = vst [vmem:[%s134 + $0xc8] sm:$0xff] %v5794
        %6307 = vst [vmem:[%s134 + $0xd0] sm:$0xff] %v5795
        %6308 = vst [vmem:[%s134 + $0xd8] sm:$0xff] %v5796
        %6309 = vst [vmem:[%s134 + $0xe0] sm:$0xff] %v5797
        %6310 = vst [vmem:[%s134 + $0xe8] sm:$0xff] %v5798
        %6311 = vst [vmem:[%s134 + $0xf0] sm:$0xff] %v5799
        %6312 = vst [vmem:[%s134 + $0xf8] sm:$0xff] %v5800
        %6313 = vst [vmem:[%s134 + $0x100] sm:$0xff] %v5801
        %6314 = vst [vmem:[%s134 + $0x108] sm:$0xff] %v5802
        %6315 = vst [vmem:[%s134 + $0x110] sm:$0xff] %v5803
        %6316 = vst [vmem:[%s134 + $0x118] sm:$0xff] %v5804
        %6317 = vst [vmem:[%s134 + $0x120] sm:$0xff] %v5805
        %6318 = vst [vmem:[%s134 + $0x128] sm:$0xff] %v5806
        %6319 = vst [vmem:[%s134 + $0x130] sm:$0xff] %v5807
        %6320 = vst [vmem:[%s134 + $0x138] sm:$0xff] %v5808
        %6321 = vst [vmem:[%s134 + $0x140] sm:$0xff] %v5809
        %6322 = vst [vmem:[%s134 + $0x148] sm:$0xff] %v5810
        %6323 = vst [vmem:[%s134 + $0x150] sm:$0xff] %v5811
        %6324 = vst [vmem:[%s134 + $0x158] sm:$0xff] %v5812
        %6325 = vst [vmem:[%s134 + $0x160] sm:$0xff] %v5813
        %6326 = vst [vmem:[%s134 + $0x168] sm:$0xff] %v5814
        %6327 = vst [vmem:[%s134 + $0x170] sm:$0xff] %v5815
        %6328 = vst [vmem:[%s134 + $0x178] sm:$0xff] %v5816
        %6329 = vst [vmem:[%s134 + $0x180] sm:$0xff] %v5817
        %6330 = vst [vmem:[%s134 + $0x188] sm:$0xff] %v5818
        %6331 = vst [vmem:[%s134 + $0x190] sm:$0xff] %v5819
        %6332 = vst [vmem:[%s134 + $0x198] sm:$0xff] %v5820
        %6333 = vst [vmem:[%s134 + $0x1a0] sm:$0xff] %v5821
        %6334 = vst [vmem:[%s134 + $0x1a8] sm:$0xff] %v5822
        %6335 = vst [vmem:[%s134 + $0x1b0] sm:$0xff] %v5823
        %6336 = vst [vmem:[%s134 + $0x1b8] sm:$0xff] %v5824
        %6337 = vst [vmem:[%s134 + $0x1c0] sm:$0xff] %v5825
        %6338 = vst [vmem:[%s134 + $0x1c8] sm:$0xff] %v5826
        %6339 = vst [vmem:[%s134 + $0x1d0] sm:$0xff] %v5827
        %6340 = vst [vmem:[%s134 + $0x1d8] sm:$0xff] %v5828
        %6341 = vst [vmem:[%s134 + $0x1e0] sm:$0xff] %v5829
        %6342 = vst [vmem:[%s134 + $0x1e8] sm:$0xff] %v5830
        %6343 = vst [vmem:[%s134 + $0x1f0] sm:$0xff] %v5831
        %6344 = vst [vmem:[%s134 + $0x1f8] sm:$0xff] %v5832
        %6345 = vst [vmem:[%s134 + $0x200] sm:$0xff] %v5833
        %6346 = vst [vmem:[%s134 + $0x208] sm:$0xff] %v5834
        %6347 = vst [vmem:[%s134 + $0x210] sm:$0xff] %v5835
        %6348 = vst [vmem:[%s134 + $0x218] sm:$0xff] %v5836
        %6349 = vst [vmem:[%s134 + $0x220] sm:$0xff] %v5837
        %6350 = vst [vmem:[%s134 + $0x228] sm:$0xff] %v5838
        %6351 = vst [vmem:[%s134 + $0x230] sm:$0xff] %v5839
        %6352 = vst [vmem:[%s134 + $0x238] sm:$0xff] %v5840
        %6353 = vst [vmem:[%s134 + $0x240] sm:$0xff] %v5841
        %6354 = vst [vmem:[%s134 + $0x248] sm:$0xff] %v5842
        %6355 = vst [vmem:[%s134 + $0x250] sm:$0xff] %v5843
        %6356 = vst [vmem:[%s134 + $0x258] sm:$0xff] %v5844
        %6357 = vst [vmem:[%s134 + $0x260] sm:$0xff] %v5845
        %6358 = vst [vmem:[%s134 + $0x268] sm:$0xff] %v5846
        %6359 = vst [vmem:[%s134 + $0x270] sm:$0xff] %v5847
        %6360 = vst [vmem:[%s134 + $0x278] sm:$0xff] %v5848
        %6361 = vst [vmem:[%s134 + $0x280] sm:$0xff] %v5849
        %6362 = vst [vmem:[%s134 + $0x288] sm:$0xff] %v5850
        %6363 = vst [vmem:[%s134 + $0x290] sm:$0xff] %v5851
        %6364 = vst [vmem:[%s134 + $0x298] sm:$0xff] %v5852
        %6365 = vst [vmem:[%s134 + $0x2a0] sm:$0xff] %v5853
        %6366 = vst [vmem:[%s134 + $0x2a8] sm:$0xff] %v5854
        %6367 = vst [vmem:[%s134 + $0x2b0] sm:$0xff] %v5855
        %6368 = vst [vmem:[%s134 + $0x2b8] sm:$0xff] %v5856
        %6369 = vst [vmem:[%s134 + $0x2c0] sm:$0xff] %v5857
        %6370 = vst [vmem:[%s134 + $0x2c8] sm:$0xff] %v5858
        %6371 = vst [vmem:[%s134 + $0x2d0] sm:$0xff] %v5859
        %6372 = vst [vmem:[%s134 + $0x2d8] sm:$0xff] %v5860
        %6373 = vst [vmem:[%s134 + $0x2e0] sm:$0xff] %v5861
        %6374 = vst [vmem:[%s134 + $0x2e8] sm:$0xff] %v5862
        %6375 = vst [vmem:[%s134 + $0x2f0] sm:$0xff] %v5863
        %6376 = vst [vmem:[%s134 + $0x2f8] sm:$0xff] %v5864
        %6377 = vst [vmem:[%s134 + $0x300] sm:$0xff] %v5865
        %6378 = vst [vmem:[%s134 + $0x308] sm:$0xff] %v5866
        %6379 = vst [vmem:[%s134 + $0x310] sm:$0xff] %v5867
        %6380 = vst [vmem:[%s134 + $0x318] sm:$0xff] %v5868
        %6381 = vst [vmem:[%s134 + $0x320] sm:$0xff] %v5869
        %6382 = vst [vmem:[%s134 + $0x328] sm:$0xff] %v5870
        %6383 = vst [vmem:[%s134 + $0x330] sm:$0xff] %v5871
        %6384 = vst [vmem:[%s134 + $0x338] sm:$0xff] %v5872
        %6385 = vst [vmem:[%s134 + $0x340] sm:$0xff] %v5873
        %6386 = vst [vmem:[%s134 + $0x348] sm:$0xff] %v5874
        %6387 = vst [vmem:[%s134 + $0x350] sm:$0xff] %v5875
        %6388 = vst [vmem:[%s134 + $0x358] sm:$0xff] %v5876
        %6389 = vst [vmem:[%s134 + $0x360] sm:$0xff] %v5877
        %6390 = vst [vmem:[%s134 + $0x368] sm:$0xff] %v5878
        %6391 = vst [vmem:[%s134 + $0x370] sm:$0xff] %v5879
        %6392 = vst [vmem:[%s134 + $0x378] sm:$0xff] %v5880
        %6393 = vst [vmem:[%s134 + $0x380] sm:$0xff] %v5881
        %6394 = vst [vmem:[%s134 + $0x388] sm:$0xff] %v5882
        %6395 = vst [vmem:[%s134 + $0x390] sm:$0xff] %v5883
        %6396 = vst [vmem:[%s134 + $0x398] sm:$0xff] %v5884
        %6397 = vst [vmem:[%s134 + $0x3a0] sm:$0xff] %v5885
        %6398 = vst [vmem:[%s134 + $0x3a8] sm:$0xff] %v5886
        %6399 = vst [vmem:[%s134 + $0x3b0] sm:$0xff] %v5887
        %6400 = vst [vmem:[%s134 + $0x3b8] sm:$0xff] %v5888
        %6401 = vst [vmem:[%s134 + $0x3c0] sm:$0xff] %v5889
        %6402 = vst [vmem:[%s134 + $0x3c8] sm:$0xff] %v5890
        %6403 = vst [vmem:[%s134 + $0x3d0] sm:$0xff] %v5891
        %6404 = vst [vmem:[%s134 + $0x3d8] sm:$0xff] %v5892
        %6405 = vst [vmem:[%s134 + $0x3e0] sm:$0xff] %v5893
        %6406 = vst [vmem:[%s134 + $0x3e8] sm:$0xff] %v5894
        %6407 = vst [vmem:[%s134 + $0x3f0] sm:$0xff] %v5895
        %6408 = vst [vmem:[%s134 + $0x3f8] sm:$0xff] %v5896
        %6409 = vst [vmem:[%s134 + $0x400] sm:$0xff] %v5897
        %6410 = vst [vmem:[%s134 + $0x408] sm:$0xff] %v5898
        %6411 = vst [vmem:[%s134 + $0x410] sm:$0xff] %v5899
        %6412 = vst [vmem:[%s134 + $0x418] sm:$0xff] %v5900
        %6413 = vst [vmem:[%s134 + $0x420] sm:$0xff] %v5901
        %6414 = vst [vmem:[%s134 + $0x428] sm:$0xff] %v5902
        %6415 = vst [vmem:[%s134 + $0x430] sm:$0xff] %v5903
        %6416 = vst [vmem:[%s134 + $0x438] sm:$0xff] %v5904
        %6417 = vst [vmem:[%s134 + $0x440] sm:$0xff] %v5905
        %6418 = vst [vmem:[%s134 + $0x448] sm:$0xff] %v5906
        %6419 = vst [vmem:[%s134 + $0x450] sm:$0xff] %v5907
        %6420 = vst [vmem:[%s134 + $0x458] sm:$0xff] %v5908
        %6421 = vst [vmem:[%s134 + $0x460] sm:$0xff] %v5909
        %6422 = vst [vmem:[%s134 + $0x468] sm:$0xff] %v5910
        %6423 = vst [vmem:[%s134 + $0x470] sm:$0xff] %v5911
        %6424 = vst [vmem:[%s134 + $0x478] sm:$0xff] %v5912
        %6425 = vst [vmem:[%s134 + $0x480] sm:$0xff] %v5913
        %6426 = vst [vmem:[%s134 + $0x488] sm:$0xff] %v5914
        %6427 = vst [vmem:[%s134 + $0x490] sm:$0xff] %v5915
        %6428 = vst [vmem:[%s134 + $0x498] sm:$0xff] %v5916
        %6429 = vst [vmem:[%s134 + $0x4a0] sm:$0xff] %v5917
        %6430 = vst [vmem:[%s134 + $0x4a8] sm:$0xff] %v5918
        %6431 = vst [vmem:[%s134 + $0x4b0] sm:$0xff] %v5919
        %6432 = vst [vmem:[%s134 + $0x4b8] sm:$0xff] %v5920
        %6433 = vst [vmem:[%s134 + $0x4c0] sm:$0xff] %v5921
        %6434 = vst [vmem:[%s134 + $0x4c8] sm:$0xff] %v5922
        %6435 = vst [vmem:[%s134 + $0x4d0] sm:$0xff] %v5923
        %6436 = vst [vmem:[%s134 + $0x4d8] sm:$0xff] %v5924
        %6437 = vst [vmem:[%s134 + $0x4e0] sm:$0xff] %v5925
        %6438 = vst [vmem:[%s134 + $0x4e8] sm:$0xff] %v5926
        %6439 = vst [vmem:[%s134 + $0x4f0] sm:$0xff] %v5927
        %6440 = vst [vmem:[%s134 + $0x4f8] sm:$0xff] %v5928
        %6441 = vst [vmem:[%s134 + $0x500] sm:$0xff] %v5929
        %6442 = vst [vmem:[%s134 + $0x508] sm:$0xff] %v5930
        %6443 = vst [vmem:[%s134 + $0x510] sm:$0xff] %v5931
        %6444 = vst [vmem:[%s134 + $0x518] sm:$0xff] %v5932
        %6445 = vst [vmem:[%s134 + $0x520] sm:$0xff] %v5933
        %6446 = vst [vmem:[%s134 + $0x528] sm:$0xff] %v5934
        %6447 = vst [vmem:[%s134 + $0x530] sm:$0xff] %v5935
        %6448 = vst [vmem:[%s134 + $0x538] sm:$0xff] %v5936
        %6449 = vst [vmem:[%s134 + $0x540] sm:$0xff] %v5937
        %6450 = vst [vmem:[%s134 + $0x548] sm:$0xff] %v5938
        %6451 = vst [vmem:[%s134 + $0x550] sm:$0xff] %v5939
        %6452 = vst [vmem:[%s134 + $0x558] sm:$0xff] %v5940
        %6453 = vst [vmem:[%s134 + $0x560] sm:$0xff] %v5941
        %6454 = vst [vmem:[%s134 + $0x568] sm:$0xff] %v5942
        %6455 = vst [vmem:[%s134 + $0x570] sm:$0xff] %v5943
        %6456 = vst [vmem:[%s134 + $0x578] sm:$0xff] %v5944
        %6457 = vst [vmem:[%s134 + $0x580] sm:$0xff] %v5945
        %6458 = vst [vmem:[%s134 + $0x588] sm:$0xff] %v5946
        %6459 = vst [vmem:[%s134 + $0x590] sm:$0xff] %v5947
        %6460 = vst [vmem:[%s134 + $0x598] sm:$0xff] %v5948
        %6461 = vst [vmem:[%s134 + $0x5a0] sm:$0xff] %v5949
        %6462 = vst [vmem:[%s134 + $0x5a8] sm:$0xff] %v5950
        %6463 = vst [vmem:[%s134 + $0x5b0] sm:$0xff] %v5951
        %6464 = vst [vmem:[%s134 + $0x5b8] sm:$0xff] %v5952
        %6465 = vst [vmem:[%s134 + $0x5c0] sm:$0xff] %v5953
        %6466 = vst [vmem:[%s134 + $0x5c8] sm:$0xff] %v5954
        %6467 = vst [vmem:[%s134 + $0x5d0] sm:$0xff] %v5955
        %6468 = vst [vmem:[%s134 + $0x5d8] sm:$0xff] %v5956
        %6469 = vst [vmem:[%s134 + $0x5e0] sm:$0xff] %v5957
        %6470 = vst [vmem:[%s134 + $0x5e8] sm:$0xff] %v5958
        %6471 = vst [vmem:[%s134 + $0x5f0] sm:$0xff] %v5959
        %6472 = vst [vmem:[%s134 + $0x5f8] sm:$0xff] %v5960
        %6473 = vst [vmem:[%s134 + $0x600] sm:$0xff] %v5961
        %6474 = vst [vmem:[%s134 + $0x608] sm:$0xff] %v5962
        %6475 = vst [vmem:[%s134 + $0x610] sm:$0xff] %v5963
        %6476 = vst [vmem:[%s134 + $0x618] sm:$0xff] %v5964
        %6477 = vst [vmem:[%s134 + $0x620] sm:$0xff] %v5965
        %6478 = vst [vmem:[%s134 + $0x628] sm:$0xff] %v5966
        %6479 = vst [vmem:[%s134 + $0x630] sm:$0xff] %v5967
        %6480 = vst [vmem:[%s134 + $0x638] sm:$0xff] %v5968
        %6481 = vst [vmem:[%s134 + $0x640] sm:$0xff] %v5969
        %6482 = vst [vmem:[%s134 + $0x648] sm:$0xff] %v5970
        %6483 = vst [vmem:[%s134 + $0x650] sm:$0xff] %v5971
        %6484 = vst [vmem:[%s134 + $0x658] sm:$0xff] %v5972
        %6485 = vst [vmem:[%s134 + $0x660] sm:$0xff] %v5973
        %6486 = vst [vmem:[%s134 + $0x668] sm:$0xff] %v5974
        %6487 = vst [vmem:[%s134 + $0x670] sm:$0xff] %v5975
        %6488 = vst [vmem:[%s134 + $0x678] sm:$0xff] %v5976
        %6489 = vst [vmem:[%s134 + $0x680] sm:$0xff] %v5977
        %6490 = vst [vmem:[%s134 + $0x688] sm:$0xff] %v5978
        %6491 = vst [vmem:[%s134 + $0x690] sm:$0xff] %v5979
        %6492 = vst [vmem:[%s134 + $0x698] sm:$0xff] %v5980
        %6493 = vst [vmem:[%s134 + $0x6a0] sm:$0xff] %v5981
        %6494 = vst [vmem:[%s134 + $0x6a8] sm:$0xff] %v5982
        %6495 = vst [vmem:[%s134 + $0x6b0] sm:$0xff] %v5983
        %6496 = vst [vmem:[%s134 + $0x6b8] sm:$0xff] %v5984
        %6497 = vst [vmem:[%s134 + $0x6c0] sm:$0xff] %v5985
        %6498 = vst [vmem:[%s134 + $0x6c8] sm:$0xff] %v5986
        %6499 = vst [vmem:[%s134 + $0x6d0] sm:$0xff] %v5987
        %6500 = vst [vmem:[%s134 + $0x6d8] sm:$0xff] %v5988
        %6501 = vst [vmem:[%s134 + $0x6e0] sm:$0xff] %v5989
        %6502 = vst [vmem:[%s134 + $0x6e8] sm:$0xff] %v5990
        %6503 = vst [vmem:[%s134 + $0x6f0] sm:$0xff] %v5991
        %6504 = vst [vmem:[%s134 + $0x6f8] sm:$0xff] %v5992
        %6505 = vst [vmem:[%s134 + $0x700] sm:$0xff] %v5993
        %6506 = vst [vmem:[%s134 + $0x708] sm:$0xff] %v5994
        %6507 = vst [vmem:[%s134 + $0x710] sm:$0xff] %v5995
        %6508 = vst [vmem:[%s134 + $0x718] sm:$0xff] %v5996
        %6509 = vst [vmem:[%s134 + $0x720] sm:$0xff] %v5997
        %6510 = vst [vmem:[%s134 + $0x728] sm:$0xff] %v5998
        %6511 = vst [vmem:[%s134 + $0x730] sm:$0xff] %v5999
        %6512 = vst [vmem:[%s134 + $0x738] sm:$0xff] %v6000
        %6513 = vst [vmem:[%s134 + $0x740] sm:$0xff] %v6001
        %6514 = vst [vmem:[%s134 + $0x748] sm:$0xff] %v6002
        %6515 = vst [vmem:[%s134 + $0x750] sm:$0xff] %v6003
        %6516 = vst [vmem:[%s134 + $0x758] sm:$0xff] %v6004
        %6517 = vst [vmem:[%s134 + $0x760] sm:$0xff] %v6005
        %6518 = vst [vmem:[%s134 + $0x768] sm:$0xff] %v6006
        %6519 = vst [vmem:[%s134 + $0x770] sm:$0xff] %v6007
        %6520 = vst [vmem:[%s134 + $0x778] sm:$0xff] %v6008
        %6521 = vst [vmem:[%s134 + $0x780] sm:$0xff] %v6009
        %6522 = vst [vmem:[%s134 + $0x788] sm:$0xff] %v6010
        %6523 = vst [vmem:[%s134 + $0x790] sm:$0xff] %v6011
        %6524 = vst [vmem:[%s134 + $0x798] sm:$0xff] %v6012
        %6525 = vst [vmem:[%s134 + $0x7a0] sm:$0xff] %v6013
        %6526 = vst [vmem:[%s134 + $0x7a8] sm:$0xff] %v6014
        %6527 = vst [vmem:[%s134 + $0x7b0] sm:$0xff] %v6015
        %6528 = vst [vmem:[%s134 + $0x7b8] sm:$0xff] %v6016
        %6529 = vst [vmem:[%s134 + $0x7c0] sm:$0xff] %v6017
        %6530 = vst [vmem:[%s134 + $0x7c8] sm:$0xff] %v6018
        %6531 = vst [vmem:[%s134 + $0x7d0] sm:$0xff] %v6019
        %6532 = vst [vmem:[%s134 + $0x7d8] sm:$0xff] %v6020
        %6533 = vst [vmem:[%s134 + $0x7e0] sm:$0xff] %v6021
        %6534 = vst [vmem:[%s134 + $0x7e8] sm:$0xff] %v6022
        %6535 = vst [vmem:[%s134 + $0x7f0] sm:$0xff] %v6023
        %6536 = vst [vmem:[%s134 + $0x7f8] sm:$0xff] %v6024
        %6537 = vst [vmem:[%s134 + $0x800] sm:$0xff] %v6025
        %6538 = vst [vmem:[%s134 + $0x808] sm:$0xff] %v6026
        %6539 = vst [vmem:[%s134 + $0x810] sm:$0xff] %v6027
        %6540 = vst [vmem:[%s134 + $0x818] sm:$0xff] %v6028
        %6541 = vst [vmem:[%s134 + $0x820] sm:$0xff] %v6029
        %6542 = vst [vmem:[%s134 + $0x828] sm:$0xff] %v6030
        %6543 = vst [vmem:[%s134 + $0x830] sm:$0xff] %v6031
        %6544 = vst [vmem:[%s134 + $0x838] sm:$0xff] %v6032
        %6545 = vst [vmem:[%s134 + $0x840] sm:$0xff] %v6033
        %6546 = vst [vmem:[%s134 + $0x848] sm:$0xff] %v6034
        %6547 = vst [vmem:[%s134 + $0x850] sm:$0xff] %v6035
        %6548 = vst [vmem:[%s134 + $0x858] sm:$0xff] %v6036
        %6549 = vst [vmem:[%s134 + $0x860] sm:$0xff] %v6037
        %6550 = vst [vmem:[%s134 + $0x868] sm:$0xff] %v6038
        %6551 = vst [vmem:[%s134 + $0x870] sm:$0xff] %v6039
        %6552 = vst [vmem:[%s134 + $0x878] sm:$0xff] %v6040
        %6553 = vst [vmem:[%s134 + $0x880] sm:$0xff] %v6041
        %6554 = vst [vmem:[%s134 + $0x888] sm:$0xff] %v6042
        %6555 = vst [vmem:[%s134 + $0x890] sm:$0xff] %v6043
        %6556 = vst [vmem:[%s134 + $0x898] sm:$0xff] %v6044
        %6557 = vst [vmem:[%s134 + $0x8a0] sm:$0xff] %v6045
        %6558 = vst [vmem:[%s134 + $0x8a8] sm:$0xff] %v6046
        %6559 = vst [vmem:[%s134 + $0x8b0] sm:$0xff] %v6047
        %6560 = vst [vmem:[%s134 + $0x8b8] sm:$0xff] %v6048
        %6561 = vst [vmem:[%s134 + $0x8c0] sm:$0xff] %v6049
        %6562 = vst [vmem:[%s134 + $0x8c8] sm:$0xff] %v6050
        %6563 = vst [vmem:[%s134 + $0x8d0] sm:$0xff] %v6051
        %6564 = vst [vmem:[%s134 + $0x8d8] sm:$0xff] %v6052
        %6565 = vst [vmem:[%s134 + $0x8e0] sm:$0xff] %v6053
        %6566 = vst [vmem:[%s134 + $0x8e8] sm:$0xff] %v6054
        %6567 = vst [vmem:[%s134 + $0x8f0] sm:$0xff] %v6055
        %6568 = vst [vmem:[%s134 + $0x8f8] sm:$0xff] %v6056
        %6569 = vst [vmem:[%s134 + $0x900] sm:$0xff] %v6057
        %6570 = vst [vmem:[%s134 + $0x908] sm:$0xff] %v6058
        %6571 = vst [vmem:[%s134 + $0x910] sm:$0xff] %v6059
        %6572 = vst [vmem:[%s134 + $0x918] sm:$0xff] %v6060
        %6573 = vst [vmem:[%s134 + $0x920] sm:$0xff] %v6061
        %6574 = vst [vmem:[%s134 + $0x928] sm:$0xff] %v6062
        %6575 = vst [vmem:[%s134 + $0x930] sm:$0xff] %v6063
        %6576 = vst [vmem:[%s134 + $0x938] sm:$0xff] %v6064
        %6577 = vst [vmem:[%s134 + $0x940] sm:$0xff] %v6065
        %6578 = vst [vmem:[%s134 + $0x948] sm:$0xff] %v6066
        %6579 = vst [vmem:[%s134 + $0x950] sm:$0xff] %v6067
        %6580 = vst [vmem:[%s134 + $0x958] sm:$0xff] %v6068
        %6581 = vst [vmem:[%s134 + $0x960] sm:$0xff] %v6069
        %6582 = vst [vmem:[%s134 + $0x968] sm:$0xff] %v6070
        %6583 = vst [vmem:[%s134 + $0x970] sm:$0xff] %v6071
        %6584 = vst [vmem:[%s134 + $0x978] sm:$0xff] %v6072
        %6585 = vst [vmem:[%s134 + $0x980] sm:$0xff] %v6073
        %6586 = vst [vmem:[%s134 + $0x988] sm:$0xff] %v6074
        %6587 = vst [vmem:[%s134 + $0x990] sm:$0xff] %v6075
        %6588 = vst [vmem:[%s134 + $0x998] sm:$0xff] %v6076
        %6589 = vst [vmem:[%s134 + $0x9a0] sm:$0xff] %v6077
        %6590 = vst [vmem:[%s134 + $0x9a8] sm:$0xff] %v6078
        %6591 = vst [vmem:[%s134 + $0x9b0] sm:$0xff] %v6079
        %6592 = vst [vmem:[%s134 + $0x9b8] sm:$0xff] %v6080
        %6593 = vst [vmem:[%s134 + $0x9c0] sm:$0xff] %v6081
        %6594 = vst [vmem:[%s134 + $0x9c8] sm:$0xff] %v6082
        %6595 = vst [vmem:[%s134 + $0x9d0] sm:$0xff] %v6083
        %6596 = vst [vmem:[%s134 + $0x9d8] sm:$0xff] %v6084
        %6597 = vst [vmem:[%s134 + $0x9e0] sm:$0xff] %v6085
        %6598 = vst [vmem:[%s134 + $0x9e8] sm:$0xff] %v6086
        %6599 = vst [vmem:[%s134 + $0x9f0] sm:$0xff] %v6087
        %6600 = vst [vmem:[%s134 + $0x9f8] sm:$0xff] %v6088
        %6601 = vst [vmem:[%s134 + $0xa00] sm:$0xff] %v6089
        %6602 = vst [vmem:[%s134 + $0xa08] sm:$0xff] %v6090
        %6603 = vst [vmem:[%s134 + $0xa10] sm:$0xff] %v6091
        %6604 = vst [vmem:[%s134 + $0xa18] sm:$0xff] %v6092
        %6605 = vst [vmem:[%s134 + $0xa20] sm:$0xff] %v6093
        %6606 = vst [vmem:[%s134 + $0xa28] sm:$0xff] %v6094
        %6607 = vst [vmem:[%s134 + $0xa30] sm:$0xff] %v6095
        %6608 = vst [vmem:[%s134 + $0xa38] sm:$0xff] %v6096
        %6609 = vst [vmem:[%s134 + $0xa40] sm:$0xff] %v6097
        %6610 = vst [vmem:[%s134 + $0xa48] sm:$0xff] %v6098
        %6611 = vst [vmem:[%s134 + $0xa50] sm:$0xff] %v6099
        %6612 = vst [vmem:[%s134 + $0xa58] sm:$0xff] %v6100
        %6613 = vst [vmem:[%s134 + $0xa60] sm:$0xff] %v6101
        %6614 = vst [vmem:[%s134 + $0xa68] sm:$0xff] %v6102
        %6615 = vst [vmem:[%s134 + $0xa70] sm:$0xff] %v6103
        %6616 = vst [vmem:[%s134 + $0xa78] sm:$0xff] %v6104
        %6617 = vst [vmem:[%s134 + $0xa80] sm:$0xff] %v6105
        %6618 = vst [vmem:[%s134 + $0xa88] sm:$0xff] %v6106
        %6619 = vst [vmem:[%s134 + $0xa90] sm:$0xff] %v6107
        %6620 = vst [vmem:[%s134 + $0xa98] sm:$0xff] %v6108
        %6621 = vst [vmem:[%s134 + $0xaa0] sm:$0xff] %v6109
        %6622 = vst [vmem:[%s134 + $0xaa8] sm:$0xff] %v6110
        %6623 = vst [vmem:[%s134 + $0xab0] sm:$0xff] %v6111
        %6624 = vst [vmem:[%s134 + $0xab8] sm:$0xff] %v6112
        %6625 = vst [vmem:[%s134 + $0xac0] sm:$0xff] %v6113
        %6626 = vst [vmem:[%s134 + $0xac8] sm:$0xff] %v6114
        %6627 = vst [vmem:[%s134 + $0xad0] sm:$0xff] %v6115
        %6628 = vst [vmem:[%s134 + $0xad8] sm:$0xff] %v6116
        %6629 = vst [vmem:[%s134 + $0xae0] sm:$0xff] %v6117
        %6630 = vst [vmem:[%s134 + $0xae8] sm:$0xff] %v6118
        %6631 = vst [vmem:[%s134 + $0xaf0] sm:$0xff] %v6119
        %6632 = vst [vmem:[%s134 + $0xaf8] sm:$0xff] %v6120
        %6633 = vst [vmem:[%s134 + $0xb00] sm:$0xff] %v6121
        %6634 = vst [vmem:[%s134 + $0xb08] sm:$0xff] %v6122
        %6635 = vst [vmem:[%s134 + $0xb10] sm:$0xff] %v6123
        %6636 = vst [vmem:[%s134 + $0xb18] sm:$0xff] %v6124
        %6637 = vst [vmem:[%s134 + $0xb20] sm:$0xff] %v6125
        %6638 = vst [vmem:[%s134 + $0xb28] sm:$0xff] %v6126
        %6639 = vst [vmem:[%s134 + $0xb30] sm:$0xff] %v6127
        %6640 = vst [vmem:[%s134 + $0xb38] sm:$0xff] %v6128
        %6641 = vst [vmem:[%s134 + $0xb40] sm:$0xff] %v6129
        %6642 = vst [vmem:[%s134 + $0xb48] sm:$0xff] %v6130
        %6643 = vst [vmem:[%s134 + $0xb50] sm:$0xff] %v6131
        %6644 = vst [vmem:[%s134 + $0xb58] sm:$0xff] %v6132
        %6645 = vst [vmem:[%s134 + $0xb60] sm:$0xff] %v6133
        %6646 = vst [vmem:[%s134 + $0xb68] sm:$0xff] %v6134
        %6647 = vst [vmem:[%s134 + $0xb70] sm:$0xff] %v6135
        %6648 = vst [vmem:[%s134 + $0xb78] sm:$0xff] %v6136
        %6649 = vst [vmem:[%s134 + $0xb80] sm:$0xff] %v6137
        %6650 = vst [vmem:[%s134 + $0xb88] sm:$0xff] %v6138
        %6651 = vst [vmem:[%s134 + $0xb90] sm:$0xff] %v6139
        %6652 = vst [vmem:[%s134 + $0xb98] sm:$0xff] %v6140
        %6653 = vst [vmem:[%s134 + $0xba0] sm:$0xff] %v6141
        %6654 = vst [vmem:[%s134 + $0xba8] sm:$0xff] %v6142
        %6655 = vst [vmem:[%s134 + $0xbb0] sm:$0xff] %v6143
        %6656 = vst [vmem:[%s134 + $0xbb8] sm:$0xff] %v6144
        %6657 = vst [vmem:[%s134 + $0xbc0] sm:$0xff] %v6145
        %6658 = vst [vmem:[%s134 + $0xbc8] sm:$0xff] %v6146
        %6659 = vst [vmem:[%s134 + $0xbd0] sm:$0xff] %v6147
        %6660 = vst [vmem:[%s134 + $0xbd8] sm:$0xff] %v6148
        %6661 = vst [vmem:[%s134 + $0xbe0] sm:$0xff] %v6149
        %6662 = vst [vmem:[%s134 + $0xbe8] sm:$0xff] %v6150
        %6663 = vst [vmem:[%s134 + $0xbf0] sm:$0xff] %v6151
        %6664 = vst [vmem:[%s134 + $0xbf8] sm:$0xff] %v6152
        %6665 = vst [vmem:[%s134 + $0xc00] sm:$0xff] %v6153
        %6666 = vst [vmem:[%s134 + $0xc08] sm:$0xff] %v6154
        %6667 = vst [vmem:[%s134 + $0xc10] sm:$0xff] %v6155
        %6668 = vst [vmem:[%s134 + $0xc18] sm:$0xff] %v6156
        %6669 = vst [vmem:[%s134 + $0xc20] sm:$0xff] %v6157
        %6670 = vst [vmem:[%s134 + $0xc28] sm:$0xff] %v6158
        %6671 = vst [vmem:[%s134 + $0xc30] sm:$0xff] %v6159
        %6672 = vst [vmem:[%s134 + $0xc38] sm:$0xff] %v6160
        %6673 = vst [vmem:[%s134 + $0xc40] sm:$0xff] %v6161
        %6674 = vst [vmem:[%s134 + $0xc48] sm:$0xff] %v6162
        %6675 = vst [vmem:[%s134 + $0xc50] sm:$0xff] %v6163
        %6676 = vst [vmem:[%s134 + $0xc58] sm:$0xff] %v6164
        %6677 = vst [vmem:[%s134 + $0xc60] sm:$0xff] %v6165
        %6678 = vst [vmem:[%s134 + $0xc68] sm:$0xff] %v6166
        %6679 = vst [vmem:[%s134 + $0xc70] sm:$0xff] %v6167
        %6680 = vst [vmem:[%s134 + $0xc78] sm:$0xff] %v6168
        %6681 = vst [vmem:[%s134 + $0xc80] sm:$0xff] %v6169
        %6682 = vst [vmem:[%s134 + $0xc88] sm:$0xff] %v6170
        %6683 = vst [vmem:[%s134 + $0xc90] sm:$0xff] %v6171
        %6684 = vst [vmem:[%s134 + $0xc98] sm:$0xff] %v6172
        %6685 = vst [vmem:[%s134 + $0xca0] sm:$0xff] %v6173
        %6686 = vst [vmem:[%s134 + $0xca8] sm:$0xff] %v6174
        %6687 = vst [vmem:[%s134 + $0xcb0] sm:$0xff] %v6175
        %6688 = vst [vmem:[%s134 + $0xcb8] sm:$0xff] %v6176
        %6689 = vst [vmem:[%s134 + $0xcc0] sm:$0xff] %v6177
        %6690 = vst [vmem:[%s134 + $0xcc8] sm:$0xff] %v6178
        %6691 = vst [vmem:[%s134 + $0xcd0] sm:$0xff] %v6179
        %6692 = vst [vmem:[%s134 + $0xcd8] sm:$0xff] %v6180
        %6693 = vst [vmem:[%s134 + $0xce0] sm:$0xff] %v6181
        %6694 = vst [vmem:[%s134 + $0xce8] sm:$0xff] %v6182
        %6695 = vst [vmem:[%s134 + $0xcf0] sm:$0xff] %v6183
        %6696 = vst [vmem:[%s134 + $0xcf8] sm:$0xff] %v6184
        %6697 = vst [vmem:[%s134 + $0xd00] sm:$0xff] %v6185
        %6698 = vst [vmem:[%s134 + $0xd08] sm:$0xff] %v6186
        %6699 = vst [vmem:[%s134 + $0xd10] sm:$0xff] %v6187
        %6700 = vst [vmem:[%s134 + $0xd18] sm:$0xff] %v6188
        %6701 = vst [vmem:[%s134 + $0xd20] sm:$0xff] %v6189
        %6702 = vst [vmem:[%s134 + $0xd28] sm:$0xff] %v6190
        %6703 = vst [vmem:[%s134 + $0xd30] sm:$0xff] %v6191
        %6704 = vst [vmem:[%s134 + $0xd38] sm:$0xff] %v6192
        %6705 = vst [vmem:[%s134 + $0xd40] sm:$0xff] %v6193
        %6706 = vst [vmem:[%s134 + $0xd48] sm:$0xff] %v6194
        %6707 = vst [vmem:[%s134 + $0xd50] sm:$0xff] %v6195
        %6708 = vst [vmem:[%s134 + $0xd58] sm:$0xff] %v6196
        %6709 = vst [vmem:[%s134 + $0xd60] sm:$0xff] %v6197
        %6710 = vst [vmem:[%s134 + $0xd68] sm:$0xff] %v6198
        %6711 = vst [vmem:[%s134 + $0xd70] sm:$0xff] %v6199
        %6712 = vst [vmem:[%s134 + $0xd78] sm:$0xff] %v6200
        %6713 = vst [vmem:[%s134 + $0xd80] sm:$0xff] %v6201
        %6714 = vst [vmem:[%s134 + $0xd88] sm:$0xff] %v6202
        %6715 = vst [vmem:[%s134 + $0xd90] sm:$0xff] %v6203
        %6716 = vst [vmem:[%s134 + $0xd98] sm:$0xff] %v6204
        %6717 = vst [vmem:[%s134 + $0xda0] sm:$0xff] %v6205
        %6718 = vst [vmem:[%s134 + $0xda8] sm:$0xff] %v6206
        %6719 = vst [vmem:[%s134 + $0xdb0] sm:$0xff] %v6207
        %6720 = vst [vmem:[%s134 + $0xdb8] sm:$0xff] %v6208
        %6721 = vst [vmem:[%s134 + $0xdc0] sm:$0xff] %v6209
        %6722 = vst [vmem:[%s134 + $0xdc8] sm:$0xff] %v6210
        %6723 = vst [vmem:[%s134 + $0xdd0] sm:$0xff] %v6211
        %6724 = vst [vmem:[%s134 + $0xdd8] sm:$0xff] %v6212
        %6725 = vst [vmem:[%s134 + $0xde0] sm:$0xff] %v6213
        %6726 = vst [vmem:[%s134 + $0xde8] sm:$0xff] %v6214
        %6727 = vst [vmem:[%s134 + $0xdf0] sm:$0xff] %v6215
        %6728 = vst [vmem:[%s134 + $0xdf8] sm:$0xff] %v6216
        %6729 = vst [vmem:[%s134 + $0xe00] sm:$0xff] %v6217
        %6730 = vst [vmem:[%s134 + $0xe08] sm:$0xff] %v6218
        %6731 = vst [vmem:[%s134 + $0xe10] sm:$0xff] %v6219
        %6732 = vst [vmem:[%s134 + $0xe18] sm:$0xff] %v6220
        %6733 = vst [vmem:[%s134 + $0xe20] sm:$0xff] %v6221
        %6734 = vst [vmem:[%s134 + $0xe28] sm:$0xff] %v6222
        %6735 = vst [vmem:[%s134 + $0xe30] sm:$0xff] %v6223
        %6736 = vst [vmem:[%s134 + $0xe38] sm:$0xff] %v6224
        %6737 = vst [vmem:[%s134 + $0xe40] sm:$0xff] %v6225
        %6738 = vst [vmem:[%s134 + $0xe48] sm:$0xff] %v6226
        %6739 = vst [vmem:[%s134 + $0xe50] sm:$0xff] %v6227
        %6740 = vst [vmem:[%s134 + $0xe58] sm:$0xff] %v6228
        %6741 = vst [vmem:[%s134 + $0xe60] sm:$0xff] %v6229
        %6742 = vst [vmem:[%s134 + $0xe68] sm:$0xff] %v6230
        %6743 = vst [vmem:[%s134 + $0xe70] sm:$0xff] %v6231
        %6744 = vst [vmem:[%s134 + $0xe78] sm:$0xff] %v6232
        %6745 = vst [vmem:[%s134 + $0xe80] sm:$0xff] %v6233
        %6746 = vst [vmem:[%s134 + $0xe88] sm:$0xff] %v6234
        %6747 = vst [vmem:[%s134 + $0xe90] sm:$0xff] %v6235
        %6748 = vst [vmem:[%s134 + $0xe98] sm:$0xff] %v6236
        %6749 = vst [vmem:[%s134 + $0xea0] sm:$0xff] %v6237
        %6750 = vst [vmem:[%s134 + $0xea8] sm:$0xff] %v6238
        %6751 = vst [vmem:[%s134 + $0xeb0] sm:$0xff] %v6239
        %6752 = vst [vmem:[%s134 + $0xeb8] sm:$0xff] %v6240
        %6753 = vst [vmem:[%s134 + $0xec0] sm:$0xff] %v6241
        %6754 = vst [vmem:[%s134 + $0xec8] sm:$0xff] %v6242
        %6755 = vst [vmem:[%s134 + $0xed0] sm:$0xff] %v6243
        %6756 = vst [vmem:[%s134 + $0xed8] sm:$0xff] %v6244
        %6757 = vst [vmem:[%s134 + $0xee0] sm:$0xff] %v6245
        %6758 = vst [vmem:[%s134 + $0xee8] sm:$0xff] %v6246
        %6759 = vst [vmem:[%s134 + $0xef0] sm:$0xff] %v6247
        %6760 = vst [vmem:[%s134 + $0xef8] sm:$0xff] %v6248
        %6761 = vst [vmem:[%s134 + $0xf00] sm:$0xff] %v6249
        %6762 = vst [vmem:[%s134 + $0xf08] sm:$0xff] %v6250
        %6763 = vst [vmem:[%s134 + $0xf10] sm:$0xff] %v6251
        %6764 = vst [vmem:[%s134 + $0xf18] sm:$0xff] %v6252
        %6765 = vst [vmem:[%s134 + $0xf20] sm:$0xff] %v6253
        %6766 = vst [vmem:[%s134 + $0xf28] sm:$0xff] %v6254
        %6767 = vst [vmem:[%s134 + $0xf30] sm:$0xff] %v6255
        %6768 = vst [vmem:[%s134 + $0xf38] sm:$0xff] %v6256
        %6769 = vst [vmem:[%s134 + $0xf40] sm:$0xff] %v6257
        %6770 = vst [vmem:[%s134 + $0xf48] sm:$0xff] %v6258
        %6771 = vst [vmem:[%s134 + $0xf50] sm:$0xff] %v6259
        %6772 = vst [vmem:[%s134 + $0xf58] sm:$0xff] %v6260
        %6773 = vst [vmem:[%s134 + $0xf60] sm:$0xff] %v6261
        %6774 = vst [vmem:[%s134 + $0xf68] sm:$0xff] %v6262
        %6775 = vst [vmem:[%s134 + $0xf70] sm:$0xff] %v6263
        %6776 = vst [vmem:[%s134 + $0xf78] sm:$0xff] %v6264
        %6777 = vst [vmem:[%s134 + $0xf80] sm:$0xff] %v6265
        %6778 = vst [vmem:[%s134 + $0xf88] sm:$0xff] %v6266
        %6779 = vst [vmem:[%s134 + $0xf90] sm:$0xff] %v6267
        %6780 = vst [vmem:[%s134 + $0xf98] sm:$0xff] %v6268
        %6781 = vst [vmem:[%s134 + $0xfa0] sm:$0xff] %v6269
        %6782 = vst [vmem:[%s134 + $0xfa8] sm:$0xff] %v6270
        %6783 = vst [vmem:[%s134 + $0xfb0] sm:$0xff] %v6271
        %6784 = vst [vmem:[%s134 + $0xfb8] sm:$0xff] %v6272
        %6785 = vst [vmem:[%s134 + $0xfc0] sm:$0xff] %v6273
        %6786 = vst [vmem:[%s134 + $0xfc8] sm:$0xff] %v6274
        %6787 = vst [vmem:[%s134 + $0xfd0] sm:$0xff] %v6275
        %6788 = vst [vmem:[%s134 + $0xfd8] sm:$0xff] %v6276
        %6789 = vst [vmem:[%s134 + $0xfe0] sm:$0xff] %v6277
        %6790 = vst [vmem:[%s134 + $0xfe8] sm:$0xff] %v6278
        %6791 = vst [vmem:[%s134 + $0xff0] sm:$0xff] %v6279
        %6792 = vst [vmem:[%s134 + $0xff8] sm:$0xff] %v6280
        %s6793 = sand.u32 %s52, 1
        %s6794 = scalar_lea.sflag [#allocation4], %s6793
        %s6795 = sand.u32 %s52, 1
        %s6796 = smul.addr %s6795, 4096
        %s6797 = scalar_lea.vmem [#allocation5], %s6796
        // Predicated region
        $region29: #{tpu_custom_call.1} parent=23 // pred_check
          %p6798 = pneg %p62
        $region30: #{tpu_custom_call.1} parent=23 // pred_check_branch
          %6800 = sbr.rel (%p6798) target = $region32
        $region31: #{tpu_custom_call.1} parent=23 // pred_region
          %s6801 = smul.u32 512, %s18
          %s6803 = ssub.s32 65536, 65536
          %6804 = vsyncadd %s6794, %s6803
          %s6805 = smul.addr %s6801, 128
          %s6806 = scalar_lea.hbm %s1, %s6805
          %s6807 = sshll.u32 %s6797, 4
          %s6808 = int_to_ptr.vmem [resolvable:$true] %s6807
          %6813 = dma.vmem_to_hbm [thread:$0]  %s6808, 65536, %s6806, %s6794, 128, 128, 8
        $region32: #{tpu_custom_call.1} parent=23 // pred_fallthru
          _
      $region24: #{tpu_custom_call.1} parent=5 // pred_fallthru
        _
      %p6814 = scmp.le.s32.totalorder 2, %s13
      // Predicated region
      $region33: #{tpu_custom_call.1} parent=5 // pred_check
        %p6815 = pneg %p6814
      $region34: #{tpu_custom_call.1} parent=5 // pred_check_branch
        %6817 = sbr.rel (%p6815) target = $region36
      $region35: #{tpu_custom_call.1} parent=5 // pred_region
        %s6818 = ssub.s32 %s13, 2
        // Predicated region
        $region37: #{tpu_custom_call.1} parent=35 // pred_check
          %p6819 = pneg %p68
        $region38: #{tpu_custom_call.1} parent=35 // pred_check_branch
          %6821 = sbr.rel (%p6819) target = $region40
        $region39: #{tpu_custom_call.1} parent=35 // pred_region
          %s6822 = sand.u32 %s53, 1
          %s6823 = scalar_lea.sflag [#allocation4], %s6822
          %s6824 = sand.u32 %s53, 1
          %s6825 = smul.addr %s6824, 4096
          %s6826 = scalar_lea.vmem [#allocation5], %s6825
          %6827 = dma.done %s6823, 65536
        $region40: #{tpu_custom_call.1} parent=35 // pred_fallthru
          _
      $region36: #{tpu_custom_call.1} parent=5 // pred_fallthru
        _
    $region6: #{tpu_custom_call.1} parent=1 // loop_footer
      %s17 = sadd.s32 1, %s13
    $region7: #{tpu_custom_call.1} parent=1 // loop_footer_branch
      %12 = sbr.rel target = $region3
    $region8: #{tpu_custom_call.1} parent=1 // loop_exit
      _
    %6828 = vsyncpa [#allocation3], 1
    %s6829 = scalar_lea.sflag [#allocation3], 1
    %6830 = vsyncpa %s6829, 1
    %6831 = vsyncpa [#allocation4], 1
    %s6832 = scalar_lea.sflag [#allocation4], 1
    %6833 = vsyncpa %s6832, 1

</llo_original>
